<compile_context>
chip_gen: v6e
topology: v6e:2x2x1
jax: 0.10.0
libtpu: 0.0.40
codegen_flags: <defaults>
</compile_context>

<pallas_src>
import jax
import jax.numpy as jnp
from jax.experimental import pallas as pl
from jax.experimental.pallas import tpu as pltpu  # noqa: F401  (TPU backend targeted)


# ---------------------------------------------------------------------------
# Kernel (single invocation, unrolled recurrence over T timesteps)
# ---------------------------------------------------------------------------
def _decoder_kernel(
    # inputs (whole arrays, VMEM-resident for the entire recurrence)
    x0_ref,        # (B, H)       decode_input[:, 0]
    h0_ref,        # (B, H)
    c0_ref,        # (B, H)
    enc_ref,       # (B, L, H)
    w_x_ref,       # (H, L+H)     [w_attn_x | w_comb_x]
    b_x_ref,       # (1, L+H)     [b_attn   | b_comb  ]
    w_comb_a_ref,  # (H, H)
    w_h_ref,       # (H, 4H+L)    [w_hh1 (gate order i|f|g|o) | w_attn_h]
    w1_ih_ref,     # (H, 4H)      gate order i|f|g|o
    b1_ref,        # (1, 4H)
    w2_ref,        # (H, 4H)      w_ih2 + w_hh2 folded (x == h for LSTM2)
    b2_ref,        # (1, 4H)
    w3_ref,        # (H, 4H)      folded (x == h for LSTM3)
    b3_ref,        # (1, 4H)
    w_out_ref,     # (H, H)
    b_out_ref,     # (1, H)
    # outputs (final layout; no wrapper transposes)
    out_ref,       # (B, T, H)
    attn_ref,      # (B, T, L)
):
    f32 = jnp.float32
    B, H = x0_ref.shape
    T = out_ref.shape[1]
    L = attn_ref.shape[2]

    def lstm_cell(gates, c_in):
        # Packed nonlinearities: one sigmoid + one tanh over the full (B, 4H) vreg;
        # gate extraction is static lane slicing (XLU). Gate order i, f, g, o.
        sig = jax.nn.sigmoid(gates)
        th = jnp.tanh(gates)
        i_g = sig[:, 0 * H:1 * H]
        f_g = sig[:, 1 * H:2 * H]
        g_g = th[:, 2 * H:3 * H]
        o_g = sig[:, 3 * H:4 * H]
        c_new = f_g * c_in + i_g * g_g
        return o_g * jnp.tanh(c_new), c_new

    # ---- loop-invariant hoists (small constants only; the big LSTM/gate weights
    # ---- stay as per-use ref reads so the unrolled loop cannot spill the vregs) --
    enc = enc_ref[...]                                            # (B, L, H)
    b_x = jnp.broadcast_to(b_x_ref[...], (B, L + H))
    b1 = jnp.broadcast_to(b1_ref[...], (B, 4 * H))
    b2 = jnp.broadcast_to(b2_ref[...], (B, 4 * H))
    b3 = jnp.broadcast_to(b3_ref[...], (B, 4 * H))
    b_out = jnp.broadcast_to(b_out_ref[...], (B, H))
    w_comb_a = w_comb_a_ref[...]                                  # 1 vreg
    w_out = w_out_ref[...]                                        # 1 vreg

    x = x0_ref[...]            # (B, H)  autoregressive input
    h = h0_ref[...]            # (B, H)
    c = c0_ref[...]            # (B, H)

    # Fully unrolled: the time recurrence is inherently serial and T is small.
    # TODO(synk): for T >~ 16 switch to lax.fori_loop(..., unroll=2..4) with
    # dynamic out_ref stores to bound live ranges / program size.
    for t in range(T):
        # Shared-LHS fused matmuls (one MXU dot per LHS):
        #   xr = x @ [w_attn_x | w_comb_x] + [b_attn | b_comb]
        #   hr = h @ [w_hh1    | w_attn_h]        (all h-dependent MXU work up front)
        xr = jnp.dot(x, w_x_ref[...], preferred_element_type=f32) + b_x   # (B, L+H)
        hr = jnp.dot(h, w_h_ref[...], preferred_element_type=f32)         # (B, 4H+L)

        # ---- attention weights: exact softmax --------------------------------
        logits = xr[:, :L] + hr[:, 4 * H:]                                 # (B, L)
        m = jnp.max(logits, axis=-1, keepdims=True)
        e = jnp.exp(logits - m)
        inv = pl.reciprocal(jnp.sum(e, axis=-1, keepdims=True))            # exact
        attn_w = e * inv                                                   # (B, L)
        attn_ref[:, t, :] = attn_w.astype(attn_ref.dtype)

        # ---- apply attention over encoder outputs (tiny L -> VPU/XLU reduce) --
        applied = jnp.sum(attn_w[:, :, None] * enc, axis=1)                # (B, H)

        # ---- attn_combine + relu ----------------------------------------------
        comb = jnp.maximum(
            xr[:, L:] + jnp.dot(applied, w_comb_a, preferred_element_type=f32),
            0.0,
        )                                                                  # (B, H)

        # ---- stacked single-step LSTMs, lane-fused (B, 4H) gates ---------------
        g1 = (jnp.dot(comb, w1_ih_ref[...], preferred_element_type=f32)
              + hr[:, :4 * H] + b1)
        h1, c1 = lstm_cell(g1, c)
        g2 = jnp.dot(h1, w2_ref[...], preferred_element_type=f32) + b2
        h2, c2 = lstm_cell(g2, c1)
        g3 = jnp.dot(h2, w3_ref[...], preferred_element_type=f32) + b3
        h3, c3 = lstm_cell(g3, c2)

        # ---- output projection + relu ------------------------------------------
        out = jnp.maximum(
            jnp.dot(h3, w_out, preferred_element_type=f32) + b_out, 0.0)   # (B, H)
        out_ref[:, t, :] = out.astype(out_ref.dtype)

        # carry recurrent state to the next timestep
        x, h, c = out, h3, c3


# ---------------------------------------------------------------------------
# Wrapper
# ---------------------------------------------------------------------------
@jax.jit
def attn_decoder2_forward(decode_input, decode_hidden, encode_outputs, params):
    """decode_input: (B, T, H); decode_hidden: ((B,H),(B,H)); encode_outputs: (B, L, H)."""
    B, T, H = decode_input.shape
    L = encode_outputs.shape[1]
    h0, c0 = decode_hidden

    # Only timestep 0 is ever consumed (autoregressive, eval-mode).
    x0 = decode_input[:, 0, :]                                            # (B, H)

    # Pre-split the concatenated Linear weights, then lane-fuse RHS blocks that
    # share the same LHS so the kernel issues one dot per LHS.
    w_attn_x = params["w_attn"][:H]                                       # (H, L)
    w_attn_h = params["w_attn"][H:]                                       # (H, L)
    w_comb_x = params["w_comb"][:H]                                       # (H, H)
    w_comb_a = params["w_comb"][H:]                                       # (H, H)

    w_x = jnp.concatenate([w_attn_x, w_comb_x], axis=1)                   # (H, L+H)
    b_x = jnp.concatenate([params["b_attn"], params["b_comb"]], axis=1)   # (1, L+H)
    w_h = jnp.concatenate([params["w_hh1"], w_attn_h], axis=1)            # (H, 4H+L)

    # LSTM2/3 are called with x == h -> fold input+hidden weights (bit-equivalent).
    w2 = params["w_ih2"] + params["w_hh2"]                                # (H, 4H)
    w3 = params["w_ih3"] + params["w_hh3"]                                # (H, 4H)

    # Single grid-less invocation: the whole working set (<1 MiB) is VMEM-resident
    # for the entire recurrence; outputs are written back to HBM once, already in
    # their final (B, T, ·) layout.
    # TODO(synk): on v7x (2 TensorCores/chip) a grid=(B,) with
    # dimension_semantics=("parallel",) shards the independent batch recurrences
    # across cores; kept grid-less here (optimal on 1-TC v5e/v6e, correct everywhere).
    out, attn = pl.pallas_call(
        _decoder_kernel,
        out_shape=(
            jax.ShapeDtypeStruct((B, T, H), jnp.float32),
            jax.ShapeDtypeStruct((B, T, L), jnp.float32),
        ),
    )(
        x0, h0, c0, encode_outputs,
        w_x, b_x, w_comb_a, w_h,
        params["w_ih1"], params["b1"],
        w2, params["b2"],
        w3, params["b3"],
        params["w_out"], params["b_out"],
    )
    return out, attn


# ---------------------------------------------------------------------------
# Pure-JAX reference (mirrors the PyTorch forward, eval mode)
# ---------------------------------------------------------------------------
def reference_forward(decode_input, decode_hidden, encode_outputs, params):
    B, T, H = decode_input.shape
    h0, c0 = decode_hidden

    def lstm(x, h, c, w_ih, w_hh, b):
        g = x @ w_ih + h @ w_hh + b
        i = jax.nn.sigmoid(g[:, 0 * H:1 * H])
        f = jax.nn.sigmoid(g[:, 1 * H:2 * H])
        gg = jnp.tanh(g[:, 2 * H:3 * H])
        o = jax.nn.sigmoid(g[:, 3 * H:4 * H])
        c2 = f * c + i * gg
        return o * jnp.tanh(c2), c2

    outs, attns = [], []
    for i in range(B):
        h, c = h0[i:i + 1], c0[i:i + 1]
        x = decode_input[i, 0:1]
        row_o, row_a = [], []
        for _ in range(T):
            xh = jnp.concatenate([x, h], axis=1)
            aw = jax.nn.softmax(xh @ params["w_attn"] + params["b_attn"], axis=-1)
            applied = aw @ encode_outputs[i]
            comb = jnp.maximum(
                jnp.concatenate([x, applied], axis=1) @ params["w_comb"] + params["b_comb"], 0.0)
            h1, c1 = lstm(comb, h, c, params["w_ih1"], params["w_hh1"], params["b1"])
            h2, c2 = lstm(h1, h1, c1, params["w_ih2"], params["w_hh2"], params["b2"])
            h3, c3 = lstm(h2, h2, c2, params["w_ih3"], params["w_hh3"], params["b3"])
            o = jnp.maximum(h3 @ params["w_out"] + params["b_out"], 0.0)
            row_o.append(o[0]); row_a.append(aw[0])
            x, h, c = o, h3, c3
        outs.append(jnp.stack(row_o)); attns.append(jnp.stack(row_a))
    return jnp.stack(outs), jnp.stack(attns)


# ---------------------------------------------------------------------------
# Parameter init (deterministic; PyTorch-style uniform(-1/sqrt(H), 1/sqrt(H)))
# ---------------------------------------------------------------------------
def init_params(key, H, L):
    s = 1.0 / jnp.sqrt(H)
    keys = iter(jax.random.split(key, 32))
    u = lambda shape: jax.random.uniform(next(keys), shape, jnp.float32, -s, s)
    params = {
        "w_attn": u((2 * H, L)), "b_attn": u((1, L)),     # nn.Linear(2H, L), stored transposed
        "w_comb": u((2 * H, H)), "b_comb": u((1, H)),     # nn.Linear(2H, H)
        "w_out":  u((H, H)),     "b_out":  u((1, H)),     # nn.Linear(H, H)
    }
    for k in (1, 2, 3):                                   # nn.LSTM(H, H) weights, pre-transposed
        params[f"w_ih{k}"] = u((H, 4 * H))
        params[f"w_hh{k}"] = u((H, 4 * H))
        params[f"b{k}"] = u((1, 4 * H)) + u((1, 4 * H))   # b_ih + b_hh folded together
    return params


# ---------------------------------------------------------------------------
if __name__ == "__main__":
    B, T, H, L = 2, 8, 32, 8     # batch, decode length, hidden_size, max_length

    key = jax.random.PRNGKey(0)
    k_in, k_h, k_c, k_enc, k_p = jax.random.split(key, 5)

    decode_input = jax.random.normal(k_in, (B, T, H), jnp.float32)
    h0 = jax.random.normal(k_h, (B, H), jnp.float32)
    c0 = jax.random.normal(k_c, (B, H), jnp.float32)
    encode_outputs = jax.random.normal(k_enc, (B, L, H), jnp.float32)
    params = init_params(k_p, H, L)

    dec_out, attn = attn_decoder2_forward(decode_input, (h0, c0), encode_outputs, params)
    jax.block_until_ready((dec_out, attn))

    ref_out, ref_attn = reference_forward(decode_input, (h0, c0), encode_outputs, params)
    assert dec_out.shape == (B, T, H) and attn.shape == (B, T, L)
    assert jnp.allclose(dec_out, ref_out, atol=1e-2, rtol=1e-2)
    assert jnp.allclose(attn, ref_attn, atol=1e-2, rtol=1e-2)

    print("KERNEL_OK")
</pallas_src>

<mosaic_0001>
module attributes {stable_mosaic.version = 11 : i64} {
  func.func @_decoder_kernel(%arg0: memref<2x32xf32, #tpu.memory_space<vmem>>, %arg1: memref<2x32xf32, #tpu.memory_space<vmem>>, %arg2: memref<2x32xf32, #tpu.memory_space<vmem>>, %arg3: memref<2x8x32xf32, #tpu.memory_space<vmem>>, %arg4: memref<32x40xf32, #tpu.memory_space<vmem>>, %arg5: memref<1x40xf32, #tpu.memory_space<vmem>>, %arg6: memref<32x32xf32, #tpu.memory_space<vmem>>, %arg7: memref<32x136xf32, #tpu.memory_space<vmem>>, %arg8: memref<32x128xf32, #tpu.memory_space<vmem>>, %arg9: memref<1x128xf32, #tpu.memory_space<vmem>>, %arg10: memref<32x128xf32, #tpu.memory_space<vmem>>, %arg11: memref<1x128xf32, #tpu.memory_space<vmem>>, %arg12: memref<32x128xf32, #tpu.memory_space<vmem>>, %arg13: memref<1x128xf32, #tpu.memory_space<vmem>>, %arg14: memref<32x32xf32, #tpu.memory_space<vmem>>, %arg15: memref<1x32xf32, #tpu.memory_space<vmem>>, %arg16: memref<2x8x32xf32, #tpu.memory_space<vmem>>, %arg17: memref<2x8x8xf32, #tpu.memory_space<vmem>>) attributes {dimension_semantics = [], scalar_prefetch = 0 : i64, scratch_operands = 0 : i64, tpu.core_type = #tpu.core_type<tc>} {
    %c0 = arith.constant 0 : index
    %c0_0 = arith.constant 0 : index
    %c0_1 = arith.constant 0 : index
    %0 = vector.load %arg3[%c0, %c0_0, %c0_1] : memref<2x8x32xf32, #tpu.memory_space<vmem>>, vector<2x8x32xf32>
    %c0_2 = arith.constant 0 : index
    %c0_3 = arith.constant 0 : index
    %1 = vector.load %arg5[%c0_2, %c0_3] : memref<1x40xf32, #tpu.memory_space<vmem>>, vector<1x40xf32>
    %2 = vector.shape_cast %1 : vector<1x40xf32> to vector<1x40xf32>
    %3 = vector.broadcast %2 : vector<1x40xf32> to vector<2x40xf32>
    %c0_4 = arith.constant 0 : index
    %c0_5 = arith.constant 0 : index
    %4 = vector.load %arg9[%c0_4, %c0_5] : memref<1x128xf32, #tpu.memory_space<vmem>>, vector<1x128xf32>
    %5 = vector.shape_cast %4 : vector<1x128xf32> to vector<1x128xf32>
    %6 = vector.broadcast %5 : vector<1x128xf32> to vector<2x128xf32>
    %c0_6 = arith.constant 0 : index
    %c0_7 = arith.constant 0 : index
    %7 = vector.load %arg11[%c0_6, %c0_7] : memref<1x128xf32, #tpu.memory_space<vmem>>, vector<1x128xf32>
    %8 = vector.shape_cast %7 : vector<1x128xf32> to vector<1x128xf32>
    %9 = vector.broadcast %8 : vector<1x128xf32> to vector<2x128xf32>
    %c0_8 = arith.constant 0 : index
    %c0_9 = arith.constant 0 : index
    %10 = vector.load %arg13[%c0_8, %c0_9] : memref<1x128xf32, #tpu.memory_space<vmem>>, vector<1x128xf32>
    %11 = vector.shape_cast %10 : vector<1x128xf32> to vector<1x128xf32>
    %12 = vector.broadcast %11 : vector<1x128xf32> to vector<2x128xf32>
    %c0_10 = arith.constant 0 : index
    %c0_11 = arith.constant 0 : index
    %13 = vector.load %arg15[%c0_10, %c0_11] : memref<1x32xf32, #tpu.memory_space<vmem>>, vector<1x32xf32>
    %14 = vector.shape_cast %13 : vector<1x32xf32> to vector<1x32xf32>
    %15 = vector.broadcast %14 : vector<1x32xf32> to vector<2x32xf32>
    %c0_12 = arith.constant 0 : index
    %c0_13 = arith.constant 0 : index
    %16 = vector.load %arg6[%c0_12, %c0_13] : memref<32x32xf32, #tpu.memory_space<vmem>>, vector<32x32xf32>
    %c0_14 = arith.constant 0 : index
    %c0_15 = arith.constant 0 : index
    %17 = vector.load %arg14[%c0_14, %c0_15] : memref<32x32xf32, #tpu.memory_space<vmem>>, vector<32x32xf32>
    %c0_16 = arith.constant 0 : index
    %c0_17 = arith.constant 0 : index
    %18 = vector.load %arg0[%c0_16, %c0_17] : memref<2x32xf32, #tpu.memory_space<vmem>>, vector<2x32xf32>
    %c0_18 = arith.constant 0 : index
    %c0_19 = arith.constant 0 : index
    %19 = vector.load %arg1[%c0_18, %c0_19] : memref<2x32xf32, #tpu.memory_space<vmem>>, vector<2x32xf32>
    %c0_20 = arith.constant 0 : index
    %c0_21 = arith.constant 0 : index
    %20 = vector.load %arg2[%c0_20, %c0_21] : memref<2x32xf32, #tpu.memory_space<vmem>>, vector<2x32xf32>
    %c0_22 = arith.constant 0 : index
    %c0_23 = arith.constant 0 : index
    %21 = vector.load %arg4[%c0_22, %c0_23] : memref<32x40xf32, #tpu.memory_space<vmem>>, vector<32x40xf32>
    %cst = arith.constant dense<0.000000e+00> : vector<2x40xf32>
    %22 = tpu.matmul %18, %21, %cst {dimension_numbers = #tpu.dot_dimension_numbers<[1], [0], [0], [1], [0, 0, 1, 1], [], []>} : vector<2x32xf32>, vector<32x40xf32>, vector<2x40xf32> -> vector<2x40xf32>
    %23 = arith.addf %22, %3 : vector<2x40xf32>
    %c0_24 = arith.constant 0 : index
    %c0_25 = arith.constant 0 : index
    %24 = vector.load %arg7[%c0_24, %c0_25] : memref<32x136xf32, #tpu.memory_space<vmem>>, vector<32x136xf32>
    %cst_26 = arith.constant dense<0.000000e+00> : vector<2x136xf32>
    %25 = tpu.matmul %19, %24, %cst_26 {dimension_numbers = #tpu.dot_dimension_numbers<[1], [0], [0], [1], [0, 0, 1, 1], [], []>} : vector<2x32xf32>, vector<32x136xf32>, vector<2x136xf32> -> vector<2x136xf32>
    %26 = vector.extract_strided_slice %23 {offsets = [0, 0], sizes = [2, 8], strides = [1, 1]} : vector<2x40xf32> to vector<2x8xf32>
    %27 = vector.extract_strided_slice %25 {offsets = [0, 128], sizes = [2, 8], strides = [1, 1]} : vector<2x136xf32> to vector<2x8xf32>
    %28 = arith.addf %26, %27 : vector<2x8xf32>
    %cst_27 = arith.constant dense<0xFF800000> : vector<2xf32>
    %29 = vector.multi_reduction <maximumf>, %28, %cst_27 [1] : vector<2x8xf32> to vector<2xf32>
    %30 = vector.shape_cast %29 : vector<2xf32> to vector<2x1xf32>
    %31 = vector.broadcast %30 : vector<2x1xf32> to vector<2x8xf32>
    %32 = arith.subf %28, %31 : vector<2x8xf32>
    %33 = math.exp %32 : vector<2x8xf32>
    %cst_28 = arith.constant dense<0.000000e+00> : vector<2xf32>
    %34 = vector.multi_reduction <add>, %33, %cst_28 [1] : vector<2x8xf32> to vector<2xf32>
    %35 = vector.shape_cast %34 : vector<2xf32> to vector<2x1xf32>
    %36 = tpu.reciprocal %35 : vector<2x1xf32> -> vector<2x1xf32>
    %37 = vector.broadcast %36 : vector<2x1xf32> to vector<2x8xf32>
    %38 = arith.mulf %33, %37 : vector<2x8xf32>
    %c0_29 = arith.constant 0 : index
    %c0_30 = arith.constant 0 : index
    %c0_31 = arith.constant 0 : index
    %39 = vector.load %arg17[%c0_29, %c0_30, %c0_31] : memref<2x8x8xf32, #tpu.memory_space<vmem>>, vector<2x1x8xf32>
    %40 = vector.shape_cast %39 : vector<2x1x8xf32> to vector<2x8xf32>
    %41 = vector.shape_cast %38 : vector<2x8xf32> to vector<2x1x8xf32>
    tpu.vector_store %arg17[%c0_29, %c0_30, %c0_31], %41 {strides = array<i32>} : memref<2x8x8xf32, #tpu.memory_space<vmem>>, vector<2x1x8xf32>,
    %42 = vector.shape_cast %38 : vector<2x8xf32> to vector<2x8x1xf32>
    %43 = vector.broadcast %42 : vector<2x8x1xf32> to vector<2x8x32xf32>
    %44 = arith.mulf %43, %0 : vector<2x8x32xf32>
    %cst_32 = arith.constant dense<0.000000e+00> : vector<2x32xf32>
    %45 = vector.multi_reduction <add>, %44, %cst_32 [1] : vector<2x8x32xf32> to vector<2x32xf32>
    %46 = vector.extract_strided_slice %23 {offsets = [0, 8], sizes = [2, 32], strides = [1, 1]} : vector<2x40xf32> to vector<2x32xf32>
    %cst_33 = arith.constant dense<0.000000e+00> : vector<2x32xf32>
    %47 = tpu.matmul %45, %16, %cst_33 {dimension_numbers = #tpu.dot_dimension_numbers<[1], [0], [0], [1], [0, 0, 1, 1], [], []>} : vector<2x32xf32>, vector<32x32xf32>, vector<2x32xf32> -> vector<2x32xf32>
    %48 = arith.addf %46, %47 : vector<2x32xf32>
    %cst_34 = arith.constant 0.000000e+00 : f32
    %49 = vector.broadcast %cst_34 : f32 to vector<2x32xf32>
    %50 = arith.maximumf %48, %49 : vector<2x32xf32>
    %c0_35 = arith.constant 0 : index
    %c0_36 = arith.constant 0 : index
    %51 = vector.load %arg8[%c0_35, %c0_36] : memref<32x128xf32, #tpu.memory_space<vmem>>, vector<32x128xf32>
    %cst_37 = arith.constant dense<0.000000e+00> : vector<2x128xf32>
    %52 = tpu.matmul %50, %51, %cst_37 {dimension_numbers = #tpu.dot_dimension_numbers<[1], [0], [0], [1], [0, 0, 1, 1], [], []>} : vector<2x32xf32>, vector<32x128xf32>, vector<2x128xf32> -> vector<2x128xf32>
    %53 = vector.extract_strided_slice %25 {offsets = [0, 0], sizes = [2, 128], strides = [1, 1]} : vector<2x136xf32> to vector<2x128xf32>
    %54 = arith.addf %52, %53 : vector<2x128xf32>
    %55 = arith.addf %54, %6 : vector<2x128xf32>
    %56 = arith.negf %55 : vector<2x128xf32>
    %57 = math.exp %56 : vector<2x128xf32>
    %cst_38 = arith.constant 1.000000e+00 : f32
    %58 = vector.broadcast %cst_38 : f32 to vector<2x128xf32>
    %59 = arith.addf %58, %57 : vector<2x128xf32>
    %60 = arith.divf %58, %59 : vector<2x128xf32>
    %61 = math.tanh %55 : vector<2x128xf32>
    %62 = vector.extract_strided_slice %60 {offsets = [0, 0], sizes = [2, 32], strides = [1, 1]} : vector<2x128xf32> to vector<2x32xf32>
    %63 = vector.extract_strided_slice %60 {offsets = [0, 32], sizes = [2, 32], strides = [1, 1]} : vector<2x128xf32> to vector<2x32xf32>
    %64 = vector.extract_strided_slice %61 {offsets = [0, 64], sizes = [2, 32], strides = [1, 1]} : vector<2x128xf32> to vector<2x32xf32>
    %65 = vector.extract_strided_slice %60 {offsets = [0, 96], sizes = [2, 32], strides = [1, 1]} : vector<2x128xf32> to vector<2x32xf32>
    %66 = arith.mulf %63, %20 : vector<2x32xf32>
    %67 = arith.mulf %62, %64 : vector<2x32xf32>
    %68 = arith.addf %66, %67 : vector<2x32xf32>
    %69 = math.tanh %68 : vector<2x32xf32>
    %70 = arith.mulf %65, %69 : vector<2x32xf32>
    %c0_39 = arith.constant 0 : index
    %c0_40 = arith.constant 0 : index
    %71 = vector.load %arg10[%c0_39, %c0_40] : memref<32x128xf32, #tpu.memory_space<vmem>>, vector<32x128xf32>
    %cst_41 = arith.constant dense<0.000000e+00> : vector<2x128xf32>
    %72 = tpu.matmul %70, %71, %cst_41 {dimension_numbers = #tpu.dot_dimension_numbers<[1], [0], [0], [1], [0, 0, 1, 1], [], []>} : vector<2x32xf32>, vector<32x128xf32>, vector<2x128xf32> -> vector<2x128xf32>
    %73 = arith.addf %72, %9 : vector<2x128xf32>
    %74 = arith.negf %73 : vector<2x128xf32>
    %75 = math.exp %74 : vector<2x128xf32>
    %cst_42 = arith.constant 1.000000e+00 : f32
    %76 = vector.broadcast %cst_42 : f32 to vector<2x128xf32>
    %77 = arith.addf %76, %75 : vector<2x128xf32>
    %78 = arith.divf %76, %77 : vector<2x128xf32>
    %79 = math.tanh %73 : vector<2x128xf32>
    %80 = vector.extract_strided_slice %78 {offsets = [0, 0], sizes = [2, 32], strides = [1, 1]} : vector<2x128xf32> to vector<2x32xf32>
    %81 = vector.extract_strided_slice %78 {offsets = [0, 32], sizes = [2, 32], strides = [1, 1]} : vector<2x128xf32> to vector<2x32xf32>
    %82 = vector.extract_strided_slice %79 {offsets = [0, 64], sizes = [2, 32], strides = [1, 1]} : vector<2x128xf32> to vector<2x32xf32>
    %83 = vector.extract_strided_slice %78 {offsets = [0, 96], sizes = [2, 32], strides = [1, 1]} : vector<2x128xf32> to vector<2x32xf32>
    %84 = arith.mulf %81, %68 : vector<2x32xf32>
    %85 = arith.mulf %80, %82 : vector<2x32xf32>
    %86 = arith.addf %84, %85 : vector<2x32xf32>
    %87 = math.tanh %86 : vector<2x32xf32>
    %88 = arith.mulf %83, %87 : vector<2x32xf32>
    %c0_43 = arith.constant 0 : index
    %c0_44 = arith.constant 0 : index
    %89 = vector.load %arg12[%c0_43, %c0_44] : memref<32x128xf32, #tpu.memory_space<vmem>>, vector<32x128xf32>
    %cst_45 = arith.constant dense<0.000000e+00> : vector<2x128xf32>
    %90 = tpu.matmul %88, %89, %cst_45 {dimension_numbers = #tpu.dot_dimension_numbers<[1], [0], [0], [1], [0, 0, 1, 1], [], []>} : vector<2x32xf32>, vector<32x128xf32>, vector<2x128xf32> -> vector<2x128xf32>
    %91 = arith.addf %90, %12 : vector<2x128xf32>
    %92 = arith.negf %91 : vector<2x128xf32>
    %93 = math.exp %92 : vector<2x128xf32>
    %cst_46 = arith.constant 1.000000e+00 : f32
    %94 = vector.broadcast %cst_46 : f32 to vector<2x128xf32>
    %95 = arith.addf %94, %93 : vector<2x128xf32>
    %96 = arith.divf %94, %95 : vector<2x128xf32>
    %97 = math.tanh %91 : vector<2x128xf32>
    %98 = vector.extract_strided_slice %96 {offsets = [0, 0], sizes = [2, 32], strides = [1, 1]} : vector<2x128xf32> to vector<2x32xf32>
    %99 = vector.extract_strided_slice %96 {offsets = [0, 32], sizes = [2, 32], strides = [1, 1]} : vector<2x128xf32> to vector<2x32xf32>
    %100 = vector.extract_strided_slice %97 {offsets = [0, 64], sizes = [2, 32], strides = [1, 1]} : vector<2x128xf32> to vector<2x32xf32>
    %101 = vector.extract_strided_slice %96 {offsets = [0, 96], sizes = [2, 32], strides = [1, 1]} : vector<2x128xf32> to vector<2x32xf32>
    %102 = arith.mulf %99, %86 : vector<2x32xf32>
    %103 = arith.mulf %98, %100 : vector<2x32xf32>
    %104 = arith.addf %102, %103 : vector<2x32xf32>
    %105 = math.tanh %104 : vector<2x32xf32>
    %106 = arith.mulf %101, %105 : vector<2x32xf32>
    %cst_47 = arith.constant dense<0.000000e+00> : vector<2x32xf32>
    %107 = tpu.matmul %106, %17, %cst_47 {dimension_numbers = #tpu.dot_dimension_numbers<[1], [0], [0], [1], [0, 0, 1, 1], [], []>} : vector<2x32xf32>, vector<32x32xf32>, vector<2x32xf32> -> vector<2x32xf32>
    %108 = arith.addf %107, %15 : vector<2x32xf32>
    %cst_48 = arith.constant 0.000000e+00 : f32
    %109 = vector.broadcast %cst_48 : f32 to vector<2x32xf32>
    %110 = arith.maximumf %108, %109 : vector<2x32xf32>
    %c0_49 = arith.constant 0 : index
    %c0_50 = arith.constant 0 : index
    %c0_51 = arith.constant 0 : index
    %111 = vector.load %arg16[%c0_49, %c0_50, %c0_51] : memref<2x8x32xf32, #tpu.memory_space<vmem>>, vector<2x1x32xf32>
    %112 = vector.shape_cast %111 : vector<2x1x32xf32> to vector<2x32xf32>
    %113 = vector.shape_cast %110 : vector<2x32xf32> to vector<2x1x32xf32>
    tpu.vector_store %arg16[%c0_49, %c0_50, %c0_51], %113 {strides = array<i32>} : memref<2x8x32xf32, #tpu.memory_space<vmem>>, vector<2x1x32xf32>,
    %c0_52 = arith.constant 0 : index
    %c0_53 = arith.constant 0 : index
    %114 = vector.load %arg4[%c0_52, %c0_53] : memref<32x40xf32, #tpu.memory_space<vmem>>, vector<32x40xf32>
    %cst_54 = arith.constant dense<0.000000e+00> : vector<2x40xf32>
    %115 = tpu.matmul %110, %114, %cst_54 {dimension_numbers = #tpu.dot_dimension_numbers<[1], [0], [0], [1], [0, 0, 1, 1], [], []>} : vector<2x32xf32>, vector<32x40xf32>, vector<2x40xf32> -> vector<2x40xf32>
    %116 = arith.addf %115, %3 : vector<2x40xf32>
    %c0_55 = arith.constant 0 : index
    %c0_56 = arith.constant 0 : index
    %117 = vector.load %arg7[%c0_55, %c0_56] : memref<32x136xf32, #tpu.memory_space<vmem>>, vector<32x136xf32>
    %cst_57 = arith.constant dense<0.000000e+00> : vector<2x136xf32>
    %118 = tpu.matmul %106, %117, %cst_57 {dimension_numbers = #tpu.dot_dimension_numbers<[1], [0], [0], [1], [0, 0, 1, 1], [], []>} : vector<2x32xf32>, vector<32x136xf32>, vector<2x136xf32> -> vector<2x136xf32>
    %119 = vector.extract_strided_slice %116 {offsets = [0, 0], sizes = [2, 8], strides = [1, 1]} : vector<2x40xf32> to vector<2x8xf32>
    %120 = vector.extract_strided_slice %118 {offsets = [0, 128], sizes = [2, 8], strides = [1, 1]} : vector<2x136xf32> to vector<2x8xf32>
    %121 = arith.addf %119, %120 : vector<2x8xf32>
    %cst_58 = arith.constant dense<0xFF800000> : vector<2xf32>
    %122 = vector.multi_reduction <maximumf>, %121, %cst_58 [1] : vector<2x8xf32> to vector<2xf32>
    %123 = vector.shape_cast %122 : vector<2xf32> to vector<2x1xf32>
    %124 = vector.broadcast %123 : vector<2x1xf32> to vector<2x8xf32>
    %125 = arith.subf %121, %124 : vector<2x8xf32>
    %126 = math.exp %125 : vector<2x8xf32>
    %cst_59 = arith.constant dense<0.000000e+00> : vector<2xf32>
    %127 = vector.multi_reduction <add>, %126, %cst_59 [1] : vector<2x8xf32> to vector<2xf32>
    %128 = vector.shape_cast %127 : vector<2xf32> to vector<2x1xf32>
    %129 = tpu.reciprocal %128 : vector<2x1xf32> -> vector<2x1xf32>
    %130 = vector.broadcast %129 : vector<2x1xf32> to vector<2x8xf32>
    %131 = arith.mulf %126, %130 : vector<2x8xf32>
    %c0_60 = arith.constant 0 : index
    %c1 = arith.constant 1 : index
    %c0_61 = arith.constant 0 : index
    %132 = vector.load %arg17[%c0_60, %c1, %c0_61] : memref<2x8x8xf32, #tpu.memory_space<vmem>>, vector<2x1x8xf32>
    %133 = vector.shape_cast %132 : vector<2x1x8xf32> to vector<2x8xf32>
    %134 = vector.shape_cast %131 : vector<2x8xf32> to vector<2x1x8xf32>
    tpu.vector_store %arg17[%c0_60, %c1, %c0_61], %134 {strides = array<i32>} : memref<2x8x8xf32, #tpu.memory_space<vmem>>, vector<2x1x8xf32>,
    %135 = vector.shape_cast %131 : vector<2x8xf32> to vector<2x8x1xf32>
    %136 = vector.broadcast %135 : vector<2x8x1xf32> to vector<2x8x32xf32>
    %137 = arith.mulf %136, %0 : vector<2x8x32xf32>
    %cst_62 = arith.constant dense<0.000000e+00> : vector<2x32xf32>
    %138 = vector.multi_reduction <add>, %137, %cst_62 [1] : vector<2x8x32xf32> to vector<2x32xf32>
    %139 = vector.extract_strided_slice %116 {offsets = [0, 8], sizes = [2, 32], strides = [1, 1]} : vector<2x40xf32> to vector<2x32xf32>
    %cst_63 = arith.constant dense<0.000000e+00> : vector<2x32xf32>
    %140 = tpu.matmul %138, %16, %cst_63 {dimension_numbers = #tpu.dot_dimension_numbers<[1], [0], [0], [1], [0, 0, 1, 1], [], []>} : vector<2x32xf32>, vector<32x32xf32>, vector<2x32xf32> -> vector<2x32xf32>
    %141 = arith.addf %139, %140 : vector<2x32xf32>
    %cst_64 = arith.constant 0.000000e+00 : f32
    %142 = vector.broadcast %cst_64 : f32 to vector<2x32xf32>
    %143 = arith.maximumf %141, %142 : vector<2x32xf32>
    %c0_65 = arith.constant 0 : index
    %c0_66 = arith.constant 0 : index
    %144 = vector.load %arg8[%c0_65, %c0_66] : memref<32x128xf32, #tpu.memory_space<vmem>>, vector<32x128xf32>
    %cst_67 = arith.constant dense<0.000000e+00> : vector<2x128xf32>
    %145 = tpu.matmul %143, %144, %cst_67 {dimension_numbers = #tpu.dot_dimension_numbers<[1], [0], [0], [1], [0, 0, 1, 1], [], []>} : vector<2x32xf32>, vector<32x128xf32>, vector<2x128xf32> -> vector<2x128xf32>
    %146 = vector.extract_strided_slice %118 {offsets = [0, 0], sizes = [2, 128], strides = [1, 1]} : vector<2x136xf32> to vector<2x128xf32>
    %147 = arith.addf %145, %146 : vector<2x128xf32>
    %148 = arith.addf %147, %6 : vector<2x128xf32>
    %149 = arith.negf %148 : vector<2x128xf32>
    %150 = math.exp %149 : vector<2x128xf32>
    %cst_68 = arith.constant 1.000000e+00 : f32
    %151 = vector.broadcast %cst_68 : f32 to vector<2x128xf32>
    %152 = arith.addf %151, %150 : vector<2x128xf32>
    %153 = arith.divf %151, %152 : vector<2x128xf32>
    %154 = math.tanh %148 : vector<2x128xf32>
    %155 = vector.extract_strided_slice %153 {offsets = [0, 0], sizes = [2, 32], strides = [1, 1]} : vector<2x128xf32> to vector<2x32xf32>
    %156 = vector.extract_strided_slice %153 {offsets = [0, 32], sizes = [2, 32], strides = [1, 1]} : vector<2x128xf32> to vector<2x32xf32>
    %157 = vector.extract_strided_slice %154 {offsets = [0, 64], sizes = [2, 32], strides = [1, 1]} : vector<2x128xf32> to vector<2x32xf32>
    %158 = vector.extract_strided_slice %153 {offsets = [0, 96], sizes = [2, 32], strides = [1, 1]} : vector<2x128xf32> to vector<2x32xf32>
    %159 = arith.mulf %156, %104 : vector<2x32xf32>
    %160 = arith.mulf %155, %157 : vector<2x32xf32>
    %161 = arith.addf %159, %160 : vector<2x32xf32>
    %162 = math.tanh %161 : vector<2x32xf32>
    %163 = arith.mulf %158, %162 : vector<2x32xf32>
    %c0_69 = arith.constant 0 : index
    %c0_70 = arith.constant 0 : index
    %164 = vector.load %arg10[%c0_69, %c0_70] : memref<32x128xf32, #tpu.memory_space<vmem>>, vector<32x128xf32>
    %cst_71 = arith.constant dense<0.000000e+00> : vector<2x128xf32>
    %165 = tpu.matmul %163, %164, %cst_71 {dimension_numbers = #tpu.dot_dimension_numbers<[1], [0], [0], [1], [0, 0, 1, 1], [], []>} : vector<2x32xf32>, vector<32x128xf32>, vector<2x128xf32> -> vector<2x128xf32>
    %166 = arith.addf %165, %9 : vector<2x128xf32>
    %167 = arith.negf %166 : vector<2x128xf32>
    %168 = math.exp %167 : vector<2x128xf32>
    %cst_72 = arith.constant 1.000000e+00 : f32
    %169 = vector.broadcast %cst_72 : f32 to vector<2x128xf32>
    %170 = arith.addf %169, %168 : vector<2x128xf32>
    %171 = arith.divf %169, %170 : vector<2x128xf32>
    %172 = math.tanh %166 : vector<2x128xf32>
    %173 = vector.extract_strided_slice %171 {offsets = [0, 0], sizes = [2, 32], strides = [1, 1]} : vector<2x128xf32> to vector<2x32xf32>
    %174 = vector.extract_strided_slice %171 {offsets = [0, 32], sizes = [2, 32], strides = [1, 1]} : vector<2x128xf32> to vector<2x32xf32>
    %175 = vector.extract_strided_slice %172 {offsets = [0, 64], sizes = [2, 32], strides = [1, 1]} : vector<2x128xf32> to vector<2x32xf32>
    %176 = vector.extract_strided_slice %171 {offsets = [0, 96], sizes = [2, 32], strides = [1, 1]} : vector<2x128xf32> to vector<2x32xf32>
    %177 = arith.mulf %174, %161 : vector<2x32xf32>
    %178 = arith.mulf %173, %175 : vector<2x32xf32>
    %179 = arith.addf %177, %178 : vector<2x32xf32>
    %180 = math.tanh %179 : vector<2x32xf32>
    %181 = arith.mulf %176, %180 : vector<2x32xf32>
    %c0_73 = arith.constant 0 : index
    %c0_74 = arith.constant 0 : index
    %182 = vector.load %arg12[%c0_73, %c0_74] : memref<32x128xf32, #tpu.memory_space<vmem>>, vector<32x128xf32>
    %cst_75 = arith.constant dense<0.000000e+00> : vector<2x128xf32>
    %183 = tpu.matmul %181, %182, %cst_75 {dimension_numbers = #tpu.dot_dimension_numbers<[1], [0], [0], [1], [0, 0, 1, 1], [], []>} : vector<2x32xf32>, vector<32x128xf32>, vector<2x128xf32> -> vector<2x128xf32>
    %184 = arith.addf %183, %12 : vector<2x128xf32>
    %185 = arith.negf %184 : vector<2x128xf32>
    %186 = math.exp %185 : vector<2x128xf32>
    %cst_76 = arith.constant 1.000000e+00 : f32
    %187 = vector.broadcast %cst_76 : f32 to vector<2x128xf32>
    %188 = arith.addf %187, %186 : vector<2x128xf32>
    %189 = arith.divf %187, %188 : vector<2x128xf32>
    %190 = math.tanh %184 : vector<2x128xf32>
    %191 = vector.extract_strided_slice %189 {offsets = [0, 0], sizes = [2, 32], strides = [1, 1]} : vector<2x128xf32> to vector<2x32xf32>
    %192 = vector.extract_strided_slice %189 {offsets = [0, 32], sizes = [2, 32], strides = [1, 1]} : vector<2x128xf32> to vector<2x32xf32>
    %193 = vector.extract_strided_slice %190 {offsets = [0, 64], sizes = [2, 32], strides = [1, 1]} : vector<2x128xf32> to vector<2x32xf32>
    %194 = vector.extract_strided_slice %189 {offsets = [0, 96], sizes = [2, 32], strides = [1, 1]} : vector<2x128xf32> to vector<2x32xf32>
    %195 = arith.mulf %192, %179 : vector<2x32xf32>
    %196 = arith.mulf %191, %193 : vector<2x32xf32>
    %197 = arith.addf %195, %196 : vector<2x32xf32>
    %198 = math.tanh %197 : vector<2x32xf32>
    %199 = arith.mulf %194, %198 : vector<2x32xf32>
    %cst_77 = arith.constant dense<0.000000e+00> : vector<2x32xf32>
    %200 = tpu.matmul %199, %17, %cst_77 {dimension_numbers = #tpu.dot_dimension_numbers<[1], [0], [0], [1], [0, 0, 1, 1], [], []>} : vector<2x32xf32>, vector<32x32xf32>, vector<2x32xf32> -> vector<2x32xf32>
    %201 = arith.addf %200, %15 : vector<2x32xf32>
    %cst_78 = arith.constant 0.000000e+00 : f32
    %202 = vector.broadcast %cst_78 : f32 to vector<2x32xf32>
    %203 = arith.maximumf %201, %202 : vector<2x32xf32>
    %c0_79 = arith.constant 0 : index
    %c1_80 = arith.constant 1 : index
    %c0_81 = arith.constant 0 : index
    %204 = vector.load %arg16[%c0_79, %c1_80, %c0_81] : memref<2x8x32xf32, #tpu.memory_space<vmem>>, vector<2x1x32xf32>
    %205 = vector.shape_cast %204 : vector<2x1x32xf32> to vector<2x32xf32>
    %206 = vector.shape_cast %203 : vector<2x32xf32> to vector<2x1x32xf32>
    tpu.vector_store %arg16[%c0_79, %c1_80, %c0_81], %206 {strides = array<i32>} : memref<2x8x32xf32, #tpu.memory_space<vmem>>, vector<2x1x32xf32>,
    %c0_82 = arith.constant 0 : index
    %c0_83 = arith.constant 0 : index
    %207 = vector.load %arg4[%c0_82, %c0_83] : memref<32x40xf32, #tpu.memory_space<vmem>>, vector<32x40xf32>
    %cst_84 = arith.constant dense<0.000000e+00> : vector<2x40xf32>
    %208 = tpu.matmul %203, %207, %cst_84 {dimension_numbers = #tpu.dot_dimension_numbers<[1], [0], [0], [1], [0, 0, 1, 1], [], []>} : vector<2x32xf32>, vector<32x40xf32>, vector<2x40xf32> -> vector<2x40xf32>
    %209 = arith.addf %208, %3 : vector<2x40xf32>
    %c0_85 = arith.constant 0 : index
    %c0_86 = arith.constant 0 : index
    %210 = vector.load %arg7[%c0_85, %c0_86] : memref<32x136xf32, #tpu.memory_space<vmem>>, vector<32x136xf32>
    %cst_87 = arith.constant dense<0.000000e+00> : vector<2x136xf32>
    %211 = tpu.matmul %199, %210, %cst_87 {dimension_numbers = #tpu.dot_dimension_numbers<[1], [0], [0], [1], [0, 0, 1, 1], [], []>} : vector<2x32xf32>, vector<32x136xf32>, vector<2x136xf32> -> vector<2x136xf32>
    %212 = vector.extract_strided_slice %209 {offsets = [0, 0], sizes = [2, 8], strides = [1, 1]} : vector<2x40xf32> to vector<2x8xf32>
    %213 = vector.extract_strided_slice %211 {offsets = [0, 128], sizes = [2, 8], strides = [1, 1]} : vector<2x136xf32> to vector<2x8xf32>
    %214 = arith.addf %212, %213 : vector<2x8xf32>
    %cst_88 = arith.constant dense<0xFF800000> : vector<2xf32>
    %215 = vector.multi_reduction <maximumf>, %214, %cst_88 [1] : vector<2x8xf32> to vector<2xf32>
    %216 = vector.shape_cast %215 : vector<2xf32> to vector<2x1xf32>
    %217 = vector.broadcast %216 : vector<2x1xf32> to vector<2x8xf32>
    %218 = arith.subf %214, %217 : vector<2x8xf32>
    %219 = math.exp %218 : vector<2x8xf32>
    %cst_89 = arith.constant dense<0.000000e+00> : vector<2xf32>
    %220 = vector.multi_reduction <add>, %219, %cst_89 [1] : vector<2x8xf32> to vector<2xf32>
    %221 = vector.shape_cast %220 : vector<2xf32> to vector<2x1xf32>
    %222 = tpu.reciprocal %221 : vector<2x1xf32> -> vector<2x1xf32>
    %223 = vector.broadcast %222 : vector<2x1xf32> to vector<2x8xf32>
    %224 = arith.mulf %219, %223 : vector<2x8xf32>
    %c0_90 = arith.constant 0 : index
    %c2 = arith.constant 2 : index
    %c0_91 = arith.constant 0 : index
    %225 = vector.load %arg17[%c0_90, %c2, %c0_91] : memref<2x8x8xf32, #tpu.memory_space<vmem>>, vector<2x1x8xf32>
    %226 = vector.shape_cast %225 : vector<2x1x8xf32> to vector<2x8xf32>
    %227 = vector.shape_cast %224 : vector<2x8xf32> to vector<2x1x8xf32>
    tpu.vector_store %arg17[%c0_90, %c2, %c0_91], %227 {strides = array<i32>} : memref<2x8x8xf32, #tpu.memory_space<vmem>>, vector<2x1x8xf32>,
    %228 = vector.shape_cast %224 : vector<2x8xf32> to vector<2x8x1xf32>
    %229 = vector.broadcast %228 : vector<2x8x1xf32> to vector<2x8x32xf32>
    %230 = arith.mulf %229, %0 : vector<2x8x32xf32>
    %cst_92 = arith.constant dense<0.000000e+00> : vector<2x32xf32>
    %231 = vector.multi_reduction <add>, %230, %cst_92 [1] : vector<2x8x32xf32> to vector<2x32xf32>
    %232 = vector.extract_strided_slice %209 {offsets = [0, 8], sizes = [2, 32], strides = [1, 1]} : vector<2x40xf32> to vector<2x32xf32>
    %cst_93 = arith.constant dense<0.000000e+00> : vector<2x32xf32>
    %233 = tpu.matmul %231, %16, %cst_93 {dimension_numbers = #tpu.dot_dimension_numbers<[1], [0], [0], [1], [0, 0, 1, 1], [], []>} : vector<2x32xf32>, vector<32x32xf32>, vector<2x32xf32> -> vector<2x32xf32>
    %234 = arith.addf %232, %233 : vector<2x32xf32>
    %cst_94 = arith.constant 0.000000e+00 : f32
    %235 = vector.broadcast %cst_94 : f32 to vector<2x32xf32>
    %236 = arith.maximumf %234, %235 : vector<2x32xf32>
    %c0_95 = arith.constant 0 : index
    %c0_96 = arith.constant 0 : index
    %237 = vector.load %arg8[%c0_95, %c0_96] : memref<32x128xf32, #tpu.memory_space<vmem>>, vector<32x128xf32>
    %cst_97 = arith.constant dense<0.000000e+00> : vector<2x128xf32>
    %238 = tpu.matmul %236, %237, %cst_97 {dimension_numbers = #tpu.dot_dimension_numbers<[1], [0], [0], [1], [0, 0, 1, 1], [], []>} : vector<2x32xf32>, vector<32x128xf32>, vector<2x128xf32> -> vector<2x128xf32>
    %239 = vector.extract_strided_slice %211 {offsets = [0, 0], sizes = [2, 128], strides = [1, 1]} : vector<2x136xf32> to vector<2x128xf32>
    %240 = arith.addf %238, %239 : vector<2x128xf32>
    %241 = arith.addf %240, %6 : vector<2x128xf32>
    %242 = arith.negf %241 : vector<2x128xf32>
    %243 = math.exp %242 : vector<2x128xf32>
    %cst_98 = arith.constant 1.000000e+00 : f32
    %244 = vector.broadcast %cst_98 : f32 to vector<2x128xf32>
    %245 = arith.addf %244, %243 : vector<2x128xf32>
    %246 = arith.divf %244, %245 : vector<2x128xf32>
    %247 = math.tanh %241 : vector<2x128xf32>
    %248 = vector.extract_strided_slice %246 {offsets = [0, 0], sizes = [2, 32], strides = [1, 1]} : vector<2x128xf32> to vector<2x32xf32>
    %249 = vector.extract_strided_slice %246 {offsets = [0, 32], sizes = [2, 32], strides = [1, 1]} : vector<2x128xf32> to vector<2x32xf32>
    %250 = vector.extract_strided_slice %247 {offsets = [0, 64], sizes = [2, 32], strides = [1, 1]} : vector<2x128xf32> to vector<2x32xf32>
    %251 = vector.extract_strided_slice %246 {offsets = [0, 96], sizes = [2, 32], strides = [1, 1]} : vector<2x128xf32> to vector<2x32xf32>
    %252 = arith.mulf %249, %197 : vector<2x32xf32>
    %253 = arith.mulf %248, %250 : vector<2x32xf32>
    %254 = arith.addf %252, %253 : vector<2x32xf32>
    %255 = math.tanh %254 : vector<2x32xf32>
    %256 = arith.mulf %251, %255 : vector<2x32xf32>
    %c0_99 = arith.constant 0 : index
    %c0_100 = arith.constant 0 : index
    %257 = vector.load %arg10[%c0_99, %c0_100] : memref<32x128xf32, #tpu.memory_space<vmem>>, vector<32x128xf32>
    %cst_101 = arith.constant dense<0.000000e+00> : vector<2x128xf32>
    %258 = tpu.matmul %256, %257, %cst_101 {dimension_numbers = #tpu.dot_dimension_numbers<[1], [0], [0], [1], [0, 0, 1, 1], [], []>} : vector<2x32xf32>, vector<32x128xf32>, vector<2x128xf32> -> vector<2x128xf32>
    %259 = arith.addf %258, %9 : vector<2x128xf32>
    %260 = arith.negf %259 : vector<2x128xf32>
    %261 = math.exp %260 : vector<2x128xf32>
    %cst_102 = arith.constant 1.000000e+00 : f32
    %262 = vector.broadcast %cst_102 : f32 to vector<2x128xf32>
    %263 = arith.addf %262, %261 : vector<2x128xf32>
    %264 = arith.divf %262, %263 : vector<2x128xf32>
    %265 = math.tanh %259 : vector<2x128xf32>
    %266 = vector.extract_strided_slice %264 {offsets = [0, 0], sizes = [2, 32], strides = [1, 1]} : vector<2x128xf32> to vector<2x32xf32>
    %267 = vector.extract_strided_slice %264 {offsets = [0, 32], sizes = [2, 32], strides = [1, 1]} : vector<2x128xf32> to vector<2x32xf32>
    %268 = vector.extract_strided_slice %265 {offsets = [0, 64], sizes = [2, 32], strides = [1, 1]} : vector<2x128xf32> to vector<2x32xf32>
    %269 = vector.extract_strided_slice %264 {offsets = [0, 96], sizes = [2, 32], strides = [1, 1]} : vector<2x128xf32> to vector<2x32xf32>
    %270 = arith.mulf %267, %254 : vector<2x32xf32>
    %271 = arith.mulf %266, %268 : vector<2x32xf32>
    %272 = arith.addf %270, %271 : vector<2x32xf32>
    %273 = math.tanh %272 : vector<2x32xf32>
    %274 = arith.mulf %269, %273 : vector<2x32xf32>
    %c0_103 = arith.constant 0 : index
    %c0_104 = arith.constant 0 : index
    %275 = vector.load %arg12[%c0_103, %c0_104] : memref<32x128xf32, #tpu.memory_space<vmem>>, vector<32x128xf32>
    %cst_105 = arith.constant dense<0.000000e+00> : vector<2x128xf32>
    %276 = tpu.matmul %274, %275, %cst_105 {dimension_numbers = #tpu.dot_dimension_numbers<[1], [0], [0], [1], [0, 0, 1, 1], [], []>} : vector<2x32xf32>, vector<32x128xf32>, vector<2x128xf32> -> vector<2x128xf32>
    %277 = arith.addf %276, %12 : vector<2x128xf32>
    %278 = arith.negf %277 : vector<2x128xf32>
    %279 = math.exp %278 : vector<2x128xf32>
    %cst_106 = arith.constant 1.000000e+00 : f32
    %280 = vector.broadcast %cst_106 : f32 to vector<2x128xf32>
    %281 = arith.addf %280, %279 : vector<2x128xf32>
    %282 = arith.divf %280, %281 : vector<2x128xf32>
    %283 = math.tanh %277 : vector<2x128xf32>
    %284 = vector.extract_strided_slice %282 {offsets = [0, 0], sizes = [2, 32], strides = [1, 1]} : vector<2x128xf32> to vector<2x32xf32>
    %285 = vector.extract_strided_slice %282 {offsets = [0, 32], sizes = [2, 32], strides = [1, 1]} : vector<2x128xf32> to vector<2x32xf32>
    %286 = vector.extract_strided_slice %283 {offsets = [0, 64], sizes = [2, 32], strides = [1, 1]} : vector<2x128xf32> to vector<2x32xf32>
    %287 = vector.extract_strided_slice %282 {offsets = [0, 96], sizes = [2, 32], strides = [1, 1]} : vector<2x128xf32> to vector<2x32xf32>
    %288 = arith.mulf %285, %272 : vector<2x32xf32>
    %289 = arith.mulf %284, %286 : vector<2x32xf32>
    %290 = arith.addf %288, %289 : vector<2x32xf32>
    %291 = math.tanh %290 : vector<2x32xf32>
    %292 = arith.mulf %287, %291 : vector<2x32xf32>
    %cst_107 = arith.constant dense<0.000000e+00> : vector<2x32xf32>
    %293 = tpu.matmul %292, %17, %cst_107 {dimension_numbers = #tpu.dot_dimension_numbers<[1], [0], [0], [1], [0, 0, 1, 1], [], []>} : vector<2x32xf32>, vector<32x32xf32>, vector<2x32xf32> -> vector<2x32xf32>
    %294 = arith.addf %293, %15 : vector<2x32xf32>
    %cst_108 = arith.constant 0.000000e+00 : f32
    %295 = vector.broadcast %cst_108 : f32 to vector<2x32xf32>
    %296 = arith.maximumf %294, %295 : vector<2x32xf32>
    %c0_109 = arith.constant 0 : index
    %c2_110 = arith.constant 2 : index
    %c0_111 = arith.constant 0 : index
    %297 = vector.load %arg16[%c0_109, %c2_110, %c0_111] : memref<2x8x32xf32, #tpu.memory_space<vmem>>, vector<2x1x32xf32>
    %298 = vector.shape_cast %297 : vector<2x1x32xf32> to vector<2x32xf32>
    %299 = vector.shape_cast %296 : vector<2x32xf32> to vector<2x1x32xf32>
    tpu.vector_store %arg16[%c0_109, %c2_110, %c0_111], %299 {strides = array<i32>} : memref<2x8x32xf32, #tpu.memory_space<vmem>>, vector<2x1x32xf32>,
    %c0_112 = arith.constant 0 : index
    %c0_113 = arith.constant 0 : index
    %300 = vector.load %arg4[%c0_112, %c0_113] : memref<32x40xf32, #tpu.memory_space<vmem>>, vector<32x40xf32>
    %cst_114 = arith.constant dense<0.000000e+00> : vector<2x40xf32>
    %301 = tpu.matmul %296, %300, %cst_114 {dimension_numbers = #tpu.dot_dimension_numbers<[1], [0], [0], [1], [0, 0, 1, 1], [], []>} : vector<2x32xf32>, vector<32x40xf32>, vector<2x40xf32> -> vector<2x40xf32>
    %302 = arith.addf %301, %3 : vector<2x40xf32>
    %c0_115 = arith.constant 0 : index
    %c0_116 = arith.constant 0 : index
    %303 = vector.load %arg7[%c0_115, %c0_116] : memref<32x136xf32, #tpu.memory_space<vmem>>, vector<32x136xf32>
    %cst_117 = arith.constant dense<0.000000e+00> : vector<2x136xf32>
    %304 = tpu.matmul %292, %303, %cst_117 {dimension_numbers = #tpu.dot_dimension_numbers<[1], [0], [0], [1], [0, 0, 1, 1], [], []>} : vector<2x32xf32>, vector<32x136xf32>, vector<2x136xf32> -> vector<2x136xf32>
    %305 = vector.extract_strided_slice %302 {offsets = [0, 0], sizes = [2, 8], strides = [1, 1]} : vector<2x40xf32> to vector<2x8xf32>
    %306 = vector.extract_strided_slice %304 {offsets = [0, 128], sizes = [2, 8], strides = [1, 1]} : vector<2x136xf32> to vector<2x8xf32>
    %307 = arith.addf %305, %306 : vector<2x8xf32>
    %cst_118 = arith.constant dense<0xFF800000> : vector<2xf32>
    %308 = vector.multi_reduction <maximumf>, %307, %cst_118 [1] : vector<2x8xf32> to vector<2xf32>
    %309 = vector.shape_cast %308 : vector<2xf32> to vector<2x1xf32>
    %310 = vector.broadcast %309 : vector<2x1xf32> to vector<2x8xf32>
    %311 = arith.subf %307, %310 : vector<2x8xf32>
    %312 = math.exp %311 : vector<2x8xf32>
    %cst_119 = arith.constant dense<0.000000e+00> : vector<2xf32>
    %313 = vector.multi_reduction <add>, %312, %cst_119 [1] : vector<2x8xf32> to vector<2xf32>
    %314 = vector.shape_cast %313 : vector<2xf32> to vector<2x1xf32>
    %315 = tpu.reciprocal %314 : vector<2x1xf32> -> vector<2x1xf32>
    %316 = vector.broadcast %315 : vector<2x1xf32> to vector<2x8xf32>
    %317 = arith.mulf %312, %316 : vector<2x8xf32>
    %c0_120 = arith.constant 0 : index
    %c3 = arith.constant 3 : index
    %c0_121 = arith.constant 0 : index
    %318 = vector.load %arg17[%c0_120, %c3, %c0_121] : memref<2x8x8xf32, #tpu.memory_space<vmem>>, vector<2x1x8xf32>
    %319 = vector.shape_cast %318 : vector<2x1x8xf32> to vector<2x8xf32>
    %320 = vector.shape_cast %317 : vector<2x8xf32> to vector<2x1x8xf32>
    tpu.vector_store %arg17[%c0_120, %c3, %c0_121], %320 {strides = array<i32>} : memref<2x8x8xf32, #tpu.memory_space<vmem>>, vector<2x1x8xf32>,
    %321 = vector.shape_cast %317 : vector<2x8xf32> to vector<2x8x1xf32>
    %322 = vector.broadcast %321 : vector<2x8x1xf32> to vector<2x8x32xf32>
    %323 = arith.mulf %322, %0 : vector<2x8x32xf32>
    %cst_122 = arith.constant dense<0.000000e+00> : vector<2x32xf32>
    %324 = vector.multi_reduction <add>, %323, %cst_122 [1] : vector<2x8x32xf32> to vector<2x32xf32>
    %325 = vector.extract_strided_slice %302 {offsets = [0, 8], sizes = [2, 32], strides = [1, 1]} : vector<2x40xf32> to vector<2x32xf32>
    %cst_123 = arith.constant dense<0.000000e+00> : vector<2x32xf32>
    %326 = tpu.matmul %324, %16, %cst_123 {dimension_numbers = #tpu.dot_dimension_numbers<[1], [0], [0], [1], [0, 0, 1, 1], [], []>} : vector<2x32xf32>, vector<32x32xf32>, vector<2x32xf32> -> vector<2x32xf32>
    %327 = arith.addf %325, %326 : vector<2x32xf32>
    %cst_124 = arith.constant 0.000000e+00 : f32
    %328 = vector.broadcast %cst_124 : f32 to vector<2x32xf32>
    %329 = arith.maximumf %327, %328 : vector<2x32xf32>
    %c0_125 = arith.constant 0 : index
    %c0_126 = arith.constant 0 : index
    %330 = vector.load %arg8[%c0_125, %c0_126] : memref<32x128xf32, #tpu.memory_space<vmem>>, vector<32x128xf32>
    %cst_127 = arith.constant dense<0.000000e+00> : vector<2x128xf32>
    %331 = tpu.matmul %329, %330, %cst_127 {dimension_numbers = #tpu.dot_dimension_numbers<[1], [0], [0], [1], [0, 0, 1, 1], [], []>} : vector<2x32xf32>, vector<32x128xf32>, vector<2x128xf32> -> vector<2x128xf32>
    %332 = vector.extract_strided_slice %304 {offsets = [0, 0], sizes = [2, 128], strides = [1, 1]} : vector<2x136xf32> to vector<2x128xf32>
    %333 = arith.addf %331, %332 : vector<2x128xf32>
    %334 = arith.addf %333, %6 : vector<2x128xf32>
    %335 = arith.negf %334 : vector<2x128xf32>
    %336 = math.exp %335 : vector<2x128xf32>
    %cst_128 = arith.constant 1.000000e+00 : f32
    %337 = vector.broadcast %cst_128 : f32 to vector<2x128xf32>
    %338 = arith.addf %337, %336 : vector<2x128xf32>
    %339 = arith.divf %337, %338 : vector<2x128xf32>
    %340 = math.tanh %334 : vector<2x128xf32>
    %341 = vector.extract_strided_slice %339 {offsets = [0, 0], sizes = [2, 32], strides = [1, 1]} : vector<2x128xf32> to vector<2x32xf32>
    %342 = vector.extract_strided_slice %339 {offsets = [0, 32], sizes = [2, 32], strides = [1, 1]} : vector<2x128xf32> to vector<2x32xf32>
    %343 = vector.extract_strided_slice %340 {offsets = [0, 64], sizes = [2, 32], strides = [1, 1]} : vector<2x128xf32> to vector<2x32xf32>
    %344 = vector.extract_strided_slice %339 {offsets = [0, 96], sizes = [2, 32], strides = [1, 1]} : vector<2x128xf32> to vector<2x32xf32>
    %345 = arith.mulf %342, %290 : vector<2x32xf32>
    %346 = arith.mulf %341, %343 : vector<2x32xf32>
    %347 = arith.addf %345, %346 : vector<2x32xf32>
    %348 = math.tanh %347 : vector<2x32xf32>
    %349 = arith.mulf %344, %348 : vector<2x32xf32>
    %c0_129 = arith.constant 0 : index
    %c0_130 = arith.constant 0 : index
    %350 = vector.load %arg10[%c0_129, %c0_130] : memref<32x128xf32, #tpu.memory_space<vmem>>, vector<32x128xf32>
    %cst_131 = arith.constant dense<0.000000e+00> : vector<2x128xf32>
    %351 = tpu.matmul %349, %350, %cst_131 {dimension_numbers = #tpu.dot_dimension_numbers<[1], [0], [0], [1], [0, 0, 1, 1], [], []>} : vector<2x32xf32>, vector<32x128xf32>, vector<2x128xf32> -> vector<2x128xf32>
    %352 = arith.addf %351, %9 : vector<2x128xf32>
    %353 = arith.negf %352 : vector<2x128xf32>
    %354 = math.exp %353 : vector<2x128xf32>
    %cst_132 = arith.constant 1.000000e+00 : f32
    %355 = vector.broadcast %cst_132 : f32 to vector<2x128xf32>
    %356 = arith.addf %355, %354 : vector<2x128xf32>
    %357 = arith.divf %355, %356 : vector<2x128xf32>
    %358 = math.tanh %352 : vector<2x128xf32>
    %359 = vector.extract_strided_slice %357 {offsets = [0, 0], sizes = [2, 32], strides = [1, 1]} : vector<2x128xf32> to vector<2x32xf32>
    %360 = vector.extract_strided_slice %357 {offsets = [0, 32], sizes = [2, 32], strides = [1, 1]} : vector<2x128xf32> to vector<2x32xf32>
    %361 = vector.extract_strided_slice %358 {offsets = [0, 64], sizes = [2, 32], strides = [1, 1]} : vector<2x128xf32> to vector<2x32xf32>
    %362 = vector.extract_strided_slice %357 {offsets = [0, 96], sizes = [2, 32], strides = [1, 1]} : vector<2x128xf32> to vector<2x32xf32>
    %363 = arith.mulf %360, %347 : vector<2x32xf32>
    %364 = arith.mulf %359, %361 : vector<2x32xf32>
    %365 = arith.addf %363, %364 : vector<2x32xf32>
    %366 = math.tanh %365 : vector<2x32xf32>
    %367 = arith.mulf %362, %366 : vector<2x32xf32>
    %c0_133 = arith.constant 0 : index
    %c0_134 = arith.constant 0 : index
    %368 = vector.load %arg12[%c0_133, %c0_134] : memref<32x128xf32, #tpu.memory_space<vmem>>, vector<32x128xf32>
    %cst_135 = arith.constant dense<0.000000e+00> : vector<2x128xf32>
    %369 = tpu.matmul %367, %368, %cst_135 {dimension_numbers = #tpu.dot_dimension_numbers<[1], [0], [0], [1], [0, 0, 1, 1], [], []>} : vector<2x32xf32>, vector<32x128xf32>, vector<2x128xf32> -> vector<2x128xf32>
    %370 = arith.addf %369, %12 : vector<2x128xf32>
    %371 = arith.negf %370 : vector<2x128xf32>
    %372 = math.exp %371 : vector<2x128xf32>
    %cst_136 = arith.constant 1.000000e+00 : f32
    %373 = vector.broadcast %cst_136 : f32 to vector<2x128xf32>
    %374 = arith.addf %373, %372 : vector<2x128xf32>
    %375 = arith.divf %373, %374 : vector<2x128xf32>
    %376 = math.tanh %370 : vector<2x128xf32>
    %377 = vector.extract_strided_slice %375 {offsets = [0, 0], sizes = [2, 32], strides = [1, 1]} : vector<2x128xf32> to vector<2x32xf32>
    %378 = vector.extract_strided_slice %375 {offsets = [0, 32], sizes = [2, 32], strides = [1, 1]} : vector<2x128xf32> to vector<2x32xf32>
    %379 = vector.extract_strided_slice %376 {offsets = [0, 64], sizes = [2, 32], strides = [1, 1]} : vector<2x128xf32> to vector<2x32xf32>
    %380 = vector.extract_strided_slice %375 {offsets = [0, 96], sizes = [2, 32], strides = [1, 1]} : vector<2x128xf32> to vector<2x32xf32>
    %381 = arith.mulf %378, %365 : vector<2x32xf32>
    %382 = arith.mulf %377, %379 : vector<2x32xf32>
    %383 = arith.addf %381, %382 : vector<2x32xf32>
    %384 = math.tanh %383 : vector<2x32xf32>
    %385 = arith.mulf %380, %384 : vector<2x32xf32>
    %cst_137 = arith.constant dense<0.000000e+00> : vector<2x32xf32>
    %386 = tpu.matmul %385, %17, %cst_137 {dimension_numbers = #tpu.dot_dimension_numbers<[1], [0], [0], [1], [0, 0, 1, 1], [], []>} : vector<2x32xf32>, vector<32x32xf32>, vector<2x32xf32> -> vector<2x32xf32>
    %387 = arith.addf %386, %15 : vector<2x32xf32>
    %cst_138 = arith.constant 0.000000e+00 : f32
    %388 = vector.broadcast %cst_138 : f32 to vector<2x32xf32>
    %389 = arith.maximumf %387, %388 : vector<2x32xf32>
    %c0_139 = arith.constant 0 : index
    %c3_140 = arith.constant 3 : index
    %c0_141 = arith.constant 0 : index
    %390 = vector.load %arg16[%c0_139, %c3_140, %c0_141] : memref<2x8x32xf32, #tpu.memory_space<vmem>>, vector<2x1x32xf32>
    %391 = vector.shape_cast %390 : vector<2x1x32xf32> to vector<2x32xf32>
    %392 = vector.shape_cast %389 : vector<2x32xf32> to vector<2x1x32xf32>
    tpu.vector_store %arg16[%c0_139, %c3_140, %c0_141], %392 {strides = array<i32>} : memref<2x8x32xf32, #tpu.memory_space<vmem>>, vector<2x1x32xf32>,
    %c0_142 = arith.constant 0 : index
    %c0_143 = arith.constant 0 : index
    %393 = vector.load %arg4[%c0_142, %c0_143] : memref<32x40xf32, #tpu.memory_space<vmem>>, vector<32x40xf32>
    %cst_144 = arith.constant dense<0.000000e+00> : vector<2x40xf32>
    %394 = tpu.matmul %389, %393, %cst_144 {dimension_numbers = #tpu.dot_dimension_numbers<[1], [0], [0], [1], [0, 0, 1, 1], [], []>} : vector<2x32xf32>, vector<32x40xf32>, vector<2x40xf32> -> vector<2x40xf32>
    %395 = arith.addf %394, %3 : vector<2x40xf32>
    %c0_145 = arith.constant 0 : index
    %c0_146 = arith.constant 0 : index
    %396 = vector.load %arg7[%c0_145, %c0_146] : memref<32x136xf32, #tpu.memory_space<vmem>>, vector<32x136xf32>
    %cst_147 = arith.constant dense<0.000000e+00> : vector<2x136xf32>
    %397 = tpu.matmul %385, %396, %cst_147 {dimension_numbers = #tpu.dot_dimension_numbers<[1], [0], [0], [1], [0, 0, 1, 1], [], []>} : vector<2x32xf32>, vector<32x136xf32>, vector<2x136xf32> -> vector<2x136xf32>
    %398 = vector.extract_strided_slice %395 {offsets = [0, 0], sizes = [2, 8], strides = [1, 1]} : vector<2x40xf32> to vector<2x8xf32>
    %399 = vector.extract_strided_slice %397 {offsets = [0, 128], sizes = [2, 8], strides = [1, 1]} : vector<2x136xf32> to vector<2x8xf32>
    %400 = arith.addf %398, %399 : vector<2x8xf32>
    %cst_148 = arith.constant dense<0xFF800000> : vector<2xf32>
    %401 = vector.multi_reduction <maximumf>, %400, %cst_148 [1] : vector<2x8xf32> to vector<2xf32>
    %402 = vector.shape_cast %401 : vector<2xf32> to vector<2x1xf32>
    %403 = vector.broadcast %402 : vector<2x1xf32> to vector<2x8xf32>
    %404 = arith.subf %400, %403 : vector<2x8xf32>
    %405 = math.exp %404 : vector<2x8xf32>
    %cst_149 = arith.constant dense<0.000000e+00> : vector<2xf32>
    %406 = vector.multi_reduction <add>, %405, %cst_149 [1] : vector<2x8xf32> to vector<2xf32>
    %407 = vector.shape_cast %406 : vector<2xf32> to vector<2x1xf32>
    %408 = tpu.reciprocal %407 : vector<2x1xf32> -> vector<2x1xf32>
    %409 = vector.broadcast %408 : vector<2x1xf32> to vector<2x8xf32>
    %410 = arith.mulf %405, %409 : vector<2x8xf32>
    %c0_150 = arith.constant 0 : index
    %c4 = arith.constant 4 : index
    %c0_151 = arith.constant 0 : index
    %411 = vector.load %arg17[%c0_150, %c4, %c0_151] : memref<2x8x8xf32, #tpu.memory_space<vmem>>, vector<2x1x8xf32>
    %412 = vector.shape_cast %411 : vector<2x1x8xf32> to vector<2x8xf32>
    %413 = vector.shape_cast %410 : vector<2x8xf32> to vector<2x1x8xf32>
    tpu.vector_store %arg17[%c0_150, %c4, %c0_151], %413 {strides = array<i32>} : memref<2x8x8xf32, #tpu.memory_space<vmem>>, vector<2x1x8xf32>,
    %414 = vector.shape_cast %410 : vector<2x8xf32> to vector<2x8x1xf32>
    %415 = vector.broadcast %414 : vector<2x8x1xf32> to vector<2x8x32xf32>
    %416 = arith.mulf %415, %0 : vector<2x8x32xf32>
    %cst_152 = arith.constant dense<0.000000e+00> : vector<2x32xf32>
    %417 = vector.multi_reduction <add>, %416, %cst_152 [1] : vector<2x8x32xf32> to vector<2x32xf32>
    %418 = vector.extract_strided_slice %395 {offsets = [0, 8], sizes = [2, 32], strides = [1, 1]} : vector<2x40xf32> to vector<2x32xf32>
    %cst_153 = arith.constant dense<0.000000e+00> : vector<2x32xf32>
    %419 = tpu.matmul %417, %16, %cst_153 {dimension_numbers = #tpu.dot_dimension_numbers<[1], [0], [0], [1], [0, 0, 1, 1], [], []>} : vector<2x32xf32>, vector<32x32xf32>, vector<2x32xf32> -> vector<2x32xf32>
    %420 = arith.addf %418, %419 : vector<2x32xf32>
    %cst_154 = arith.constant 0.000000e+00 : f32
    %421 = vector.broadcast %cst_154 : f32 to vector<2x32xf32>
    %422 = arith.maximumf %420, %421 : vector<2x32xf32>
    %c0_155 = arith.constant 0 : index
    %c0_156 = arith.constant 0 : index
    %423 = vector.load %arg8[%c0_155, %c0_156] : memref<32x128xf32, #tpu.memory_space<vmem>>, vector<32x128xf32>
    %cst_157 = arith.constant dense<0.000000e+00> : vector<2x128xf32>
    %424 = tpu.matmul %422, %423, %cst_157 {dimension_numbers = #tpu.dot_dimension_numbers<[1], [0], [0], [1], [0, 0, 1, 1], [], []>} : vector<2x32xf32>, vector<32x128xf32>, vector<2x128xf32> -> vector<2x128xf32>
    %425 = vector.extract_strided_slice %397 {offsets = [0, 0], sizes = [2, 128], strides = [1, 1]} : vector<2x136xf32> to vector<2x128xf32>
    %426 = arith.addf %424, %425 : vector<2x128xf32>
    %427 = arith.addf %426, %6 : vector<2x128xf32>
    %428 = arith.negf %427 : vector<2x128xf32>
    %429 = math.exp %428 : vector<2x128xf32>
    %cst_158 = arith.constant 1.000000e+00 : f32
    %430 = vector.broadcast %cst_158 : f32 to vector<2x128xf32>
    %431 = arith.addf %430, %429 : vector<2x128xf32>
    %432 = arith.divf %430, %431 : vector<2x128xf32>
    %433 = math.tanh %427 : vector<2x128xf32>
    %434 = vector.extract_strided_slice %432 {offsets = [0, 0], sizes = [2, 32], strides = [1, 1]} : vector<2x128xf32> to vector<2x32xf32>
    %435 = vector.extract_strided_slice %432 {offsets = [0, 32], sizes = [2, 32], strides = [1, 1]} : vector<2x128xf32> to vector<2x32xf32>
    %436 = vector.extract_strided_slice %433 {offsets = [0, 64], sizes = [2, 32], strides = [1, 1]} : vector<2x128xf32> to vector<2x32xf32>
    %437 = vector.extract_strided_slice %432 {offsets = [0, 96], sizes = [2, 32], strides = [1, 1]} : vector<2x128xf32> to vector<2x32xf32>
    %438 = arith.mulf %435, %383 : vector<2x32xf32>
    %439 = arith.mulf %434, %436 : vector<2x32xf32>
    %440 = arith.addf %438, %439 : vector<2x32xf32>
    %441 = math.tanh %440 : vector<2x32xf32>
    %442 = arith.mulf %437, %441 : vector<2x32xf32>
    %c0_159 = arith.constant 0 : index
    %c0_160 = arith.constant 0 : index
    %443 = vector.load %arg10[%c0_159, %c0_160] : memref<32x128xf32, #tpu.memory_space<vmem>>, vector<32x128xf32>
    %cst_161 = arith.constant dense<0.000000e+00> : vector<2x128xf32>
    %444 = tpu.matmul %442, %443, %cst_161 {dimension_numbers = #tpu.dot_dimension_numbers<[1], [0], [0], [1], [0, 0, 1, 1], [], []>} : vector<2x32xf32>, vector<32x128xf32>, vector<2x128xf32> -> vector<2x128xf32>
    %445 = arith.addf %444, %9 : vector<2x128xf32>
    %446 = arith.negf %445 : vector<2x128xf32>
    %447 = math.exp %446 : vector<2x128xf32>
    %cst_162 = arith.constant 1.000000e+00 : f32
    %448 = vector.broadcast %cst_162 : f32 to vector<2x128xf32>
    %449 = arith.addf %448, %447 : vector<2x128xf32>
    %450 = arith.divf %448, %449 : vector<2x128xf32>
    %451 = math.tanh %445 : vector<2x128xf32>
    %452 = vector.extract_strided_slice %450 {offsets = [0, 0], sizes = [2, 32], strides = [1, 1]} : vector<2x128xf32> to vector<2x32xf32>
    %453 = vector.extract_strided_slice %450 {offsets = [0, 32], sizes = [2, 32], strides = [1, 1]} : vector<2x128xf32> to vector<2x32xf32>
    %454 = vector.extract_strided_slice %451 {offsets = [0, 64], sizes = [2, 32], strides = [1, 1]} : vector<2x128xf32> to vector<2x32xf32>
    %455 = vector.extract_strided_slice %450 {offsets = [0, 96], sizes = [2, 32], strides = [1, 1]} : vector<2x128xf32> to vector<2x32xf32>
    %456 = arith.mulf %453, %440 : vector<2x32xf32>
    %457 = arith.mulf %452, %454 : vector<2x32xf32>
    %458 = arith.addf %456, %457 : vector<2x32xf32>
    %459 = math.tanh %458 : vector<2x32xf32>
    %460 = arith.mulf %455, %459 : vector<2x32xf32>
    %c0_163 = arith.constant 0 : index
    %c0_164 = arith.constant 0 : index
    %461 = vector.load %arg12[%c0_163, %c0_164] : memref<32x128xf32, #tpu.memory_space<vmem>>, vector<32x128xf32>
    %cst_165 = arith.constant dense<0.000000e+00> : vector<2x128xf32>
    %462 = tpu.matmul %460, %461, %cst_165 {dimension_numbers = #tpu.dot_dimension_numbers<[1], [0], [0], [1], [0, 0, 1, 1], [], []>} : vector<2x32xf32>, vector<32x128xf32>, vector<2x128xf32> -> vector<2x128xf32>
    %463 = arith.addf %462, %12 : vector<2x128xf32>
    %464 = arith.negf %463 : vector<2x128xf32>
    %465 = math.exp %464 : vector<2x128xf32>
    %cst_166 = arith.constant 1.000000e+00 : f32
    %466 = vector.broadcast %cst_166 : f32 to vector<2x128xf32>
    %467 = arith.addf %466, %465 : vector<2x128xf32>
    %468 = arith.divf %466, %467 : vector<2x128xf32>
    %469 = math.tanh %463 : vector<2x128xf32>
    %470 = vector.extract_strided_slice %468 {offsets = [0, 0], sizes = [2, 32], strides = [1, 1]} : vector<2x128xf32> to vector<2x32xf32>
    %471 = vector.extract_strided_slice %468 {offsets = [0, 32], sizes = [2, 32], strides = [1, 1]} : vector<2x128xf32> to vector<2x32xf32>
    %472 = vector.extract_strided_slice %469 {offsets = [0, 64], sizes = [2, 32], strides = [1, 1]} : vector<2x128xf32> to vector<2x32xf32>
    %473 = vector.extract_strided_slice %468 {offsets = [0, 96], sizes = [2, 32], strides = [1, 1]} : vector<2x128xf32> to vector<2x32xf32>
    %474 = arith.mulf %471, %458 : vector<2x32xf32>
    %475 = arith.mulf %470, %472 : vector<2x32xf32>
    %476 = arith.addf %474, %475 : vector<2x32xf32>
    %477 = math.tanh %476 : vector<2x32xf32>
    %478 = arith.mulf %473, %477 : vector<2x32xf32>
    %cst_167 = arith.constant dense<0.000000e+00> : vector<2x32xf32>
    %479 = tpu.matmul %478, %17, %cst_167 {dimension_numbers = #tpu.dot_dimension_numbers<[1], [0], [0], [1], [0, 0, 1, 1], [], []>} : vector<2x32xf32>, vector<32x32xf32>, vector<2x32xf32> -> vector<2x32xf32>
    %480 = arith.addf %479, %15 : vector<2x32xf32>
    %cst_168 = arith.constant 0.000000e+00 : f32
    %481 = vector.broadcast %cst_168 : f32 to vector<2x32xf32>
    %482 = arith.maximumf %480, %481 : vector<2x32xf32>
    %c0_169 = arith.constant 0 : index
    %c4_170 = arith.constant 4 : index
    %c0_171 = arith.constant 0 : index
    %483 = vector.load %arg16[%c0_169, %c4_170, %c0_171] : memref<2x8x32xf32, #tpu.memory_space<vmem>>, vector<2x1x32xf32>
    %484 = vector.shape_cast %483 : vector<2x1x32xf32> to vector<2x32xf32>
    %485 = vector.shape_cast %482 : vector<2x32xf32> to vector<2x1x32xf32>
    tpu.vector_store %arg16[%c0_169, %c4_170, %c0_171], %485 {strides = array<i32>} : memref<2x8x32xf32, #tpu.memory_space<vmem>>, vector<2x1x32xf32>,
    %c0_172 = arith.constant 0 : index
    %c0_173 = arith.constant 0 : index
    %486 = vector.load %arg4[%c0_172, %c0_173] : memref<32x40xf32, #tpu.memory_space<vmem>>, vector<32x40xf32>
    %cst_174 = arith.constant dense<0.000000e+00> : vector<2x40xf32>
    %487 = tpu.matmul %482, %486, %cst_174 {dimension_numbers = #tpu.dot_dimension_numbers<[1], [0], [0], [1], [0, 0, 1, 1], [], []>} : vector<2x32xf32>, vector<32x40xf32>, vector<2x40xf32> -> vector<2x40xf32>
    %488 = arith.addf %487, %3 : vector<2x40xf32>
    %c0_175 = arith.constant 0 : index
    %c0_176 = arith.constant 0 : index
    %489 = vector.load %arg7[%c0_175, %c0_176] : memref<32x136xf32, #tpu.memory_space<vmem>>, vector<32x136xf32>
    %cst_177 = arith.constant dense<0.000000e+00> : vector<2x136xf32>
    %490 = tpu.matmul %478, %489, %cst_177 {dimension_numbers = #tpu.dot_dimension_numbers<[1], [0], [0], [1], [0, 0, 1, 1], [], []>} : vector<2x32xf32>, vector<32x136xf32>, vector<2x136xf32> -> vector<2x136xf32>
    %491 = vector.extract_strided_slice %488 {offsets = [0, 0], sizes = [2, 8], strides = [1, 1]} : vector<2x40xf32> to vector<2x8xf32>
    %492 = vector.extract_strided_slice %490 {offsets = [0, 128], sizes = [2, 8], strides = [1, 1]} : vector<2x136xf32> to vector<2x8xf32>
    %493 = arith.addf %491, %492 : vector<2x8xf32>
    %cst_178 = arith.constant dense<0xFF800000> : vector<2xf32>
    %494 = vector.multi_reduction <maximumf>, %493, %cst_178 [1] : vector<2x8xf32> to vector<2xf32>
    %495 = vector.shape_cast %494 : vector<2xf32> to vector<2x1xf32>
    %496 = vector.broadcast %495 : vector<2x1xf32> to vector<2x8xf32>
    %497 = arith.subf %493, %496 : vector<2x8xf32>
    %498 = math.exp %497 : vector<2x8xf32>
    %cst_179 = arith.constant dense<0.000000e+00> : vector<2xf32>
    %499 = vector.multi_reduction <add>, %498, %cst_179 [1] : vector<2x8xf32> to vector<2xf32>
    %500 = vector.shape_cast %499 : vector<2xf32> to vector<2x1xf32>
    %501 = tpu.reciprocal %500 : vector<2x1xf32> -> vector<2x1xf32>
    %502 = vector.broadcast %501 : vector<2x1xf32> to vector<2x8xf32>
    %503 = arith.mulf %498, %502 : vector<2x8xf32>
    %c0_180 = arith.constant 0 : index
    %c5 = arith.constant 5 : index
    %c0_181 = arith.constant 0 : index
    %504 = vector.load %arg17[%c0_180, %c5, %c0_181] : memref<2x8x8xf32, #tpu.memory_space<vmem>>, vector<2x1x8xf32>
    %505 = vector.shape_cast %504 : vector<2x1x8xf32> to vector<2x8xf32>
    %506 = vector.shape_cast %503 : vector<2x8xf32> to vector<2x1x8xf32>
    tpu.vector_store %arg17[%c0_180, %c5, %c0_181], %506 {strides = array<i32>} : memref<2x8x8xf32, #tpu.memory_space<vmem>>, vector<2x1x8xf32>,
    %507 = vector.shape_cast %503 : vector<2x8xf32> to vector<2x8x1xf32>
    %508 = vector.broadcast %507 : vector<2x8x1xf32> to vector<2x8x32xf32>
    %509 = arith.mulf %508, %0 : vector<2x8x32xf32>
    %cst_182 = arith.constant dense<0.000000e+00> : vector<2x32xf32>
    %510 = vector.multi_reduction <add>, %509, %cst_182 [1] : vector<2x8x32xf32> to vector<2x32xf32>
    %511 = vector.extract_strided_slice %488 {offsets = [0, 8], sizes = [2, 32], strides = [1, 1]} : vector<2x40xf32> to vector<2x32xf32>
    %cst_183 = arith.constant dense<0.000000e+00> : vector<2x32xf32>
    %512 = tpu.matmul %510, %16, %cst_183 {dimension_numbers = #tpu.dot_dimension_numbers<[1], [0], [0], [1], [0, 0, 1, 1], [], []>} : vector<2x32xf32>, vector<32x32xf32>, vector<2x32xf32> -> vector<2x32xf32>
    %513 = arith.addf %511, %512 : vector<2x32xf32>
    %cst_184 = arith.constant 0.000000e+00 : f32
    %514 = vector.broadcast %cst_184 : f32 to vector<2x32xf32>
    %515 = arith.maximumf %513, %514 : vector<2x32xf32>
    %c0_185 = arith.constant 0 : index
    %c0_186 = arith.constant 0 : index
    %516 = vector.load %arg8[%c0_185, %c0_186] : memref<32x128xf32, #tpu.memory_space<vmem>>, vector<32x128xf32>
    %cst_187 = arith.constant dense<0.000000e+00> : vector<2x128xf32>
    %517 = tpu.matmul %515, %516, %cst_187 {dimension_numbers = #tpu.dot_dimension_numbers<[1], [0], [0], [1], [0, 0, 1, 1], [], []>} : vector<2x32xf32>, vector<32x128xf32>, vector<2x128xf32> -> vector<2x128xf32>
    %518 = vector.extract_strided_slice %490 {offsets = [0, 0], sizes = [2, 128], strides = [1, 1]} : vector<2x136xf32> to vector<2x128xf32>
    %519 = arith.addf %517, %518 : vector<2x128xf32>
    %520 = arith.addf %519, %6 : vector<2x128xf32>
    %521 = arith.negf %520 : vector<2x128xf32>
    %522 = math.exp %521 : vector<2x128xf32>
    %cst_188 = arith.constant 1.000000e+00 : f32
    %523 = vector.broadcast %cst_188 : f32 to vector<2x128xf32>
    %524 = arith.addf %523, %522 : vector<2x128xf32>
    %525 = arith.divf %523, %524 : vector<2x128xf32>
    %526 = math.tanh %520 : vector<2x128xf32>
    %527 = vector.extract_strided_slice %525 {offsets = [0, 0], sizes = [2, 32], strides = [1, 1]} : vector<2x128xf32> to vector<2x32xf32>
    %528 = vector.extract_strided_slice %525 {offsets = [0, 32], sizes = [2, 32], strides = [1, 1]} : vector<2x128xf32> to vector<2x32xf32>
    %529 = vector.extract_strided_slice %526 {offsets = [0, 64], sizes = [2, 32], strides = [1, 1]} : vector<2x128xf32> to vector<2x32xf32>
    %530 = vector.extract_strided_slice %525 {offsets = [0, 96], sizes = [2, 32], strides = [1, 1]} : vector<2x128xf32> to vector<2x32xf32>
    %531 = arith.mulf %528, %476 : vector<2x32xf32>
    %532 = arith.mulf %527, %529 : vector<2x32xf32>
    %533 = arith.addf %531, %532 : vector<2x32xf32>
    %534 = math.tanh %533 : vector<2x32xf32>
    %535 = arith.mulf %530, %534 : vector<2x32xf32>
    %c0_189 = arith.constant 0 : index
    %c0_190 = arith.constant 0 : index
    %536 = vector.load %arg10[%c0_189, %c0_190] : memref<32x128xf32, #tpu.memory_space<vmem>>, vector<32x128xf32>
    %cst_191 = arith.constant dense<0.000000e+00> : vector<2x128xf32>
    %537 = tpu.matmul %535, %536, %cst_191 {dimension_numbers = #tpu.dot_dimension_numbers<[1], [0], [0], [1], [0, 0, 1, 1], [], []>} : vector<2x32xf32>, vector<32x128xf32>, vector<2x128xf32> -> vector<2x128xf32>
    %538 = arith.addf %537, %9 : vector<2x128xf32>
    %539 = arith.negf %538 : vector<2x128xf32>
    %540 = math.exp %539 : vector<2x128xf32>
    %cst_192 = arith.constant 1.000000e+00 : f32
    %541 = vector.broadcast %cst_192 : f32 to vector<2x128xf32>
    %542 = arith.addf %541, %540 : vector<2x128xf32>
    %543 = arith.divf %541, %542 : vector<2x128xf32>
    %544 = math.tanh %538 : vector<2x128xf32>
    %545 = vector.extract_strided_slice %543 {offsets = [0, 0], sizes = [2, 32], strides = [1, 1]} : vector<2x128xf32> to vector<2x32xf32>
    %546 = vector.extract_strided_slice %543 {offsets = [0, 32], sizes = [2, 32], strides = [1, 1]} : vector<2x128xf32> to vector<2x32xf32>
    %547 = vector.extract_strided_slice %544 {offsets = [0, 64], sizes = [2, 32], strides = [1, 1]} : vector<2x128xf32> to vector<2x32xf32>
    %548 = vector.extract_strided_slice %543 {offsets = [0, 96], sizes = [2, 32], strides = [1, 1]} : vector<2x128xf32> to vector<2x32xf32>
    %549 = arith.mulf %546, %533 : vector<2x32xf32>
    %550 = arith.mulf %545, %547 : vector<2x32xf32>
    %551 = arith.addf %549, %550 : vector<2x32xf32>
    %552 = math.tanh %551 : vector<2x32xf32>
    %553 = arith.mulf %548, %552 : vector<2x32xf32>
    %c0_193 = arith.constant 0 : index
    %c0_194 = arith.constant 0 : index
    %554 = vector.load %arg12[%c0_193, %c0_194] : memref<32x128xf32, #tpu.memory_space<vmem>>, vector<32x128xf32>
    %cst_195 = arith.constant dense<0.000000e+00> : vector<2x128xf32>
    %555 = tpu.matmul %553, %554, %cst_195 {dimension_numbers = #tpu.dot_dimension_numbers<[1], [0], [0], [1], [0, 0, 1, 1], [], []>} : vector<2x32xf32>, vector<32x128xf32>, vector<2x128xf32> -> vector<2x128xf32>
    %556 = arith.addf %555, %12 : vector<2x128xf32>
    %557 = arith.negf %556 : vector<2x128xf32>
    %558 = math.exp %557 : vector<2x128xf32>
    %cst_196 = arith.constant 1.000000e+00 : f32
    %559 = vector.broadcast %cst_196 : f32 to vector<2x128xf32>
    %560 = arith.addf %559, %558 : vector<2x128xf32>
    %561 = arith.divf %559, %560 : vector<2x128xf32>
    %562 = math.tanh %556 : vector<2x128xf32>
    %563 = vector.extract_strided_slice %561 {offsets = [0, 0], sizes = [2, 32], strides = [1, 1]} : vector<2x128xf32> to vector<2x32xf32>
    %564 = vector.extract_strided_slice %561 {offsets = [0, 32], sizes = [2, 32], strides = [1, 1]} : vector<2x128xf32> to vector<2x32xf32>
    %565 = vector.extract_strided_slice %562 {offsets = [0, 64], sizes = [2, 32], strides = [1, 1]} : vector<2x128xf32> to vector<2x32xf32>
    %566 = vector.extract_strided_slice %561 {offsets = [0, 96], sizes = [2, 32], strides = [1, 1]} : vector<2x128xf32> to vector<2x32xf32>
    %567 = arith.mulf %564, %551 : vector<2x32xf32>
    %568 = arith.mulf %563, %565 : vector<2x32xf32>
    %569 = arith.addf %567, %568 : vector<2x32xf32>
    %570 = math.tanh %569 : vector<2x32xf32>
    %571 = arith.mulf %566, %570 : vector<2x32xf32>
    %cst_197 = arith.constant dense<0.000000e+00> : vector<2x32xf32>
    %572 = tpu.matmul %571, %17, %cst_197 {dimension_numbers = #tpu.dot_dimension_numbers<[1], [0], [0], [1], [0, 0, 1, 1], [], []>} : vector<2x32xf32>, vector<32x32xf32>, vector<2x32xf32> -> vector<2x32xf32>
    %573 = arith.addf %572, %15 : vector<2x32xf32>
    %cst_198 = arith.constant 0.000000e+00 : f32
    %574 = vector.broadcast %cst_198 : f32 to vector<2x32xf32>
    %575 = arith.maximumf %573, %574 : vector<2x32xf32>
    %c0_199 = arith.constant 0 : index
    %c5_200 = arith.constant 5 : index
    %c0_201 = arith.constant 0 : index
    %576 = vector.load %arg16[%c0_199, %c5_200, %c0_201] : memref<2x8x32xf32, #tpu.memory_space<vmem>>, vector<2x1x32xf32>
    %577 = vector.shape_cast %576 : vector<2x1x32xf32> to vector<2x32xf32>
    %578 = vector.shape_cast %575 : vector<2x32xf32> to vector<2x1x32xf32>
    tpu.vector_store %arg16[%c0_199, %c5_200, %c0_201], %578 {strides = array<i32>} : memref<2x8x32xf32, #tpu.memory_space<vmem>>, vector<2x1x32xf32>,
    %c0_202 = arith.constant 0 : index
    %c0_203 = arith.constant 0 : index
    %579 = vector.load %arg4[%c0_202, %c0_203] : memref<32x40xf32, #tpu.memory_space<vmem>>, vector<32x40xf32>
    %cst_204 = arith.constant dense<0.000000e+00> : vector<2x40xf32>
    %580 = tpu.matmul %575, %579, %cst_204 {dimension_numbers = #tpu.dot_dimension_numbers<[1], [0], [0], [1], [0, 0, 1, 1], [], []>} : vector<2x32xf32>, vector<32x40xf32>, vector<2x40xf32> -> vector<2x40xf32>
    %581 = arith.addf %580, %3 : vector<2x40xf32>
    %c0_205 = arith.constant 0 : index
    %c0_206 = arith.constant 0 : index
    %582 = vector.load %arg7[%c0_205, %c0_206] : memref<32x136xf32, #tpu.memory_space<vmem>>, vector<32x136xf32>
    %cst_207 = arith.constant dense<0.000000e+00> : vector<2x136xf32>
    %583 = tpu.matmul %571, %582, %cst_207 {dimension_numbers = #tpu.dot_dimension_numbers<[1], [0], [0], [1], [0, 0, 1, 1], [], []>} : vector<2x32xf32>, vector<32x136xf32>, vector<2x136xf32> -> vector<2x136xf32>
    %584 = vector.extract_strided_slice %581 {offsets = [0, 0], sizes = [2, 8], strides = [1, 1]} : vector<2x40xf32> to vector<2x8xf32>
    %585 = vector.extract_strided_slice %583 {offsets = [0, 128], sizes = [2, 8], strides = [1, 1]} : vector<2x136xf32> to vector<2x8xf32>
    %586 = arith.addf %584, %585 : vector<2x8xf32>
    %cst_208 = arith.constant dense<0xFF800000> : vector<2xf32>
    %587 = vector.multi_reduction <maximumf>, %586, %cst_208 [1] : vector<2x8xf32> to vector<2xf32>
    %588 = vector.shape_cast %587 : vector<2xf32> to vector<2x1xf32>
    %589 = vector.broadcast %588 : vector<2x1xf32> to vector<2x8xf32>
    %590 = arith.subf %586, %589 : vector<2x8xf32>
    %591 = math.exp %590 : vector<2x8xf32>
    %cst_209 = arith.constant dense<0.000000e+00> : vector<2xf32>
    %592 = vector.multi_reduction <add>, %591, %cst_209 [1] : vector<2x8xf32> to vector<2xf32>
    %593 = vector.shape_cast %592 : vector<2xf32> to vector<2x1xf32>
    %594 = tpu.reciprocal %593 : vector<2x1xf32> -> vector<2x1xf32>
    %595 = vector.broadcast %594 : vector<2x1xf32> to vector<2x8xf32>
    %596 = arith.mulf %591, %595 : vector<2x8xf32>
    %c0_210 = arith.constant 0 : index
    %c6 = arith.constant 6 : index
    %c0_211 = arith.constant 0 : index
    %597 = vector.load %arg17[%c0_210, %c6, %c0_211] : memref<2x8x8xf32, #tpu.memory_space<vmem>>, vector<2x1x8xf32>
    %598 = vector.shape_cast %597 : vector<2x1x8xf32> to vector<2x8xf32>
    %599 = vector.shape_cast %596 : vector<2x8xf32> to vector<2x1x8xf32>
    tpu.vector_store %arg17[%c0_210, %c6, %c0_211], %599 {strides = array<i32>} : memref<2x8x8xf32, #tpu.memory_space<vmem>>, vector<2x1x8xf32>,
    %600 = vector.shape_cast %596 : vector<2x8xf32> to vector<2x8x1xf32>
    %601 = vector.broadcast %600 : vector<2x8x1xf32> to vector<2x8x32xf32>
    %602 = arith.mulf %601, %0 : vector<2x8x32xf32>
    %cst_212 = arith.constant dense<0.000000e+00> : vector<2x32xf32>
    %603 = vector.multi_reduction <add>, %602, %cst_212 [1] : vector<2x8x32xf32> to vector<2x32xf32>
    %604 = vector.extract_strided_slice %581 {offsets = [0, 8], sizes = [2, 32], strides = [1, 1]} : vector<2x40xf32> to vector<2x32xf32>
    %cst_213 = arith.constant dense<0.000000e+00> : vector<2x32xf32>
    %605 = tpu.matmul %603, %16, %cst_213 {dimension_numbers = #tpu.dot_dimension_numbers<[1], [0], [0], [1], [0, 0, 1, 1], [], []>} : vector<2x32xf32>, vector<32x32xf32>, vector<2x32xf32> -> vector<2x32xf32>
    %606 = arith.addf %604, %605 : vector<2x32xf32>
    %cst_214 = arith.constant 0.000000e+00 : f32
    %607 = vector.broadcast %cst_214 : f32 to vector<2x32xf32>
    %608 = arith.maximumf %606, %607 : vector<2x32xf32>
    %c0_215 = arith.constant 0 : index
    %c0_216 = arith.constant 0 : index
    %609 = vector.load %arg8[%c0_215, %c0_216] : memref<32x128xf32, #tpu.memory_space<vmem>>, vector<32x128xf32>
    %cst_217 = arith.constant dense<0.000000e+00> : vector<2x128xf32>
    %610 = tpu.matmul %608, %609, %cst_217 {dimension_numbers = #tpu.dot_dimension_numbers<[1], [0], [0], [1], [0, 0, 1, 1], [], []>} : vector<2x32xf32>, vector<32x128xf32>, vector<2x128xf32> -> vector<2x128xf32>
    %611 = vector.extract_strided_slice %583 {offsets = [0, 0], sizes = [2, 128], strides = [1, 1]} : vector<2x136xf32> to vector<2x128xf32>
    %612 = arith.addf %610, %611 : vector<2x128xf32>
    %613 = arith.addf %612, %6 : vector<2x128xf32>
    %614 = arith.negf %613 : vector<2x128xf32>
    %615 = math.exp %614 : vector<2x128xf32>
    %cst_218 = arith.constant 1.000000e+00 : f32
    %616 = vector.broadcast %cst_218 : f32 to vector<2x128xf32>
    %617 = arith.addf %616, %615 : vector<2x128xf32>
    %618 = arith.divf %616, %617 : vector<2x128xf32>
    %619 = math.tanh %613 : vector<2x128xf32>
    %620 = vector.extract_strided_slice %618 {offsets = [0, 0], sizes = [2, 32], strides = [1, 1]} : vector<2x128xf32> to vector<2x32xf32>
    %621 = vector.extract_strided_slice %618 {offsets = [0, 32], sizes = [2, 32], strides = [1, 1]} : vector<2x128xf32> to vector<2x32xf32>
    %622 = vector.extract_strided_slice %619 {offsets = [0, 64], sizes = [2, 32], strides = [1, 1]} : vector<2x128xf32> to vector<2x32xf32>
    %623 = vector.extract_strided_slice %618 {offsets = [0, 96], sizes = [2, 32], strides = [1, 1]} : vector<2x128xf32> to vector<2x32xf32>
    %624 = arith.mulf %621, %569 : vector<2x32xf32>
    %625 = arith.mulf %620, %622 : vector<2x32xf32>
    %626 = arith.addf %624, %625 : vector<2x32xf32>
    %627 = math.tanh %626 : vector<2x32xf32>
    %628 = arith.mulf %623, %627 : vector<2x32xf32>
    %c0_219 = arith.constant 0 : index
    %c0_220 = arith.constant 0 : index
    %629 = vector.load %arg10[%c0_219, %c0_220] : memref<32x128xf32, #tpu.memory_space<vmem>>, vector<32x128xf32>
    %cst_221 = arith.constant dense<0.000000e+00> : vector<2x128xf32>
    %630 = tpu.matmul %628, %629, %cst_221 {dimension_numbers = #tpu.dot_dimension_numbers<[1], [0], [0], [1], [0, 0, 1, 1], [], []>} : vector<2x32xf32>, vector<32x128xf32>, vector<2x128xf32> -> vector<2x128xf32>
    %631 = arith.addf %630, %9 : vector<2x128xf32>
    %632 = arith.negf %631 : vector<2x128xf32>
    %633 = math.exp %632 : vector<2x128xf32>
    %cst_222 = arith.constant 1.000000e+00 : f32
    %634 = vector.broadcast %cst_222 : f32 to vector<2x128xf32>
    %635 = arith.addf %634, %633 : vector<2x128xf32>
    %636 = arith.divf %634, %635 : vector<2x128xf32>
    %637 = math.tanh %631 : vector<2x128xf32>
    %638 = vector.extract_strided_slice %636 {offsets = [0, 0], sizes = [2, 32], strides = [1, 1]} : vector<2x128xf32> to vector<2x32xf32>
    %639 = vector.extract_strided_slice %636 {offsets = [0, 32], sizes = [2, 32], strides = [1, 1]} : vector<2x128xf32> to vector<2x32xf32>
    %640 = vector.extract_strided_slice %637 {offsets = [0, 64], sizes = [2, 32], strides = [1, 1]} : vector<2x128xf32> to vector<2x32xf32>
    %641 = vector.extract_strided_slice %636 {offsets = [0, 96], sizes = [2, 32], strides = [1, 1]} : vector<2x128xf32> to vector<2x32xf32>
    %642 = arith.mulf %639, %626 : vector<2x32xf32>
    %643 = arith.mulf %638, %640 : vector<2x32xf32>
    %644 = arith.addf %642, %643 : vector<2x32xf32>
    %645 = math.tanh %644 : vector<2x32xf32>
    %646 = arith.mulf %641, %645 : vector<2x32xf32>
    %c0_223 = arith.constant 0 : index
    %c0_224 = arith.constant 0 : index
    %647 = vector.load %arg12[%c0_223, %c0_224] : memref<32x128xf32, #tpu.memory_space<vmem>>, vector<32x128xf32>
    %cst_225 = arith.constant dense<0.000000e+00> : vector<2x128xf32>
    %648 = tpu.matmul %646, %647, %cst_225 {dimension_numbers = #tpu.dot_dimension_numbers<[1], [0], [0], [1], [0, 0, 1, 1], [], []>} : vector<2x32xf32>, vector<32x128xf32>, vector<2x128xf32> -> vector<2x128xf32>
    %649 = arith.addf %648, %12 : vector<2x128xf32>
    %650 = arith.negf %649 : vector<2x128xf32>
    %651 = math.exp %650 : vector<2x128xf32>
    %cst_226 = arith.constant 1.000000e+00 : f32
    %652 = vector.broadcast %cst_226 : f32 to vector<2x128xf32>
    %653 = arith.addf %652, %651 : vector<2x128xf32>
    %654 = arith.divf %652, %653 : vector<2x128xf32>
    %655 = math.tanh %649 : vector<2x128xf32>
    %656 = vector.extract_strided_slice %654 {offsets = [0, 0], sizes = [2, 32], strides = [1, 1]} : vector<2x128xf32> to vector<2x32xf32>
    %657 = vector.extract_strided_slice %654 {offsets = [0, 32], sizes = [2, 32], strides = [1, 1]} : vector<2x128xf32> to vector<2x32xf32>
    %658 = vector.extract_strided_slice %655 {offsets = [0, 64], sizes = [2, 32], strides = [1, 1]} : vector<2x128xf32> to vector<2x32xf32>
    %659 = vector.extract_strided_slice %654 {offsets = [0, 96], sizes = [2, 32], strides = [1, 1]} : vector<2x128xf32> to vector<2x32xf32>
    %660 = arith.mulf %657, %644 : vector<2x32xf32>
    %661 = arith.mulf %656, %658 : vector<2x32xf32>
    %662 = arith.addf %660, %661 : vector<2x32xf32>
    %663 = math.tanh %662 : vector<2x32xf32>
    %664 = arith.mulf %659, %663 : vector<2x32xf32>
    %cst_227 = arith.constant dense<0.000000e+00> : vector<2x32xf32>
    %665 = tpu.matmul %664, %17, %cst_227 {dimension_numbers = #tpu.dot_dimension_numbers<[1], [0], [0], [1], [0, 0, 1, 1], [], []>} : vector<2x32xf32>, vector<32x32xf32>, vector<2x32xf32> -> vector<2x32xf32>
    %666 = arith.addf %665, %15 : vector<2x32xf32>
    %cst_228 = arith.constant 0.000000e+00 : f32
    %667 = vector.broadcast %cst_228 : f32 to vector<2x32xf32>
    %668 = arith.maximumf %666, %667 : vector<2x32xf32>
    %c0_229 = arith.constant 0 : index
    %c6_230 = arith.constant 6 : index
    %c0_231 = arith.constant 0 : index
    %669 = vector.load %arg16[%c0_229, %c6_230, %c0_231] : memref<2x8x32xf32, #tpu.memory_space<vmem>>, vector<2x1x32xf32>
    %670 = vector.shape_cast %669 : vector<2x1x32xf32> to vector<2x32xf32>
    %671 = vector.shape_cast %668 : vector<2x32xf32> to vector<2x1x32xf32>
    tpu.vector_store %arg16[%c0_229, %c6_230, %c0_231], %671 {strides = array<i32>} : memref<2x8x32xf32, #tpu.memory_space<vmem>>, vector<2x1x32xf32>,
    %c0_232 = arith.constant 0 : index
    %c0_233 = arith.constant 0 : index
    %672 = vector.load %arg4[%c0_232, %c0_233] : memref<32x40xf32, #tpu.memory_space<vmem>>, vector<32x40xf32>
    %cst_234 = arith.constant dense<0.000000e+00> : vector<2x40xf32>
    %673 = tpu.matmul %668, %672, %cst_234 {dimension_numbers = #tpu.dot_dimension_numbers<[1], [0], [0], [1], [0, 0, 1, 1], [], []>} : vector<2x32xf32>, vector<32x40xf32>, vector<2x40xf32> -> vector<2x40xf32>
    %674 = arith.addf %673, %3 : vector<2x40xf32>
    %c0_235 = arith.constant 0 : index
    %c0_236 = arith.constant 0 : index
    %675 = vector.load %arg7[%c0_235, %c0_236] : memref<32x136xf32, #tpu.memory_space<vmem>>, vector<32x136xf32>
    %cst_237 = arith.constant dense<0.000000e+00> : vector<2x136xf32>
    %676 = tpu.matmul %664, %675, %cst_237 {dimension_numbers = #tpu.dot_dimension_numbers<[1], [0], [0], [1], [0, 0, 1, 1], [], []>} : vector<2x32xf32>, vector<32x136xf32>, vector<2x136xf32> -> vector<2x136xf32>
    %677 = vector.extract_strided_slice %674 {offsets = [0, 0], sizes = [2, 8], strides = [1, 1]} : vector<2x40xf32> to vector<2x8xf32>
    %678 = vector.extract_strided_slice %676 {offsets = [0, 128], sizes = [2, 8], strides = [1, 1]} : vector<2x136xf32> to vector<2x8xf32>
    %679 = arith.addf %677, %678 : vector<2x8xf32>
    %cst_238 = arith.constant dense<0xFF800000> : vector<2xf32>
    %680 = vector.multi_reduction <maximumf>, %679, %cst_238 [1] : vector<2x8xf32> to vector<2xf32>
    %681 = vector.shape_cast %680 : vector<2xf32> to vector<2x1xf32>
    %682 = vector.broadcast %681 : vector<2x1xf32> to vector<2x8xf32>
    %683 = arith.subf %679, %682 : vector<2x8xf32>
    %684 = math.exp %683 : vector<2x8xf32>
    %cst_239 = arith.constant dense<0.000000e+00> : vector<2xf32>
    %685 = vector.multi_reduction <add>, %684, %cst_239 [1] : vector<2x8xf32> to vector<2xf32>
    %686 = vector.shape_cast %685 : vector<2xf32> to vector<2x1xf32>
    %687 = tpu.reciprocal %686 : vector<2x1xf32> -> vector<2x1xf32>
    %688 = vector.broadcast %687 : vector<2x1xf32> to vector<2x8xf32>
    %689 = arith.mulf %684, %688 : vector<2x8xf32>
    %c0_240 = arith.constant 0 : index
    %c7 = arith.constant 7 : index
    %c0_241 = arith.constant 0 : index
    %690 = vector.load %arg17[%c0_240, %c7, %c0_241] : memref<2x8x8xf32, #tpu.memory_space<vmem>>, vector<2x1x8xf32>
    %691 = vector.shape_cast %690 : vector<2x1x8xf32> to vector<2x8xf32>
    %692 = vector.shape_cast %689 : vector<2x8xf32> to vector<2x1x8xf32>
    tpu.vector_store %arg17[%c0_240, %c7, %c0_241], %692 {strides = array<i32>} : memref<2x8x8xf32, #tpu.memory_space<vmem>>, vector<2x1x8xf32>,
    %693 = vector.shape_cast %689 : vector<2x8xf32> to vector<2x8x1xf32>
    %694 = vector.broadcast %693 : vector<2x8x1xf32> to vector<2x8x32xf32>
    %695 = arith.mulf %694, %0 : vector<2x8x32xf32>
    %cst_242 = arith.constant dense<0.000000e+00> : vector<2x32xf32>
    %696 = vector.multi_reduction <add>, %695, %cst_242 [1] : vector<2x8x32xf32> to vector<2x32xf32>
    %697 = vector.extract_strided_slice %674 {offsets = [0, 8], sizes = [2, 32], strides = [1, 1]} : vector<2x40xf32> to vector<2x32xf32>
    %cst_243 = arith.constant dense<0.000000e+00> : vector<2x32xf32>
    %698 = tpu.matmul %696, %16, %cst_243 {dimension_numbers = #tpu.dot_dimension_numbers<[1], [0], [0], [1], [0, 0, 1, 1], [], []>} : vector<2x32xf32>, vector<32x32xf32>, vector<2x32xf32> -> vector<2x32xf32>
    %699 = arith.addf %697, %698 : vector<2x32xf32>
    %cst_244 = arith.constant 0.000000e+00 : f32
    %700 = vector.broadcast %cst_244 : f32 to vector<2x32xf32>
    %701 = arith.maximumf %699, %700 : vector<2x32xf32>
    %c0_245 = arith.constant 0 : index
    %c0_246 = arith.constant 0 : index
    %702 = vector.load %arg8[%c0_245, %c0_246] : memref<32x128xf32, #tpu.memory_space<vmem>>, vector<32x128xf32>
    %cst_247 = arith.constant dense<0.000000e+00> : vector<2x128xf32>
    %703 = tpu.matmul %701, %702, %cst_247 {dimension_numbers = #tpu.dot_dimension_numbers<[1], [0], [0], [1], [0, 0, 1, 1], [], []>} : vector<2x32xf32>, vector<32x128xf32>, vector<2x128xf32> -> vector<2x128xf32>
    %704 = vector.extract_strided_slice %676 {offsets = [0, 0], sizes = [2, 128], strides = [1, 1]} : vector<2x136xf32> to vector<2x128xf32>
    %705 = arith.addf %703, %704 : vector<2x128xf32>
    %706 = arith.addf %705, %6 : vector<2x128xf32>
    %707 = arith.negf %706 : vector<2x128xf32>
    %708 = math.exp %707 : vector<2x128xf32>
    %cst_248 = arith.constant 1.000000e+00 : f32
    %709 = vector.broadcast %cst_248 : f32 to vector<2x128xf32>
    %710 = arith.addf %709, %708 : vector<2x128xf32>
    %711 = arith.divf %709, %710 : vector<2x128xf32>
    %712 = math.tanh %706 : vector<2x128xf32>
    %713 = vector.extract_strided_slice %711 {offsets = [0, 0], sizes = [2, 32], strides = [1, 1]} : vector<2x128xf32> to vector<2x32xf32>
    %714 = vector.extract_strided_slice %711 {offsets = [0, 32], sizes = [2, 32], strides = [1, 1]} : vector<2x128xf32> to vector<2x32xf32>
    %715 = vector.extract_strided_slice %712 {offsets = [0, 64], sizes = [2, 32], strides = [1, 1]} : vector<2x128xf32> to vector<2x32xf32>
    %716 = vector.extract_strided_slice %711 {offsets = [0, 96], sizes = [2, 32], strides = [1, 1]} : vector<2x128xf32> to vector<2x32xf32>
    %717 = arith.mulf %714, %662 : vector<2x32xf32>
    %718 = arith.mulf %713, %715 : vector<2x32xf32>
    %719 = arith.addf %717, %718 : vector<2x32xf32>
    %720 = math.tanh %719 : vector<2x32xf32>
    %721 = arith.mulf %716, %720 : vector<2x32xf32>
    %c0_249 = arith.constant 0 : index
    %c0_250 = arith.constant 0 : index
    %722 = vector.load %arg10[%c0_249, %c0_250] : memref<32x128xf32, #tpu.memory_space<vmem>>, vector<32x128xf32>
    %cst_251 = arith.constant dense<0.000000e+00> : vector<2x128xf32>
    %723 = tpu.matmul %721, %722, %cst_251 {dimension_numbers = #tpu.dot_dimension_numbers<[1], [0], [0], [1], [0, 0, 1, 1], [], []>} : vector<2x32xf32>, vector<32x128xf32>, vector<2x128xf32> -> vector<2x128xf32>
    %724 = arith.addf %723, %9 : vector<2x128xf32>
    %725 = arith.negf %724 : vector<2x128xf32>
    %726 = math.exp %725 : vector<2x128xf32>
    %cst_252 = arith.constant 1.000000e+00 : f32
    %727 = vector.broadcast %cst_252 : f32 to vector<2x128xf32>
    %728 = arith.addf %727, %726 : vector<2x128xf32>
    %729 = arith.divf %727, %728 : vector<2x128xf32>
    %730 = math.tanh %724 : vector<2x128xf32>
    %731 = vector.extract_strided_slice %729 {offsets = [0, 0], sizes = [2, 32], strides = [1, 1]} : vector<2x128xf32> to vector<2x32xf32>
    %732 = vector.extract_strided_slice %729 {offsets = [0, 32], sizes = [2, 32], strides = [1, 1]} : vector<2x128xf32> to vector<2x32xf32>
    %733 = vector.extract_strided_slice %730 {offsets = [0, 64], sizes = [2, 32], strides = [1, 1]} : vector<2x128xf32> to vector<2x32xf32>
    %734 = vector.extract_strided_slice %729 {offsets = [0, 96], sizes = [2, 32], strides = [1, 1]} : vector<2x128xf32> to vector<2x32xf32>
    %735 = arith.mulf %732, %719 : vector<2x32xf32>
    %736 = arith.mulf %731, %733 : vector<2x32xf32>
    %737 = arith.addf %735, %736 : vector<2x32xf32>
    %738 = math.tanh %737 : vector<2x32xf32>
    %739 = arith.mulf %734, %738 : vector<2x32xf32>
    %c0_253 = arith.constant 0 : index
    %c0_254 = arith.constant 0 : index
    %740 = vector.load %arg12[%c0_253, %c0_254] : memref<32x128xf32, #tpu.memory_space<vmem>>, vector<32x128xf32>
    %cst_255 = arith.constant dense<0.000000e+00> : vector<2x128xf32>
    %741 = tpu.matmul %739, %740, %cst_255 {dimension_numbers = #tpu.dot_dimension_numbers<[1], [0], [0], [1], [0, 0, 1, 1], [], []>} : vector<2x32xf32>, vector<32x128xf32>, vector<2x128xf32> -> vector<2x128xf32>
    %742 = arith.addf %741, %12 : vector<2x128xf32>
    %743 = arith.negf %742 : vector<2x128xf32>
    %744 = math.exp %743 : vector<2x128xf32>
    %cst_256 = arith.constant 1.000000e+00 : f32
    %745 = vector.broadcast %cst_256 : f32 to vector<2x128xf32>
    %746 = arith.addf %745, %744 : vector<2x128xf32>
    %747 = arith.divf %745, %746 : vector<2x128xf32>
    %748 = math.tanh %742 : vector<2x128xf32>
    %749 = vector.extract_strided_slice %747 {offsets = [0, 0], sizes = [2, 32], strides = [1, 1]} : vector<2x128xf32> to vector<2x32xf32>
    %750 = vector.extract_strided_slice %747 {offsets = [0, 32], sizes = [2, 32], strides = [1, 1]} : vector<2x128xf32> to vector<2x32xf32>
    %751 = vector.extract_strided_slice %748 {offsets = [0, 64], sizes = [2, 32], strides = [1, 1]} : vector<2x128xf32> to vector<2x32xf32>
    %752 = vector.extract_strided_slice %747 {offsets = [0, 96], sizes = [2, 32], strides = [1, 1]} : vector<2x128xf32> to vector<2x32xf32>
    %753 = arith.mulf %750, %737 : vector<2x32xf32>
    %754 = arith.mulf %749, %751 : vector<2x32xf32>
    %755 = arith.addf %753, %754 : vector<2x32xf32>
    %756 = math.tanh %755 : vector<2x32xf32>
    %757 = arith.mulf %752, %756 : vector<2x32xf32>
    %cst_257 = arith.constant dense<0.000000e+00> : vector<2x32xf32>
    %758 = tpu.matmul %757, %17, %cst_257 {dimension_numbers = #tpu.dot_dimension_numbers<[1], [0], [0], [1], [0, 0, 1, 1], [], []>} : vector<2x32xf32>, vector<32x32xf32>, vector<2x32xf32> -> vector<2x32xf32>
    %759 = arith.addf %758, %15 : vector<2x32xf32>
    %cst_258 = arith.constant 0.000000e+00 : f32
    %760 = vector.broadcast %cst_258 : f32 to vector<2x32xf32>
    %761 = arith.maximumf %759, %760 : vector<2x32xf32>
    %c0_259 = arith.constant 0 : index
    %c7_260 = arith.constant 7 : index
    %c0_261 = arith.constant 0 : index
    %762 = vector.load %arg16[%c0_259, %c7_260, %c0_261] : memref<2x8x32xf32, #tpu.memory_space<vmem>>, vector<2x1x32xf32>
    %763 = vector.shape_cast %762 : vector<2x1x32xf32> to vector<2x32xf32>
    %764 = vector.shape_cast %761 : vector<2x32xf32> to vector<2x1x32xf32>
    tpu.vector_store %arg16[%c0_259, %c7_260, %c0_261], %764 {strides = array<i32>} : memref<2x8x32xf32, #tpu.memory_space<vmem>>, vector<2x1x32xf32>,
    return
  }
}

</mosaic_0001>

<llo_original>
// kernel: attn_decoder2_forward.1
$region0: #{attn_decoder2_forward.1}
  #allocation0 [shape = 'u32[]', space=smem, size = 0x4, offset = 0x4, fixed_abs, tag = 'smem constant byte address 0x4 - core index']
  #allocation1 [shape = 'u32[144,128]{1,0:T(1,128)}', space=vmem, size = 0x12000, scoped, tag = 'internal scratch']
  %s0 = inlined_call_operand.vmem [shape: f32[2,32], index: 0, kind: input, shape index: {}]
  %s1 = inlined_call_operand.vmem [shape: f32[2,32], index: 1, kind: input, shape index: {}]
  %s2 = inlined_call_operand.vmem [shape: f32[2,32], index: 2, kind: input, shape index: {}]
  %s3 = inlined_call_operand.vmem [shape: f32[2,8,32], index: 3, kind: input, shape index: {}]
  %s4 = inlined_call_operand.vmem [shape: f32[32,40], index: 4, kind: input, shape index: {}]
  %s5 = inlined_call_operand.vmem [shape: f32[1,40], index: 5, kind: input, shape index: {}]
  %s6 = inlined_call_operand.vmem [shape: f32[32,32], index: 6, kind: input, shape index: {}]
  %s7 = inlined_call_operand.vmem [shape: f32[32,136], index: 7, kind: input, shape index: {}]
  %s8 = inlined_call_operand.vmem [shape: f32[32,128], index: 8, kind: input, shape index: {}]
  %s9 = inlined_call_operand.vmem [shape: f32[1,128], index: 9, kind: input, shape index: {}]
  %s10 = inlined_call_operand.vmem [shape: f32[32,128], index: 10, kind: input, shape index: {}]
  %s11 = inlined_call_operand.vmem [shape: f32[1,128], index: 11, kind: input, shape index: {}]
  %s12 = inlined_call_operand.vmem [shape: f32[32,128], index: 12, kind: input, shape index: {}]
  %s13 = inlined_call_operand.vmem [shape: f32[1,128], index: 13, kind: input, shape index: {}]
  %s14 = inlined_call_operand.vmem [shape: f32[32,32], index: 14, kind: input, shape index: {}]
  %s15 = inlined_call_operand.vmem [shape: f32[1,32], index: 15, kind: input, shape index: {}]
  %s16 = inlined_call_operand.hbm [shape: f32[2,8,32], index: 16, kind: output, shape index: {0}]
  %s17 = inlined_call_operand.hbm [shape: f32[2,8,8], index: 17, kind: output, shape index: {1}]
  %18 = xla_tuple %s16, %s17
  %s19 = sld [smem:[#allocation0]]
  $region82: #{attn_decoder2_forward.1} parent=0
    _
  %s21 = ssub.s32 1, %s19
  %s22 = scalar_select 0, %s21, %s19
  $region1: #{attn_decoder2_forward.1} parent=0
    #allocation2 [shape = 'u8[8192]{0}', space=vmem, size = 0x2000, scoped, tag = 'output window, operand 0, single buffered']
    #allocation3 [shape = 's32[1]{0}', space=sflag, size = 0x4, scoped, tag = 'scoped memory for attn_decoder2_forward.1']
    #allocation4 [shape = 'u8[8192]{0}', space=vmem, size = 0x2000, scoped, tag = 'output window, operand 1, single buffered']
    #allocation5 [shape = 's32[1]{0}', space=sflag, size = 0x4, scoped, tag = 'scoped memory for attn_decoder2_forward.1']
    %23 = vsyncpa [#allocation3], 0
    %24 = vsyncpa [#allocation5], 0
    // Predicated region
    $region2: #{attn_decoder2_forward.1} parent=1 // pred_check
      _
    $region3: #{attn_decoder2_forward.1} parent=1 // pred_check_branch
      %26 = sbr.rel (0) target = $region5
    $region4: #{attn_decoder2_forward.1} parent=1 // pred_region
      _
    $region5: #{attn_decoder2_forward.1} parent=1 // pred_fallthru
      _
    // Predicated region
    $region6: #{attn_decoder2_forward.1} parent=1 // pred_check
      _
    $region7: #{attn_decoder2_forward.1} parent=1 // pred_check_branch
      %28 = sbr.rel (0) target = $region9
    $region8: #{attn_decoder2_forward.1} parent=1 // pred_region
      _
    $region9: #{attn_decoder2_forward.1} parent=1 // pred_fallthru
      _
    // Predicated region
    $region10: #{attn_decoder2_forward.1} parent=1 // pred_check
      _
    $region11: #{attn_decoder2_forward.1} parent=1 // pred_check_branch
      %30 = sbr.rel (0) target = $region13
    $region12: #{attn_decoder2_forward.1} parent=1 // pred_region
      _
    $region13: #{attn_decoder2_forward.1} parent=1 // pred_fallthru
      _
    // Predicated region
    $region14: #{attn_decoder2_forward.1} parent=1 // pred_check
      _
    $region15: #{attn_decoder2_forward.1} parent=1 // pred_check_branch
      %32 = sbr.rel (0) target = $region17
    $region16: #{attn_decoder2_forward.1} parent=1 // pred_region
      _
    $region17: #{attn_decoder2_forward.1} parent=1 // pred_fallthru
      _
    // Predicated region
    $region18: #{attn_decoder2_forward.1} parent=1 // pred_check
      _
    $region19: #{attn_decoder2_forward.1} parent=1 // pred_check_branch
      %34 = sbr.rel (0) target = $region21
    $region20: #{attn_decoder2_forward.1} parent=1 // pred_region
      _
    $region21: #{attn_decoder2_forward.1} parent=1 // pred_fallthru
      _
    // Predicated region
    $region22: #{attn_decoder2_forward.1} parent=1 // pred_check
      _
    $region23: #{attn_decoder2_forward.1} parent=1 // pred_check_branch
      %36 = sbr.rel (0) target = $region25
    $region24: #{attn_decoder2_forward.1} parent=1 // pred_region
      _
    $region25: #{attn_decoder2_forward.1} parent=1 // pred_fallthru
      _
    // Predicated region
    $region26: #{attn_decoder2_forward.1} parent=1 // pred_check
      _
    $region27: #{attn_decoder2_forward.1} parent=1 // pred_check_branch
      %38 = sbr.rel (0) target = $region29
    $region28: #{attn_decoder2_forward.1} parent=1 // pred_region
      _
    $region29: #{attn_decoder2_forward.1} parent=1 // pred_fallthru
      _
    // Predicated region
    $region30: #{attn_decoder2_forward.1} parent=1 // pred_check
      _
    $region31: #{attn_decoder2_forward.1} parent=1 // pred_check_branch
      %40 = sbr.rel (0) target = $region33
    $region32: #{attn_decoder2_forward.1} parent=1 // pred_region
      _
    $region33: #{attn_decoder2_forward.1} parent=1 // pred_fallthru
      _
    // Predicated region
    $region34: #{attn_decoder2_forward.1} parent=1 // pred_check
      _
    $region35: #{attn_decoder2_forward.1} parent=1 // pred_check_branch
      %42 = sbr.rel (0) target = $region37
    $region36: #{attn_decoder2_forward.1} parent=1 // pred_region
      _
    $region37: #{attn_decoder2_forward.1} parent=1 // pred_fallthru
      _
    // Predicated region
    $region38: #{attn_decoder2_forward.1} parent=1 // pred_check
      _
    $region39: #{attn_decoder2_forward.1} parent=1 // pred_check_branch
      %44 = sbr.rel (0) target = $region41
    $region40: #{attn_decoder2_forward.1} parent=1 // pred_region
      _
    $region41: #{attn_decoder2_forward.1} parent=1 // pred_fallthru
      _
    // Predicated region
    $region42: #{attn_decoder2_forward.1} parent=1 // pred_check
      _
    $region43: #{attn_decoder2_forward.1} parent=1 // pred_check_branch
      %46 = sbr.rel (0) target = $region45
    $region44: #{attn_decoder2_forward.1} parent=1 // pred_region
      _
    $region45: #{attn_decoder2_forward.1} parent=1 // pred_fallthru
      _
    // Predicated region
    $region46: #{attn_decoder2_forward.1} parent=1 // pred_check
      _
    $region47: #{attn_decoder2_forward.1} parent=1 // pred_check_branch
      %48 = sbr.rel (0) target = $region49
    $region48: #{attn_decoder2_forward.1} parent=1 // pred_region
      _
    $region49: #{attn_decoder2_forward.1} parent=1 // pred_fallthru
      _
    // Predicated region
    $region50: #{attn_decoder2_forward.1} parent=1 // pred_check
      _
    $region51: #{attn_decoder2_forward.1} parent=1 // pred_check_branch
      %50 = sbr.rel (0) target = $region53
    $region52: #{attn_decoder2_forward.1} parent=1 // pred_region
      _
    $region53: #{attn_decoder2_forward.1} parent=1 // pred_fallthru
      _
    // Predicated region
    $region54: #{attn_decoder2_forward.1} parent=1 // pred_check
      _
    $region55: #{attn_decoder2_forward.1} parent=1 // pred_check_branch
      %52 = sbr.rel (0) target = $region57
    $region56: #{attn_decoder2_forward.1} parent=1 // pred_region
      _
    $region57: #{attn_decoder2_forward.1} parent=1 // pred_fallthru
      _
    // Predicated region
    $region58: #{attn_decoder2_forward.1} parent=1 // pred_check
      _
    $region59: #{attn_decoder2_forward.1} parent=1 // pred_check_branch
      %54 = sbr.rel (0) target = $region61
    $region60: #{attn_decoder2_forward.1} parent=1 // pred_region
      _
    $region61: #{attn_decoder2_forward.1} parent=1 // pred_fallthru
      _
    // Predicated region
    $region62: #{attn_decoder2_forward.1} parent=1 // pred_check
      _
    $region63: #{attn_decoder2_forward.1} parent=1 // pred_check_branch
      %56 = sbr.rel (0) target = $region65
    $region64: #{attn_decoder2_forward.1} parent=1 // pred_region
      _
    $region65: #{attn_decoder2_forward.1} parent=1 // pred_fallthru
      _
    %v57 = vld [vmem:[%s3] sm:$0xff]
    %v58 = vld [vmem:[%s3 + $0x8] sm:$0xff]
    %v59 = vld [vmem:[%s5] sm:$0x1]
    %v61 = vlaneseq
    %v62 = vshrl.u32 %v61, 7
    %v63 = vsub.s32 0, %v62
    %v64 = vrot.slane %v59, %v63
    %v66 = vld [vmem:[%s9] sm:$0x1]
    %v68 = vlaneseq
    %v69 = vshrl.u32 %v68, 7
    %v70 = vsub.s32 0, %v69
    %v71 = vrot.slane %v66, %v70
    %v73 = vld [vmem:[%s11] sm:$0x1]
    %v75 = vlaneseq
    %v76 = vshrl.u32 %v75, 7
    %v77 = vsub.s32 0, %v76
    %v78 = vrot.slane %v73, %v77
    %v80 = vld [vmem:[%s13] sm:$0x1]
    %v82 = vlaneseq
    %v83 = vshrl.u32 %v82, 7
    %v84 = vsub.s32 0, %v83
    %v85 = vrot.slane %v80, %v84
    %v87 = vld [vmem:[%s15] sm:$0x1]
    %v89 = vlaneseq
    %v90 = vshrl.u32 %v89, 7
    %v91 = vsub.s32 0, %v90
    %v92 = vrot.slane %v87, %v91
    %v94 = vld [vmem:[%s6] sm:$0xff]
    %v95 = vld [vmem:[%s6 + $0x8] sm:$0xff]
    %v96 = vld [vmem:[%s6 + $0x10] sm:$0xff]
    %v97 = vld [vmem:[%s6 + $0x18] sm:$0xff]
    %v98 = vld [vmem:[%s14] sm:$0xff]
    %v99 = vld [vmem:[%s14 + $0x8] sm:$0xff]
    %v100 = vld [vmem:[%s14 + $0x10] sm:$0xff]
    %v101 = vld [vmem:[%s14 + $0x18] sm:$0xff]
    %v102 = vld [vmem:[%s0] sm:$0x3]
    %v103 = vld [vmem:[%s1] sm:$0x3]
    %v104 = vld [vmem:[%s2] sm:$0x3]
    %v105 = vld [vmem:[%s4] sm:$0xff]
    %v106 = vld [vmem:[%s4 + $0x8] sm:$0xff]
    %v107 = vld [vmem:[%s4 + $0x10] sm:$0xff]
    %v108 = vld [vmem:[%s4 + $0x18] sm:$0xff]
    %vm109 = vcmask 261120
    %v111 = vsel %vm109, %v102, 0
    %113 = vmatprep.subr.mxu0 0.0
    %114 = vmatpush1.msra.mxu0 0.0
    %115 = vmatprep.subr.mxu0 0.0
    %116 = vmatpush1.msra.mxu0 0.0
    %117 = vmatprep.subr.mxu0 0.0
    %118 = vmatpush1.msra.mxu0 0.0
    %119 = vmatprep.subr.mxu0 0.0
    %120 = vmatpush1.msra.mxu0 0.0
    %121 = vmatprep.subr.mxu0 0.0
    %122 = vmatpush1.msra.mxu0 0.0
    %123 = vmatprep.subr.mxu0 0.0
    %124 = vmatpush1.msra.mxu0 0.0
    %125 = vmatprep.subr.mxu0 0.0
    %126 = vmatpush1.msra.mxu0 0.0
    %127 = vmatprep.subr.mxu0 0.0
    %128 = vmatpush1.msra.mxu0 0.0
    %129 = vmatprep.subr.mxu0 0.0
    %130 = vmatpush1.msra.mxu0 0.0
    %131 = vmatprep.subr.mxu0 0.0
    %132 = vmatpush1.msra.mxu0 0.0
    %133 = vmatprep.subr.mxu0 0.0
    %134 = vmatpush1.msra.mxu0 0.0
    %135 = vmatprep.subr.mxu0 0.0
    %136 = vmatpush1.msra.mxu0 0.0
    %137 = vmatprep.subr.mxu0 0.0
    %138 = vmatpush1.msra.mxu0 %v108
    %139 = vmatprep.subr.mxu0 0.0
    %140 = vmatpush1.msra.mxu0 %v107
    %141 = vmatprep.subr.mxu0 0.0
    %142 = vmatpush1.msra.mxu0 %v106
    %143 = vmatprep.subr.mxu0 0.0
    %144 = vmatpush1.msra.mxu0 %v105
    %145 = vmatprep.subr.mxu0 0.0
    %146 = vmatpush2.msra.mxu0 0.0
    %147 = vmatprep.subr.mxu0 0.0
    %148 = vmatpush2.msra.mxu0 0.0
    %149 = vmatprep.subr.mxu0 0.0
    %150 = vmatpush2.msra.mxu0 0.0
    %151 = vmatprep.subr.mxu0 0.0
    %152 = vmatpush2.msra.mxu0 0.0
    %153 = vmatprep.subr.mxu0 0.0
    %154 = vmatpush2.msra.mxu0 0.0
    %155 = vmatprep.subr.mxu0 0.0
    %156 = vmatpush2.msra.mxu0 0.0
    %157 = vmatprep.subr.mxu0 0.0
    %158 = vmatpush2.msra.mxu0 0.0
    %159 = vmatprep.subr.mxu0 0.0
    %160 = vmatpush2.msra.mxu0 0.0
    %161 = vmatprep.subr.mxu0 0.0
    %162 = vmatpush2.msra.mxu0 0.0
    %163 = vmatprep.subr.mxu0 0.0
    %164 = vmatpush2.msra.mxu0 0.0
    %165 = vmatprep.subr.mxu0 0.0
    %166 = vmatpush2.msra.mxu0 0.0
    %167 = vmatprep.subr.mxu0 0.0
    %168 = vmatpush2.msra.mxu0 0.0
    %169 = vmatprep.subr.mxu0 0.0
    %170 = vmatpush2.msra.mxu0 0.0
    %171 = vmatprep.subr.mxu0 0.0
    %172 = vmatpush2.msra.mxu0 0.0
    %173 = vmatprep.subr.mxu0 0.0
    %174 = vmatpush2.msra.mxu0 0.0
    %175 = vmatprep.subr.mxu0 0.0
    %176 = vmatpush2.msra.mxu0 0.0
    %177 = vmatprep.mubr.f32.mxu0 0.0
    %178 = vmatmul.mubr.f32.gmra.mxu0 %v111
    %v179 = vpop.f32.mrf.mxu0
    %v180 = vadd.f32 %v64, %v179
    %v181 = vpop.f32.mrf.mxu0
    %182 = vdwg.mxu0
    %v183 = vld [vmem:[%s7] sm:$0xff]
    %v184 = vld [vmem:[%s7 + $0x8] sm:$0xff]
    %v185 = vld [vmem:[%s7 + $0x10] sm:$0xff]
    %v186 = vld [vmem:[%s7 + $0x18] sm:$0xff]
    %v187 = vld [vmem:[%s7 + $0x20] sm:$0xff]
    %v188 = vld [vmem:[%s7 + $0x28] sm:$0xff]
    %v189 = vld [vmem:[%s7 + $0x30] sm:$0xff]
    %v190 = vld [vmem:[%s7 + $0x38] sm:$0xff]
    %v192 = vsel %vm109, %v103, 0
    %194 = vmatprep.subr.mxu0 0.0
    %195 = vmatpush1.msra.mxu0 0.0
    %196 = vmatprep.subr.mxu0 0.0
    %197 = vmatpush1.msra.mxu0 0.0
    %198 = vmatprep.subr.mxu0 0.0
    %199 = vmatpush1.msra.mxu0 0.0
    %200 = vmatprep.subr.mxu0 0.0
    %201 = vmatpush1.msra.mxu0 0.0
    %202 = vmatprep.subr.mxu0 0.0
    %203 = vmatpush1.msra.mxu0 0.0
    %204 = vmatprep.subr.mxu0 0.0
    %205 = vmatpush1.msra.mxu0 0.0
    %206 = vmatprep.subr.mxu0 0.0
    %207 = vmatpush1.msra.mxu0 0.0
    %208 = vmatprep.subr.mxu0 0.0
    %209 = vmatpush1.msra.mxu0 0.0
    %210 = vmatprep.subr.mxu0 0.0
    %211 = vmatpush1.msra.mxu0 0.0
    %212 = vmatprep.subr.mxu0 0.0
    %213 = vmatpush1.msra.mxu0 0.0
    %214 = vmatprep.subr.mxu0 0.0
    %215 = vmatpush1.msra.mxu0 0.0
    %216 = vmatprep.subr.mxu0 0.0
    %217 = vmatpush1.msra.mxu0 0.0
    %218 = vmatprep.subr.mxu0 %v190
    %219 = vmatpush1.msra.mxu0 %v189
    %220 = vmatprep.subr.mxu0 %v188
    %221 = vmatpush1.msra.mxu0 %v187
    %222 = vmatprep.subr.mxu0 %v186
    %223 = vmatpush1.msra.mxu0 %v185
    %224 = vmatprep.subr.mxu0 %v184
    %225 = vmatpush1.msra.mxu0 %v183
    %226 = vmatprep.subr.mxu0 0.0
    %227 = vmatpush2.msra.mxu0 0.0
    %228 = vmatprep.subr.mxu0 0.0
    %229 = vmatpush2.msra.mxu0 0.0
    %230 = vmatprep.subr.mxu0 0.0
    %231 = vmatpush2.msra.mxu0 0.0
    %232 = vmatprep.subr.mxu0 0.0
    %233 = vmatpush2.msra.mxu0 0.0
    %234 = vmatprep.subr.mxu0 0.0
    %235 = vmatpush2.msra.mxu0 0.0
    %236 = vmatprep.subr.mxu0 0.0
    %237 = vmatpush2.msra.mxu0 0.0
    %238 = vmatprep.subr.mxu0 0.0
    %239 = vmatpush2.msra.mxu0 0.0
    %240 = vmatprep.subr.mxu0 0.0
    %241 = vmatpush2.msra.mxu0 0.0
    %242 = vmatprep.subr.mxu0 0.0
    %243 = vmatpush2.msra.mxu0 0.0
    %244 = vmatprep.subr.mxu0 0.0
    %245 = vmatpush2.msra.mxu0 0.0
    %246 = vmatprep.subr.mxu0 0.0
    %247 = vmatpush2.msra.mxu0 0.0
    %248 = vmatprep.subr.mxu0 0.0
    %249 = vmatpush2.msra.mxu0 0.0
    %250 = vmatprep.subr.mxu0 0.0
    %251 = vmatpush2.msra.mxu0 0.0
    %252 = vmatprep.subr.mxu0 0.0
    %253 = vmatpush2.msra.mxu0 0.0
    %254 = vmatprep.subr.mxu0 0.0
    %255 = vmatpush2.msra.mxu0 0.0
    %256 = vmatprep.subr.mxu0 0.0
    %257 = vmatpush2.msra.mxu0 0.0
    %258 = vmatprep.mubr.f32.mxu0 0.0
    %259 = vmatmul.mubr.f32.gmra.mxu0 %v192
    %v260 = vpop.f32.mrf.mxu0
    %v261 = vadd.f32 0.0, %v260
    %v262 = vpop.f32.mrf.mxu0
    %v263 = vadd.f32 0.0, %v262
    %264 = vdwg.mxu0
    %v265 = vadd.f32 %v180, %v263
    %vm266 = vcmask 58368
    %v267 = vsel %vm266, %v265, -inf
    %268 = vmax.xlane.f32.xlu0 %v267
    %v269 = vpop.xlane.xlu0 %268
    %v270 = vsub.f32 %v265, %v269
    %v271 = vmul.f32 %v270, 1.442695
    %v272 = vpow.pop %v271
    %v273 = vsel %vm266, %v272, 0.0
    %274 = vadd.xlane.f32.xlu0 %v273
    %v275 = vpop.xlane.xlu0 %274
    %v276 = vrcp.pop %v275
    %v277 = vmul.f32 %v272, %v276
    %v280 = vunpack.c.l.s4 1966171168
    %v281 = vunpack.c.0.s8 %v280
    %v282 = vlaneseq
    %v283 = vshrl.u32 %v282, 7
    %v284 = vsub.s32 %v281, %v283
    %v285 = vrot.slane %v277, %v284
    %v286 = vcombine.high %v285, %v285
    %v288 = vunpack.c.l.s4 1966171168
    %v289 = vunpack.c.0.s8 %v288
    %v290 = vlaneseq
    %v291 = vshrl.u32 %v290, 7
    %v292 = vsub.s32 %v289, %v291
    %v293 = vrot.slane %v285, %v292
    %v295 = vunpack.c.l.s4 1966171168
    %v296 = vunpack.c.0.s8 %v295
    %v297 = vlaneseq
    %v298 = vshrl.u32 %v297, 7
    %v299 = vsub.s32 %v296, %v298
    %v300 = vrot.slane %v286, %v299
    %vm303 = vcmask 57344
    %304 = vst.msk [vmem:[#allocation4] sm:$0x1] %vm303, %v293
    %305 = vst.msk [vmem:[#allocation4 + $0x8] sm:$0x1] %vm303, %v300
    %v306 = vlaneseq
    %v307 = vshrl.u32 %v306, 7
    %v308 = vsub.s32 0, %v307
    %v309 = vrot.slane %v277, %v308
    %311 = vbcast.lane.b32.xlu0 %v309, 256
    %v312 = vpop.permute.xlu0 %311
    %v313 = vlaneseq
    %v314 = vshrl.u32 %v313, 7
    %v315 = vsub.s32 1, %v314
    %v316 = vrot.slane %v277, %v315
    %318 = vbcast.lane.b32.xlu0 %v316, 256
    %v319 = vpop.permute.xlu0 %318
    %v320 = vmul.f32 %v312, %v57
    %v321 = vmul.f32 %v319, %v58
    %v322 = vsel %vm109, %v320, 0.0
    %v323 = vrot.slane %v322, 4
    %v324 = vadd.f32 %v322, %v323
    %v325 = vrot.slane %v324, 2
    %v326 = vadd.f32 %v324, %v325
    %v327 = vrot.slane %v326, 1
    %v328 = vadd.f32 %v326, %v327
    %v329 = vsel %vm109, %v321, 0.0
    %v330 = vrot.slane %v329, 4
    %v331 = vadd.f32 %v329, %v330
    %v332 = vrot.slane %v331, 2
    %v333 = vadd.f32 %v331, %v332
    %v334 = vrot.slane %v333, 1
    %v335 = vadd.f32 %v333, %v334
    %vm338 = vcmask 1041409
    %v339 = vsel %vm338, %v335, %v328
    %v340 = vsel %vm109, %v339, 0
    %342 = vmatprep.subr.mxu0 0.0
    %343 = vmatpush1.msra.mxu0 0.0
    %344 = vmatprep.subr.mxu0 0.0
    %345 = vmatpush1.msra.mxu0 0.0
    %346 = vmatprep.subr.mxu0 0.0
    %347 = vmatpush1.msra.mxu0 0.0
    %348 = vmatprep.subr.mxu0 0.0
    %349 = vmatpush1.msra.mxu0 0.0
    %350 = vmatprep.subr.mxu0 0.0
    %351 = vmatpush1.msra.mxu0 0.0
    %352 = vmatprep.subr.mxu0 0.0
    %353 = vmatpush1.msra.mxu0 0.0
    %354 = vmatprep.subr.mxu0 0.0
    %355 = vmatpush1.msra.mxu0 0.0
    %356 = vmatprep.subr.mxu0 0.0
    %357 = vmatpush1.msra.mxu0 0.0
    %358 = vmatprep.subr.mxu0 0.0
    %359 = vmatpush1.msra.mxu0 0.0
    %360 = vmatprep.subr.mxu0 0.0
    %361 = vmatpush1.msra.mxu0 0.0
    %362 = vmatprep.subr.mxu0 0.0
    %363 = vmatpush1.msra.mxu0 0.0
    %364 = vmatprep.subr.mxu0 0.0
    %365 = vmatpush1.msra.mxu0 0.0
    %366 = vmatprep.subr.mxu0 0.0
    %367 = vmatpush1.msra.mxu0 %v97
    %368 = vmatprep.subr.mxu0 0.0
    %369 = vmatpush1.msra.mxu0 %v96
    %370 = vmatprep.subr.mxu0 0.0
    %371 = vmatpush1.msra.mxu0 %v95
    %372 = vmatprep.subr.mxu0 0.0
    %373 = vmatpush1.msra.mxu0 %v94
    %374 = vmatprep.subr.mxu0 0.0
    %375 = vmatpush2.msra.mxu0 0.0
    %376 = vmatprep.subr.mxu0 0.0
    %377 = vmatpush2.msra.mxu0 0.0
    %378 = vmatprep.subr.mxu0 0.0
    %379 = vmatpush2.msra.mxu0 0.0
    %380 = vmatprep.subr.mxu0 0.0
    %381 = vmatpush2.msra.mxu0 0.0
    %382 = vmatprep.subr.mxu0 0.0
    %383 = vmatpush2.msra.mxu0 0.0
    %384 = vmatprep.subr.mxu0 0.0
    %385 = vmatpush2.msra.mxu0 0.0
    %386 = vmatprep.subr.mxu0 0.0
    %387 = vmatpush2.msra.mxu0 0.0
    %388 = vmatprep.subr.mxu0 0.0
    %389 = vmatpush2.msra.mxu0 0.0
    %390 = vmatprep.subr.mxu0 0.0
    %391 = vmatpush2.msra.mxu0 0.0
    %392 = vmatprep.subr.mxu0 0.0
    %393 = vmatpush2.msra.mxu0 0.0
    %394 = vmatprep.subr.mxu0 0.0
    %395 = vmatpush2.msra.mxu0 0.0
    %396 = vmatprep.subr.mxu0 0.0
    %397 = vmatpush2.msra.mxu0 0.0
    %398 = vmatprep.subr.mxu0 0.0
    %399 = vmatpush2.msra.mxu0 0.0
    %400 = vmatprep.subr.mxu0 0.0
    %401 = vmatpush2.msra.mxu0 0.0
    %402 = vmatprep.subr.mxu0 0.0
    %403 = vmatpush2.msra.mxu0 0.0
    %404 = vmatprep.subr.mxu0 0.0
    %405 = vmatpush2.msra.mxu0 0.0
    %406 = vmatprep.mubr.f32.mxu0 0.0
    %407 = vmatmul.mubr.f32.gmra.mxu0 %v340
    %v408 = vpop.f32.mrf.mxu0
    %v409 = vadd.f32 0.0, %v408
    %v410 = vpop.f32.mrf.mxu0
    %411 = vdwg.mxu0
    %413 = vrot.lane.b32.xlu0 %v409, 8
    %v414 = vpop.permute.xlu0 %413
    %v416 = vadd.f32 %v180, %v414
    %v417 = vmax.f32 %v416, 0.0
    %v418 = vld [vmem:[%s8] sm:$0xff]
    %v419 = vld [vmem:[%s8 + $0x8] sm:$0xff]
    %v420 = vld [vmem:[%s8 + $0x10] sm:$0xff]
    %v421 = vld [vmem:[%s8 + $0x18] sm:$0xff]
    %423 = vrot.lane.b32.xlu0 %v417, 120
    %v424 = vpop.permute.xlu0 %423
    %v425 = vsel %vm109, %v424, 0
    %427 = vmatprep.subr.mxu0 0.0
    %428 = vmatpush1.msra.mxu0 0.0
    %429 = vmatprep.subr.mxu0 0.0
    %430 = vmatpush1.msra.mxu0 0.0
    %431 = vmatprep.subr.mxu0 0.0
    %432 = vmatpush1.msra.mxu0 0.0
    %433 = vmatprep.subr.mxu0 0.0
    %434 = vmatpush1.msra.mxu0 0.0
    %435 = vmatprep.subr.mxu0 0.0
    %436 = vmatpush1.msra.mxu0 0.0
    %437 = vmatprep.subr.mxu0 0.0
    %438 = vmatpush1.msra.mxu0 0.0
    %439 = vmatprep.subr.mxu0 0.0
    %440 = vmatpush1.msra.mxu0 0.0
    %441 = vmatprep.subr.mxu0 0.0
    %442 = vmatpush1.msra.mxu0 0.0
    %443 = vmatprep.subr.mxu0 0.0
    %444 = vmatpush1.msra.mxu0 0.0
    %445 = vmatprep.subr.mxu0 0.0
    %446 = vmatpush1.msra.mxu0 0.0
    %447 = vmatprep.subr.mxu0 0.0
    %448 = vmatpush1.msra.mxu0 0.0
    %449 = vmatprep.subr.mxu0 0.0
    %450 = vmatpush1.msra.mxu0 0.0
    %451 = vmatprep.subr.mxu0 0.0
    %452 = vmatpush1.msra.mxu0 %v421
    %453 = vmatprep.subr.mxu0 0.0
    %454 = vmatpush1.msra.mxu0 %v420
    %455 = vmatprep.subr.mxu0 0.0
    %456 = vmatpush1.msra.mxu0 %v419
    %457 = vmatprep.subr.mxu0 0.0
    %458 = vmatpush1.msra.mxu0 %v418
    %459 = vmatprep.subr.mxu0 0.0
    %460 = vmatpush2.msra.mxu0 0.0
    %461 = vmatprep.subr.mxu0 0.0
    %462 = vmatpush2.msra.mxu0 0.0
    %463 = vmatprep.subr.mxu0 0.0
    %464 = vmatpush2.msra.mxu0 0.0
    %465 = vmatprep.subr.mxu0 0.0
    %466 = vmatpush2.msra.mxu0 0.0
    %467 = vmatprep.subr.mxu0 0.0
    %468 = vmatpush2.msra.mxu0 0.0
    %469 = vmatprep.subr.mxu0 0.0
    %470 = vmatpush2.msra.mxu0 0.0
    %471 = vmatprep.subr.mxu0 0.0
    %472 = vmatpush2.msra.mxu0 0.0
    %473 = vmatprep.subr.mxu0 0.0
    %474 = vmatpush2.msra.mxu0 0.0
    %475 = vmatprep.subr.mxu0 0.0
    %476 = vmatpush2.msra.mxu0 0.0
    %477 = vmatprep.subr.mxu0 0.0
    %478 = vmatpush2.msra.mxu0 0.0
    %479 = vmatprep.subr.mxu0 0.0
    %480 = vmatpush2.msra.mxu0 0.0
    %481 = vmatprep.subr.mxu0 0.0
    %482 = vmatpush2.msra.mxu0 0.0
    %483 = vmatprep.subr.mxu0 0.0
    %484 = vmatpush2.msra.mxu0 0.0
    %485 = vmatprep.subr.mxu0 0.0
    %486 = vmatpush2.msra.mxu0 0.0
    %487 = vmatprep.subr.mxu0 0.0
    %488 = vmatpush2.msra.mxu0 0.0
    %489 = vmatprep.subr.mxu0 0.0
    %490 = vmatpush2.msra.mxu0 0.0
    %491 = vmatprep.mubr.f32.mxu0 0.0
    %492 = vmatmul.mubr.f32.gmra.mxu0 %v425
    %v493 = vpop.f32.mrf.mxu0
    %v494 = vadd.f32 %v261, %v493
    %v495 = vpop.f32.mrf.mxu0
    %496 = vdwg.mxu0
    %v497 = vadd.f32 %v494, %v71
    %v498 = vxor.u32 %v497, 2147483648
    %v499 = vmul.f32 %v498, 1.442695
    %v500 = vpow.pop %v499
    %v501 = vadd.f32 %v500, 1.0
    %v502 = vrcp.pop %v501
    %v503 = vmul.f32 1.0, %v502
    %v504 = vtanh.pop %v497
    %506 = vrot.lane.b32.xlu0 %v104, 32
    %v507 = vpop.permute.xlu0 %506
    %v509 = vmul.f32 %v503, %v507
    %511 = vrot.lane.b32.xlu0 %v504, 64
    %v512 = vpop.permute.xlu0 %511
    %v514 = vmul.f32 %v503, %v512
    %516 = vrot.lane.b32.xlu0 %v514, 32
    %v517 = vpop.permute.xlu0 %516
    %v519 = vadd.f32 %v509, %v517
    %v520 = vtanh.pop %v519
    %522 = vrot.lane.b32.xlu0 %v520, 64
    %v523 = vpop.permute.xlu0 %522
    %v525 = vmul.f32 %v503, %v523
    %v526 = vld [vmem:[%s10] sm:$0xff]
    %v527 = vld [vmem:[%s10 + $0x8] sm:$0xff]
    %v528 = vld [vmem:[%s10 + $0x10] sm:$0xff]
    %v529 = vld [vmem:[%s10 + $0x18] sm:$0xff]
    %531 = vrot.lane.b32.xlu0 %v525, 32
    %v532 = vpop.permute.xlu0 %531
    %v533 = vsel %vm109, %v532, 0
    %535 = vmatprep.subr.mxu0 0.0
    %536 = vmatpush1.msra.mxu0 0.0
    %537 = vmatprep.subr.mxu0 0.0
    %538 = vmatpush1.msra.mxu0 0.0
    %539 = vmatprep.subr.mxu0 0.0
    %540 = vmatpush1.msra.mxu0 0.0
    %541 = vmatprep.subr.mxu0 0.0
    %542 = vmatpush1.msra.mxu0 0.0
    %543 = vmatprep.subr.mxu0 0.0
    %544 = vmatpush1.msra.mxu0 0.0
    %545 = vmatprep.subr.mxu0 0.0
    %546 = vmatpush1.msra.mxu0 0.0
    %547 = vmatprep.subr.mxu0 0.0
    %548 = vmatpush1.msra.mxu0 0.0
    %549 = vmatprep.subr.mxu0 0.0
    %550 = vmatpush1.msra.mxu0 0.0
    %551 = vmatprep.subr.mxu0 0.0
    %552 = vmatpush1.msra.mxu0 0.0
    %553 = vmatprep.subr.mxu0 0.0
    %554 = vmatpush1.msra.mxu0 0.0
    %555 = vmatprep.subr.mxu0 0.0
    %556 = vmatpush1.msra.mxu0 0.0
    %557 = vmatprep.subr.mxu0 0.0
    %558 = vmatpush1.msra.mxu0 0.0
    %559 = vmatprep.subr.mxu0 0.0
    %560 = vmatpush1.msra.mxu0 %v529
    %561 = vmatprep.subr.mxu0 0.0
    %562 = vmatpush1.msra.mxu0 %v528
    %563 = vmatprep.subr.mxu0 0.0
    %564 = vmatpush1.msra.mxu0 %v527
    %565 = vmatprep.subr.mxu0 0.0
    %566 = vmatpush1.msra.mxu0 %v526
    %567 = vmatprep.subr.mxu0 0.0
    %568 = vmatpush2.msra.mxu0 0.0
    %569 = vmatprep.subr.mxu0 0.0
    %570 = vmatpush2.msra.mxu0 0.0
    %571 = vmatprep.subr.mxu0 0.0
    %572 = vmatpush2.msra.mxu0 0.0
    %573 = vmatprep.subr.mxu0 0.0
    %574 = vmatpush2.msra.mxu0 0.0
    %575 = vmatprep.subr.mxu0 0.0
    %576 = vmatpush2.msra.mxu0 0.0
    %577 = vmatprep.subr.mxu0 0.0
    %578 = vmatpush2.msra.mxu0 0.0
    %579 = vmatprep.subr.mxu0 0.0
    %580 = vmatpush2.msra.mxu0 0.0
    %581 = vmatprep.subr.mxu0 0.0
    %582 = vmatpush2.msra.mxu0 0.0
    %583 = vmatprep.subr.mxu0 0.0
    %584 = vmatpush2.msra.mxu0 0.0
    %585 = vmatprep.subr.mxu0 0.0
    %586 = vmatpush2.msra.mxu0 0.0
    %587 = vmatprep.subr.mxu0 0.0
    %588 = vmatpush2.msra.mxu0 0.0
    %589 = vmatprep.subr.mxu0 0.0
    %590 = vmatpush2.msra.mxu0 0.0
    %591 = vmatprep.subr.mxu0 0.0
    %592 = vmatpush2.msra.mxu0 0.0
    %593 = vmatprep.subr.mxu0 0.0
    %594 = vmatpush2.msra.mxu0 0.0
    %595 = vmatprep.subr.mxu0 0.0
    %596 = vmatpush2.msra.mxu0 0.0
    %597 = vmatprep.subr.mxu0 0.0
    %598 = vmatpush2.msra.mxu0 0.0
    %599 = vmatprep.mubr.f32.mxu0 0.0
    %600 = vmatmul.mubr.f32.gmra.mxu0 %v533
    %v601 = vpop.f32.mrf.mxu0
    %v602 = vadd.f32 %v78, %v601
    %v603 = vpop.f32.mrf.mxu0
    %604 = vdwg.mxu0
    %v605 = vxor.u32 %v602, 2147483648
    %v606 = vmul.f32 %v605, 1.442695
    %v607 = vpow.pop %v606
    %v608 = vadd.f32 %v607, 1.0
    %v609 = vrcp.pop %v608
    %v610 = vmul.f32 1.0, %v609
    %v611 = vtanh.pop %v602
    %v612 = vmul.f32 %v610, %v519
    %614 = vrot.lane.b32.xlu0 %v611, 64
    %v615 = vpop.permute.xlu0 %614
    %v617 = vmul.f32 %v610, %v615
    %619 = vrot.lane.b32.xlu0 %v617, 32
    %v620 = vpop.permute.xlu0 %619
    %v622 = vadd.f32 %v612, %v620
    %v623 = vtanh.pop %v622
    %625 = vrot.lane.b32.xlu0 %v623, 64
    %v626 = vpop.permute.xlu0 %625
    %v628 = vmul.f32 %v610, %v626
    %v629 = vld [vmem:[%s12] sm:$0xff]
    %v630 = vld [vmem:[%s12 + $0x8] sm:$0xff]
    %v631 = vld [vmem:[%s12 + $0x10] sm:$0xff]
    %v632 = vld [vmem:[%s12 + $0x18] sm:$0xff]
    %634 = vrot.lane.b32.xlu0 %v628, 32
    %v635 = vpop.permute.xlu0 %634
    %v636 = vsel %vm109, %v635, 0
    %638 = vmatprep.subr.mxu0 0.0
    %639 = vmatpush1.msra.mxu0 0.0
    %640 = vmatprep.subr.mxu0 0.0
    %641 = vmatpush1.msra.mxu0 0.0
    %642 = vmatprep.subr.mxu0 0.0
    %643 = vmatpush1.msra.mxu0 0.0
    %644 = vmatprep.subr.mxu0 0.0
    %645 = vmatpush1.msra.mxu0 0.0
    %646 = vmatprep.subr.mxu0 0.0
    %647 = vmatpush1.msra.mxu0 0.0
    %648 = vmatprep.subr.mxu0 0.0
    %649 = vmatpush1.msra.mxu0 0.0
    %650 = vmatprep.subr.mxu0 0.0
    %651 = vmatpush1.msra.mxu0 0.0
    %652 = vmatprep.subr.mxu0 0.0
    %653 = vmatpush1.msra.mxu0 0.0
    %654 = vmatprep.subr.mxu0 0.0
    %655 = vmatpush1.msra.mxu0 0.0
    %656 = vmatprep.subr.mxu0 0.0
    %657 = vmatpush1.msra.mxu0 0.0
    %658 = vmatprep.subr.mxu0 0.0
    %659 = vmatpush1.msra.mxu0 0.0
    %660 = vmatprep.subr.mxu0 0.0
    %661 = vmatpush1.msra.mxu0 0.0
    %662 = vmatprep.subr.mxu0 0.0
    %663 = vmatpush1.msra.mxu0 %v632
    %664 = vmatprep.subr.mxu0 0.0
    %665 = vmatpush1.msra.mxu0 %v631
    %666 = vmatprep.subr.mxu0 0.0
    %667 = vmatpush1.msra.mxu0 %v630
    %668 = vmatprep.subr.mxu0 0.0
    %669 = vmatpush1.msra.mxu0 %v629
    %670 = vmatprep.subr.mxu0 0.0
    %671 = vmatpush2.msra.mxu0 0.0
    %672 = vmatprep.subr.mxu0 0.0
    %673 = vmatpush2.msra.mxu0 0.0
    %674 = vmatprep.subr.mxu0 0.0
    %675 = vmatpush2.msra.mxu0 0.0
    %676 = vmatprep.subr.mxu0 0.0
    %677 = vmatpush2.msra.mxu0 0.0
    %678 = vmatprep.subr.mxu0 0.0
    %679 = vmatpush2.msra.mxu0 0.0
    %680 = vmatprep.subr.mxu0 0.0
    %681 = vmatpush2.msra.mxu0 0.0
    %682 = vmatprep.subr.mxu0 0.0
    %683 = vmatpush2.msra.mxu0 0.0
    %684 = vmatprep.subr.mxu0 0.0
    %685 = vmatpush2.msra.mxu0 0.0
    %686 = vmatprep.subr.mxu0 0.0
    %687 = vmatpush2.msra.mxu0 0.0
    %688 = vmatprep.subr.mxu0 0.0
    %689 = vmatpush2.msra.mxu0 0.0
    %690 = vmatprep.subr.mxu0 0.0
    %691 = vmatpush2.msra.mxu0 0.0
    %692 = vmatprep.subr.mxu0 0.0
    %693 = vmatpush2.msra.mxu0 0.0
    %694 = vmatprep.subr.mxu0 0.0
    %695 = vmatpush2.msra.mxu0 0.0
    %696 = vmatprep.subr.mxu0 0.0
    %697 = vmatpush2.msra.mxu0 0.0
    %698 = vmatprep.subr.mxu0 0.0
    %699 = vmatpush2.msra.mxu0 0.0
    %700 = vmatprep.subr.mxu0 0.0
    %701 = vmatpush2.msra.mxu0 0.0
    %702 = vmatprep.mubr.f32.mxu0 0.0
    %703 = vmatmul.mubr.f32.gmra.mxu0 %v636
    %v704 = vpop.f32.mrf.mxu0
    %v705 = vadd.f32 %v85, %v704
    %v706 = vpop.f32.mrf.mxu0
    %707 = vdwg.mxu0
    %v708 = vxor.u32 %v705, 2147483648
    %v709 = vmul.f32 %v708, 1.442695
    %v710 = vpow.pop %v709
    %v711 = vadd.f32 %v710, 1.0
    %v712 = vrcp.pop %v711
    %v713 = vmul.f32 1.0, %v712
    %v714 = vtanh.pop %v705
    %v715 = vmul.f32 %v713, %v622
    %717 = vrot.lane.b32.xlu0 %v714, 64
    %v718 = vpop.permute.xlu0 %717
    %v720 = vmul.f32 %v713, %v718
    %722 = vrot.lane.b32.xlu0 %v720, 32
    %v723 = vpop.permute.xlu0 %722
    %v725 = vadd.f32 %v715, %v723
    %v726 = vtanh.pop %v725
    %728 = vrot.lane.b32.xlu0 %v726, 64
    %v729 = vpop.permute.xlu0 %728
    %v731 = vmul.f32 %v713, %v729
    %733 = vrot.lane.b32.xlu0 %v731, 32
    %v734 = vpop.permute.xlu0 %733
    %v735 = vsel %vm109, %v734, 0
    %737 = vmatprep.subr.mxu0 0.0
    %738 = vmatpush1.msra.mxu0 0.0
    %739 = vmatprep.subr.mxu0 0.0
    %740 = vmatpush1.msra.mxu0 0.0
    %741 = vmatprep.subr.mxu0 0.0
    %742 = vmatpush1.msra.mxu0 0.0
    %743 = vmatprep.subr.mxu0 0.0
    %744 = vmatpush1.msra.mxu0 0.0
    %745 = vmatprep.subr.mxu0 0.0
    %746 = vmatpush1.msra.mxu0 0.0
    %747 = vmatprep.subr.mxu0 0.0
    %748 = vmatpush1.msra.mxu0 0.0
    %749 = vmatprep.subr.mxu0 0.0
    %750 = vmatpush1.msra.mxu0 0.0
    %751 = vmatprep.subr.mxu0 0.0
    %752 = vmatpush1.msra.mxu0 0.0
    %753 = vmatprep.subr.mxu0 0.0
    %754 = vmatpush1.msra.mxu0 0.0
    %755 = vmatprep.subr.mxu0 0.0
    %756 = vmatpush1.msra.mxu0 0.0
    %757 = vmatprep.subr.mxu0 0.0
    %758 = vmatpush1.msra.mxu0 0.0
    %759 = vmatprep.subr.mxu0 0.0
    %760 = vmatpush1.msra.mxu0 0.0
    %761 = vmatprep.subr.mxu0 0.0
    %762 = vmatpush1.msra.mxu0 %v101
    %763 = vmatprep.subr.mxu0 0.0
    %764 = vmatpush1.msra.mxu0 %v100
    %765 = vmatprep.subr.mxu0 0.0
    %766 = vmatpush1.msra.mxu0 %v99
    %767 = vmatprep.subr.mxu0 0.0
    %768 = vmatpush1.msra.mxu0 %v98
    %769 = vmatprep.subr.mxu0 0.0
    %770 = vmatpush2.msra.mxu0 0.0
    %771 = vmatprep.subr.mxu0 0.0
    %772 = vmatpush2.msra.mxu0 0.0
    %773 = vmatprep.subr.mxu0 0.0
    %774 = vmatpush2.msra.mxu0 0.0
    %775 = vmatprep.subr.mxu0 0.0
    %776 = vmatpush2.msra.mxu0 0.0
    %777 = vmatprep.subr.mxu0 0.0
    %778 = vmatpush2.msra.mxu0 0.0
    %779 = vmatprep.subr.mxu0 0.0
    %780 = vmatpush2.msra.mxu0 0.0
    %781 = vmatprep.subr.mxu0 0.0
    %782 = vmatpush2.msra.mxu0 0.0
    %783 = vmatprep.subr.mxu0 0.0
    %784 = vmatpush2.msra.mxu0 0.0
    %785 = vmatprep.subr.mxu0 0.0
    %786 = vmatpush2.msra.mxu0 0.0
    %787 = vmatprep.subr.mxu0 0.0
    %788 = vmatpush2.msra.mxu0 0.0
    %789 = vmatprep.subr.mxu0 0.0
    %790 = vmatpush2.msra.mxu0 0.0
    %791 = vmatprep.subr.mxu0 0.0
    %792 = vmatpush2.msra.mxu0 0.0
    %793 = vmatprep.subr.mxu0 0.0
    %794 = vmatpush2.msra.mxu0 0.0
    %795 = vmatprep.subr.mxu0 0.0
    %796 = vmatpush2.msra.mxu0 0.0
    %797 = vmatprep.subr.mxu0 0.0
    %798 = vmatpush2.msra.mxu0 0.0
    %799 = vmatprep.subr.mxu0 0.0
    %800 = vmatpush2.msra.mxu0 0.0
    %801 = vmatprep.mubr.f32.mxu0 0.0
    %802 = vmatmul.mubr.f32.gmra.mxu0 %v735
    %v803 = vpop.f32.mrf.mxu0
    %v804 = vadd.f32 %v92, %v803
    %v805 = vpop.f32.mrf.mxu0
    %806 = vdwg.mxu0
    %v807 = vmax.f32 %v804, 0.0
    %v810 = vunpack.c.l.s4 1966171168
    %v811 = vunpack.c.0.s8 %v810
    %v812 = vlaneseq
    %v813 = vshrl.u32 %v812, 7
    %v814 = vsub.s32 %v811, %v813
    %v815 = vrot.slane %v807, %v814
    %v816 = vcombine.high %v815, %v815
    %v818 = vunpack.c.l.s4 1966171168
    %v819 = vunpack.c.0.s8 %v818
    %v820 = vlaneseq
    %v821 = vshrl.u32 %v820, 7
    %v822 = vsub.s32 %v819, %v821
    %v823 = vrot.slane %v815, %v822
    %v825 = vunpack.c.l.s4 1966171168
    %v826 = vunpack.c.0.s8 %v825
    %v827 = vlaneseq
    %v828 = vshrl.u32 %v827, 7
    %v829 = vsub.s32 %v826, %v828
    %v830 = vrot.slane %v816, %v829
    %vm833 = vcmask 253952
    %834 = vst.msk [vmem:[#allocation2] sm:$0x1] %vm833, %v823
    %835 = vst.msk [vmem:[#allocation2 + $0x8] sm:$0x1] %vm833, %v830
    %v836 = vld [vmem:[%s4] sm:$0xff]
    %v837 = vld [vmem:[%s4 + $0x8] sm:$0xff]
    %v838 = vld [vmem:[%s4 + $0x10] sm:$0xff]
    %v839 = vld [vmem:[%s4 + $0x18] sm:$0xff]
    %v840 = vsel %vm109, %v807, 0
    %842 = vmatprep.subr.mxu0 0.0
    %843 = vmatpush1.msra.mxu0 0.0
    %844 = vmatprep.subr.mxu0 0.0
    %845 = vmatpush1.msra.mxu0 0.0
    %846 = vmatprep.subr.mxu0 0.0
    %847 = vmatpush1.msra.mxu0 0.0
    %848 = vmatprep.subr.mxu0 0.0
    %849 = vmatpush1.msra.mxu0 0.0
    %850 = vmatprep.subr.mxu0 0.0
    %851 = vmatpush1.msra.mxu0 0.0
    %852 = vmatprep.subr.mxu0 0.0
    %853 = vmatpush1.msra.mxu0 0.0
    %854 = vmatprep.subr.mxu0 0.0
    %855 = vmatpush1.msra.mxu0 0.0
    %856 = vmatprep.subr.mxu0 0.0
    %857 = vmatpush1.msra.mxu0 0.0
    %858 = vmatprep.subr.mxu0 0.0
    %859 = vmatpush1.msra.mxu0 0.0
    %860 = vmatprep.subr.mxu0 0.0
    %861 = vmatpush1.msra.mxu0 0.0
    %862 = vmatprep.subr.mxu0 0.0
    %863 = vmatpush1.msra.mxu0 0.0
    %864 = vmatprep.subr.mxu0 0.0
    %865 = vmatpush1.msra.mxu0 0.0
    %866 = vmatprep.subr.mxu0 0.0
    %867 = vmatpush1.msra.mxu0 %v839
    %868 = vmatprep.subr.mxu0 0.0
    %869 = vmatpush1.msra.mxu0 %v838
    %870 = vmatprep.subr.mxu0 0.0
    %871 = vmatpush1.msra.mxu0 %v837
    %872 = vmatprep.subr.mxu0 0.0
    %873 = vmatpush1.msra.mxu0 %v836
    %874 = vmatprep.subr.mxu0 0.0
    %875 = vmatpush2.msra.mxu0 0.0
    %876 = vmatprep.subr.mxu0 0.0
    %877 = vmatpush2.msra.mxu0 0.0
    %878 = vmatprep.subr.mxu0 0.0
    %879 = vmatpush2.msra.mxu0 0.0
    %880 = vmatprep.subr.mxu0 0.0
    %881 = vmatpush2.msra.mxu0 0.0
    %882 = vmatprep.subr.mxu0 0.0
    %883 = vmatpush2.msra.mxu0 0.0
    %884 = vmatprep.subr.mxu0 0.0
    %885 = vmatpush2.msra.mxu0 0.0
    %886 = vmatprep.subr.mxu0 0.0
    %887 = vmatpush2.msra.mxu0 0.0
    %888 = vmatprep.subr.mxu0 0.0
    %889 = vmatpush2.msra.mxu0 0.0
    %890 = vmatprep.subr.mxu0 0.0
    %891 = vmatpush2.msra.mxu0 0.0
    %892 = vmatprep.subr.mxu0 0.0
    %893 = vmatpush2.msra.mxu0 0.0
    %894 = vmatprep.subr.mxu0 0.0
    %895 = vmatpush2.msra.mxu0 0.0
    %896 = vmatprep.subr.mxu0 0.0
    %897 = vmatpush2.msra.mxu0 0.0
    %898 = vmatprep.subr.mxu0 0.0
    %899 = vmatpush2.msra.mxu0 0.0
    %900 = vmatprep.subr.mxu0 0.0
    %901 = vmatpush2.msra.mxu0 0.0
    %902 = vmatprep.subr.mxu0 0.0
    %903 = vmatpush2.msra.mxu0 0.0
    %904 = vmatprep.subr.mxu0 0.0
    %905 = vmatpush2.msra.mxu0 0.0
    %906 = vmatprep.mubr.f32.mxu0 0.0
    %907 = vmatmul.mubr.f32.gmra.mxu0 %v840
    %v908 = vpop.f32.mrf.mxu0
    %v909 = vadd.f32 %v64, %v908
    %v910 = vpop.f32.mrf.mxu0
    %911 = vdwg.mxu0
    %v912 = vld [vmem:[%s7] sm:$0xff]
    %v913 = vld [vmem:[%s7 + $0x8] sm:$0xff]
    %v914 = vld [vmem:[%s7 + $0x10] sm:$0xff]
    %v915 = vld [vmem:[%s7 + $0x18] sm:$0xff]
    %v916 = vld [vmem:[%s7 + $0x20] sm:$0xff]
    %v917 = vld [vmem:[%s7 + $0x28] sm:$0xff]
    %v918 = vld [vmem:[%s7 + $0x30] sm:$0xff]
    %v919 = vld [vmem:[%s7 + $0x38] sm:$0xff]
    %920 = vmatprep.subr.mxu0 0.0
    %921 = vmatpush1.msra.mxu0 0.0
    %922 = vmatprep.subr.mxu0 0.0
    %923 = vmatpush1.msra.mxu0 0.0
    %924 = vmatprep.subr.mxu0 0.0
    %925 = vmatpush1.msra.mxu0 0.0
    %926 = vmatprep.subr.mxu0 0.0
    %927 = vmatpush1.msra.mxu0 0.0
    %928 = vmatprep.subr.mxu0 0.0
    %929 = vmatpush1.msra.mxu0 0.0
    %930 = vmatprep.subr.mxu0 0.0
    %931 = vmatpush1.msra.mxu0 0.0
    %932 = vmatprep.subr.mxu0 0.0
    %933 = vmatpush1.msra.mxu0 0.0
    %934 = vmatprep.subr.mxu0 0.0
    %935 = vmatpush1.msra.mxu0 0.0
    %936 = vmatprep.subr.mxu0 0.0
    %937 = vmatpush1.msra.mxu0 0.0
    %938 = vmatprep.subr.mxu0 0.0
    %939 = vmatpush1.msra.mxu0 0.0
    %940 = vmatprep.subr.mxu0 0.0
    %941 = vmatpush1.msra.mxu0 0.0
    %942 = vmatprep.subr.mxu0 0.0
    %943 = vmatpush1.msra.mxu0 0.0
    %944 = vmatprep.subr.mxu0 %v919
    %945 = vmatpush1.msra.mxu0 %v918
    %946 = vmatprep.subr.mxu0 %v917
    %947 = vmatpush1.msra.mxu0 %v916
    %948 = vmatprep.subr.mxu0 %v915
    %949 = vmatpush1.msra.mxu0 %v914
    %950 = vmatprep.subr.mxu0 %v913
    %951 = vmatpush1.msra.mxu0 %v912
    %952 = vmatprep.subr.mxu0 0.0
    %953 = vmatpush2.msra.mxu0 0.0
    %954 = vmatprep.subr.mxu0 0.0
    %955 = vmatpush2.msra.mxu0 0.0
    %956 = vmatprep.subr.mxu0 0.0
    %957 = vmatpush2.msra.mxu0 0.0
    %958 = vmatprep.subr.mxu0 0.0
    %959 = vmatpush2.msra.mxu0 0.0
    %960 = vmatprep.subr.mxu0 0.0
    %961 = vmatpush2.msra.mxu0 0.0
    %962 = vmatprep.subr.mxu0 0.0
    %963 = vmatpush2.msra.mxu0 0.0
    %964 = vmatprep.subr.mxu0 0.0
    %965 = vmatpush2.msra.mxu0 0.0
    %966 = vmatprep.subr.mxu0 0.0
    %967 = vmatpush2.msra.mxu0 0.0
    %968 = vmatprep.subr.mxu0 0.0
    %969 = vmatpush2.msra.mxu0 0.0
    %970 = vmatprep.subr.mxu0 0.0
    %971 = vmatpush2.msra.mxu0 0.0
    %972 = vmatprep.subr.mxu0 0.0
    %973 = vmatpush2.msra.mxu0 0.0
    %974 = vmatprep.subr.mxu0 0.0
    %975 = vmatpush2.msra.mxu0 0.0
    %976 = vmatprep.subr.mxu0 0.0
    %977 = vmatpush2.msra.mxu0 0.0
    %978 = vmatprep.subr.mxu0 0.0
    %979 = vmatpush2.msra.mxu0 0.0
    %980 = vmatprep.subr.mxu0 0.0
    %981 = vmatpush2.msra.mxu0 0.0
    %982 = vmatprep.subr.mxu0 0.0
    %983 = vmatpush2.msra.mxu0 0.0
    %984 = vmatprep.mubr.f32.mxu0 0.0
    %985 = vmatmul.mubr.f32.gmra.mxu0 %v735
    %v986 = vpop.f32.mrf.mxu0
    %v987 = vadd.f32 0.0, %v986
    %v988 = vpop.f32.mrf.mxu0
    %v989 = vadd.f32 0.0, %v988
    %990 = vdwg.mxu0
    %v991 = vadd.f32 %v909, %v989
    %v992 = vsel %vm266, %v991, -inf
    %993 = vmax.xlane.f32.xlu0 %v992
    %v994 = vpop.xlane.xlu0 %993
    %v995 = vsub.f32 %v991, %v994
    %v996 = vmul.f32 %v995, 1.442695
    %v997 = vpow.pop %v996
    %v998 = vsel %vm266, %v997, 0.0
    %999 = vadd.xlane.f32.xlu0 %v998
    %v1000 = vpop.xlane.xlu0 %999
    %v1001 = vrcp.pop %v1000
    %v1002 = vmul.f32 %v997, %v1001
    %v1005 = vunpack.c.l.s4 1966171168
    %v1006 = vunpack.c.0.s8 %v1005
    %v1007 = vlaneseq
    %v1008 = vshrl.u32 %v1007, 7
    %v1009 = vsub.s32 %v1006, %v1008
    %v1010 = vrot.slane %v1002, %v1009
    %v1011 = vcombine.high %v1010, %v1010
    %v1013 = vunpack.c.l.s4 1966171168
    %v1014 = vunpack.c.0.s8 %v1013
    %v1015 = vlaneseq
    %v1016 = vshrl.u32 %v1015, 7
    %v1017 = vsub.s32 %v1014, %v1016
    %v1018 = vrot.slane %v1010, %v1017
    %v1020 = vunpack.c.l.s4 1966171168
    %v1021 = vunpack.c.0.s8 %v1020
    %v1022 = vlaneseq
    %v1023 = vshrl.u32 %v1022, 7
    %v1024 = vsub.s32 %v1021, %v1023
    %v1025 = vrot.slane %v1011, %v1024
    %1028 = vst.msk [vmem:[#allocation4 + $0x1] sm:$0x1] %vm303, %v1018
    %1029 = vst.msk [vmem:[#allocation4 + $0x9] sm:$0x1] %vm303, %v1025
    %v1030 = vlaneseq
    %v1031 = vshrl.u32 %v1030, 7
    %v1032 = vsub.s32 0, %v1031
    %v1033 = vrot.slane %v1002, %v1032
    %1035 = vbcast.lane.b32.xlu0 %v1033, 256
    %v1036 = vpop.permute.xlu0 %1035
    %v1037 = vlaneseq
    %v1038 = vshrl.u32 %v1037, 7
    %v1039 = vsub.s32 1, %v1038
    %v1040 = vrot.slane %v1002, %v1039
    %1042 = vbcast.lane.b32.xlu0 %v1040, 256
    %v1043 = vpop.permute.xlu0 %1042
    %v1044 = vmul.f32 %v1036, %v57
    %v1045 = vmul.f32 %v1043, %v58
    %v1046 = vsel %vm109, %v1044, 0.0
    %v1047 = vrot.slane %v1046, 4
    %v1048 = vadd.f32 %v1046, %v1047
    %v1049 = vrot.slane %v1048, 2
    %v1050 = vadd.f32 %v1048, %v1049
    %v1051 = vrot.slane %v1050, 1
    %v1052 = vadd.f32 %v1050, %v1051
    %v1053 = vsel %vm109, %v1045, 0.0
    %v1054 = vrot.slane %v1053, 4
    %v1055 = vadd.f32 %v1053, %v1054
    %v1056 = vrot.slane %v1055, 2
    %v1057 = vadd.f32 %v1055, %v1056
    %v1058 = vrot.slane %v1057, 1
    %v1059 = vadd.f32 %v1057, %v1058
    %v1062 = vsel %vm338, %v1059, %v1052
    %v1063 = vsel %vm109, %v1062, 0
    %1065 = vmatprep.subr.mxu0 0.0
    %1066 = vmatpush1.msra.mxu0 0.0
    %1067 = vmatprep.subr.mxu0 0.0
    %1068 = vmatpush1.msra.mxu0 0.0
    %1069 = vmatprep.subr.mxu0 0.0
    %1070 = vmatpush1.msra.mxu0 0.0
    %1071 = vmatprep.subr.mxu0 0.0
    %1072 = vmatpush1.msra.mxu0 0.0
    %1073 = vmatprep.subr.mxu0 0.0
    %1074 = vmatpush1.msra.mxu0 0.0
    %1075 = vmatprep.subr.mxu0 0.0
    %1076 = vmatpush1.msra.mxu0 0.0
    %1077 = vmatprep.subr.mxu0 0.0
    %1078 = vmatpush1.msra.mxu0 0.0
    %1079 = vmatprep.subr.mxu0 0.0
    %1080 = vmatpush1.msra.mxu0 0.0
    %1081 = vmatprep.subr.mxu0 0.0
    %1082 = vmatpush1.msra.mxu0 0.0
    %1083 = vmatprep.subr.mxu0 0.0
    %1084 = vmatpush1.msra.mxu0 0.0
    %1085 = vmatprep.subr.mxu0 0.0
    %1086 = vmatpush1.msra.mxu0 0.0
    %1087 = vmatprep.subr.mxu0 0.0
    %1088 = vmatpush1.msra.mxu0 0.0
    %1089 = vmatprep.subr.mxu0 0.0
    %1090 = vmatpush1.msra.mxu0 %v97
    %1091 = vmatprep.subr.mxu0 0.0
    %1092 = vmatpush1.msra.mxu0 %v96
    %1093 = vmatprep.subr.mxu0 0.0
    %1094 = vmatpush1.msra.mxu0 %v95
    %1095 = vmatprep.subr.mxu0 0.0
    %1096 = vmatpush1.msra.mxu0 %v94
    %1097 = vmatprep.subr.mxu0 0.0
    %1098 = vmatpush2.msra.mxu0 0.0
    %1099 = vmatprep.subr.mxu0 0.0
    %1100 = vmatpush2.msra.mxu0 0.0
    %1101 = vmatprep.subr.mxu0 0.0
    %1102 = vmatpush2.msra.mxu0 0.0
    %1103 = vmatprep.subr.mxu0 0.0
    %1104 = vmatpush2.msra.mxu0 0.0
    %1105 = vmatprep.subr.mxu0 0.0
    %1106 = vmatpush2.msra.mxu0 0.0
    %1107 = vmatprep.subr.mxu0 0.0
    %1108 = vmatpush2.msra.mxu0 0.0
    %1109 = vmatprep.subr.mxu0 0.0
    %1110 = vmatpush2.msra.mxu0 0.0
    %1111 = vmatprep.subr.mxu0 0.0
    %1112 = vmatpush2.msra.mxu0 0.0
    %1113 = vmatprep.subr.mxu0 0.0
    %1114 = vmatpush2.msra.mxu0 0.0
    %1115 = vmatprep.subr.mxu0 0.0
    %1116 = vmatpush2.msra.mxu0 0.0
    %1117 = vmatprep.subr.mxu0 0.0
    %1118 = vmatpush2.msra.mxu0 0.0
    %1119 = vmatprep.subr.mxu0 0.0
    %1120 = vmatpush2.msra.mxu0 0.0
    %1121 = vmatprep.subr.mxu0 0.0
    %1122 = vmatpush2.msra.mxu0 0.0
    %1123 = vmatprep.subr.mxu0 0.0
    %1124 = vmatpush2.msra.mxu0 0.0
    %1125 = vmatprep.subr.mxu0 0.0
    %1126 = vmatpush2.msra.mxu0 0.0
    %1127 = vmatprep.subr.mxu0 0.0
    %1128 = vmatpush2.msra.mxu0 0.0
    %1129 = vmatprep.mubr.f32.mxu0 0.0
    %1130 = vmatmul.mubr.f32.gmra.mxu0 %v1063
    %v1131 = vpop.f32.mrf.mxu0
    %v1132 = vadd.f32 0.0, %v1131
    %v1133 = vpop.f32.mrf.mxu0
    %1134 = vdwg.mxu0
    %1136 = vrot.lane.b32.xlu0 %v1132, 8
    %v1137 = vpop.permute.xlu0 %1136
    %v1139 = vadd.f32 %v909, %v1137
    %v1140 = vmax.f32 %v1139, 0.0
    %v1141 = vld [vmem:[%s8] sm:$0xff]
    %v1142 = vld [vmem:[%s8 + $0x8] sm:$0xff]
    %v1143 = vld [vmem:[%s8 + $0x10] sm:$0xff]
    %v1144 = vld [vmem:[%s8 + $0x18] sm:$0xff]
    %1146 = vrot.lane.b32.xlu0 %v1140, 120
    %v1147 = vpop.permute.xlu0 %1146
    %v1148 = vsel %vm109, %v1147, 0
    %1150 = vmatprep.subr.mxu0 0.0
    %1151 = vmatpush1.msra.mxu0 0.0
    %1152 = vmatprep.subr.mxu0 0.0
    %1153 = vmatpush1.msra.mxu0 0.0
    %1154 = vmatprep.subr.mxu0 0.0
    %1155 = vmatpush1.msra.mxu0 0.0
    %1156 = vmatprep.subr.mxu0 0.0
    %1157 = vmatpush1.msra.mxu0 0.0
    %1158 = vmatprep.subr.mxu0 0.0
    %1159 = vmatpush1.msra.mxu0 0.0
    %1160 = vmatprep.subr.mxu0 0.0
    %1161 = vmatpush1.msra.mxu0 0.0
    %1162 = vmatprep.subr.mxu0 0.0
    %1163 = vmatpush1.msra.mxu0 0.0
    %1164 = vmatprep.subr.mxu0 0.0
    %1165 = vmatpush1.msra.mxu0 0.0
    %1166 = vmatprep.subr.mxu0 0.0
    %1167 = vmatpush1.msra.mxu0 0.0
    %1168 = vmatprep.subr.mxu0 0.0
    %1169 = vmatpush1.msra.mxu0 0.0
    %1170 = vmatprep.subr.mxu0 0.0
    %1171 = vmatpush1.msra.mxu0 0.0
    %1172 = vmatprep.subr.mxu0 0.0
    %1173 = vmatpush1.msra.mxu0 0.0
    %1174 = vmatprep.subr.mxu0 0.0
    %1175 = vmatpush1.msra.mxu0 %v1144
    %1176 = vmatprep.subr.mxu0 0.0
    %1177 = vmatpush1.msra.mxu0 %v1143
    %1178 = vmatprep.subr.mxu0 0.0
    %1179 = vmatpush1.msra.mxu0 %v1142
    %1180 = vmatprep.subr.mxu0 0.0
    %1181 = vmatpush1.msra.mxu0 %v1141
    %1182 = vmatprep.subr.mxu0 0.0
    %1183 = vmatpush2.msra.mxu0 0.0
    %1184 = vmatprep.subr.mxu0 0.0
    %1185 = vmatpush2.msra.mxu0 0.0
    %1186 = vmatprep.subr.mxu0 0.0
    %1187 = vmatpush2.msra.mxu0 0.0
    %1188 = vmatprep.subr.mxu0 0.0
    %1189 = vmatpush2.msra.mxu0 0.0
    %1190 = vmatprep.subr.mxu0 0.0
    %1191 = vmatpush2.msra.mxu0 0.0
    %1192 = vmatprep.subr.mxu0 0.0
    %1193 = vmatpush2.msra.mxu0 0.0
    %1194 = vmatprep.subr.mxu0 0.0
    %1195 = vmatpush2.msra.mxu0 0.0
    %1196 = vmatprep.subr.mxu0 0.0
    %1197 = vmatpush2.msra.mxu0 0.0
    %1198 = vmatprep.subr.mxu0 0.0
    %1199 = vmatpush2.msra.mxu0 0.0
    %1200 = vmatprep.subr.mxu0 0.0
    %1201 = vmatpush2.msra.mxu0 0.0
    %1202 = vmatprep.subr.mxu0 0.0
    %1203 = vmatpush2.msra.mxu0 0.0
    %1204 = vmatprep.subr.mxu0 0.0
    %1205 = vmatpush2.msra.mxu0 0.0
    %1206 = vmatprep.subr.mxu0 0.0
    %1207 = vmatpush2.msra.mxu0 0.0
    %1208 = vmatprep.subr.mxu0 0.0
    %1209 = vmatpush2.msra.mxu0 0.0
    %1210 = vmatprep.subr.mxu0 0.0
    %1211 = vmatpush2.msra.mxu0 0.0
    %1212 = vmatprep.subr.mxu0 0.0
    %1213 = vmatpush2.msra.mxu0 0.0
    %1214 = vmatprep.mubr.f32.mxu0 0.0
    %1215 = vmatmul.mubr.f32.gmra.mxu0 %v1148
    %v1216 = vpop.f32.mrf.mxu0
    %v1217 = vadd.f32 %v987, %v1216
    %v1218 = vpop.f32.mrf.mxu0
    %1219 = vdwg.mxu0
    %v1220 = vadd.f32 %v1217, %v71
    %v1221 = vxor.u32 %v1220, 2147483648
    %v1222 = vmul.f32 %v1221, 1.442695
    %v1223 = vpow.pop %v1222
    %v1224 = vadd.f32 %v1223, 1.0
    %v1225 = vrcp.pop %v1224
    %v1226 = vmul.f32 1.0, %v1225
    %v1227 = vtanh.pop %v1220
    %v1228 = vmul.f32 %v1226, %v725
    %1230 = vrot.lane.b32.xlu0 %v1227, 64
    %v1231 = vpop.permute.xlu0 %1230
    %v1233 = vmul.f32 %v1226, %v1231
    %1235 = vrot.lane.b32.xlu0 %v1233, 32
    %v1236 = vpop.permute.xlu0 %1235
    %v1238 = vadd.f32 %v1228, %v1236
    %v1239 = vtanh.pop %v1238
    %1241 = vrot.lane.b32.xlu0 %v1239, 64
    %v1242 = vpop.permute.xlu0 %1241
    %v1244 = vmul.f32 %v1226, %v1242
    %v1245 = vld [vmem:[%s10] sm:$0xff]
    %v1246 = vld [vmem:[%s10 + $0x8] sm:$0xff]
    %v1247 = vld [vmem:[%s10 + $0x10] sm:$0xff]
    %v1248 = vld [vmem:[%s10 + $0x18] sm:$0xff]
    %1250 = vrot.lane.b32.xlu0 %v1244, 32
    %v1251 = vpop.permute.xlu0 %1250
    %v1252 = vsel %vm109, %v1251, 0
    %1254 = vmatprep.subr.mxu0 0.0
    %1255 = vmatpush1.msra.mxu0 0.0
    %1256 = vmatprep.subr.mxu0 0.0
    %1257 = vmatpush1.msra.mxu0 0.0
    %1258 = vmatprep.subr.mxu0 0.0
    %1259 = vmatpush1.msra.mxu0 0.0
    %1260 = vmatprep.subr.mxu0 0.0
    %1261 = vmatpush1.msra.mxu0 0.0
    %1262 = vmatprep.subr.mxu0 0.0
    %1263 = vmatpush1.msra.mxu0 0.0
    %1264 = vmatprep.subr.mxu0 0.0
    %1265 = vmatpush1.msra.mxu0 0.0
    %1266 = vmatprep.subr.mxu0 0.0
    %1267 = vmatpush1.msra.mxu0 0.0
    %1268 = vmatprep.subr.mxu0 0.0
    %1269 = vmatpush1.msra.mxu0 0.0
    %1270 = vmatprep.subr.mxu0 0.0
    %1271 = vmatpush1.msra.mxu0 0.0
    %1272 = vmatprep.subr.mxu0 0.0
    %1273 = vmatpush1.msra.mxu0 0.0
    %1274 = vmatprep.subr.mxu0 0.0
    %1275 = vmatpush1.msra.mxu0 0.0
    %1276 = vmatprep.subr.mxu0 0.0
    %1277 = vmatpush1.msra.mxu0 0.0
    %1278 = vmatprep.subr.mxu0 0.0
    %1279 = vmatpush1.msra.mxu0 %v1248
    %1280 = vmatprep.subr.mxu0 0.0
    %1281 = vmatpush1.msra.mxu0 %v1247
    %1282 = vmatprep.subr.mxu0 0.0
    %1283 = vmatpush1.msra.mxu0 %v1246
    %1284 = vmatprep.subr.mxu0 0.0
    %1285 = vmatpush1.msra.mxu0 %v1245
    %1286 = vmatprep.subr.mxu0 0.0
    %1287 = vmatpush2.msra.mxu0 0.0
    %1288 = vmatprep.subr.mxu0 0.0
    %1289 = vmatpush2.msra.mxu0 0.0
    %1290 = vmatprep.subr.mxu0 0.0
    %1291 = vmatpush2.msra.mxu0 0.0
    %1292 = vmatprep.subr.mxu0 0.0
    %1293 = vmatpush2.msra.mxu0 0.0
    %1294 = vmatprep.subr.mxu0 0.0
    %1295 = vmatpush2.msra.mxu0 0.0
    %1296 = vmatprep.subr.mxu0 0.0
    %1297 = vmatpush2.msra.mxu0 0.0
    %1298 = vmatprep.subr.mxu0 0.0
    %1299 = vmatpush2.msra.mxu0 0.0
    %1300 = vmatprep.subr.mxu0 0.0
    %1301 = vmatpush2.msra.mxu0 0.0
    %1302 = vmatprep.subr.mxu0 0.0
    %1303 = vmatpush2.msra.mxu0 0.0
    %1304 = vmatprep.subr.mxu0 0.0
    %1305 = vmatpush2.msra.mxu0 0.0
    %1306 = vmatprep.subr.mxu0 0.0
    %1307 = vmatpush2.msra.mxu0 0.0
    %1308 = vmatprep.subr.mxu0 0.0
    %1309 = vmatpush2.msra.mxu0 0.0
    %1310 = vmatprep.subr.mxu0 0.0
    %1311 = vmatpush2.msra.mxu0 0.0
    %1312 = vmatprep.subr.mxu0 0.0
    %1313 = vmatpush2.msra.mxu0 0.0
    %1314 = vmatprep.subr.mxu0 0.0
    %1315 = vmatpush2.msra.mxu0 0.0
    %1316 = vmatprep.subr.mxu0 0.0
    %1317 = vmatpush2.msra.mxu0 0.0
    %1318 = vmatprep.mubr.f32.mxu0 0.0
    %1319 = vmatmul.mubr.f32.gmra.mxu0 %v1252
    %v1320 = vpop.f32.mrf.mxu0
    %v1321 = vadd.f32 %v78, %v1320
    %v1322 = vpop.f32.mrf.mxu0
    %1323 = vdwg.mxu0
    %v1324 = vxor.u32 %v1321, 2147483648
    %v1325 = vmul.f32 %v1324, 1.442695
    %v1326 = vpow.pop %v1325
    %v1327 = vadd.f32 %v1326, 1.0
    %v1328 = vrcp.pop %v1327
    %v1329 = vmul.f32 1.0, %v1328
    %v1330 = vtanh.pop %v1321
    %v1331 = vmul.f32 %v1329, %v1238
    %1333 = vrot.lane.b32.xlu0 %v1330, 64
    %v1334 = vpop.permute.xlu0 %1333
    %v1336 = vmul.f32 %v1329, %v1334
    %1338 = vrot.lane.b32.xlu0 %v1336, 32
    %v1339 = vpop.permute.xlu0 %1338
    %v1341 = vadd.f32 %v1331, %v1339
    %v1342 = vtanh.pop %v1341
    %1344 = vrot.lane.b32.xlu0 %v1342, 64
    %v1345 = vpop.permute.xlu0 %1344
    %v1347 = vmul.f32 %v1329, %v1345
    %v1348 = vld [vmem:[%s12] sm:$0xff]
    %v1349 = vld [vmem:[%s12 + $0x8] sm:$0xff]
    %v1350 = vld [vmem:[%s12 + $0x10] sm:$0xff]
    %v1351 = vld [vmem:[%s12 + $0x18] sm:$0xff]
    %1353 = vrot.lane.b32.xlu0 %v1347, 32
    %v1354 = vpop.permute.xlu0 %1353
    %v1355 = vsel %vm109, %v1354, 0
    %1357 = vmatprep.subr.mxu0 0.0
    %1358 = vmatpush1.msra.mxu0 0.0
    %1359 = vmatprep.subr.mxu0 0.0
    %1360 = vmatpush1.msra.mxu0 0.0
    %1361 = vmatprep.subr.mxu0 0.0
    %1362 = vmatpush1.msra.mxu0 0.0
    %1363 = vmatprep.subr.mxu0 0.0
    %1364 = vmatpush1.msra.mxu0 0.0
    %1365 = vmatprep.subr.mxu0 0.0
    %1366 = vmatpush1.msra.mxu0 0.0
    %1367 = vmatprep.subr.mxu0 0.0
    %1368 = vmatpush1.msra.mxu0 0.0
    %1369 = vmatprep.subr.mxu0 0.0
    %1370 = vmatpush1.msra.mxu0 0.0
    %1371 = vmatprep.subr.mxu0 0.0
    %1372 = vmatpush1.msra.mxu0 0.0
    %1373 = vmatprep.subr.mxu0 0.0
    %1374 = vmatpush1.msra.mxu0 0.0
    %1375 = vmatprep.subr.mxu0 0.0
    %1376 = vmatpush1.msra.mxu0 0.0
    %1377 = vmatprep.subr.mxu0 0.0
    %1378 = vmatpush1.msra.mxu0 0.0
    %1379 = vmatprep.subr.mxu0 0.0
    %1380 = vmatpush1.msra.mxu0 0.0
    %1381 = vmatprep.subr.mxu0 0.0
    %1382 = vmatpush1.msra.mxu0 %v1351
    %1383 = vmatprep.subr.mxu0 0.0
    %1384 = vmatpush1.msra.mxu0 %v1350
    %1385 = vmatprep.subr.mxu0 0.0
    %1386 = vmatpush1.msra.mxu0 %v1349
    %1387 = vmatprep.subr.mxu0 0.0
    %1388 = vmatpush1.msra.mxu0 %v1348
    %1389 = vmatprep.subr.mxu0 0.0
    %1390 = vmatpush2.msra.mxu0 0.0
    %1391 = vmatprep.subr.mxu0 0.0
    %1392 = vmatpush2.msra.mxu0 0.0
    %1393 = vmatprep.subr.mxu0 0.0
    %1394 = vmatpush2.msra.mxu0 0.0
    %1395 = vmatprep.subr.mxu0 0.0
    %1396 = vmatpush2.msra.mxu0 0.0
    %1397 = vmatprep.subr.mxu0 0.0
    %1398 = vmatpush2.msra.mxu0 0.0
    %1399 = vmatprep.subr.mxu0 0.0
    %1400 = vmatpush2.msra.mxu0 0.0
    %1401 = vmatprep.subr.mxu0 0.0
    %1402 = vmatpush2.msra.mxu0 0.0
    %1403 = vmatprep.subr.mxu0 0.0
    %1404 = vmatpush2.msra.mxu0 0.0
    %1405 = vmatprep.subr.mxu0 0.0
    %1406 = vmatpush2.msra.mxu0 0.0
    %1407 = vmatprep.subr.mxu0 0.0
    %1408 = vmatpush2.msra.mxu0 0.0
    %1409 = vmatprep.subr.mxu0 0.0
    %1410 = vmatpush2.msra.mxu0 0.0
    %1411 = vmatprep.subr.mxu0 0.0
    %1412 = vmatpush2.msra.mxu0 0.0
    %1413 = vmatprep.subr.mxu0 0.0
    %1414 = vmatpush2.msra.mxu0 0.0
    %1415 = vmatprep.subr.mxu0 0.0
    %1416 = vmatpush2.msra.mxu0 0.0
    %1417 = vmatprep.subr.mxu0 0.0
    %1418 = vmatpush2.msra.mxu0 0.0
    %1419 = vmatprep.subr.mxu0 0.0
    %1420 = vmatpush2.msra.mxu0 0.0
    %1421 = vmatprep.mubr.f32.mxu0 0.0
    %1422 = vmatmul.mubr.f32.gmra.mxu0 %v1355
    %v1423 = vpop.f32.mrf.mxu0
    %v1424 = vadd.f32 %v85, %v1423
    %v1425 = vpop.f32.mrf.mxu0
    %1426 = vdwg.mxu0
    %v1427 = vxor.u32 %v1424, 2147483648
    %v1428 = vmul.f32 %v1427, 1.442695
    %v1429 = vpow.pop %v1428
    %v1430 = vadd.f32 %v1429, 1.0
    %v1431 = vrcp.pop %v1430
    %v1432 = vmul.f32 1.0, %v1431
    %v1433 = vtanh.pop %v1424
    %v1434 = vmul.f32 %v1432, %v1341
    %1436 = vrot.lane.b32.xlu0 %v1433, 64
    %v1437 = vpop.permute.xlu0 %1436
    %v1439 = vmul.f32 %v1432, %v1437
    %1441 = vrot.lane.b32.xlu0 %v1439, 32
    %v1442 = vpop.permute.xlu0 %1441
    %v1444 = vadd.f32 %v1434, %v1442
    %v1445 = vtanh.pop %v1444
    %1447 = vrot.lane.b32.xlu0 %v1445, 64
    %v1448 = vpop.permute.xlu0 %1447
    %v1450 = vmul.f32 %v1432, %v1448
    %1452 = vrot.lane.b32.xlu0 %v1450, 32
    %v1453 = vpop.permute.xlu0 %1452
    %v1454 = vsel %vm109, %v1453, 0
    %1456 = vmatprep.subr.mxu0 0.0
    %1457 = vmatpush1.msra.mxu0 0.0
    %1458 = vmatprep.subr.mxu0 0.0
    %1459 = vmatpush1.msra.mxu0 0.0
    %1460 = vmatprep.subr.mxu0 0.0
    %1461 = vmatpush1.msra.mxu0 0.0
    %1462 = vmatprep.subr.mxu0 0.0
    %1463 = vmatpush1.msra.mxu0 0.0
    %1464 = vmatprep.subr.mxu0 0.0
    %1465 = vmatpush1.msra.mxu0 0.0
    %1466 = vmatprep.subr.mxu0 0.0
    %1467 = vmatpush1.msra.mxu0 0.0
    %1468 = vmatprep.subr.mxu0 0.0
    %1469 = vmatpush1.msra.mxu0 0.0
    %1470 = vmatprep.subr.mxu0 0.0
    %1471 = vmatpush1.msra.mxu0 0.0
    %1472 = vmatprep.subr.mxu0 0.0
    %1473 = vmatpush1.msra.mxu0 0.0
    %1474 = vmatprep.subr.mxu0 0.0
    %1475 = vmatpush1.msra.mxu0 0.0
    %1476 = vmatprep.subr.mxu0 0.0
    %1477 = vmatpush1.msra.mxu0 0.0
    %1478 = vmatprep.subr.mxu0 0.0
    %1479 = vmatpush1.msra.mxu0 0.0
    %1480 = vmatprep.subr.mxu0 0.0
    %1481 = vmatpush1.msra.mxu0 %v101
    %1482 = vmatprep.subr.mxu0 0.0
    %1483 = vmatpush1.msra.mxu0 %v100
    %1484 = vmatprep.subr.mxu0 0.0
    %1485 = vmatpush1.msra.mxu0 %v99
    %1486 = vmatprep.subr.mxu0 0.0
    %1487 = vmatpush1.msra.mxu0 %v98
    %1488 = vmatprep.subr.mxu0 0.0
    %1489 = vmatpush2.msra.mxu0 0.0
    %1490 = vmatprep.subr.mxu0 0.0
    %1491 = vmatpush2.msra.mxu0 0.0
    %1492 = vmatprep.subr.mxu0 0.0
    %1493 = vmatpush2.msra.mxu0 0.0
    %1494 = vmatprep.subr.mxu0 0.0
    %1495 = vmatpush2.msra.mxu0 0.0
    %1496 = vmatprep.subr.mxu0 0.0
    %1497 = vmatpush2.msra.mxu0 0.0
    %1498 = vmatprep.subr.mxu0 0.0
    %1499 = vmatpush2.msra.mxu0 0.0
    %1500 = vmatprep.subr.mxu0 0.0
    %1501 = vmatpush2.msra.mxu0 0.0
    %1502 = vmatprep.subr.mxu0 0.0
    %1503 = vmatpush2.msra.mxu0 0.0
    %1504 = vmatprep.subr.mxu0 0.0
    %1505 = vmatpush2.msra.mxu0 0.0
    %1506 = vmatprep.subr.mxu0 0.0
    %1507 = vmatpush2.msra.mxu0 0.0
    %1508 = vmatprep.subr.mxu0 0.0
    %1509 = vmatpush2.msra.mxu0 0.0
    %1510 = vmatprep.subr.mxu0 0.0
    %1511 = vmatpush2.msra.mxu0 0.0
    %1512 = vmatprep.subr.mxu0 0.0
    %1513 = vmatpush2.msra.mxu0 0.0
    %1514 = vmatprep.subr.mxu0 0.0
    %1515 = vmatpush2.msra.mxu0 0.0
    %1516 = vmatprep.subr.mxu0 0.0
    %1517 = vmatpush2.msra.mxu0 0.0
    %1518 = vmatprep.subr.mxu0 0.0
    %1519 = vmatpush2.msra.mxu0 0.0
    %1520 = vmatprep.mubr.f32.mxu0 0.0
    %1521 = vmatmul.mubr.f32.gmra.mxu0 %v1454
    %v1522 = vpop.f32.mrf.mxu0
    %v1523 = vadd.f32 %v92, %v1522
    %v1524 = vpop.f32.mrf.mxu0
    %1525 = vdwg.mxu0
    %v1526 = vmax.f32 %v1523, 0.0
    %v1529 = vunpack.c.l.s4 1966171168
    %v1530 = vunpack.c.0.s8 %v1529
    %v1531 = vlaneseq
    %v1532 = vshrl.u32 %v1531, 7
    %v1533 = vsub.s32 %v1530, %v1532
    %v1534 = vrot.slane %v1526, %v1533
    %v1535 = vcombine.high %v1534, %v1534
    %v1537 = vunpack.c.l.s4 1966171168
    %v1538 = vunpack.c.0.s8 %v1537
    %v1539 = vlaneseq
    %v1540 = vshrl.u32 %v1539, 7
    %v1541 = vsub.s32 %v1538, %v1540
    %v1542 = vrot.slane %v1534, %v1541
    %v1544 = vunpack.c.l.s4 1966171168
    %v1545 = vunpack.c.0.s8 %v1544
    %v1546 = vlaneseq
    %v1547 = vshrl.u32 %v1546, 7
    %v1548 = vsub.s32 %v1545, %v1547
    %v1549 = vrot.slane %v1535, %v1548
    %1552 = vst.msk [vmem:[#allocation2 + $0x1] sm:$0x1] %vm833, %v1542
    %1553 = vst.msk [vmem:[#allocation2 + $0x9] sm:$0x1] %vm833, %v1549
    %v1554 = vld [vmem:[%s4] sm:$0xff]
    %v1555 = vld [vmem:[%s4 + $0x8] sm:$0xff]
    %v1556 = vld [vmem:[%s4 + $0x10] sm:$0xff]
    %v1557 = vld [vmem:[%s4 + $0x18] sm:$0xff]
    %v1558 = vsel %vm109, %v1526, 0
    %1560 = vmatprep.subr.mxu0 0.0
    %1561 = vmatpush1.msra.mxu0 0.0
    %1562 = vmatprep.subr.mxu0 0.0
    %1563 = vmatpush1.msra.mxu0 0.0
    %1564 = vmatprep.subr.mxu0 0.0
    %1565 = vmatpush1.msra.mxu0 0.0
    %1566 = vmatprep.subr.mxu0 0.0
    %1567 = vmatpush1.msra.mxu0 0.0
    %1568 = vmatprep.subr.mxu0 0.0
    %1569 = vmatpush1.msra.mxu0 0.0
    %1570 = vmatprep.subr.mxu0 0.0
    %1571 = vmatpush1.msra.mxu0 0.0
    %1572 = vmatprep.subr.mxu0 0.0
    %1573 = vmatpush1.msra.mxu0 0.0
    %1574 = vmatprep.subr.mxu0 0.0
    %1575 = vmatpush1.msra.mxu0 0.0
    %1576 = vmatprep.subr.mxu0 0.0
    %1577 = vmatpush1.msra.mxu0 0.0
    %1578 = vmatprep.subr.mxu0 0.0
    %1579 = vmatpush1.msra.mxu0 0.0
    %1580 = vmatprep.subr.mxu0 0.0
    %1581 = vmatpush1.msra.mxu0 0.0
    %1582 = vmatprep.subr.mxu0 0.0
    %1583 = vmatpush1.msra.mxu0 0.0
    %1584 = vmatprep.subr.mxu0 0.0
    %1585 = vmatpush1.msra.mxu0 %v1557
    %1586 = vmatprep.subr.mxu0 0.0
    %1587 = vmatpush1.msra.mxu0 %v1556
    %1588 = vmatprep.subr.mxu0 0.0
    %1589 = vmatpush1.msra.mxu0 %v1555
    %1590 = vmatprep.subr.mxu0 0.0
    %1591 = vmatpush1.msra.mxu0 %v1554
    %1592 = vmatprep.subr.mxu0 0.0
    %1593 = vmatpush2.msra.mxu0 0.0
    %1594 = vmatprep.subr.mxu0 0.0
    %1595 = vmatpush2.msra.mxu0 0.0
    %1596 = vmatprep.subr.mxu0 0.0
    %1597 = vmatpush2.msra.mxu0 0.0
    %1598 = vmatprep.subr.mxu0 0.0
    %1599 = vmatpush2.msra.mxu0 0.0
    %1600 = vmatprep.subr.mxu0 0.0
    %1601 = vmatpush2.msra.mxu0 0.0
    %1602 = vmatprep.subr.mxu0 0.0
    %1603 = vmatpush2.msra.mxu0 0.0
    %1604 = vmatprep.subr.mxu0 0.0
    %1605 = vmatpush2.msra.mxu0 0.0
    %1606 = vmatprep.subr.mxu0 0.0
    %1607 = vmatpush2.msra.mxu0 0.0
    %1608 = vmatprep.subr.mxu0 0.0
    %1609 = vmatpush2.msra.mxu0 0.0
    %1610 = vmatprep.subr.mxu0 0.0
    %1611 = vmatpush2.msra.mxu0 0.0
    %1612 = vmatprep.subr.mxu0 0.0
    %1613 = vmatpush2.msra.mxu0 0.0
    %1614 = vmatprep.subr.mxu0 0.0
    %1615 = vmatpush2.msra.mxu0 0.0
    %1616 = vmatprep.subr.mxu0 0.0
    %1617 = vmatpush2.msra.mxu0 0.0
    %1618 = vmatprep.subr.mxu0 0.0
    %1619 = vmatpush2.msra.mxu0 0.0
    %1620 = vmatprep.subr.mxu0 0.0
    %1621 = vmatpush2.msra.mxu0 0.0
    %1622 = vmatprep.subr.mxu0 0.0
    %1623 = vmatpush2.msra.mxu0 0.0
    %1624 = vmatprep.mubr.f32.mxu0 0.0
    %1625 = vmatmul.mubr.f32.gmra.mxu0 %v1558
    %v1626 = vpop.f32.mrf.mxu0
    %v1627 = vadd.f32 %v64, %v1626
    %v1628 = vpop.f32.mrf.mxu0
    %1629 = vdwg.mxu0
    %v1630 = vld [vmem:[%s7] sm:$0xff]
    %v1631 = vld [vmem:[%s7 + $0x8] sm:$0xff]
    %v1632 = vld [vmem:[%s7 + $0x10] sm:$0xff]
    %v1633 = vld [vmem:[%s7 + $0x18] sm:$0xff]
    %v1634 = vld [vmem:[%s7 + $0x20] sm:$0xff]
    %v1635 = vld [vmem:[%s7 + $0x28] sm:$0xff]
    %v1636 = vld [vmem:[%s7 + $0x30] sm:$0xff]
    %v1637 = vld [vmem:[%s7 + $0x38] sm:$0xff]
    %1638 = vmatprep.subr.mxu0 0.0
    %1639 = vmatpush1.msra.mxu0 0.0
    %1640 = vmatprep.subr.mxu0 0.0
    %1641 = vmatpush1.msra.mxu0 0.0
    %1642 = vmatprep.subr.mxu0 0.0
    %1643 = vmatpush1.msra.mxu0 0.0
    %1644 = vmatprep.subr.mxu0 0.0
    %1645 = vmatpush1.msra.mxu0 0.0
    %1646 = vmatprep.subr.mxu0 0.0
    %1647 = vmatpush1.msra.mxu0 0.0
    %1648 = vmatprep.subr.mxu0 0.0
    %1649 = vmatpush1.msra.mxu0 0.0
    %1650 = vmatprep.subr.mxu0 0.0
    %1651 = vmatpush1.msra.mxu0 0.0
    %1652 = vmatprep.subr.mxu0 0.0
    %1653 = vmatpush1.msra.mxu0 0.0
    %1654 = vmatprep.subr.mxu0 0.0
    %1655 = vmatpush1.msra.mxu0 0.0
    %1656 = vmatprep.subr.mxu0 0.0
    %1657 = vmatpush1.msra.mxu0 0.0
    %1658 = vmatprep.subr.mxu0 0.0
    %1659 = vmatpush1.msra.mxu0 0.0
    %1660 = vmatprep.subr.mxu0 0.0
    %1661 = vmatpush1.msra.mxu0 0.0
    %1662 = vmatprep.subr.mxu0 %v1637
    %1663 = vmatpush1.msra.mxu0 %v1636
    %1664 = vmatprep.subr.mxu0 %v1635
    %1665 = vmatpush1.msra.mxu0 %v1634
    %1666 = vmatprep.subr.mxu0 %v1633
    %1667 = vmatpush1.msra.mxu0 %v1632
    %1668 = vmatprep.subr.mxu0 %v1631
    %1669 = vmatpush1.msra.mxu0 %v1630
    %1670 = vmatprep.subr.mxu0 0.0
    %1671 = vmatpush2.msra.mxu0 0.0
    %1672 = vmatprep.subr.mxu0 0.0
    %1673 = vmatpush2.msra.mxu0 0.0
    %1674 = vmatprep.subr.mxu0 0.0
    %1675 = vmatpush2.msra.mxu0 0.0
    %1676 = vmatprep.subr.mxu0 0.0
    %1677 = vmatpush2.msra.mxu0 0.0
    %1678 = vmatprep.subr.mxu0 0.0
    %1679 = vmatpush2.msra.mxu0 0.0
    %1680 = vmatprep.subr.mxu0 0.0
    %1681 = vmatpush2.msra.mxu0 0.0
    %1682 = vmatprep.subr.mxu0 0.0
    %1683 = vmatpush2.msra.mxu0 0.0
    %1684 = vmatprep.subr.mxu0 0.0
    %1685 = vmatpush2.msra.mxu0 0.0
    %1686 = vmatprep.subr.mxu0 0.0
    %1687 = vmatpush2.msra.mxu0 0.0
    %1688 = vmatprep.subr.mxu0 0.0
    %1689 = vmatpush2.msra.mxu0 0.0
    %1690 = vmatprep.subr.mxu0 0.0
    %1691 = vmatpush2.msra.mxu0 0.0
    %1692 = vmatprep.subr.mxu0 0.0
    %1693 = vmatpush2.msra.mxu0 0.0
    %1694 = vmatprep.subr.mxu0 0.0
    %1695 = vmatpush2.msra.mxu0 0.0
    %1696 = vmatprep.subr.mxu0 0.0
    %1697 = vmatpush2.msra.mxu0 0.0
    %1698 = vmatprep.subr.mxu0 0.0
    %1699 = vmatpush2.msra.mxu0 0.0
    %1700 = vmatprep.subr.mxu0 0.0
    %1701 = vmatpush2.msra.mxu0 0.0
    %1702 = vmatprep.mubr.f32.mxu0 0.0
    %1703 = vmatmul.mubr.f32.gmra.mxu0 %v1454
    %v1704 = vpop.f32.mrf.mxu0
    %v1705 = vadd.f32 0.0, %v1704
    %v1706 = vpop.f32.mrf.mxu0
    %v1707 = vadd.f32 0.0, %v1706
    %1708 = vdwg.mxu0
    %v1709 = vadd.f32 %v1627, %v1707
    %v1710 = vsel %vm266, %v1709, -inf
    %1711 = vmax.xlane.f32.xlu0 %v1710
    %v1712 = vpop.xlane.xlu0 %1711
    %v1713 = vsub.f32 %v1709, %v1712
    %v1714 = vmul.f32 %v1713, 1.442695
    %v1715 = vpow.pop %v1714
    %v1716 = vsel %vm266, %v1715, 0.0
    %1717 = vadd.xlane.f32.xlu0 %v1716
    %v1718 = vpop.xlane.xlu0 %1717
    %v1719 = vrcp.pop %v1718
    %v1720 = vmul.f32 %v1715, %v1719
    %v1723 = vunpack.c.l.s4 1966171168
    %v1724 = vunpack.c.0.s8 %v1723
    %v1725 = vlaneseq
    %v1726 = vshrl.u32 %v1725, 7
    %v1727 = vsub.s32 %v1724, %v1726
    %v1728 = vrot.slane %v1720, %v1727
    %v1729 = vcombine.high %v1728, %v1728
    %v1731 = vunpack.c.l.s4 1966171168
    %v1732 = vunpack.c.0.s8 %v1731
    %v1733 = vlaneseq
    %v1734 = vshrl.u32 %v1733, 7
    %v1735 = vsub.s32 %v1732, %v1734
    %v1736 = vrot.slane %v1728, %v1735
    %v1738 = vunpack.c.l.s4 1966171168
    %v1739 = vunpack.c.0.s8 %v1738
    %v1740 = vlaneseq
    %v1741 = vshrl.u32 %v1740, 7
    %v1742 = vsub.s32 %v1739, %v1741
    %v1743 = vrot.slane %v1729, %v1742
    %1746 = vst.msk [vmem:[#allocation4 + $0x2] sm:$0x1] %vm303, %v1736
    %1747 = vst.msk [vmem:[#allocation4 + $0xa] sm:$0x1] %vm303, %v1743
    %v1748 = vlaneseq
    %v1749 = vshrl.u32 %v1748, 7
    %v1750 = vsub.s32 0, %v1749
    %v1751 = vrot.slane %v1720, %v1750
    %1753 = vbcast.lane.b32.xlu0 %v1751, 256
    %v1754 = vpop.permute.xlu0 %1753
    %v1755 = vlaneseq
    %v1756 = vshrl.u32 %v1755, 7
    %v1757 = vsub.s32 1, %v1756
    %v1758 = vrot.slane %v1720, %v1757
    %1760 = vbcast.lane.b32.xlu0 %v1758, 256
    %v1761 = vpop.permute.xlu0 %1760
    %v1762 = vmul.f32 %v1754, %v57
    %v1763 = vmul.f32 %v1761, %v58
    %v1764 = vsel %vm109, %v1762, 0.0
    %v1765 = vrot.slane %v1764, 4
    %v1766 = vadd.f32 %v1764, %v1765
    %v1767 = vrot.slane %v1766, 2
    %v1768 = vadd.f32 %v1766, %v1767
    %v1769 = vrot.slane %v1768, 1
    %v1770 = vadd.f32 %v1768, %v1769
    %v1771 = vsel %vm109, %v1763, 0.0
    %v1772 = vrot.slane %v1771, 4
    %v1773 = vadd.f32 %v1771, %v1772
    %v1774 = vrot.slane %v1773, 2
    %v1775 = vadd.f32 %v1773, %v1774
    %v1776 = vrot.slane %v1775, 1
    %v1777 = vadd.f32 %v1775, %v1776
    %v1780 = vsel %vm338, %v1777, %v1770
    %v1781 = vsel %vm109, %v1780, 0
    %1783 = vmatprep.subr.mxu0 0.0
    %1784 = vmatpush1.msra.mxu0 0.0
    %1785 = vmatprep.subr.mxu0 0.0
    %1786 = vmatpush1.msra.mxu0 0.0
    %1787 = vmatprep.subr.mxu0 0.0
    %1788 = vmatpush1.msra.mxu0 0.0
    %1789 = vmatprep.subr.mxu0 0.0
    %1790 = vmatpush1.msra.mxu0 0.0
    %1791 = vmatprep.subr.mxu0 0.0
    %1792 = vmatpush1.msra.mxu0 0.0
    %1793 = vmatprep.subr.mxu0 0.0
    %1794 = vmatpush1.msra.mxu0 0.0
    %1795 = vmatprep.subr.mxu0 0.0
    %1796 = vmatpush1.msra.mxu0 0.0
    %1797 = vmatprep.subr.mxu0 0.0
    %1798 = vmatpush1.msra.mxu0 0.0
    %1799 = vmatprep.subr.mxu0 0.0
    %1800 = vmatpush1.msra.mxu0 0.0
    %1801 = vmatprep.subr.mxu0 0.0
    %1802 = vmatpush1.msra.mxu0 0.0
    %1803 = vmatprep.subr.mxu0 0.0
    %1804 = vmatpush1.msra.mxu0 0.0
    %1805 = vmatprep.subr.mxu0 0.0
    %1806 = vmatpush1.msra.mxu0 0.0
    %1807 = vmatprep.subr.mxu0 0.0
    %1808 = vmatpush1.msra.mxu0 %v97
    %1809 = vmatprep.subr.mxu0 0.0
    %1810 = vmatpush1.msra.mxu0 %v96
    %1811 = vmatprep.subr.mxu0 0.0
    %1812 = vmatpush1.msra.mxu0 %v95
    %1813 = vmatprep.subr.mxu0 0.0
    %1814 = vmatpush1.msra.mxu0 %v94
    %1815 = vmatprep.subr.mxu0 0.0
    %1816 = vmatpush2.msra.mxu0 0.0
    %1817 = vmatprep.subr.mxu0 0.0
    %1818 = vmatpush2.msra.mxu0 0.0
    %1819 = vmatprep.subr.mxu0 0.0
    %1820 = vmatpush2.msra.mxu0 0.0
    %1821 = vmatprep.subr.mxu0 0.0
    %1822 = vmatpush2.msra.mxu0 0.0
    %1823 = vmatprep.subr.mxu0 0.0
    %1824 = vmatpush2.msra.mxu0 0.0
    %1825 = vmatprep.subr.mxu0 0.0
    %1826 = vmatpush2.msra.mxu0 0.0
    %1827 = vmatprep.subr.mxu0 0.0
    %1828 = vmatpush2.msra.mxu0 0.0
    %1829 = vmatprep.subr.mxu0 0.0
    %1830 = vmatpush2.msra.mxu0 0.0
    %1831 = vmatprep.subr.mxu0 0.0
    %1832 = vmatpush2.msra.mxu0 0.0
    %1833 = vmatprep.subr.mxu0 0.0
    %1834 = vmatpush2.msra.mxu0 0.0
    %1835 = vmatprep.subr.mxu0 0.0
    %1836 = vmatpush2.msra.mxu0 0.0
    %1837 = vmatprep.subr.mxu0 0.0
    %1838 = vmatpush2.msra.mxu0 0.0
    %1839 = vmatprep.subr.mxu0 0.0
    %1840 = vmatpush2.msra.mxu0 0.0
    %1841 = vmatprep.subr.mxu0 0.0
    %1842 = vmatpush2.msra.mxu0 0.0
    %1843 = vmatprep.subr.mxu0 0.0
    %1844 = vmatpush2.msra.mxu0 0.0
    %1845 = vmatprep.subr.mxu0 0.0
    %1846 = vmatpush2.msra.mxu0 0.0
    %1847 = vmatprep.mubr.f32.mxu0 0.0
    %1848 = vmatmul.mubr.f32.gmra.mxu0 %v1781
    %v1849 = vpop.f32.mrf.mxu0
    %v1850 = vadd.f32 0.0, %v1849
    %v1851 = vpop.f32.mrf.mxu0
    %1852 = vdwg.mxu0
    %1854 = vrot.lane.b32.xlu0 %v1850, 8
    %v1855 = vpop.permute.xlu0 %1854
    %v1857 = vadd.f32 %v1627, %v1855
    %v1858 = vmax.f32 %v1857, 0.0
    %v1859 = vld [vmem:[%s8] sm:$0xff]
    %v1860 = vld [vmem:[%s8 + $0x8] sm:$0xff]
    %v1861 = vld [vmem:[%s8 + $0x10] sm:$0xff]
    %v1862 = vld [vmem:[%s8 + $0x18] sm:$0xff]
    %1864 = vrot.lane.b32.xlu0 %v1858, 120
    %v1865 = vpop.permute.xlu0 %1864
    %v1866 = vsel %vm109, %v1865, 0
    %1868 = vmatprep.subr.mxu0 0.0
    %1869 = vmatpush1.msra.mxu0 0.0
    %1870 = vmatprep.subr.mxu0 0.0
    %1871 = vmatpush1.msra.mxu0 0.0
    %1872 = vmatprep.subr.mxu0 0.0
    %1873 = vmatpush1.msra.mxu0 0.0
    %1874 = vmatprep.subr.mxu0 0.0
    %1875 = vmatpush1.msra.mxu0 0.0
    %1876 = vmatprep.subr.mxu0 0.0
    %1877 = vmatpush1.msra.mxu0 0.0
    %1878 = vmatprep.subr.mxu0 0.0
    %1879 = vmatpush1.msra.mxu0 0.0
    %1880 = vmatprep.subr.mxu0 0.0
    %1881 = vmatpush1.msra.mxu0 0.0
    %1882 = vmatprep.subr.mxu0 0.0
    %1883 = vmatpush1.msra.mxu0 0.0
    %1884 = vmatprep.subr.mxu0 0.0
    %1885 = vmatpush1.msra.mxu0 0.0
    %1886 = vmatprep.subr.mxu0 0.0
    %1887 = vmatpush1.msra.mxu0 0.0
    %1888 = vmatprep.subr.mxu0 0.0
    %1889 = vmatpush1.msra.mxu0 0.0
    %1890 = vmatprep.subr.mxu0 0.0
    %1891 = vmatpush1.msra.mxu0 0.0
    %1892 = vmatprep.subr.mxu0 0.0
    %1893 = vmatpush1.msra.mxu0 %v1862
    %1894 = vmatprep.subr.mxu0 0.0
    %1895 = vmatpush1.msra.mxu0 %v1861
    %1896 = vmatprep.subr.mxu0 0.0
    %1897 = vmatpush1.msra.mxu0 %v1860
    %1898 = vmatprep.subr.mxu0 0.0
    %1899 = vmatpush1.msra.mxu0 %v1859
    %1900 = vmatprep.subr.mxu0 0.0
    %1901 = vmatpush2.msra.mxu0 0.0
    %1902 = vmatprep.subr.mxu0 0.0
    %1903 = vmatpush2.msra.mxu0 0.0
    %1904 = vmatprep.subr.mxu0 0.0
    %1905 = vmatpush2.msra.mxu0 0.0
    %1906 = vmatprep.subr.mxu0 0.0
    %1907 = vmatpush2.msra.mxu0 0.0
    %1908 = vmatprep.subr.mxu0 0.0
    %1909 = vmatpush2.msra.mxu0 0.0
    %1910 = vmatprep.subr.mxu0 0.0
    %1911 = vmatpush2.msra.mxu0 0.0
    %1912 = vmatprep.subr.mxu0 0.0
    %1913 = vmatpush2.msra.mxu0 0.0
    %1914 = vmatprep.subr.mxu0 0.0
    %1915 = vmatpush2.msra.mxu0 0.0
    %1916 = vmatprep.subr.mxu0 0.0
    %1917 = vmatpush2.msra.mxu0 0.0
    %1918 = vmatprep.subr.mxu0 0.0
    %1919 = vmatpush2.msra.mxu0 0.0
    %1920 = vmatprep.subr.mxu0 0.0
    %1921 = vmatpush2.msra.mxu0 0.0
    %1922 = vmatprep.subr.mxu0 0.0
    %1923 = vmatpush2.msra.mxu0 0.0
    %1924 = vmatprep.subr.mxu0 0.0
    %1925 = vmatpush2.msra.mxu0 0.0
    %1926 = vmatprep.subr.mxu0 0.0
    %1927 = vmatpush2.msra.mxu0 0.0
    %1928 = vmatprep.subr.mxu0 0.0
    %1929 = vmatpush2.msra.mxu0 0.0
    %1930 = vmatprep.subr.mxu0 0.0
    %1931 = vmatpush2.msra.mxu0 0.0
    %1932 = vmatprep.mubr.f32.mxu0 0.0
    %1933 = vmatmul.mubr.f32.gmra.mxu0 %v1866
    %v1934 = vpop.f32.mrf.mxu0
    %v1935 = vadd.f32 %v1705, %v1934
    %v1936 = vpop.f32.mrf.mxu0
    %1937 = vdwg.mxu0
    %v1938 = vadd.f32 %v1935, %v71
    %v1939 = vxor.u32 %v1938, 2147483648
    %v1940 = vmul.f32 %v1939, 1.442695
    %v1941 = vpow.pop %v1940
    %v1942 = vadd.f32 %v1941, 1.0
    %v1943 = vrcp.pop %v1942
    %v1944 = vmul.f32 1.0, %v1943
    %v1945 = vtanh.pop %v1938
    %v1946 = vmul.f32 %v1944, %v1444
    %1948 = vrot.lane.b32.xlu0 %v1945, 64
    %v1949 = vpop.permute.xlu0 %1948
    %v1951 = vmul.f32 %v1944, %v1949
    %1953 = vrot.lane.b32.xlu0 %v1951, 32
    %v1954 = vpop.permute.xlu0 %1953
    %v1956 = vadd.f32 %v1946, %v1954
    %v1957 = vtanh.pop %v1956
    %1959 = vrot.lane.b32.xlu0 %v1957, 64
    %v1960 = vpop.permute.xlu0 %1959
    %v1962 = vmul.f32 %v1944, %v1960
    %v1963 = vld [vmem:[%s10] sm:$0xff]
    %v1964 = vld [vmem:[%s10 + $0x8] sm:$0xff]
    %v1965 = vld [vmem:[%s10 + $0x10] sm:$0xff]
    %v1966 = vld [vmem:[%s10 + $0x18] sm:$0xff]
    %1968 = vrot.lane.b32.xlu0 %v1962, 32
    %v1969 = vpop.permute.xlu0 %1968
    %v1970 = vsel %vm109, %v1969, 0
    %1972 = vmatprep.subr.mxu0 0.0
    %1973 = vmatpush1.msra.mxu0 0.0
    %1974 = vmatprep.subr.mxu0 0.0
    %1975 = vmatpush1.msra.mxu0 0.0
    %1976 = vmatprep.subr.mxu0 0.0
    %1977 = vmatpush1.msra.mxu0 0.0
    %1978 = vmatprep.subr.mxu0 0.0
    %1979 = vmatpush1.msra.mxu0 0.0
    %1980 = vmatprep.subr.mxu0 0.0
    %1981 = vmatpush1.msra.mxu0 0.0
    %1982 = vmatprep.subr.mxu0 0.0
    %1983 = vmatpush1.msra.mxu0 0.0
    %1984 = vmatprep.subr.mxu0 0.0
    %1985 = vmatpush1.msra.mxu0 0.0
    %1986 = vmatprep.subr.mxu0 0.0
    %1987 = vmatpush1.msra.mxu0 0.0
    %1988 = vmatprep.subr.mxu0 0.0
    %1989 = vmatpush1.msra.mxu0 0.0
    %1990 = vmatprep.subr.mxu0 0.0
    %1991 = vmatpush1.msra.mxu0 0.0
    %1992 = vmatprep.subr.mxu0 0.0
    %1993 = vmatpush1.msra.mxu0 0.0
    %1994 = vmatprep.subr.mxu0 0.0
    %1995 = vmatpush1.msra.mxu0 0.0
    %1996 = vmatprep.subr.mxu0 0.0
    %1997 = vmatpush1.msra.mxu0 %v1966
    %1998 = vmatprep.subr.mxu0 0.0
    %1999 = vmatpush1.msra.mxu0 %v1965
    %2000 = vmatprep.subr.mxu0 0.0
    %2001 = vmatpush1.msra.mxu0 %v1964
    %2002 = vmatprep.subr.mxu0 0.0
    %2003 = vmatpush1.msra.mxu0 %v1963
    %2004 = vmatprep.subr.mxu0 0.0
    %2005 = vmatpush2.msra.mxu0 0.0
    %2006 = vmatprep.subr.mxu0 0.0
    %2007 = vmatpush2.msra.mxu0 0.0
    %2008 = vmatprep.subr.mxu0 0.0
    %2009 = vmatpush2.msra.mxu0 0.0
    %2010 = vmatprep.subr.mxu0 0.0
    %2011 = vmatpush2.msra.mxu0 0.0
    %2012 = vmatprep.subr.mxu0 0.0
    %2013 = vmatpush2.msra.mxu0 0.0
    %2014 = vmatprep.subr.mxu0 0.0
    %2015 = vmatpush2.msra.mxu0 0.0
    %2016 = vmatprep.subr.mxu0 0.0
    %2017 = vmatpush2.msra.mxu0 0.0
    %2018 = vmatprep.subr.mxu0 0.0
    %2019 = vmatpush2.msra.mxu0 0.0
    %2020 = vmatprep.subr.mxu0 0.0
    %2021 = vmatpush2.msra.mxu0 0.0
    %2022 = vmatprep.subr.mxu0 0.0
    %2023 = vmatpush2.msra.mxu0 0.0
    %2024 = vmatprep.subr.mxu0 0.0
    %2025 = vmatpush2.msra.mxu0 0.0
    %2026 = vmatprep.subr.mxu0 0.0
    %2027 = vmatpush2.msra.mxu0 0.0
    %2028 = vmatprep.subr.mxu0 0.0
    %2029 = vmatpush2.msra.mxu0 0.0
    %2030 = vmatprep.subr.mxu0 0.0
    %2031 = vmatpush2.msra.mxu0 0.0
    %2032 = vmatprep.subr.mxu0 0.0
    %2033 = vmatpush2.msra.mxu0 0.0
    %2034 = vmatprep.subr.mxu0 0.0
    %2035 = vmatpush2.msra.mxu0 0.0
    %2036 = vmatprep.mubr.f32.mxu0 0.0
    %2037 = vmatmul.mubr.f32.gmra.mxu0 %v1970
    %v2038 = vpop.f32.mrf.mxu0
    %v2039 = vadd.f32 %v78, %v2038
    %v2040 = vpop.f32.mrf.mxu0
    %2041 = vdwg.mxu0
    %v2042 = vxor.u32 %v2039, 2147483648
    %v2043 = vmul.f32 %v2042, 1.442695
    %v2044 = vpow.pop %v2043
    %v2045 = vadd.f32 %v2044, 1.0
    %v2046 = vrcp.pop %v2045
    %v2047 = vmul.f32 1.0, %v2046
    %v2048 = vtanh.pop %v2039
    %v2049 = vmul.f32 %v2047, %v1956
    %2051 = vrot.lane.b32.xlu0 %v2048, 64
    %v2052 = vpop.permute.xlu0 %2051
    %v2054 = vmul.f32 %v2047, %v2052
    %2056 = vrot.lane.b32.xlu0 %v2054, 32
    %v2057 = vpop.permute.xlu0 %2056
    %v2059 = vadd.f32 %v2049, %v2057
    %v2060 = vtanh.pop %v2059
    %2062 = vrot.lane.b32.xlu0 %v2060, 64
    %v2063 = vpop.permute.xlu0 %2062
    %v2065 = vmul.f32 %v2047, %v2063
    %v2066 = vld [vmem:[%s12] sm:$0xff]
    %v2067 = vld [vmem:[%s12 + $0x8] sm:$0xff]
    %v2068 = vld [vmem:[%s12 + $0x10] sm:$0xff]
    %v2069 = vld [vmem:[%s12 + $0x18] sm:$0xff]
    %2071 = vrot.lane.b32.xlu0 %v2065, 32
    %v2072 = vpop.permute.xlu0 %2071
    %v2073 = vsel %vm109, %v2072, 0
    %2075 = vmatprep.subr.mxu0 0.0
    %2076 = vmatpush1.msra.mxu0 0.0
    %2077 = vmatprep.subr.mxu0 0.0
    %2078 = vmatpush1.msra.mxu0 0.0
    %2079 = vmatprep.subr.mxu0 0.0
    %2080 = vmatpush1.msra.mxu0 0.0
    %2081 = vmatprep.subr.mxu0 0.0
    %2082 = vmatpush1.msra.mxu0 0.0
    %2083 = vmatprep.subr.mxu0 0.0
    %2084 = vmatpush1.msra.mxu0 0.0
    %2085 = vmatprep.subr.mxu0 0.0
    %2086 = vmatpush1.msra.mxu0 0.0
    %2087 = vmatprep.subr.mxu0 0.0
    %2088 = vmatpush1.msra.mxu0 0.0
    %2089 = vmatprep.subr.mxu0 0.0
    %2090 = vmatpush1.msra.mxu0 0.0
    %2091 = vmatprep.subr.mxu0 0.0
    %2092 = vmatpush1.msra.mxu0 0.0
    %2093 = vmatprep.subr.mxu0 0.0
    %2094 = vmatpush1.msra.mxu0 0.0
    %2095 = vmatprep.subr.mxu0 0.0
    %2096 = vmatpush1.msra.mxu0 0.0
    %2097 = vmatprep.subr.mxu0 0.0
    %2098 = vmatpush1.msra.mxu0 0.0
    %2099 = vmatprep.subr.mxu0 0.0
    %2100 = vmatpush1.msra.mxu0 %v2069
    %2101 = vmatprep.subr.mxu0 0.0
    %2102 = vmatpush1.msra.mxu0 %v2068
    %2103 = vmatprep.subr.mxu0 0.0
    %2104 = vmatpush1.msra.mxu0 %v2067
    %2105 = vmatprep.subr.mxu0 0.0
    %2106 = vmatpush1.msra.mxu0 %v2066
    %2107 = vmatprep.subr.mxu0 0.0
    %2108 = vmatpush2.msra.mxu0 0.0
    %2109 = vmatprep.subr.mxu0 0.0
    %2110 = vmatpush2.msra.mxu0 0.0
    %2111 = vmatprep.subr.mxu0 0.0
    %2112 = vmatpush2.msra.mxu0 0.0
    %2113 = vmatprep.subr.mxu0 0.0
    %2114 = vmatpush2.msra.mxu0 0.0
    %2115 = vmatprep.subr.mxu0 0.0
    %2116 = vmatpush2.msra.mxu0 0.0
    %2117 = vmatprep.subr.mxu0 0.0
    %2118 = vmatpush2.msra.mxu0 0.0
    %2119 = vmatprep.subr.mxu0 0.0
    %2120 = vmatpush2.msra.mxu0 0.0
    %2121 = vmatprep.subr.mxu0 0.0
    %2122 = vmatpush2.msra.mxu0 0.0
    %2123 = vmatprep.subr.mxu0 0.0
    %2124 = vmatpush2.msra.mxu0 0.0
    %2125 = vmatprep.subr.mxu0 0.0
    %2126 = vmatpush2.msra.mxu0 0.0
    %2127 = vmatprep.subr.mxu0 0.0
    %2128 = vmatpush2.msra.mxu0 0.0
    %2129 = vmatprep.subr.mxu0 0.0
    %2130 = vmatpush2.msra.mxu0 0.0
    %2131 = vmatprep.subr.mxu0 0.0
    %2132 = vmatpush2.msra.mxu0 0.0
    %2133 = vmatprep.subr.mxu0 0.0
    %2134 = vmatpush2.msra.mxu0 0.0
    %2135 = vmatprep.subr.mxu0 0.0
    %2136 = vmatpush2.msra.mxu0 0.0
    %2137 = vmatprep.subr.mxu0 0.0
    %2138 = vmatpush2.msra.mxu0 0.0
    %2139 = vmatprep.mubr.f32.mxu0 0.0
    %2140 = vmatmul.mubr.f32.gmra.mxu0 %v2073
    %v2141 = vpop.f32.mrf.mxu0
    %v2142 = vadd.f32 %v85, %v2141
    %v2143 = vpop.f32.mrf.mxu0
    %2144 = vdwg.mxu0
    %v2145 = vxor.u32 %v2142, 2147483648
    %v2146 = vmul.f32 %v2145, 1.442695
    %v2147 = vpow.pop %v2146
    %v2148 = vadd.f32 %v2147, 1.0
    %v2149 = vrcp.pop %v2148
    %v2150 = vmul.f32 1.0, %v2149
    %v2151 = vtanh.pop %v2142
    %v2152 = vmul.f32 %v2150, %v2059
    %2154 = vrot.lane.b32.xlu0 %v2151, 64
    %v2155 = vpop.permute.xlu0 %2154
    %v2157 = vmul.f32 %v2150, %v2155
    %2159 = vrot.lane.b32.xlu0 %v2157, 32
    %v2160 = vpop.permute.xlu0 %2159
    %v2162 = vadd.f32 %v2152, %v2160
    %v2163 = vtanh.pop %v2162
    %2165 = vrot.lane.b32.xlu0 %v2163, 64
    %v2166 = vpop.permute.xlu0 %2165
    %v2168 = vmul.f32 %v2150, %v2166
    %2170 = vrot.lane.b32.xlu0 %v2168, 32
    %v2171 = vpop.permute.xlu0 %2170
    %v2172 = vsel %vm109, %v2171, 0
    %2174 = vmatprep.subr.mxu0 0.0
    %2175 = vmatpush1.msra.mxu0 0.0
    %2176 = vmatprep.subr.mxu0 0.0
    %2177 = vmatpush1.msra.mxu0 0.0
    %2178 = vmatprep.subr.mxu0 0.0
    %2179 = vmatpush1.msra.mxu0 0.0
    %2180 = vmatprep.subr.mxu0 0.0
    %2181 = vmatpush1.msra.mxu0 0.0
    %2182 = vmatprep.subr.mxu0 0.0
    %2183 = vmatpush1.msra.mxu0 0.0
    %2184 = vmatprep.subr.mxu0 0.0
    %2185 = vmatpush1.msra.mxu0 0.0
    %2186 = vmatprep.subr.mxu0 0.0
    %2187 = vmatpush1.msra.mxu0 0.0
    %2188 = vmatprep.subr.mxu0 0.0
    %2189 = vmatpush1.msra.mxu0 0.0
    %2190 = vmatprep.subr.mxu0 0.0
    %2191 = vmatpush1.msra.mxu0 0.0
    %2192 = vmatprep.subr.mxu0 0.0
    %2193 = vmatpush1.msra.mxu0 0.0
    %2194 = vmatprep.subr.mxu0 0.0
    %2195 = vmatpush1.msra.mxu0 0.0
    %2196 = vmatprep.subr.mxu0 0.0
    %2197 = vmatpush1.msra.mxu0 0.0
    %2198 = vmatprep.subr.mxu0 0.0
    %2199 = vmatpush1.msra.mxu0 %v101
    %2200 = vmatprep.subr.mxu0 0.0
    %2201 = vmatpush1.msra.mxu0 %v100
    %2202 = vmatprep.subr.mxu0 0.0
    %2203 = vmatpush1.msra.mxu0 %v99
    %2204 = vmatprep.subr.mxu0 0.0
    %2205 = vmatpush1.msra.mxu0 %v98
    %2206 = vmatprep.subr.mxu0 0.0
    %2207 = vmatpush2.msra.mxu0 0.0
    %2208 = vmatprep.subr.mxu0 0.0
    %2209 = vmatpush2.msra.mxu0 0.0
    %2210 = vmatprep.subr.mxu0 0.0
    %2211 = vmatpush2.msra.mxu0 0.0
    %2212 = vmatprep.subr.mxu0 0.0
    %2213 = vmatpush2.msra.mxu0 0.0
    %2214 = vmatprep.subr.mxu0 0.0
    %2215 = vmatpush2.msra.mxu0 0.0
    %2216 = vmatprep.subr.mxu0 0.0
    %2217 = vmatpush2.msra.mxu0 0.0
    %2218 = vmatprep.subr.mxu0 0.0
    %2219 = vmatpush2.msra.mxu0 0.0
    %2220 = vmatprep.subr.mxu0 0.0
    %2221 = vmatpush2.msra.mxu0 0.0
    %2222 = vmatprep.subr.mxu0 0.0
    %2223 = vmatpush2.msra.mxu0 0.0
    %2224 = vmatprep.subr.mxu0 0.0
    %2225 = vmatpush2.msra.mxu0 0.0
    %2226 = vmatprep.subr.mxu0 0.0
    %2227 = vmatpush2.msra.mxu0 0.0
    %2228 = vmatprep.subr.mxu0 0.0
    %2229 = vmatpush2.msra.mxu0 0.0
    %2230 = vmatprep.subr.mxu0 0.0
    %2231 = vmatpush2.msra.mxu0 0.0
    %2232 = vmatprep.subr.mxu0 0.0
    %2233 = vmatpush2.msra.mxu0 0.0
    %2234 = vmatprep.subr.mxu0 0.0
    %2235 = vmatpush2.msra.mxu0 0.0
    %2236 = vmatprep.subr.mxu0 0.0
    %2237 = vmatpush2.msra.mxu0 0.0
    %2238 = vmatprep.mubr.f32.mxu0 0.0
    %2239 = vmatmul.mubr.f32.gmra.mxu0 %v2172
    %v2240 = vpop.f32.mrf.mxu0
    %v2241 = vadd.f32 %v92, %v2240
    %v2242 = vpop.f32.mrf.mxu0
    %2243 = vdwg.mxu0
    %v2244 = vmax.f32 %v2241, 0.0
    %v2247 = vunpack.c.l.s4 1966171168
    %v2248 = vunpack.c.0.s8 %v2247
    %v2249 = vlaneseq
    %v2250 = vshrl.u32 %v2249, 7
    %v2251 = vsub.s32 %v2248, %v2250
    %v2252 = vrot.slane %v2244, %v2251
    %v2253 = vcombine.high %v2252, %v2252
    %v2255 = vunpack.c.l.s4 1966171168
    %v2256 = vunpack.c.0.s8 %v2255
    %v2257 = vlaneseq
    %v2258 = vshrl.u32 %v2257, 7
    %v2259 = vsub.s32 %v2256, %v2258
    %v2260 = vrot.slane %v2252, %v2259
    %v2262 = vunpack.c.l.s4 1966171168
    %v2263 = vunpack.c.0.s8 %v2262
    %v2264 = vlaneseq
    %v2265 = vshrl.u32 %v2264, 7
    %v2266 = vsub.s32 %v2263, %v2265
    %v2267 = vrot.slane %v2253, %v2266
    %2270 = vst.msk [vmem:[#allocation2 + $0x2] sm:$0x1] %vm833, %v2260
    %2271 = vst.msk [vmem:[#allocation2 + $0xa] sm:$0x1] %vm833, %v2267
    %v2272 = vld [vmem:[%s4] sm:$0xff]
    %v2273 = vld [vmem:[%s4 + $0x8] sm:$0xff]
    %v2274 = vld [vmem:[%s4 + $0x10] sm:$0xff]
    %v2275 = vld [vmem:[%s4 + $0x18] sm:$0xff]
    %v2276 = vsel %vm109, %v2244, 0
    %2278 = vmatprep.subr.mxu0 0.0
    %2279 = vmatpush1.msra.mxu0 0.0
    %2280 = vmatprep.subr.mxu0 0.0
    %2281 = vmatpush1.msra.mxu0 0.0
    %2282 = vmatprep.subr.mxu0 0.0
    %2283 = vmatpush1.msra.mxu0 0.0
    %2284 = vmatprep.subr.mxu0 0.0
    %2285 = vmatpush1.msra.mxu0 0.0
    %2286 = vmatprep.subr.mxu0 0.0
    %2287 = vmatpush1.msra.mxu0 0.0
    %2288 = vmatprep.subr.mxu0 0.0
    %2289 = vmatpush1.msra.mxu0 0.0
    %2290 = vmatprep.subr.mxu0 0.0
    %2291 = vmatpush1.msra.mxu0 0.0
    %2292 = vmatprep.subr.mxu0 0.0
    %2293 = vmatpush1.msra.mxu0 0.0
    %2294 = vmatprep.subr.mxu0 0.0
    %2295 = vmatpush1.msra.mxu0 0.0
    %2296 = vmatprep.subr.mxu0 0.0
    %2297 = vmatpush1.msra.mxu0 0.0
    %2298 = vmatprep.subr.mxu0 0.0
    %2299 = vmatpush1.msra.mxu0 0.0
    %2300 = vmatprep.subr.mxu0 0.0
    %2301 = vmatpush1.msra.mxu0 0.0
    %2302 = vmatprep.subr.mxu0 0.0
    %2303 = vmatpush1.msra.mxu0 %v2275
    %2304 = vmatprep.subr.mxu0 0.0
    %2305 = vmatpush1.msra.mxu0 %v2274
    %2306 = vmatprep.subr.mxu0 0.0
    %2307 = vmatpush1.msra.mxu0 %v2273
    %2308 = vmatprep.subr.mxu0 0.0
    %2309 = vmatpush1.msra.mxu0 %v2272
    %2310 = vmatprep.subr.mxu0 0.0
    %2311 = vmatpush2.msra.mxu0 0.0
    %2312 = vmatprep.subr.mxu0 0.0
    %2313 = vmatpush2.msra.mxu0 0.0
    %2314 = vmatprep.subr.mxu0 0.0
    %2315 = vmatpush2.msra.mxu0 0.0
    %2316 = vmatprep.subr.mxu0 0.0
    %2317 = vmatpush2.msra.mxu0 0.0
    %2318 = vmatprep.subr.mxu0 0.0
    %2319 = vmatpush2.msra.mxu0 0.0
    %2320 = vmatprep.subr.mxu0 0.0
    %2321 = vmatpush2.msra.mxu0 0.0
    %2322 = vmatprep.subr.mxu0 0.0
    %2323 = vmatpush2.msra.mxu0 0.0
    %2324 = vmatprep.subr.mxu0 0.0
    %2325 = vmatpush2.msra.mxu0 0.0
    %2326 = vmatprep.subr.mxu0 0.0
    %2327 = vmatpush2.msra.mxu0 0.0
    %2328 = vmatprep.subr.mxu0 0.0
    %2329 = vmatpush2.msra.mxu0 0.0
    %2330 = vmatprep.subr.mxu0 0.0
    %2331 = vmatpush2.msra.mxu0 0.0
    %2332 = vmatprep.subr.mxu0 0.0
    %2333 = vmatpush2.msra.mxu0 0.0
    %2334 = vmatprep.subr.mxu0 0.0
    %2335 = vmatpush2.msra.mxu0 0.0
    %2336 = vmatprep.subr.mxu0 0.0
    %2337 = vmatpush2.msra.mxu0 0.0
    %2338 = vmatprep.subr.mxu0 0.0
    %2339 = vmatpush2.msra.mxu0 0.0
    %2340 = vmatprep.subr.mxu0 0.0
    %2341 = vmatpush2.msra.mxu0 0.0
    %2342 = vmatprep.mubr.f32.mxu0 0.0
    %2343 = vmatmul.mubr.f32.gmra.mxu0 %v2276
    %v2344 = vpop.f32.mrf.mxu0
    %v2345 = vadd.f32 %v64, %v2344
    %v2346 = vpop.f32.mrf.mxu0
    %2347 = vdwg.mxu0
    %v2348 = vld [vmem:[%s7] sm:$0xff]
    %v2349 = vld [vmem:[%s7 + $0x8] sm:$0xff]
    %v2350 = vld [vmem:[%s7 + $0x10] sm:$0xff]
    %v2351 = vld [vmem:[%s7 + $0x18] sm:$0xff]
    %v2352 = vld [vmem:[%s7 + $0x20] sm:$0xff]
    %v2353 = vld [vmem:[%s7 + $0x28] sm:$0xff]
    %v2354 = vld [vmem:[%s7 + $0x30] sm:$0xff]
    %v2355 = vld [vmem:[%s7 + $0x38] sm:$0xff]
    %2356 = vmatprep.subr.mxu0 0.0
    %2357 = vmatpush1.msra.mxu0 0.0
    %2358 = vmatprep.subr.mxu0 0.0
    %2359 = vmatpush1.msra.mxu0 0.0
    %2360 = vmatprep.subr.mxu0 0.0
    %2361 = vmatpush1.msra.mxu0 0.0
    %2362 = vmatprep.subr.mxu0 0.0
    %2363 = vmatpush1.msra.mxu0 0.0
    %2364 = vmatprep.subr.mxu0 0.0
    %2365 = vmatpush1.msra.mxu0 0.0
    %2366 = vmatprep.subr.mxu0 0.0
    %2367 = vmatpush1.msra.mxu0 0.0
    %2368 = vmatprep.subr.mxu0 0.0
    %2369 = vmatpush1.msra.mxu0 0.0
    %2370 = vmatprep.subr.mxu0 0.0
    %2371 = vmatpush1.msra.mxu0 0.0
    %2372 = vmatprep.subr.mxu0 0.0
    %2373 = vmatpush1.msra.mxu0 0.0
    %2374 = vmatprep.subr.mxu0 0.0
    %2375 = vmatpush1.msra.mxu0 0.0
    %2376 = vmatprep.subr.mxu0 0.0
    %2377 = vmatpush1.msra.mxu0 0.0
    %2378 = vmatprep.subr.mxu0 0.0
    %2379 = vmatpush1.msra.mxu0 0.0
    %2380 = vmatprep.subr.mxu0 %v2355
    %2381 = vmatpush1.msra.mxu0 %v2354
    %2382 = vmatprep.subr.mxu0 %v2353
    %2383 = vmatpush1.msra.mxu0 %v2352
    %2384 = vmatprep.subr.mxu0 %v2351
    %2385 = vmatpush1.msra.mxu0 %v2350
    %2386 = vmatprep.subr.mxu0 %v2349
    %2387 = vmatpush1.msra.mxu0 %v2348
    %2388 = vmatprep.subr.mxu0 0.0
    %2389 = vmatpush2.msra.mxu0 0.0
    %2390 = vmatprep.subr.mxu0 0.0
    %2391 = vmatpush2.msra.mxu0 0.0
    %2392 = vmatprep.subr.mxu0 0.0
    %2393 = vmatpush2.msra.mxu0 0.0
    %2394 = vmatprep.subr.mxu0 0.0
    %2395 = vmatpush2.msra.mxu0 0.0
    %2396 = vmatprep.subr.mxu0 0.0
    %2397 = vmatpush2.msra.mxu0 0.0
    %2398 = vmatprep.subr.mxu0 0.0
    %2399 = vmatpush2.msra.mxu0 0.0
    %2400 = vmatprep.subr.mxu0 0.0
    %2401 = vmatpush2.msra.mxu0 0.0
    %2402 = vmatprep.subr.mxu0 0.0
    %2403 = vmatpush2.msra.mxu0 0.0
    %2404 = vmatprep.subr.mxu0 0.0
    %2405 = vmatpush2.msra.mxu0 0.0
    %2406 = vmatprep.subr.mxu0 0.0
    %2407 = vmatpush2.msra.mxu0 0.0
    %2408 = vmatprep.subr.mxu0 0.0
    %2409 = vmatpush2.msra.mxu0 0.0
    %2410 = vmatprep.subr.mxu0 0.0
    %2411 = vmatpush2.msra.mxu0 0.0
    %2412 = vmatprep.subr.mxu0 0.0
    %2413 = vmatpush2.msra.mxu0 0.0
    %2414 = vmatprep.subr.mxu0 0.0
    %2415 = vmatpush2.msra.mxu0 0.0
    %2416 = vmatprep.subr.mxu0 0.0
    %2417 = vmatpush2.msra.mxu0 0.0
    %2418 = vmatprep.subr.mxu0 0.0
    %2419 = vmatpush2.msra.mxu0 0.0
    %2420 = vmatprep.mubr.f32.mxu0 0.0
    %2421 = vmatmul.mubr.f32.gmra.mxu0 %v2172
    %v2422 = vpop.f32.mrf.mxu0
    %v2423 = vadd.f32 0.0, %v2422
    %v2424 = vpop.f32.mrf.mxu0
    %v2425 = vadd.f32 0.0, %v2424
    %2426 = vdwg.mxu0
    %v2427 = vadd.f32 %v2345, %v2425
    %v2428 = vsel %vm266, %v2427, -inf
    %2429 = vmax.xlane.f32.xlu0 %v2428
    %v2430 = vpop.xlane.xlu0 %2429
    %v2431 = vsub.f32 %v2427, %v2430
    %v2432 = vmul.f32 %v2431, 1.442695
    %v2433 = vpow.pop %v2432
    %v2434 = vsel %vm266, %v2433, 0.0
    %2435 = vadd.xlane.f32.xlu0 %v2434
    %v2436 = vpop.xlane.xlu0 %2435
    %v2437 = vrcp.pop %v2436
    %v2438 = vmul.f32 %v2433, %v2437
    %v2441 = vunpack.c.l.s4 1966171168
    %v2442 = vunpack.c.0.s8 %v2441
    %v2443 = vlaneseq
    %v2444 = vshrl.u32 %v2443, 7
    %v2445 = vsub.s32 %v2442, %v2444
    %v2446 = vrot.slane %v2438, %v2445
    %v2447 = vcombine.high %v2446, %v2446
    %v2449 = vunpack.c.l.s4 1966171168
    %v2450 = vunpack.c.0.s8 %v2449
    %v2451 = vlaneseq
    %v2452 = vshrl.u32 %v2451, 7
    %v2453 = vsub.s32 %v2450, %v2452
    %v2454 = vrot.slane %v2446, %v2453
    %v2456 = vunpack.c.l.s4 1966171168
    %v2457 = vunpack.c.0.s8 %v2456
    %v2458 = vlaneseq
    %v2459 = vshrl.u32 %v2458, 7
    %v2460 = vsub.s32 %v2457, %v2459
    %v2461 = vrot.slane %v2447, %v2460
    %2464 = vst.msk [vmem:[#allocation4 + $0x3] sm:$0x1] %vm303, %v2454
    %2465 = vst.msk [vmem:[#allocation4 + $0xb] sm:$0x1] %vm303, %v2461
    %v2466 = vlaneseq
    %v2467 = vshrl.u32 %v2466, 7
    %v2468 = vsub.s32 0, %v2467
    %v2469 = vrot.slane %v2438, %v2468
    %2471 = vbcast.lane.b32.xlu0 %v2469, 256
    %v2472 = vpop.permute.xlu0 %2471
    %v2473 = vlaneseq
    %v2474 = vshrl.u32 %v2473, 7
    %v2475 = vsub.s32 1, %v2474
    %v2476 = vrot.slane %v2438, %v2475
    %2478 = vbcast.lane.b32.xlu0 %v2476, 256
    %v2479 = vpop.permute.xlu0 %2478
    %v2480 = vmul.f32 %v2472, %v57
    %v2481 = vmul.f32 %v2479, %v58
    %v2482 = vsel %vm109, %v2480, 0.0
    %v2483 = vrot.slane %v2482, 4
    %v2484 = vadd.f32 %v2482, %v2483
    %v2485 = vrot.slane %v2484, 2
    %v2486 = vadd.f32 %v2484, %v2485
    %v2487 = vrot.slane %v2486, 1
    %v2488 = vadd.f32 %v2486, %v2487
    %v2489 = vsel %vm109, %v2481, 0.0
    %v2490 = vrot.slane %v2489, 4
    %v2491 = vadd.f32 %v2489, %v2490
    %v2492 = vrot.slane %v2491, 2
    %v2493 = vadd.f32 %v2491, %v2492
    %v2494 = vrot.slane %v2493, 1
    %v2495 = vadd.f32 %v2493, %v2494
    %v2498 = vsel %vm338, %v2495, %v2488
    %v2499 = vsel %vm109, %v2498, 0
    %2501 = vmatprep.subr.mxu0 0.0
    %2502 = vmatpush1.msra.mxu0 0.0
    %2503 = vmatprep.subr.mxu0 0.0
    %2504 = vmatpush1.msra.mxu0 0.0
    %2505 = vmatprep.subr.mxu0 0.0
    %2506 = vmatpush1.msra.mxu0 0.0
    %2507 = vmatprep.subr.mxu0 0.0
    %2508 = vmatpush1.msra.mxu0 0.0
    %2509 = vmatprep.subr.mxu0 0.0
    %2510 = vmatpush1.msra.mxu0 0.0
    %2511 = vmatprep.subr.mxu0 0.0
    %2512 = vmatpush1.msra.mxu0 0.0
    %2513 = vmatprep.subr.mxu0 0.0
    %2514 = vmatpush1.msra.mxu0 0.0
    %2515 = vmatprep.subr.mxu0 0.0
    %2516 = vmatpush1.msra.mxu0 0.0
    %2517 = vmatprep.subr.mxu0 0.0
    %2518 = vmatpush1.msra.mxu0 0.0
    %2519 = vmatprep.subr.mxu0 0.0
    %2520 = vmatpush1.msra.mxu0 0.0
    %2521 = vmatprep.subr.mxu0 0.0
    %2522 = vmatpush1.msra.mxu0 0.0
    %2523 = vmatprep.subr.mxu0 0.0
    %2524 = vmatpush1.msra.mxu0 0.0
    %2525 = vmatprep.subr.mxu0 0.0
    %2526 = vmatpush1.msra.mxu0 %v97
    %2527 = vmatprep.subr.mxu0 0.0
    %2528 = vmatpush1.msra.mxu0 %v96
    %2529 = vmatprep.subr.mxu0 0.0
    %2530 = vmatpush1.msra.mxu0 %v95
    %2531 = vmatprep.subr.mxu0 0.0
    %2532 = vmatpush1.msra.mxu0 %v94
    %2533 = vmatprep.subr.mxu0 0.0
    %2534 = vmatpush2.msra.mxu0 0.0
    %2535 = vmatprep.subr.mxu0 0.0
    %2536 = vmatpush2.msra.mxu0 0.0
    %2537 = vmatprep.subr.mxu0 0.0
    %2538 = vmatpush2.msra.mxu0 0.0
    %2539 = vmatprep.subr.mxu0 0.0
    %2540 = vmatpush2.msra.mxu0 0.0
    %2541 = vmatprep.subr.mxu0 0.0
    %2542 = vmatpush2.msra.mxu0 0.0
    %2543 = vmatprep.subr.mxu0 0.0
    %2544 = vmatpush2.msra.mxu0 0.0
    %2545 = vmatprep.subr.mxu0 0.0
    %2546 = vmatpush2.msra.mxu0 0.0
    %2547 = vmatprep.subr.mxu0 0.0
    %2548 = vmatpush2.msra.mxu0 0.0
    %2549 = vmatprep.subr.mxu0 0.0
    %2550 = vmatpush2.msra.mxu0 0.0
    %2551 = vmatprep.subr.mxu0 0.0
    %2552 = vmatpush2.msra.mxu0 0.0
    %2553 = vmatprep.subr.mxu0 0.0
    %2554 = vmatpush2.msra.mxu0 0.0
    %2555 = vmatprep.subr.mxu0 0.0
    %2556 = vmatpush2.msra.mxu0 0.0
    %2557 = vmatprep.subr.mxu0 0.0
    %2558 = vmatpush2.msra.mxu0 0.0
    %2559 = vmatprep.subr.mxu0 0.0
    %2560 = vmatpush2.msra.mxu0 0.0
    %2561 = vmatprep.subr.mxu0 0.0
    %2562 = vmatpush2.msra.mxu0 0.0
    %2563 = vmatprep.subr.mxu0 0.0
    %2564 = vmatpush2.msra.mxu0 0.0
    %2565 = vmatprep.mubr.f32.mxu0 0.0
    %2566 = vmatmul.mubr.f32.gmra.mxu0 %v2499
    %v2567 = vpop.f32.mrf.mxu0
    %v2568 = vadd.f32 0.0, %v2567
    %v2569 = vpop.f32.mrf.mxu0
    %2570 = vdwg.mxu0
    %2572 = vrot.lane.b32.xlu0 %v2568, 8
    %v2573 = vpop.permute.xlu0 %2572
    %v2575 = vadd.f32 %v2345, %v2573
    %v2576 = vmax.f32 %v2575, 0.0
    %v2577 = vld [vmem:[%s8] sm:$0xff]
    %v2578 = vld [vmem:[%s8 + $0x8] sm:$0xff]
    %v2579 = vld [vmem:[%s8 + $0x10] sm:$0xff]
    %v2580 = vld [vmem:[%s8 + $0x18] sm:$0xff]
    %2582 = vrot.lane.b32.xlu0 %v2576, 120
    %v2583 = vpop.permute.xlu0 %2582
    %v2584 = vsel %vm109, %v2583, 0
    %2586 = vmatprep.subr.mxu0 0.0
    %2587 = vmatpush1.msra.mxu0 0.0
    %2588 = vmatprep.subr.mxu0 0.0
    %2589 = vmatpush1.msra.mxu0 0.0
    %2590 = vmatprep.subr.mxu0 0.0
    %2591 = vmatpush1.msra.mxu0 0.0
    %2592 = vmatprep.subr.mxu0 0.0
    %2593 = vmatpush1.msra.mxu0 0.0
    %2594 = vmatprep.subr.mxu0 0.0
    %2595 = vmatpush1.msra.mxu0 0.0
    %2596 = vmatprep.subr.mxu0 0.0
    %2597 = vmatpush1.msra.mxu0 0.0
    %2598 = vmatprep.subr.mxu0 0.0
    %2599 = vmatpush1.msra.mxu0 0.0
    %2600 = vmatprep.subr.mxu0 0.0
    %2601 = vmatpush1.msra.mxu0 0.0
    %2602 = vmatprep.subr.mxu0 0.0
    %2603 = vmatpush1.msra.mxu0 0.0
    %2604 = vmatprep.subr.mxu0 0.0
    %2605 = vmatpush1.msra.mxu0 0.0
    %2606 = vmatprep.subr.mxu0 0.0
    %2607 = vmatpush1.msra.mxu0 0.0
    %2608 = vmatprep.subr.mxu0 0.0
    %2609 = vmatpush1.msra.mxu0 0.0
    %2610 = vmatprep.subr.mxu0 0.0
    %2611 = vmatpush1.msra.mxu0 %v2580
    %2612 = vmatprep.subr.mxu0 0.0
    %2613 = vmatpush1.msra.mxu0 %v2579
    %2614 = vmatprep.subr.mxu0 0.0
    %2615 = vmatpush1.msra.mxu0 %v2578
    %2616 = vmatprep.subr.mxu0 0.0
    %2617 = vmatpush1.msra.mxu0 %v2577
    %2618 = vmatprep.subr.mxu0 0.0
    %2619 = vmatpush2.msra.mxu0 0.0
    %2620 = vmatprep.subr.mxu0 0.0
    %2621 = vmatpush2.msra.mxu0 0.0
    %2622 = vmatprep.subr.mxu0 0.0
    %2623 = vmatpush2.msra.mxu0 0.0
    %2624 = vmatprep.subr.mxu0 0.0
    %2625 = vmatpush2.msra.mxu0 0.0
    %2626 = vmatprep.subr.mxu0 0.0
    %2627 = vmatpush2.msra.mxu0 0.0
    %2628 = vmatprep.subr.mxu0 0.0
    %2629 = vmatpush2.msra.mxu0 0.0
    %2630 = vmatprep.subr.mxu0 0.0
    %2631 = vmatpush2.msra.mxu0 0.0
    %2632 = vmatprep.subr.mxu0 0.0
    %2633 = vmatpush2.msra.mxu0 0.0
    %2634 = vmatprep.subr.mxu0 0.0
    %2635 = vmatpush2.msra.mxu0 0.0
    %2636 = vmatprep.subr.mxu0 0.0
    %2637 = vmatpush2.msra.mxu0 0.0
    %2638 = vmatprep.subr.mxu0 0.0
    %2639 = vmatpush2.msra.mxu0 0.0
    %2640 = vmatprep.subr.mxu0 0.0
    %2641 = vmatpush2.msra.mxu0 0.0
    %2642 = vmatprep.subr.mxu0 0.0
    %2643 = vmatpush2.msra.mxu0 0.0
    %2644 = vmatprep.subr.mxu0 0.0
    %2645 = vmatpush2.msra.mxu0 0.0
    %2646 = vmatprep.subr.mxu0 0.0
    %2647 = vmatpush2.msra.mxu0 0.0
    %2648 = vmatprep.subr.mxu0 0.0
    %2649 = vmatpush2.msra.mxu0 0.0
    %2650 = vmatprep.mubr.f32.mxu0 0.0
    %2651 = vmatmul.mubr.f32.gmra.mxu0 %v2584
    %v2652 = vpop.f32.mrf.mxu0
    %v2653 = vadd.f32 %v2423, %v2652
    %v2654 = vpop.f32.mrf.mxu0
    %2655 = vdwg.mxu0
    %v2656 = vadd.f32 %v2653, %v71
    %v2657 = vxor.u32 %v2656, 2147483648
    %v2658 = vmul.f32 %v2657, 1.442695
    %v2659 = vpow.pop %v2658
    %v2660 = vadd.f32 %v2659, 1.0
    %v2661 = vrcp.pop %v2660
    %v2662 = vmul.f32 1.0, %v2661
    %v2663 = vtanh.pop %v2656
    %v2664 = vmul.f32 %v2662, %v2162
    %2666 = vrot.lane.b32.xlu0 %v2663, 64
    %v2667 = vpop.permute.xlu0 %2666
    %v2669 = vmul.f32 %v2662, %v2667
    %2671 = vrot.lane.b32.xlu0 %v2669, 32
    %v2672 = vpop.permute.xlu0 %2671
    %v2674 = vadd.f32 %v2664, %v2672
    %v2675 = vtanh.pop %v2674
    %2677 = vrot.lane.b32.xlu0 %v2675, 64
    %v2678 = vpop.permute.xlu0 %2677
    %v2680 = vmul.f32 %v2662, %v2678
    %v2681 = vld [vmem:[%s10] sm:$0xff]
    %v2682 = vld [vmem:[%s10 + $0x8] sm:$0xff]
    %v2683 = vld [vmem:[%s10 + $0x10] sm:$0xff]
    %v2684 = vld [vmem:[%s10 + $0x18] sm:$0xff]
    %2686 = vrot.lane.b32.xlu0 %v2680, 32
    %v2687 = vpop.permute.xlu0 %2686
    %v2688 = vsel %vm109, %v2687, 0
    %2690 = vmatprep.subr.mxu0 0.0
    %2691 = vmatpush1.msra.mxu0 0.0
    %2692 = vmatprep.subr.mxu0 0.0
    %2693 = vmatpush1.msra.mxu0 0.0
    %2694 = vmatprep.subr.mxu0 0.0
    %2695 = vmatpush1.msra.mxu0 0.0
    %2696 = vmatprep.subr.mxu0 0.0
    %2697 = vmatpush1.msra.mxu0 0.0
    %2698 = vmatprep.subr.mxu0 0.0
    %2699 = vmatpush1.msra.mxu0 0.0
    %2700 = vmatprep.subr.mxu0 0.0
    %2701 = vmatpush1.msra.mxu0 0.0
    %2702 = vmatprep.subr.mxu0 0.0
    %2703 = vmatpush1.msra.mxu0 0.0
    %2704 = vmatprep.subr.mxu0 0.0
    %2705 = vmatpush1.msra.mxu0 0.0
    %2706 = vmatprep.subr.mxu0 0.0
    %2707 = vmatpush1.msra.mxu0 0.0
    %2708 = vmatprep.subr.mxu0 0.0
    %2709 = vmatpush1.msra.mxu0 0.0
    %2710 = vmatprep.subr.mxu0 0.0
    %2711 = vmatpush1.msra.mxu0 0.0
    %2712 = vmatprep.subr.mxu0 0.0
    %2713 = vmatpush1.msra.mxu0 0.0
    %2714 = vmatprep.subr.mxu0 0.0
    %2715 = vmatpush1.msra.mxu0 %v2684
    %2716 = vmatprep.subr.mxu0 0.0
    %2717 = vmatpush1.msra.mxu0 %v2683
    %2718 = vmatprep.subr.mxu0 0.0
    %2719 = vmatpush1.msra.mxu0 %v2682
    %2720 = vmatprep.subr.mxu0 0.0
    %2721 = vmatpush1.msra.mxu0 %v2681
    %2722 = vmatprep.subr.mxu0 0.0
    %2723 = vmatpush2.msra.mxu0 0.0
    %2724 = vmatprep.subr.mxu0 0.0
    %2725 = vmatpush2.msra.mxu0 0.0
    %2726 = vmatprep.subr.mxu0 0.0
    %2727 = vmatpush2.msra.mxu0 0.0
    %2728 = vmatprep.subr.mxu0 0.0
    %2729 = vmatpush2.msra.mxu0 0.0
    %2730 = vmatprep.subr.mxu0 0.0
    %2731 = vmatpush2.msra.mxu0 0.0
    %2732 = vmatprep.subr.mxu0 0.0
    %2733 = vmatpush2.msra.mxu0 0.0
    %2734 = vmatprep.subr.mxu0 0.0
    %2735 = vmatpush2.msra.mxu0 0.0
    %2736 = vmatprep.subr.mxu0 0.0
    %2737 = vmatpush2.msra.mxu0 0.0
    %2738 = vmatprep.subr.mxu0 0.0
    %2739 = vmatpush2.msra.mxu0 0.0
    %2740 = vmatprep.subr.mxu0 0.0
    %2741 = vmatpush2.msra.mxu0 0.0
    %2742 = vmatprep.subr.mxu0 0.0
    %2743 = vmatpush2.msra.mxu0 0.0
    %2744 = vmatprep.subr.mxu0 0.0
    %2745 = vmatpush2.msra.mxu0 0.0
    %2746 = vmatprep.subr.mxu0 0.0
    %2747 = vmatpush2.msra.mxu0 0.0
    %2748 = vmatprep.subr.mxu0 0.0
    %2749 = vmatpush2.msra.mxu0 0.0
    %2750 = vmatprep.subr.mxu0 0.0
    %2751 = vmatpush2.msra.mxu0 0.0
    %2752 = vmatprep.subr.mxu0 0.0
    %2753 = vmatpush2.msra.mxu0 0.0
    %2754 = vmatprep.mubr.f32.mxu0 0.0
    %2755 = vmatmul.mubr.f32.gmra.mxu0 %v2688
    %v2756 = vpop.f32.mrf.mxu0
    %v2757 = vadd.f32 %v78, %v2756
    %v2758 = vpop.f32.mrf.mxu0
    %2759 = vdwg.mxu0
    %v2760 = vxor.u32 %v2757, 2147483648
    %v2761 = vmul.f32 %v2760, 1.442695
    %v2762 = vpow.pop %v2761
    %v2763 = vadd.f32 %v2762, 1.0
    %v2764 = vrcp.pop %v2763
    %v2765 = vmul.f32 1.0, %v2764
    %v2766 = vtanh.pop %v2757
    %v2767 = vmul.f32 %v2765, %v2674
    %2769 = vrot.lane.b32.xlu0 %v2766, 64
    %v2770 = vpop.permute.xlu0 %2769
    %v2772 = vmul.f32 %v2765, %v2770
    %2774 = vrot.lane.b32.xlu0 %v2772, 32
    %v2775 = vpop.permute.xlu0 %2774
    %v2777 = vadd.f32 %v2767, %v2775
    %v2778 = vtanh.pop %v2777
    %2780 = vrot.lane.b32.xlu0 %v2778, 64
    %v2781 = vpop.permute.xlu0 %2780
    %v2783 = vmul.f32 %v2765, %v2781
    %v2784 = vld [vmem:[%s12] sm:$0xff]
    %v2785 = vld [vmem:[%s12 + $0x8] sm:$0xff]
    %v2786 = vld [vmem:[%s12 + $0x10] sm:$0xff]
    %v2787 = vld [vmem:[%s12 + $0x18] sm:$0xff]
    %2789 = vrot.lane.b32.xlu0 %v2783, 32
    %v2790 = vpop.permute.xlu0 %2789
    %v2791 = vsel %vm109, %v2790, 0
    %2793 = vmatprep.subr.mxu0 0.0
    %2794 = vmatpush1.msra.mxu0 0.0
    %2795 = vmatprep.subr.mxu0 0.0
    %2796 = vmatpush1.msra.mxu0 0.0
    %2797 = vmatprep.subr.mxu0 0.0
    %2798 = vmatpush1.msra.mxu0 0.0
    %2799 = vmatprep.subr.mxu0 0.0
    %2800 = vmatpush1.msra.mxu0 0.0
    %2801 = vmatprep.subr.mxu0 0.0
    %2802 = vmatpush1.msra.mxu0 0.0
    %2803 = vmatprep.subr.mxu0 0.0
    %2804 = vmatpush1.msra.mxu0 0.0
    %2805 = vmatprep.subr.mxu0 0.0
    %2806 = vmatpush1.msra.mxu0 0.0
    %2807 = vmatprep.subr.mxu0 0.0
    %2808 = vmatpush1.msra.mxu0 0.0
    %2809 = vmatprep.subr.mxu0 0.0
    %2810 = vmatpush1.msra.mxu0 0.0
    %2811 = vmatprep.subr.mxu0 0.0
    %2812 = vmatpush1.msra.mxu0 0.0
    %2813 = vmatprep.subr.mxu0 0.0
    %2814 = vmatpush1.msra.mxu0 0.0
    %2815 = vmatprep.subr.mxu0 0.0
    %2816 = vmatpush1.msra.mxu0 0.0
    %2817 = vmatprep.subr.mxu0 0.0
    %2818 = vmatpush1.msra.mxu0 %v2787
    %2819 = vmatprep.subr.mxu0 0.0
    %2820 = vmatpush1.msra.mxu0 %v2786
    %2821 = vmatprep.subr.mxu0 0.0
    %2822 = vmatpush1.msra.mxu0 %v2785
    %2823 = vmatprep.subr.mxu0 0.0
    %2824 = vmatpush1.msra.mxu0 %v2784
    %2825 = vmatprep.subr.mxu0 0.0
    %2826 = vmatpush2.msra.mxu0 0.0
    %2827 = vmatprep.subr.mxu0 0.0
    %2828 = vmatpush2.msra.mxu0 0.0
    %2829 = vmatprep.subr.mxu0 0.0
    %2830 = vmatpush2.msra.mxu0 0.0
    %2831 = vmatprep.subr.mxu0 0.0
    %2832 = vmatpush2.msra.mxu0 0.0
    %2833 = vmatprep.subr.mxu0 0.0
    %2834 = vmatpush2.msra.mxu0 0.0
    %2835 = vmatprep.subr.mxu0 0.0
    %2836 = vmatpush2.msra.mxu0 0.0
    %2837 = vmatprep.subr.mxu0 0.0
    %2838 = vmatpush2.msra.mxu0 0.0
    %2839 = vmatprep.subr.mxu0 0.0
    %2840 = vmatpush2.msra.mxu0 0.0
    %2841 = vmatprep.subr.mxu0 0.0
    %2842 = vmatpush2.msra.mxu0 0.0
    %2843 = vmatprep.subr.mxu0 0.0
    %2844 = vmatpush2.msra.mxu0 0.0
    %2845 = vmatprep.subr.mxu0 0.0
    %2846 = vmatpush2.msra.mxu0 0.0
    %2847 = vmatprep.subr.mxu0 0.0
    %2848 = vmatpush2.msra.mxu0 0.0
    %2849 = vmatprep.subr.mxu0 0.0
    %2850 = vmatpush2.msra.mxu0 0.0
    %2851 = vmatprep.subr.mxu0 0.0
    %2852 = vmatpush2.msra.mxu0 0.0
    %2853 = vmatprep.subr.mxu0 0.0
    %2854 = vmatpush2.msra.mxu0 0.0
    %2855 = vmatprep.subr.mxu0 0.0
    %2856 = vmatpush2.msra.mxu0 0.0
    %2857 = vmatprep.mubr.f32.mxu0 0.0
    %2858 = vmatmul.mubr.f32.gmra.mxu0 %v2791
    %v2859 = vpop.f32.mrf.mxu0
    %v2860 = vadd.f32 %v85, %v2859
    %v2861 = vpop.f32.mrf.mxu0
    %2862 = vdwg.mxu0
    %v2863 = vxor.u32 %v2860, 2147483648
    %v2864 = vmul.f32 %v2863, 1.442695
    %v2865 = vpow.pop %v2864
    %v2866 = vadd.f32 %v2865, 1.0
    %v2867 = vrcp.pop %v2866
    %v2868 = vmul.f32 1.0, %v2867
    %v2869 = vtanh.pop %v2860
    %v2870 = vmul.f32 %v2868, %v2777
    %2872 = vrot.lane.b32.xlu0 %v2869, 64
    %v2873 = vpop.permute.xlu0 %2872
    %v2875 = vmul.f32 %v2868, %v2873
    %2877 = vrot.lane.b32.xlu0 %v2875, 32
    %v2878 = vpop.permute.xlu0 %2877
    %v2880 = vadd.f32 %v2870, %v2878
    %v2881 = vtanh.pop %v2880
    %2883 = vrot.lane.b32.xlu0 %v2881, 64
    %v2884 = vpop.permute.xlu0 %2883
    %v2886 = vmul.f32 %v2868, %v2884
    %2888 = vrot.lane.b32.xlu0 %v2886, 32
    %v2889 = vpop.permute.xlu0 %2888
    %v2890 = vsel %vm109, %v2889, 0
    %2892 = vmatprep.subr.mxu0 0.0
    %2893 = vmatpush1.msra.mxu0 0.0
    %2894 = vmatprep.subr.mxu0 0.0
    %2895 = vmatpush1.msra.mxu0 0.0
    %2896 = vmatprep.subr.mxu0 0.0
    %2897 = vmatpush1.msra.mxu0 0.0
    %2898 = vmatprep.subr.mxu0 0.0
    %2899 = vmatpush1.msra.mxu0 0.0
    %2900 = vmatprep.subr.mxu0 0.0
    %2901 = vmatpush1.msra.mxu0 0.0
    %2902 = vmatprep.subr.mxu0 0.0
    %2903 = vmatpush1.msra.mxu0 0.0
    %2904 = vmatprep.subr.mxu0 0.0
    %2905 = vmatpush1.msra.mxu0 0.0
    %2906 = vmatprep.subr.mxu0 0.0
    %2907 = vmatpush1.msra.mxu0 0.0
    %2908 = vmatprep.subr.mxu0 0.0
    %2909 = vmatpush1.msra.mxu0 0.0
    %2910 = vmatprep.subr.mxu0 0.0
    %2911 = vmatpush1.msra.mxu0 0.0
    %2912 = vmatprep.subr.mxu0 0.0
    %2913 = vmatpush1.msra.mxu0 0.0
    %2914 = vmatprep.subr.mxu0 0.0
    %2915 = vmatpush1.msra.mxu0 0.0
    %2916 = vmatprep.subr.mxu0 0.0
    %2917 = vmatpush1.msra.mxu0 %v101
    %2918 = vmatprep.subr.mxu0 0.0
    %2919 = vmatpush1.msra.mxu0 %v100
    %2920 = vmatprep.subr.mxu0 0.0
    %2921 = vmatpush1.msra.mxu0 %v99
    %2922 = vmatprep.subr.mxu0 0.0
    %2923 = vmatpush1.msra.mxu0 %v98
    %2924 = vmatprep.subr.mxu0 0.0
    %2925 = vmatpush2.msra.mxu0 0.0
    %2926 = vmatprep.subr.mxu0 0.0
    %2927 = vmatpush2.msra.mxu0 0.0
    %2928 = vmatprep.subr.mxu0 0.0
    %2929 = vmatpush2.msra.mxu0 0.0
    %2930 = vmatprep.subr.mxu0 0.0
    %2931 = vmatpush2.msra.mxu0 0.0
    %2932 = vmatprep.subr.mxu0 0.0
    %2933 = vmatpush2.msra.mxu0 0.0
    %2934 = vmatprep.subr.mxu0 0.0
    %2935 = vmatpush2.msra.mxu0 0.0
    %2936 = vmatprep.subr.mxu0 0.0
    %2937 = vmatpush2.msra.mxu0 0.0
    %2938 = vmatprep.subr.mxu0 0.0
    %2939 = vmatpush2.msra.mxu0 0.0
    %2940 = vmatprep.subr.mxu0 0.0
    %2941 = vmatpush2.msra.mxu0 0.0
    %2942 = vmatprep.subr.mxu0 0.0
    %2943 = vmatpush2.msra.mxu0 0.0
    %2944 = vmatprep.subr.mxu0 0.0
    %2945 = vmatpush2.msra.mxu0 0.0
    %2946 = vmatprep.subr.mxu0 0.0
    %2947 = vmatpush2.msra.mxu0 0.0
    %2948 = vmatprep.subr.mxu0 0.0
    %2949 = vmatpush2.msra.mxu0 0.0
    %2950 = vmatprep.subr.mxu0 0.0
    %2951 = vmatpush2.msra.mxu0 0.0
    %2952 = vmatprep.subr.mxu0 0.0
    %2953 = vmatpush2.msra.mxu0 0.0
    %2954 = vmatprep.subr.mxu0 0.0
    %2955 = vmatpush2.msra.mxu0 0.0
    %2956 = vmatprep.mubr.f32.mxu0 0.0
    %2957 = vmatmul.mubr.f32.gmra.mxu0 %v2890
    %v2958 = vpop.f32.mrf.mxu0
    %v2959 = vadd.f32 %v92, %v2958
    %v2960 = vpop.f32.mrf.mxu0
    %2961 = vdwg.mxu0
    %v2962 = vmax.f32 %v2959, 0.0
    %v2965 = vunpack.c.l.s4 1966171168
    %v2966 = vunpack.c.0.s8 %v2965
    %v2967 = vlaneseq
    %v2968 = vshrl.u32 %v2967, 7
    %v2969 = vsub.s32 %v2966, %v2968
    %v2970 = vrot.slane %v2962, %v2969
    %v2971 = vcombine.high %v2970, %v2970
    %v2973 = vunpack.c.l.s4 1966171168
    %v2974 = vunpack.c.0.s8 %v2973
    %v2975 = vlaneseq
    %v2976 = vshrl.u32 %v2975, 7
    %v2977 = vsub.s32 %v2974, %v2976
    %v2978 = vrot.slane %v2970, %v2977
    %v2980 = vunpack.c.l.s4 1966171168
    %v2981 = vunpack.c.0.s8 %v2980
    %v2982 = vlaneseq
    %v2983 = vshrl.u32 %v2982, 7
    %v2984 = vsub.s32 %v2981, %v2983
    %v2985 = vrot.slane %v2971, %v2984
    %2988 = vst.msk [vmem:[#allocation2 + $0x3] sm:$0x1] %vm833, %v2978
    %2989 = vst.msk [vmem:[#allocation2 + $0xb] sm:$0x1] %vm833, %v2985
    %v2990 = vld [vmem:[%s4] sm:$0xff]
    %v2991 = vld [vmem:[%s4 + $0x8] sm:$0xff]
    %v2992 = vld [vmem:[%s4 + $0x10] sm:$0xff]
    %v2993 = vld [vmem:[%s4 + $0x18] sm:$0xff]
    %v2994 = vsel %vm109, %v2962, 0
    %2996 = vmatprep.subr.mxu0 0.0
    %2997 = vmatpush1.msra.mxu0 0.0
    %2998 = vmatprep.subr.mxu0 0.0
    %2999 = vmatpush1.msra.mxu0 0.0
    %3000 = vmatprep.subr.mxu0 0.0
    %3001 = vmatpush1.msra.mxu0 0.0
    %3002 = vmatprep.subr.mxu0 0.0
    %3003 = vmatpush1.msra.mxu0 0.0
    %3004 = vmatprep.subr.mxu0 0.0
    %3005 = vmatpush1.msra.mxu0 0.0
    %3006 = vmatprep.subr.mxu0 0.0
    %3007 = vmatpush1.msra.mxu0 0.0
    %3008 = vmatprep.subr.mxu0 0.0
    %3009 = vmatpush1.msra.mxu0 0.0
    %3010 = vmatprep.subr.mxu0 0.0
    %3011 = vmatpush1.msra.mxu0 0.0
    %3012 = vmatprep.subr.mxu0 0.0
    %3013 = vmatpush1.msra.mxu0 0.0
    %3014 = vmatprep.subr.mxu0 0.0
    %3015 = vmatpush1.msra.mxu0 0.0
    %3016 = vmatprep.subr.mxu0 0.0
    %3017 = vmatpush1.msra.mxu0 0.0
    %3018 = vmatprep.subr.mxu0 0.0
    %3019 = vmatpush1.msra.mxu0 0.0
    %3020 = vmatprep.subr.mxu0 0.0
    %3021 = vmatpush1.msra.mxu0 %v2993
    %3022 = vmatprep.subr.mxu0 0.0
    %3023 = vmatpush1.msra.mxu0 %v2992
    %3024 = vmatprep.subr.mxu0 0.0
    %3025 = vmatpush1.msra.mxu0 %v2991
    %3026 = vmatprep.subr.mxu0 0.0
    %3027 = vmatpush1.msra.mxu0 %v2990
    %3028 = vmatprep.subr.mxu0 0.0
    %3029 = vmatpush2.msra.mxu0 0.0
    %3030 = vmatprep.subr.mxu0 0.0
    %3031 = vmatpush2.msra.mxu0 0.0
    %3032 = vmatprep.subr.mxu0 0.0
    %3033 = vmatpush2.msra.mxu0 0.0
    %3034 = vmatprep.subr.mxu0 0.0
    %3035 = vmatpush2.msra.mxu0 0.0
    %3036 = vmatprep.subr.mxu0 0.0
    %3037 = vmatpush2.msra.mxu0 0.0
    %3038 = vmatprep.subr.mxu0 0.0
    %3039 = vmatpush2.msra.mxu0 0.0
    %3040 = vmatprep.subr.mxu0 0.0
    %3041 = vmatpush2.msra.mxu0 0.0
    %3042 = vmatprep.subr.mxu0 0.0
    %3043 = vmatpush2.msra.mxu0 0.0
    %3044 = vmatprep.subr.mxu0 0.0
    %3045 = vmatpush2.msra.mxu0 0.0
    %3046 = vmatprep.subr.mxu0 0.0
    %3047 = vmatpush2.msra.mxu0 0.0
    %3048 = vmatprep.subr.mxu0 0.0
    %3049 = vmatpush2.msra.mxu0 0.0
    %3050 = vmatprep.subr.mxu0 0.0
    %3051 = vmatpush2.msra.mxu0 0.0
    %3052 = vmatprep.subr.mxu0 0.0
    %3053 = vmatpush2.msra.mxu0 0.0
    %3054 = vmatprep.subr.mxu0 0.0
    %3055 = vmatpush2.msra.mxu0 0.0
    %3056 = vmatprep.subr.mxu0 0.0
    %3057 = vmatpush2.msra.mxu0 0.0
    %3058 = vmatprep.subr.mxu0 0.0
    %3059 = vmatpush2.msra.mxu0 0.0
    %3060 = vmatprep.mubr.f32.mxu0 0.0
    %3061 = vmatmul.mubr.f32.gmra.mxu0 %v2994
    %v3062 = vpop.f32.mrf.mxu0
    %v3063 = vadd.f32 %v64, %v3062
    %v3064 = vpop.f32.mrf.mxu0
    %3065 = vdwg.mxu0
    %v3066 = vld [vmem:[%s7] sm:$0xff]
    %v3067 = vld [vmem:[%s7 + $0x8] sm:$0xff]
    %v3068 = vld [vmem:[%s7 + $0x10] sm:$0xff]
    %v3069 = vld [vmem:[%s7 + $0x18] sm:$0xff]
    %v3070 = vld [vmem:[%s7 + $0x20] sm:$0xff]
    %v3071 = vld [vmem:[%s7 + $0x28] sm:$0xff]
    %v3072 = vld [vmem:[%s7 + $0x30] sm:$0xff]
    %v3073 = vld [vmem:[%s7 + $0x38] sm:$0xff]
    %3074 = vmatprep.subr.mxu0 0.0
    %3075 = vmatpush1.msra.mxu0 0.0
    %3076 = vmatprep.subr.mxu0 0.0
    %3077 = vmatpush1.msra.mxu0 0.0
    %3078 = vmatprep.subr.mxu0 0.0
    %3079 = vmatpush1.msra.mxu0 0.0
    %3080 = vmatprep.subr.mxu0 0.0
    %3081 = vmatpush1.msra.mxu0 0.0
    %3082 = vmatprep.subr.mxu0 0.0
    %3083 = vmatpush1.msra.mxu0 0.0
    %3084 = vmatprep.subr.mxu0 0.0
    %3085 = vmatpush1.msra.mxu0 0.0
    %3086 = vmatprep.subr.mxu0 0.0
    %3087 = vmatpush1.msra.mxu0 0.0
    %3088 = vmatprep.subr.mxu0 0.0
    %3089 = vmatpush1.msra.mxu0 0.0
    %3090 = vmatprep.subr.mxu0 0.0
    %3091 = vmatpush1.msra.mxu0 0.0
    %3092 = vmatprep.subr.mxu0 0.0
    %3093 = vmatpush1.msra.mxu0 0.0
    %3094 = vmatprep.subr.mxu0 0.0
    %3095 = vmatpush1.msra.mxu0 0.0
    %3096 = vmatprep.subr.mxu0 0.0
    %3097 = vmatpush1.msra.mxu0 0.0
    %3098 = vmatprep.subr.mxu0 %v3073
    %3099 = vmatpush1.msra.mxu0 %v3072
    %3100 = vmatprep.subr.mxu0 %v3071
    %3101 = vmatpush1.msra.mxu0 %v3070
    %3102 = vmatprep.subr.mxu0 %v3069
    %3103 = vmatpush1.msra.mxu0 %v3068
    %3104 = vmatprep.subr.mxu0 %v3067
    %3105 = vmatpush1.msra.mxu0 %v3066
    %3106 = vmatprep.subr.mxu0 0.0
    %3107 = vmatpush2.msra.mxu0 0.0
    %3108 = vmatprep.subr.mxu0 0.0
    %3109 = vmatpush2.msra.mxu0 0.0
    %3110 = vmatprep.subr.mxu0 0.0
    %3111 = vmatpush2.msra.mxu0 0.0
    %3112 = vmatprep.subr.mxu0 0.0
    %3113 = vmatpush2.msra.mxu0 0.0
    %3114 = vmatprep.subr.mxu0 0.0
    %3115 = vmatpush2.msra.mxu0 0.0
    %3116 = vmatprep.subr.mxu0 0.0
    %3117 = vmatpush2.msra.mxu0 0.0
    %3118 = vmatprep.subr.mxu0 0.0
    %3119 = vmatpush2.msra.mxu0 0.0
    %3120 = vmatprep.subr.mxu0 0.0
    %3121 = vmatpush2.msra.mxu0 0.0
    %3122 = vmatprep.subr.mxu0 0.0
    %3123 = vmatpush2.msra.mxu0 0.0
    %3124 = vmatprep.subr.mxu0 0.0
    %3125 = vmatpush2.msra.mxu0 0.0
    %3126 = vmatprep.subr.mxu0 0.0
    %3127 = vmatpush2.msra.mxu0 0.0
    %3128 = vmatprep.subr.mxu0 0.0
    %3129 = vmatpush2.msra.mxu0 0.0
    %3130 = vmatprep.subr.mxu0 0.0
    %3131 = vmatpush2.msra.mxu0 0.0
    %3132 = vmatprep.subr.mxu0 0.0
    %3133 = vmatpush2.msra.mxu0 0.0
    %3134 = vmatprep.subr.mxu0 0.0
    %3135 = vmatpush2.msra.mxu0 0.0
    %3136 = vmatprep.subr.mxu0 0.0
    %3137 = vmatpush2.msra.mxu0 0.0
    %3138 = vmatprep.mubr.f32.mxu0 0.0
    %3139 = vmatmul.mubr.f32.gmra.mxu0 %v2890
    %v3140 = vpop.f32.mrf.mxu0
    %v3141 = vadd.f32 0.0, %v3140
    %v3142 = vpop.f32.mrf.mxu0
    %v3143 = vadd.f32 0.0, %v3142
    %3144 = vdwg.mxu0
    %v3145 = vadd.f32 %v3063, %v3143
    %v3146 = vsel %vm266, %v3145, -inf
    %3147 = vmax.xlane.f32.xlu0 %v3146
    %v3148 = vpop.xlane.xlu0 %3147
    %v3149 = vsub.f32 %v3145, %v3148
    %v3150 = vmul.f32 %v3149, 1.442695
    %v3151 = vpow.pop %v3150
    %v3152 = vsel %vm266, %v3151, 0.0
    %3153 = vadd.xlane.f32.xlu0 %v3152
    %v3154 = vpop.xlane.xlu0 %3153
    %v3155 = vrcp.pop %v3154
    %v3156 = vmul.f32 %v3151, %v3155
    %v3159 = vunpack.c.l.s4 1966171168
    %v3160 = vunpack.c.0.s8 %v3159
    %v3161 = vlaneseq
    %v3162 = vshrl.u32 %v3161, 7
    %v3163 = vsub.s32 %v3160, %v3162
    %v3164 = vrot.slane %v3156, %v3163
    %v3165 = vcombine.high %v3164, %v3164
    %v3167 = vunpack.c.l.s4 1966171168
    %v3168 = vunpack.c.0.s8 %v3167
    %v3169 = vlaneseq
    %v3170 = vshrl.u32 %v3169, 7
    %v3171 = vsub.s32 %v3168, %v3170
    %v3172 = vrot.slane %v3164, %v3171
    %v3174 = vunpack.c.l.s4 1966171168
    %v3175 = vunpack.c.0.s8 %v3174
    %v3176 = vlaneseq
    %v3177 = vshrl.u32 %v3176, 7
    %v3178 = vsub.s32 %v3175, %v3177
    %v3179 = vrot.slane %v3165, %v3178
    %3182 = vst.msk [vmem:[#allocation4 + $0x4] sm:$0x1] %vm303, %v3172
    %3183 = vst.msk [vmem:[#allocation4 + $0xc] sm:$0x1] %vm303, %v3179
    %v3184 = vlaneseq
    %v3185 = vshrl.u32 %v3184, 7
    %v3186 = vsub.s32 0, %v3185
    %v3187 = vrot.slane %v3156, %v3186
    %3189 = vbcast.lane.b32.xlu0 %v3187, 256
    %v3190 = vpop.permute.xlu0 %3189
    %v3191 = vlaneseq
    %v3192 = vshrl.u32 %v3191, 7
    %v3193 = vsub.s32 1, %v3192
    %v3194 = vrot.slane %v3156, %v3193
    %3196 = vbcast.lane.b32.xlu0 %v3194, 256
    %v3197 = vpop.permute.xlu0 %3196
    %v3198 = vmul.f32 %v3190, %v57
    %v3199 = vmul.f32 %v3197, %v58
    %v3200 = vsel %vm109, %v3198, 0.0
    %v3201 = vrot.slane %v3200, 4
    %v3202 = vadd.f32 %v3200, %v3201
    %v3203 = vrot.slane %v3202, 2
    %v3204 = vadd.f32 %v3202, %v3203
    %v3205 = vrot.slane %v3204, 1
    %v3206 = vadd.f32 %v3204, %v3205
    %v3207 = vsel %vm109, %v3199, 0.0
    %v3208 = vrot.slane %v3207, 4
    %v3209 = vadd.f32 %v3207, %v3208
    %v3210 = vrot.slane %v3209, 2
    %v3211 = vadd.f32 %v3209, %v3210
    %v3212 = vrot.slane %v3211, 1
    %v3213 = vadd.f32 %v3211, %v3212
    %v3216 = vsel %vm338, %v3213, %v3206
    %v3217 = vsel %vm109, %v3216, 0
    %3219 = vmatprep.subr.mxu0 0.0
    %3220 = vmatpush1.msra.mxu0 0.0
    %3221 = vmatprep.subr.mxu0 0.0
    %3222 = vmatpush1.msra.mxu0 0.0
    %3223 = vmatprep.subr.mxu0 0.0
    %3224 = vmatpush1.msra.mxu0 0.0
    %3225 = vmatprep.subr.mxu0 0.0
    %3226 = vmatpush1.msra.mxu0 0.0
    %3227 = vmatprep.subr.mxu0 0.0
    %3228 = vmatpush1.msra.mxu0 0.0
    %3229 = vmatprep.subr.mxu0 0.0
    %3230 = vmatpush1.msra.mxu0 0.0
    %3231 = vmatprep.subr.mxu0 0.0
    %3232 = vmatpush1.msra.mxu0 0.0
    %3233 = vmatprep.subr.mxu0 0.0
    %3234 = vmatpush1.msra.mxu0 0.0
    %3235 = vmatprep.subr.mxu0 0.0
    %3236 = vmatpush1.msra.mxu0 0.0
    %3237 = vmatprep.subr.mxu0 0.0
    %3238 = vmatpush1.msra.mxu0 0.0
    %3239 = vmatprep.subr.mxu0 0.0
    %3240 = vmatpush1.msra.mxu0 0.0
    %3241 = vmatprep.subr.mxu0 0.0
    %3242 = vmatpush1.msra.mxu0 0.0
    %3243 = vmatprep.subr.mxu0 0.0
    %3244 = vmatpush1.msra.mxu0 %v97
    %3245 = vmatprep.subr.mxu0 0.0
    %3246 = vmatpush1.msra.mxu0 %v96
    %3247 = vmatprep.subr.mxu0 0.0
    %3248 = vmatpush1.msra.mxu0 %v95
    %3249 = vmatprep.subr.mxu0 0.0
    %3250 = vmatpush1.msra.mxu0 %v94
    %3251 = vmatprep.subr.mxu0 0.0
    %3252 = vmatpush2.msra.mxu0 0.0
    %3253 = vmatprep.subr.mxu0 0.0
    %3254 = vmatpush2.msra.mxu0 0.0
    %3255 = vmatprep.subr.mxu0 0.0
    %3256 = vmatpush2.msra.mxu0 0.0
    %3257 = vmatprep.subr.mxu0 0.0
    %3258 = vmatpush2.msra.mxu0 0.0
    %3259 = vmatprep.subr.mxu0 0.0
    %3260 = vmatpush2.msra.mxu0 0.0
    %3261 = vmatprep.subr.mxu0 0.0
    %3262 = vmatpush2.msra.mxu0 0.0
    %3263 = vmatprep.subr.mxu0 0.0
    %3264 = vmatpush2.msra.mxu0 0.0
    %3265 = vmatprep.subr.mxu0 0.0
    %3266 = vmatpush2.msra.mxu0 0.0
    %3267 = vmatprep.subr.mxu0 0.0
    %3268 = vmatpush2.msra.mxu0 0.0
    %3269 = vmatprep.subr.mxu0 0.0
    %3270 = vmatpush2.msra.mxu0 0.0
    %3271 = vmatprep.subr.mxu0 0.0
    %3272 = vmatpush2.msra.mxu0 0.0
    %3273 = vmatprep.subr.mxu0 0.0
    %3274 = vmatpush2.msra.mxu0 0.0
    %3275 = vmatprep.subr.mxu0 0.0
    %3276 = vmatpush2.msra.mxu0 0.0
    %3277 = vmatprep.subr.mxu0 0.0
    %3278 = vmatpush2.msra.mxu0 0.0
    %3279 = vmatprep.subr.mxu0 0.0
    %3280 = vmatpush2.msra.mxu0 0.0
    %3281 = vmatprep.subr.mxu0 0.0
    %3282 = vmatpush2.msra.mxu0 0.0
    %3283 = vmatprep.mubr.f32.mxu0 0.0
    %3284 = vmatmul.mubr.f32.gmra.mxu0 %v3217
    %v3285 = vpop.f32.mrf.mxu0
    %v3286 = vadd.f32 0.0, %v3285
    %v3287 = vpop.f32.mrf.mxu0
    %3288 = vdwg.mxu0
    %3290 = vrot.lane.b32.xlu0 %v3286, 8
    %v3291 = vpop.permute.xlu0 %3290
    %v3293 = vadd.f32 %v3063, %v3291
    %v3294 = vmax.f32 %v3293, 0.0
    %v3295 = vld [vmem:[%s8] sm:$0xff]
    %v3296 = vld [vmem:[%s8 + $0x8] sm:$0xff]
    %v3297 = vld [vmem:[%s8 + $0x10] sm:$0xff]
    %v3298 = vld [vmem:[%s8 + $0x18] sm:$0xff]
    %3300 = vrot.lane.b32.xlu0 %v3294, 120
    %v3301 = vpop.permute.xlu0 %3300
    %v3302 = vsel %vm109, %v3301, 0
    %3304 = vmatprep.subr.mxu0 0.0
    %3305 = vmatpush1.msra.mxu0 0.0
    %3306 = vmatprep.subr.mxu0 0.0
    %3307 = vmatpush1.msra.mxu0 0.0
    %3308 = vmatprep.subr.mxu0 0.0
    %3309 = vmatpush1.msra.mxu0 0.0
    %3310 = vmatprep.subr.mxu0 0.0
    %3311 = vmatpush1.msra.mxu0 0.0
    %3312 = vmatprep.subr.mxu0 0.0
    %3313 = vmatpush1.msra.mxu0 0.0
    %3314 = vmatprep.subr.mxu0 0.0
    %3315 = vmatpush1.msra.mxu0 0.0
    %3316 = vmatprep.subr.mxu0 0.0
    %3317 = vmatpush1.msra.mxu0 0.0
    %3318 = vmatprep.subr.mxu0 0.0
    %3319 = vmatpush1.msra.mxu0 0.0
    %3320 = vmatprep.subr.mxu0 0.0
    %3321 = vmatpush1.msra.mxu0 0.0
    %3322 = vmatprep.subr.mxu0 0.0
    %3323 = vmatpush1.msra.mxu0 0.0
    %3324 = vmatprep.subr.mxu0 0.0
    %3325 = vmatpush1.msra.mxu0 0.0
    %3326 = vmatprep.subr.mxu0 0.0
    %3327 = vmatpush1.msra.mxu0 0.0
    %3328 = vmatprep.subr.mxu0 0.0
    %3329 = vmatpush1.msra.mxu0 %v3298
    %3330 = vmatprep.subr.mxu0 0.0
    %3331 = vmatpush1.msra.mxu0 %v3297
    %3332 = vmatprep.subr.mxu0 0.0
    %3333 = vmatpush1.msra.mxu0 %v3296
    %3334 = vmatprep.subr.mxu0 0.0
    %3335 = vmatpush1.msra.mxu0 %v3295
    %3336 = vmatprep.subr.mxu0 0.0
    %3337 = vmatpush2.msra.mxu0 0.0
    %3338 = vmatprep.subr.mxu0 0.0
    %3339 = vmatpush2.msra.mxu0 0.0
    %3340 = vmatprep.subr.mxu0 0.0
    %3341 = vmatpush2.msra.mxu0 0.0
    %3342 = vmatprep.subr.mxu0 0.0
    %3343 = vmatpush2.msra.mxu0 0.0
    %3344 = vmatprep.subr.mxu0 0.0
    %3345 = vmatpush2.msra.mxu0 0.0
    %3346 = vmatprep.subr.mxu0 0.0
    %3347 = vmatpush2.msra.mxu0 0.0
    %3348 = vmatprep.subr.mxu0 0.0
    %3349 = vmatpush2.msra.mxu0 0.0
    %3350 = vmatprep.subr.mxu0 0.0
    %3351 = vmatpush2.msra.mxu0 0.0
    %3352 = vmatprep.subr.mxu0 0.0
    %3353 = vmatpush2.msra.mxu0 0.0
    %3354 = vmatprep.subr.mxu0 0.0
    %3355 = vmatpush2.msra.mxu0 0.0
    %3356 = vmatprep.subr.mxu0 0.0
    %3357 = vmatpush2.msra.mxu0 0.0
    %3358 = vmatprep.subr.mxu0 0.0
    %3359 = vmatpush2.msra.mxu0 0.0
    %3360 = vmatprep.subr.mxu0 0.0
    %3361 = vmatpush2.msra.mxu0 0.0
    %3362 = vmatprep.subr.mxu0 0.0
    %3363 = vmatpush2.msra.mxu0 0.0
    %3364 = vmatprep.subr.mxu0 0.0
    %3365 = vmatpush2.msra.mxu0 0.0
    %3366 = vmatprep.subr.mxu0 0.0
    %3367 = vmatpush2.msra.mxu0 0.0
    %3368 = vmatprep.mubr.f32.mxu0 0.0
    %3369 = vmatmul.mubr.f32.gmra.mxu0 %v3302
    %v3370 = vpop.f32.mrf.mxu0
    %v3371 = vadd.f32 %v3141, %v3370
    %v3372 = vpop.f32.mrf.mxu0
    %3373 = vdwg.mxu0
    %v3374 = vadd.f32 %v3371, %v71
    %v3375 = vxor.u32 %v3374, 2147483648
    %v3376 = vmul.f32 %v3375, 1.442695
    %v3377 = vpow.pop %v3376
    %v3378 = vadd.f32 %v3377, 1.0
    %v3379 = vrcp.pop %v3378
    %v3380 = vmul.f32 1.0, %v3379
    %v3381 = vtanh.pop %v3374
    %v3382 = vmul.f32 %v3380, %v2880
    %3384 = vrot.lane.b32.xlu0 %v3381, 64
    %v3385 = vpop.permute.xlu0 %3384
    %v3387 = vmul.f32 %v3380, %v3385
    %3389 = vrot.lane.b32.xlu0 %v3387, 32
    %v3390 = vpop.permute.xlu0 %3389
    %v3392 = vadd.f32 %v3382, %v3390
    %v3393 = vtanh.pop %v3392
    %3395 = vrot.lane.b32.xlu0 %v3393, 64
    %v3396 = vpop.permute.xlu0 %3395
    %v3398 = vmul.f32 %v3380, %v3396
    %v3399 = vld [vmem:[%s10] sm:$0xff]
    %v3400 = vld [vmem:[%s10 + $0x8] sm:$0xff]
    %v3401 = vld [vmem:[%s10 + $0x10] sm:$0xff]
    %v3402 = vld [vmem:[%s10 + $0x18] sm:$0xff]
    %3404 = vrot.lane.b32.xlu0 %v3398, 32
    %v3405 = vpop.permute.xlu0 %3404
    %v3406 = vsel %vm109, %v3405, 0
    %3408 = vmatprep.subr.mxu0 0.0
    %3409 = vmatpush1.msra.mxu0 0.0
    %3410 = vmatprep.subr.mxu0 0.0
    %3411 = vmatpush1.msra.mxu0 0.0
    %3412 = vmatprep.subr.mxu0 0.0
    %3413 = vmatpush1.msra.mxu0 0.0
    %3414 = vmatprep.subr.mxu0 0.0
    %3415 = vmatpush1.msra.mxu0 0.0
    %3416 = vmatprep.subr.mxu0 0.0
    %3417 = vmatpush1.msra.mxu0 0.0
    %3418 = vmatprep.subr.mxu0 0.0
    %3419 = vmatpush1.msra.mxu0 0.0
    %3420 = vmatprep.subr.mxu0 0.0
    %3421 = vmatpush1.msra.mxu0 0.0
    %3422 = vmatprep.subr.mxu0 0.0
    %3423 = vmatpush1.msra.mxu0 0.0
    %3424 = vmatprep.subr.mxu0 0.0
    %3425 = vmatpush1.msra.mxu0 0.0
    %3426 = vmatprep.subr.mxu0 0.0
    %3427 = vmatpush1.msra.mxu0 0.0
    %3428 = vmatprep.subr.mxu0 0.0
    %3429 = vmatpush1.msra.mxu0 0.0
    %3430 = vmatprep.subr.mxu0 0.0
    %3431 = vmatpush1.msra.mxu0 0.0
    %3432 = vmatprep.subr.mxu0 0.0
    %3433 = vmatpush1.msra.mxu0 %v3402
    %3434 = vmatprep.subr.mxu0 0.0
    %3435 = vmatpush1.msra.mxu0 %v3401
    %3436 = vmatprep.subr.mxu0 0.0
    %3437 = vmatpush1.msra.mxu0 %v3400
    %3438 = vmatprep.subr.mxu0 0.0
    %3439 = vmatpush1.msra.mxu0 %v3399
    %3440 = vmatprep.subr.mxu0 0.0
    %3441 = vmatpush2.msra.mxu0 0.0
    %3442 = vmatprep.subr.mxu0 0.0
    %3443 = vmatpush2.msra.mxu0 0.0
    %3444 = vmatprep.subr.mxu0 0.0
    %3445 = vmatpush2.msra.mxu0 0.0
    %3446 = vmatprep.subr.mxu0 0.0
    %3447 = vmatpush2.msra.mxu0 0.0
    %3448 = vmatprep.subr.mxu0 0.0
    %3449 = vmatpush2.msra.mxu0 0.0
    %3450 = vmatprep.subr.mxu0 0.0
    %3451 = vmatpush2.msra.mxu0 0.0
    %3452 = vmatprep.subr.mxu0 0.0
    %3453 = vmatpush2.msra.mxu0 0.0
    %3454 = vmatprep.subr.mxu0 0.0
    %3455 = vmatpush2.msra.mxu0 0.0
    %3456 = vmatprep.subr.mxu0 0.0
    %3457 = vmatpush2.msra.mxu0 0.0
    %3458 = vmatprep.subr.mxu0 0.0
    %3459 = vmatpush2.msra.mxu0 0.0
    %3460 = vmatprep.subr.mxu0 0.0
    %3461 = vmatpush2.msra.mxu0 0.0
    %3462 = vmatprep.subr.mxu0 0.0
    %3463 = vmatpush2.msra.mxu0 0.0
    %3464 = vmatprep.subr.mxu0 0.0
    %3465 = vmatpush2.msra.mxu0 0.0
    %3466 = vmatprep.subr.mxu0 0.0
    %3467 = vmatpush2.msra.mxu0 0.0
    %3468 = vmatprep.subr.mxu0 0.0
    %3469 = vmatpush2.msra.mxu0 0.0
    %3470 = vmatprep.subr.mxu0 0.0
    %3471 = vmatpush2.msra.mxu0 0.0
    %3472 = vmatprep.mubr.f32.mxu0 0.0
    %3473 = vmatmul.mubr.f32.gmra.mxu0 %v3406
    %v3474 = vpop.f32.mrf.mxu0
    %v3475 = vadd.f32 %v78, %v3474
    %v3476 = vpop.f32.mrf.mxu0
    %3477 = vdwg.mxu0
    %v3478 = vxor.u32 %v3475, 2147483648
    %v3479 = vmul.f32 %v3478, 1.442695
    %v3480 = vpow.pop %v3479
    %v3481 = vadd.f32 %v3480, 1.0
    %v3482 = vrcp.pop %v3481
    %v3483 = vmul.f32 1.0, %v3482
    %v3484 = vtanh.pop %v3475
    %v3485 = vmul.f32 %v3483, %v3392
    %3487 = vrot.lane.b32.xlu0 %v3484, 64
    %v3488 = vpop.permute.xlu0 %3487
    %v3490 = vmul.f32 %v3483, %v3488
    %3492 = vrot.lane.b32.xlu0 %v3490, 32
    %v3493 = vpop.permute.xlu0 %3492
    %v3495 = vadd.f32 %v3485, %v3493
    %v3496 = vtanh.pop %v3495
    %3498 = vrot.lane.b32.xlu0 %v3496, 64
    %v3499 = vpop.permute.xlu0 %3498
    %v3501 = vmul.f32 %v3483, %v3499
    %v3502 = vld [vmem:[%s12] sm:$0xff]
    %v3503 = vld [vmem:[%s12 + $0x8] sm:$0xff]
    %v3504 = vld [vmem:[%s12 + $0x10] sm:$0xff]
    %v3505 = vld [vmem:[%s12 + $0x18] sm:$0xff]
    %3507 = vrot.lane.b32.xlu0 %v3501, 32
    %v3508 = vpop.permute.xlu0 %3507
    %v3509 = vsel %vm109, %v3508, 0
    %3511 = vmatprep.subr.mxu0 0.0
    %3512 = vmatpush1.msra.mxu0 0.0
    %3513 = vmatprep.subr.mxu0 0.0
    %3514 = vmatpush1.msra.mxu0 0.0
    %3515 = vmatprep.subr.mxu0 0.0
    %3516 = vmatpush1.msra.mxu0 0.0
    %3517 = vmatprep.subr.mxu0 0.0
    %3518 = vmatpush1.msra.mxu0 0.0
    %3519 = vmatprep.subr.mxu0 0.0
    %3520 = vmatpush1.msra.mxu0 0.0
    %3521 = vmatprep.subr.mxu0 0.0
    %3522 = vmatpush1.msra.mxu0 0.0
    %3523 = vmatprep.subr.mxu0 0.0
    %3524 = vmatpush1.msra.mxu0 0.0
    %3525 = vmatprep.subr.mxu0 0.0
    %3526 = vmatpush1.msra.mxu0 0.0
    %3527 = vmatprep.subr.mxu0 0.0
    %3528 = vmatpush1.msra.mxu0 0.0
    %3529 = vmatprep.subr.mxu0 0.0
    %3530 = vmatpush1.msra.mxu0 0.0
    %3531 = vmatprep.subr.mxu0 0.0
    %3532 = vmatpush1.msra.mxu0 0.0
    %3533 = vmatprep.subr.mxu0 0.0
    %3534 = vmatpush1.msra.mxu0 0.0
    %3535 = vmatprep.subr.mxu0 0.0
    %3536 = vmatpush1.msra.mxu0 %v3505
    %3537 = vmatprep.subr.mxu0 0.0
    %3538 = vmatpush1.msra.mxu0 %v3504
    %3539 = vmatprep.subr.mxu0 0.0
    %3540 = vmatpush1.msra.mxu0 %v3503
    %3541 = vmatprep.subr.mxu0 0.0
    %3542 = vmatpush1.msra.mxu0 %v3502
    %3543 = vmatprep.subr.mxu0 0.0
    %3544 = vmatpush2.msra.mxu0 0.0
    %3545 = vmatprep.subr.mxu0 0.0
    %3546 = vmatpush2.msra.mxu0 0.0
    %3547 = vmatprep.subr.mxu0 0.0
    %3548 = vmatpush2.msra.mxu0 0.0
    %3549 = vmatprep.subr.mxu0 0.0
    %3550 = vmatpush2.msra.mxu0 0.0
    %3551 = vmatprep.subr.mxu0 0.0
    %3552 = vmatpush2.msra.mxu0 0.0
    %3553 = vmatprep.subr.mxu0 0.0
    %3554 = vmatpush2.msra.mxu0 0.0
    %3555 = vmatprep.subr.mxu0 0.0
    %3556 = vmatpush2.msra.mxu0 0.0
    %3557 = vmatprep.subr.mxu0 0.0
    %3558 = vmatpush2.msra.mxu0 0.0
    %3559 = vmatprep.subr.mxu0 0.0
    %3560 = vmatpush2.msra.mxu0 0.0
    %3561 = vmatprep.subr.mxu0 0.0
    %3562 = vmatpush2.msra.mxu0 0.0
    %3563 = vmatprep.subr.mxu0 0.0
    %3564 = vmatpush2.msra.mxu0 0.0
    %3565 = vmatprep.subr.mxu0 0.0
    %3566 = vmatpush2.msra.mxu0 0.0
    %3567 = vmatprep.subr.mxu0 0.0
    %3568 = vmatpush2.msra.mxu0 0.0
    %3569 = vmatprep.subr.mxu0 0.0
    %3570 = vmatpush2.msra.mxu0 0.0
    %3571 = vmatprep.subr.mxu0 0.0
    %3572 = vmatpush2.msra.mxu0 0.0
    %3573 = vmatprep.subr.mxu0 0.0
    %3574 = vmatpush2.msra.mxu0 0.0
    %3575 = vmatprep.mubr.f32.mxu0 0.0
    %3576 = vmatmul.mubr.f32.gmra.mxu0 %v3509
    %v3577 = vpop.f32.mrf.mxu0
    %v3578 = vadd.f32 %v85, %v3577
    %v3579 = vpop.f32.mrf.mxu0
    %3580 = vdwg.mxu0
    %v3581 = vxor.u32 %v3578, 2147483648
    %v3582 = vmul.f32 %v3581, 1.442695
    %v3583 = vpow.pop %v3582
    %v3584 = vadd.f32 %v3583, 1.0
    %v3585 = vrcp.pop %v3584
    %v3586 = vmul.f32 1.0, %v3585
    %v3587 = vtanh.pop %v3578
    %v3588 = vmul.f32 %v3586, %v3495
    %3590 = vrot.lane.b32.xlu0 %v3587, 64
    %v3591 = vpop.permute.xlu0 %3590
    %v3593 = vmul.f32 %v3586, %v3591
    %3595 = vrot.lane.b32.xlu0 %v3593, 32
    %v3596 = vpop.permute.xlu0 %3595
    %v3598 = vadd.f32 %v3588, %v3596
    %v3599 = vtanh.pop %v3598
    %3601 = vrot.lane.b32.xlu0 %v3599, 64
    %v3602 = vpop.permute.xlu0 %3601
    %v3604 = vmul.f32 %v3586, %v3602
    %3606 = vrot.lane.b32.xlu0 %v3604, 32
    %v3607 = vpop.permute.xlu0 %3606
    %v3608 = vsel %vm109, %v3607, 0
    %3610 = vmatprep.subr.mxu0 0.0
    %3611 = vmatpush1.msra.mxu0 0.0
    %3612 = vmatprep.subr.mxu0 0.0
    %3613 = vmatpush1.msra.mxu0 0.0
    %3614 = vmatprep.subr.mxu0 0.0
    %3615 = vmatpush1.msra.mxu0 0.0
    %3616 = vmatprep.subr.mxu0 0.0
    %3617 = vmatpush1.msra.mxu0 0.0
    %3618 = vmatprep.subr.mxu0 0.0
    %3619 = vmatpush1.msra.mxu0 0.0
    %3620 = vmatprep.subr.mxu0 0.0
    %3621 = vmatpush1.msra.mxu0 0.0
    %3622 = vmatprep.subr.mxu0 0.0
    %3623 = vmatpush1.msra.mxu0 0.0
    %3624 = vmatprep.subr.mxu0 0.0
    %3625 = vmatpush1.msra.mxu0 0.0
    %3626 = vmatprep.subr.mxu0 0.0
    %3627 = vmatpush1.msra.mxu0 0.0
    %3628 = vmatprep.subr.mxu0 0.0
    %3629 = vmatpush1.msra.mxu0 0.0
    %3630 = vmatprep.subr.mxu0 0.0
    %3631 = vmatpush1.msra.mxu0 0.0
    %3632 = vmatprep.subr.mxu0 0.0
    %3633 = vmatpush1.msra.mxu0 0.0
    %3634 = vmatprep.subr.mxu0 0.0
    %3635 = vmatpush1.msra.mxu0 %v101
    %3636 = vmatprep.subr.mxu0 0.0
    %3637 = vmatpush1.msra.mxu0 %v100
    %3638 = vmatprep.subr.mxu0 0.0
    %3639 = vmatpush1.msra.mxu0 %v99
    %3640 = vmatprep.subr.mxu0 0.0
    %3641 = vmatpush1.msra.mxu0 %v98
    %3642 = vmatprep.subr.mxu0 0.0
    %3643 = vmatpush2.msra.mxu0 0.0
    %3644 = vmatprep.subr.mxu0 0.0
    %3645 = vmatpush2.msra.mxu0 0.0
    %3646 = vmatprep.subr.mxu0 0.0
    %3647 = vmatpush2.msra.mxu0 0.0
    %3648 = vmatprep.subr.mxu0 0.0
    %3649 = vmatpush2.msra.mxu0 0.0
    %3650 = vmatprep.subr.mxu0 0.0
    %3651 = vmatpush2.msra.mxu0 0.0
    %3652 = vmatprep.subr.mxu0 0.0
    %3653 = vmatpush2.msra.mxu0 0.0
    %3654 = vmatprep.subr.mxu0 0.0
    %3655 = vmatpush2.msra.mxu0 0.0
    %3656 = vmatprep.subr.mxu0 0.0
    %3657 = vmatpush2.msra.mxu0 0.0
    %3658 = vmatprep.subr.mxu0 0.0
    %3659 = vmatpush2.msra.mxu0 0.0
    %3660 = vmatprep.subr.mxu0 0.0
    %3661 = vmatpush2.msra.mxu0 0.0
    %3662 = vmatprep.subr.mxu0 0.0
    %3663 = vmatpush2.msra.mxu0 0.0
    %3664 = vmatprep.subr.mxu0 0.0
    %3665 = vmatpush2.msra.mxu0 0.0
    %3666 = vmatprep.subr.mxu0 0.0
    %3667 = vmatpush2.msra.mxu0 0.0
    %3668 = vmatprep.subr.mxu0 0.0
    %3669 = vmatpush2.msra.mxu0 0.0
    %3670 = vmatprep.subr.mxu0 0.0
    %3671 = vmatpush2.msra.mxu0 0.0
    %3672 = vmatprep.subr.mxu0 0.0
    %3673 = vmatpush2.msra.mxu0 0.0
    %3674 = vmatprep.mubr.f32.mxu0 0.0
    %3675 = vmatmul.mubr.f32.gmra.mxu0 %v3608
    %v3676 = vpop.f32.mrf.mxu0
    %v3677 = vadd.f32 %v92, %v3676
    %v3678 = vpop.f32.mrf.mxu0
    %3679 = vdwg.mxu0
    %v3680 = vmax.f32 %v3677, 0.0
    %v3683 = vunpack.c.l.s4 1966171168
    %v3684 = vunpack.c.0.s8 %v3683
    %v3685 = vlaneseq
    %v3686 = vshrl.u32 %v3685, 7
    %v3687 = vsub.s32 %v3684, %v3686
    %v3688 = vrot.slane %v3680, %v3687
    %v3689 = vcombine.high %v3688, %v3688
    %v3691 = vunpack.c.l.s4 1966171168
    %v3692 = vunpack.c.0.s8 %v3691
    %v3693 = vlaneseq
    %v3694 = vshrl.u32 %v3693, 7
    %v3695 = vsub.s32 %v3692, %v3694
    %v3696 = vrot.slane %v3688, %v3695
    %v3698 = vunpack.c.l.s4 1966171168
    %v3699 = vunpack.c.0.s8 %v3698
    %v3700 = vlaneseq
    %v3701 = vshrl.u32 %v3700, 7
    %v3702 = vsub.s32 %v3699, %v3701
    %v3703 = vrot.slane %v3689, %v3702
    %3706 = vst.msk [vmem:[#allocation2 + $0x4] sm:$0x1] %vm833, %v3696
    %3707 = vst.msk [vmem:[#allocation2 + $0xc] sm:$0x1] %vm833, %v3703
    %v3708 = vld [vmem:[%s4] sm:$0xff]
    %v3709 = vld [vmem:[%s4 + $0x8] sm:$0xff]
    %v3710 = vld [vmem:[%s4 + $0x10] sm:$0xff]
    %v3711 = vld [vmem:[%s4 + $0x18] sm:$0xff]
    %v3712 = vsel %vm109, %v3680, 0
    %3714 = vmatprep.subr.mxu0 0.0
    %3715 = vmatpush1.msra.mxu0 0.0
    %3716 = vmatprep.subr.mxu0 0.0
    %3717 = vmatpush1.msra.mxu0 0.0
    %3718 = vmatprep.subr.mxu0 0.0
    %3719 = vmatpush1.msra.mxu0 0.0
    %3720 = vmatprep.subr.mxu0 0.0
    %3721 = vmatpush1.msra.mxu0 0.0
    %3722 = vmatprep.subr.mxu0 0.0
    %3723 = vmatpush1.msra.mxu0 0.0
    %3724 = vmatprep.subr.mxu0 0.0
    %3725 = vmatpush1.msra.mxu0 0.0
    %3726 = vmatprep.subr.mxu0 0.0
    %3727 = vmatpush1.msra.mxu0 0.0
    %3728 = vmatprep.subr.mxu0 0.0
    %3729 = vmatpush1.msra.mxu0 0.0
    %3730 = vmatprep.subr.mxu0 0.0
    %3731 = vmatpush1.msra.mxu0 0.0
    %3732 = vmatprep.subr.mxu0 0.0
    %3733 = vmatpush1.msra.mxu0 0.0
    %3734 = vmatprep.subr.mxu0 0.0
    %3735 = vmatpush1.msra.mxu0 0.0
    %3736 = vmatprep.subr.mxu0 0.0
    %3737 = vmatpush1.msra.mxu0 0.0
    %3738 = vmatprep.subr.mxu0 0.0
    %3739 = vmatpush1.msra.mxu0 %v3711
    %3740 = vmatprep.subr.mxu0 0.0
    %3741 = vmatpush1.msra.mxu0 %v3710
    %3742 = vmatprep.subr.mxu0 0.0
    %3743 = vmatpush1.msra.mxu0 %v3709
    %3744 = vmatprep.subr.mxu0 0.0
    %3745 = vmatpush1.msra.mxu0 %v3708
    %3746 = vmatprep.subr.mxu0 0.0
    %3747 = vmatpush2.msra.mxu0 0.0
    %3748 = vmatprep.subr.mxu0 0.0
    %3749 = vmatpush2.msra.mxu0 0.0
    %3750 = vmatprep.subr.mxu0 0.0
    %3751 = vmatpush2.msra.mxu0 0.0
    %3752 = vmatprep.subr.mxu0 0.0
    %3753 = vmatpush2.msra.mxu0 0.0
    %3754 = vmatprep.subr.mxu0 0.0
    %3755 = vmatpush2.msra.mxu0 0.0
    %3756 = vmatprep.subr.mxu0 0.0
    %3757 = vmatpush2.msra.mxu0 0.0
    %3758 = vmatprep.subr.mxu0 0.0
    %3759 = vmatpush2.msra.mxu0 0.0
    %3760 = vmatprep.subr.mxu0 0.0
    %3761 = vmatpush2.msra.mxu0 0.0
    %3762 = vmatprep.subr.mxu0 0.0
    %3763 = vmatpush2.msra.mxu0 0.0
    %3764 = vmatprep.subr.mxu0 0.0
    %3765 = vmatpush2.msra.mxu0 0.0
    %3766 = vmatprep.subr.mxu0 0.0
    %3767 = vmatpush2.msra.mxu0 0.0
    %3768 = vmatprep.subr.mxu0 0.0
    %3769 = vmatpush2.msra.mxu0 0.0
    %3770 = vmatprep.subr.mxu0 0.0
    %3771 = vmatpush2.msra.mxu0 0.0
    %3772 = vmatprep.subr.mxu0 0.0
    %3773 = vmatpush2.msra.mxu0 0.0
    %3774 = vmatprep.subr.mxu0 0.0
    %3775 = vmatpush2.msra.mxu0 0.0
    %3776 = vmatprep.subr.mxu0 0.0
    %3777 = vmatpush2.msra.mxu0 0.0
    %3778 = vmatprep.mubr.f32.mxu0 0.0
    %3779 = vmatmul.mubr.f32.gmra.mxu0 %v3712
    %v3780 = vpop.f32.mrf.mxu0
    %v3781 = vadd.f32 %v64, %v3780
    %v3782 = vpop.f32.mrf.mxu0
    %3783 = vdwg.mxu0
    %v3784 = vld [vmem:[%s7] sm:$0xff]
    %v3785 = vld [vmem:[%s7 + $0x8] sm:$0xff]
    %v3786 = vld [vmem:[%s7 + $0x10] sm:$0xff]
    %v3787 = vld [vmem:[%s7 + $0x18] sm:$0xff]
    %v3788 = vld [vmem:[%s7 + $0x20] sm:$0xff]
    %v3789 = vld [vmem:[%s7 + $0x28] sm:$0xff]
    %v3790 = vld [vmem:[%s7 + $0x30] sm:$0xff]
    %v3791 = vld [vmem:[%s7 + $0x38] sm:$0xff]
    %3792 = vmatprep.subr.mxu0 0.0
    %3793 = vmatpush1.msra.mxu0 0.0
    %3794 = vmatprep.subr.mxu0 0.0
    %3795 = vmatpush1.msra.mxu0 0.0
    %3796 = vmatprep.subr.mxu0 0.0
    %3797 = vmatpush1.msra.mxu0 0.0
    %3798 = vmatprep.subr.mxu0 0.0
    %3799 = vmatpush1.msra.mxu0 0.0
    %3800 = vmatprep.subr.mxu0 0.0
    %3801 = vmatpush1.msra.mxu0 0.0
    %3802 = vmatprep.subr.mxu0 0.0
    %3803 = vmatpush1.msra.mxu0 0.0
    %3804 = vmatprep.subr.mxu0 0.0
    %3805 = vmatpush1.msra.mxu0 0.0
    %3806 = vmatprep.subr.mxu0 0.0
    %3807 = vmatpush1.msra.mxu0 0.0
    %3808 = vmatprep.subr.mxu0 0.0
    %3809 = vmatpush1.msra.mxu0 0.0
    %3810 = vmatprep.subr.mxu0 0.0
    %3811 = vmatpush1.msra.mxu0 0.0
    %3812 = vmatprep.subr.mxu0 0.0
    %3813 = vmatpush1.msra.mxu0 0.0
    %3814 = vmatprep.subr.mxu0 0.0
    %3815 = vmatpush1.msra.mxu0 0.0
    %3816 = vmatprep.subr.mxu0 %v3791
    %3817 = vmatpush1.msra.mxu0 %v3790
    %3818 = vmatprep.subr.mxu0 %v3789
    %3819 = vmatpush1.msra.mxu0 %v3788
    %3820 = vmatprep.subr.mxu0 %v3787
    %3821 = vmatpush1.msra.mxu0 %v3786
    %3822 = vmatprep.subr.mxu0 %v3785
    %3823 = vmatpush1.msra.mxu0 %v3784
    %3824 = vmatprep.subr.mxu0 0.0
    %3825 = vmatpush2.msra.mxu0 0.0
    %3826 = vmatprep.subr.mxu0 0.0
    %3827 = vmatpush2.msra.mxu0 0.0
    %3828 = vmatprep.subr.mxu0 0.0
    %3829 = vmatpush2.msra.mxu0 0.0
    %3830 = vmatprep.subr.mxu0 0.0
    %3831 = vmatpush2.msra.mxu0 0.0
    %3832 = vmatprep.subr.mxu0 0.0
    %3833 = vmatpush2.msra.mxu0 0.0
    %3834 = vmatprep.subr.mxu0 0.0
    %3835 = vmatpush2.msra.mxu0 0.0
    %3836 = vmatprep.subr.mxu0 0.0
    %3837 = vmatpush2.msra.mxu0 0.0
    %3838 = vmatprep.subr.mxu0 0.0
    %3839 = vmatpush2.msra.mxu0 0.0
    %3840 = vmatprep.subr.mxu0 0.0
    %3841 = vmatpush2.msra.mxu0 0.0
    %3842 = vmatprep.subr.mxu0 0.0
    %3843 = vmatpush2.msra.mxu0 0.0
    %3844 = vmatprep.subr.mxu0 0.0
    %3845 = vmatpush2.msra.mxu0 0.0
    %3846 = vmatprep.subr.mxu0 0.0
    %3847 = vmatpush2.msra.mxu0 0.0
    %3848 = vmatprep.subr.mxu0 0.0
    %3849 = vmatpush2.msra.mxu0 0.0
    %3850 = vmatprep.subr.mxu0 0.0
    %3851 = vmatpush2.msra.mxu0 0.0
    %3852 = vmatprep.subr.mxu0 0.0
    %3853 = vmatpush2.msra.mxu0 0.0
    %3854 = vmatprep.subr.mxu0 0.0
    %3855 = vmatpush2.msra.mxu0 0.0
    %3856 = vmatprep.mubr.f32.mxu0 0.0
    %3857 = vmatmul.mubr.f32.gmra.mxu0 %v3608
    %v3858 = vpop.f32.mrf.mxu0
    %v3859 = vadd.f32 0.0, %v3858
    %v3860 = vpop.f32.mrf.mxu0
    %v3861 = vadd.f32 0.0, %v3860
    %3862 = vdwg.mxu0
    %v3863 = vadd.f32 %v3781, %v3861
    %v3864 = vsel %vm266, %v3863, -inf
    %3865 = vmax.xlane.f32.xlu0 %v3864
    %v3866 = vpop.xlane.xlu0 %3865
    %v3867 = vsub.f32 %v3863, %v3866
    %v3868 = vmul.f32 %v3867, 1.442695
    %v3869 = vpow.pop %v3868
    %v3870 = vsel %vm266, %v3869, 0.0
    %3871 = vadd.xlane.f32.xlu0 %v3870
    %v3872 = vpop.xlane.xlu0 %3871
    %v3873 = vrcp.pop %v3872
    %v3874 = vmul.f32 %v3869, %v3873
    %v3877 = vunpack.c.l.s4 1966171168
    %v3878 = vunpack.c.0.s8 %v3877
    %v3879 = vlaneseq
    %v3880 = vshrl.u32 %v3879, 7
    %v3881 = vsub.s32 %v3878, %v3880
    %v3882 = vrot.slane %v3874, %v3881
    %v3883 = vcombine.high %v3882, %v3882
    %v3885 = vunpack.c.l.s4 1966171168
    %v3886 = vunpack.c.0.s8 %v3885
    %v3887 = vlaneseq
    %v3888 = vshrl.u32 %v3887, 7
    %v3889 = vsub.s32 %v3886, %v3888
    %v3890 = vrot.slane %v3882, %v3889
    %v3892 = vunpack.c.l.s4 1966171168
    %v3893 = vunpack.c.0.s8 %v3892
    %v3894 = vlaneseq
    %v3895 = vshrl.u32 %v3894, 7
    %v3896 = vsub.s32 %v3893, %v3895
    %v3897 = vrot.slane %v3883, %v3896
    %3900 = vst.msk [vmem:[#allocation4 + $0x5] sm:$0x1] %vm303, %v3890
    %3901 = vst.msk [vmem:[#allocation4 + $0xd] sm:$0x1] %vm303, %v3897
    %v3902 = vlaneseq
    %v3903 = vshrl.u32 %v3902, 7
    %v3904 = vsub.s32 0, %v3903
    %v3905 = vrot.slane %v3874, %v3904
    %3907 = vbcast.lane.b32.xlu0 %v3905, 256
    %v3908 = vpop.permute.xlu0 %3907
    %v3909 = vlaneseq
    %v3910 = vshrl.u32 %v3909, 7
    %v3911 = vsub.s32 1, %v3910
    %v3912 = vrot.slane %v3874, %v3911
    %3914 = vbcast.lane.b32.xlu0 %v3912, 256
    %v3915 = vpop.permute.xlu0 %3914
    %v3916 = vmul.f32 %v3908, %v57
    %v3917 = vmul.f32 %v3915, %v58
    %v3918 = vsel %vm109, %v3916, 0.0
    %v3919 = vrot.slane %v3918, 4
    %v3920 = vadd.f32 %v3918, %v3919
    %v3921 = vrot.slane %v3920, 2
    %v3922 = vadd.f32 %v3920, %v3921
    %v3923 = vrot.slane %v3922, 1
    %v3924 = vadd.f32 %v3922, %v3923
    %v3925 = vsel %vm109, %v3917, 0.0
    %v3926 = vrot.slane %v3925, 4
    %v3927 = vadd.f32 %v3925, %v3926
    %v3928 = vrot.slane %v3927, 2
    %v3929 = vadd.f32 %v3927, %v3928
    %v3930 = vrot.slane %v3929, 1
    %v3931 = vadd.f32 %v3929, %v3930
    %v3934 = vsel %vm338, %v3931, %v3924
    %v3935 = vsel %vm109, %v3934, 0
    %3937 = vmatprep.subr.mxu0 0.0
    %3938 = vmatpush1.msra.mxu0 0.0
    %3939 = vmatprep.subr.mxu0 0.0
    %3940 = vmatpush1.msra.mxu0 0.0
    %3941 = vmatprep.subr.mxu0 0.0
    %3942 = vmatpush1.msra.mxu0 0.0
    %3943 = vmatprep.subr.mxu0 0.0
    %3944 = vmatpush1.msra.mxu0 0.0
    %3945 = vmatprep.subr.mxu0 0.0
    %3946 = vmatpush1.msra.mxu0 0.0
    %3947 = vmatprep.subr.mxu0 0.0
    %3948 = vmatpush1.msra.mxu0 0.0
    %3949 = vmatprep.subr.mxu0 0.0
    %3950 = vmatpush1.msra.mxu0 0.0
    %3951 = vmatprep.subr.mxu0 0.0
    %3952 = vmatpush1.msra.mxu0 0.0
    %3953 = vmatprep.subr.mxu0 0.0
    %3954 = vmatpush1.msra.mxu0 0.0
    %3955 = vmatprep.subr.mxu0 0.0
    %3956 = vmatpush1.msra.mxu0 0.0
    %3957 = vmatprep.subr.mxu0 0.0
    %3958 = vmatpush1.msra.mxu0 0.0
    %3959 = vmatprep.subr.mxu0 0.0
    %3960 = vmatpush1.msra.mxu0 0.0
    %3961 = vmatprep.subr.mxu0 0.0
    %3962 = vmatpush1.msra.mxu0 %v97
    %3963 = vmatprep.subr.mxu0 0.0
    %3964 = vmatpush1.msra.mxu0 %v96
    %3965 = vmatprep.subr.mxu0 0.0
    %3966 = vmatpush1.msra.mxu0 %v95
    %3967 = vmatprep.subr.mxu0 0.0
    %3968 = vmatpush1.msra.mxu0 %v94
    %3969 = vmatprep.subr.mxu0 0.0
    %3970 = vmatpush2.msra.mxu0 0.0
    %3971 = vmatprep.subr.mxu0 0.0
    %3972 = vmatpush2.msra.mxu0 0.0
    %3973 = vmatprep.subr.mxu0 0.0
    %3974 = vmatpush2.msra.mxu0 0.0
    %3975 = vmatprep.subr.mxu0 0.0
    %3976 = vmatpush2.msra.mxu0 0.0
    %3977 = vmatprep.subr.mxu0 0.0
    %3978 = vmatpush2.msra.mxu0 0.0
    %3979 = vmatprep.subr.mxu0 0.0
    %3980 = vmatpush2.msra.mxu0 0.0
    %3981 = vmatprep.subr.mxu0 0.0
    %3982 = vmatpush2.msra.mxu0 0.0
    %3983 = vmatprep.subr.mxu0 0.0
    %3984 = vmatpush2.msra.mxu0 0.0
    %3985 = vmatprep.subr.mxu0 0.0
    %3986 = vmatpush2.msra.mxu0 0.0
    %3987 = vmatprep.subr.mxu0 0.0
    %3988 = vmatpush2.msra.mxu0 0.0
    %3989 = vmatprep.subr.mxu0 0.0
    %3990 = vmatpush2.msra.mxu0 0.0
    %3991 = vmatprep.subr.mxu0 0.0
    %3992 = vmatpush2.msra.mxu0 0.0
    %3993 = vmatprep.subr.mxu0 0.0
    %3994 = vmatpush2.msra.mxu0 0.0
    %3995 = vmatprep.subr.mxu0 0.0
    %3996 = vmatpush2.msra.mxu0 0.0
    %3997 = vmatprep.subr.mxu0 0.0
    %3998 = vmatpush2.msra.mxu0 0.0
    %3999 = vmatprep.subr.mxu0 0.0
    %4000 = vmatpush2.msra.mxu0 0.0
    %4001 = vmatprep.mubr.f32.mxu0 0.0
    %4002 = vmatmul.mubr.f32.gmra.mxu0 %v3935
    %v4003 = vpop.f32.mrf.mxu0
    %v4004 = vadd.f32 0.0, %v4003
    %v4005 = vpop.f32.mrf.mxu0
    %4006 = vdwg.mxu0
    %4008 = vrot.lane.b32.xlu0 %v4004, 8
    %v4009 = vpop.permute.xlu0 %4008
    %v4011 = vadd.f32 %v3781, %v4009
    %v4012 = vmax.f32 %v4011, 0.0
    %v4013 = vld [vmem:[%s8] sm:$0xff]
    %v4014 = vld [vmem:[%s8 + $0x8] sm:$0xff]
    %v4015 = vld [vmem:[%s8 + $0x10] sm:$0xff]
    %v4016 = vld [vmem:[%s8 + $0x18] sm:$0xff]
    %4018 = vrot.lane.b32.xlu0 %v4012, 120
    %v4019 = vpop.permute.xlu0 %4018
    %v4020 = vsel %vm109, %v4019, 0
    %4022 = vmatprep.subr.mxu0 0.0
    %4023 = vmatpush1.msra.mxu0 0.0
    %4024 = vmatprep.subr.mxu0 0.0
    %4025 = vmatpush1.msra.mxu0 0.0
    %4026 = vmatprep.subr.mxu0 0.0
    %4027 = vmatpush1.msra.mxu0 0.0
    %4028 = vmatprep.subr.mxu0 0.0
    %4029 = vmatpush1.msra.mxu0 0.0
    %4030 = vmatprep.subr.mxu0 0.0
    %4031 = vmatpush1.msra.mxu0 0.0
    %4032 = vmatprep.subr.mxu0 0.0
    %4033 = vmatpush1.msra.mxu0 0.0
    %4034 = vmatprep.subr.mxu0 0.0
    %4035 = vmatpush1.msra.mxu0 0.0
    %4036 = vmatprep.subr.mxu0 0.0
    %4037 = vmatpush1.msra.mxu0 0.0
    %4038 = vmatprep.subr.mxu0 0.0
    %4039 = vmatpush1.msra.mxu0 0.0
    %4040 = vmatprep.subr.mxu0 0.0
    %4041 = vmatpush1.msra.mxu0 0.0
    %4042 = vmatprep.subr.mxu0 0.0
    %4043 = vmatpush1.msra.mxu0 0.0
    %4044 = vmatprep.subr.mxu0 0.0
    %4045 = vmatpush1.msra.mxu0 0.0
    %4046 = vmatprep.subr.mxu0 0.0
    %4047 = vmatpush1.msra.mxu0 %v4016
    %4048 = vmatprep.subr.mxu0 0.0
    %4049 = vmatpush1.msra.mxu0 %v4015
    %4050 = vmatprep.subr.mxu0 0.0
    %4051 = vmatpush1.msra.mxu0 %v4014
    %4052 = vmatprep.subr.mxu0 0.0
    %4053 = vmatpush1.msra.mxu0 %v4013
    %4054 = vmatprep.subr.mxu0 0.0
    %4055 = vmatpush2.msra.mxu0 0.0
    %4056 = vmatprep.subr.mxu0 0.0
    %4057 = vmatpush2.msra.mxu0 0.0
    %4058 = vmatprep.subr.mxu0 0.0
    %4059 = vmatpush2.msra.mxu0 0.0
    %4060 = vmatprep.subr.mxu0 0.0
    %4061 = vmatpush2.msra.mxu0 0.0
    %4062 = vmatprep.subr.mxu0 0.0
    %4063 = vmatpush2.msra.mxu0 0.0
    %4064 = vmatprep.subr.mxu0 0.0
    %4065 = vmatpush2.msra.mxu0 0.0
    %4066 = vmatprep.subr.mxu0 0.0
    %4067 = vmatpush2.msra.mxu0 0.0
    %4068 = vmatprep.subr.mxu0 0.0
    %4069 = vmatpush2.msra.mxu0 0.0
    %4070 = vmatprep.subr.mxu0 0.0
    %4071 = vmatpush2.msra.mxu0 0.0
    %4072 = vmatprep.subr.mxu0 0.0
    %4073 = vmatpush2.msra.mxu0 0.0
    %4074 = vmatprep.subr.mxu0 0.0
    %4075 = vmatpush2.msra.mxu0 0.0
    %4076 = vmatprep.subr.mxu0 0.0
    %4077 = vmatpush2.msra.mxu0 0.0
    %4078 = vmatprep.subr.mxu0 0.0
    %4079 = vmatpush2.msra.mxu0 0.0
    %4080 = vmatprep.subr.mxu0 0.0
    %4081 = vmatpush2.msra.mxu0 0.0
    %4082 = vmatprep.subr.mxu0 0.0
    %4083 = vmatpush2.msra.mxu0 0.0
    %4084 = vmatprep.subr.mxu0 0.0
    %4085 = vmatpush2.msra.mxu0 0.0
    %4086 = vmatprep.mubr.f32.mxu0 0.0
    %4087 = vmatmul.mubr.f32.gmra.mxu0 %v4020
    %v4088 = vpop.f32.mrf.mxu0
    %v4089 = vadd.f32 %v3859, %v4088
    %v4090 = vpop.f32.mrf.mxu0
    %4091 = vdwg.mxu0
    %v4092 = vadd.f32 %v4089, %v71
    %v4093 = vxor.u32 %v4092, 2147483648
    %v4094 = vmul.f32 %v4093, 1.442695
    %v4095 = vpow.pop %v4094
    %v4096 = vadd.f32 %v4095, 1.0
    %v4097 = vrcp.pop %v4096
    %v4098 = vmul.f32 1.0, %v4097
    %v4099 = vtanh.pop %v4092
    %v4100 = vmul.f32 %v4098, %v3598
    %4102 = vrot.lane.b32.xlu0 %v4099, 64
    %v4103 = vpop.permute.xlu0 %4102
    %v4105 = vmul.f32 %v4098, %v4103
    %4107 = vrot.lane.b32.xlu0 %v4105, 32
    %v4108 = vpop.permute.xlu0 %4107
    %v4110 = vadd.f32 %v4100, %v4108
    %v4111 = vtanh.pop %v4110
    %4113 = vrot.lane.b32.xlu0 %v4111, 64
    %v4114 = vpop.permute.xlu0 %4113
    %v4116 = vmul.f32 %v4098, %v4114
    %v4117 = vld [vmem:[%s10] sm:$0xff]
    %v4118 = vld [vmem:[%s10 + $0x8] sm:$0xff]
    %v4119 = vld [vmem:[%s10 + $0x10] sm:$0xff]
    %v4120 = vld [vmem:[%s10 + $0x18] sm:$0xff]
    %4122 = vrot.lane.b32.xlu0 %v4116, 32
    %v4123 = vpop.permute.xlu0 %4122
    %v4124 = vsel %vm109, %v4123, 0
    %4126 = vmatprep.subr.mxu0 0.0
    %4127 = vmatpush1.msra.mxu0 0.0
    %4128 = vmatprep.subr.mxu0 0.0
    %4129 = vmatpush1.msra.mxu0 0.0
    %4130 = vmatprep.subr.mxu0 0.0
    %4131 = vmatpush1.msra.mxu0 0.0
    %4132 = vmatprep.subr.mxu0 0.0
    %4133 = vmatpush1.msra.mxu0 0.0
    %4134 = vmatprep.subr.mxu0 0.0
    %4135 = vmatpush1.msra.mxu0 0.0
    %4136 = vmatprep.subr.mxu0 0.0
    %4137 = vmatpush1.msra.mxu0 0.0
    %4138 = vmatprep.subr.mxu0 0.0
    %4139 = vmatpush1.msra.mxu0 0.0
    %4140 = vmatprep.subr.mxu0 0.0
    %4141 = vmatpush1.msra.mxu0 0.0
    %4142 = vmatprep.subr.mxu0 0.0
    %4143 = vmatpush1.msra.mxu0 0.0
    %4144 = vmatprep.subr.mxu0 0.0
    %4145 = vmatpush1.msra.mxu0 0.0
    %4146 = vmatprep.subr.mxu0 0.0
    %4147 = vmatpush1.msra.mxu0 0.0
    %4148 = vmatprep.subr.mxu0 0.0
    %4149 = vmatpush1.msra.mxu0 0.0
    %4150 = vmatprep.subr.mxu0 0.0
    %4151 = vmatpush1.msra.mxu0 %v4120
    %4152 = vmatprep.subr.mxu0 0.0
    %4153 = vmatpush1.msra.mxu0 %v4119
    %4154 = vmatprep.subr.mxu0 0.0
    %4155 = vmatpush1.msra.mxu0 %v4118
    %4156 = vmatprep.subr.mxu0 0.0
    %4157 = vmatpush1.msra.mxu0 %v4117
    %4158 = vmatprep.subr.mxu0 0.0
    %4159 = vmatpush2.msra.mxu0 0.0
    %4160 = vmatprep.subr.mxu0 0.0
    %4161 = vmatpush2.msra.mxu0 0.0
    %4162 = vmatprep.subr.mxu0 0.0
    %4163 = vmatpush2.msra.mxu0 0.0
    %4164 = vmatprep.subr.mxu0 0.0
    %4165 = vmatpush2.msra.mxu0 0.0
    %4166 = vmatprep.subr.mxu0 0.0
    %4167 = vmatpush2.msra.mxu0 0.0
    %4168 = vmatprep.subr.mxu0 0.0
    %4169 = vmatpush2.msra.mxu0 0.0
    %4170 = vmatprep.subr.mxu0 0.0
    %4171 = vmatpush2.msra.mxu0 0.0
    %4172 = vmatprep.subr.mxu0 0.0
    %4173 = vmatpush2.msra.mxu0 0.0
    %4174 = vmatprep.subr.mxu0 0.0
    %4175 = vmatpush2.msra.mxu0 0.0
    %4176 = vmatprep.subr.mxu0 0.0
    %4177 = vmatpush2.msra.mxu0 0.0
    %4178 = vmatprep.subr.mxu0 0.0
    %4179 = vmatpush2.msra.mxu0 0.0
    %4180 = vmatprep.subr.mxu0 0.0
    %4181 = vmatpush2.msra.mxu0 0.0
    %4182 = vmatprep.subr.mxu0 0.0
    %4183 = vmatpush2.msra.mxu0 0.0
    %4184 = vmatprep.subr.mxu0 0.0
    %4185 = vmatpush2.msra.mxu0 0.0
    %4186 = vmatprep.subr.mxu0 0.0
    %4187 = vmatpush2.msra.mxu0 0.0
    %4188 = vmatprep.subr.mxu0 0.0
    %4189 = vmatpush2.msra.mxu0 0.0
    %4190 = vmatprep.mubr.f32.mxu0 0.0
    %4191 = vmatmul.mubr.f32.gmra.mxu0 %v4124
    %v4192 = vpop.f32.mrf.mxu0
    %v4193 = vadd.f32 %v78, %v4192
    %v4194 = vpop.f32.mrf.mxu0
    %4195 = vdwg.mxu0
    %v4196 = vxor.u32 %v4193, 2147483648
    %v4197 = vmul.f32 %v4196, 1.442695
    %v4198 = vpow.pop %v4197
    %v4199 = vadd.f32 %v4198, 1.0
    %v4200 = vrcp.pop %v4199
    %v4201 = vmul.f32 1.0, %v4200
    %v4202 = vtanh.pop %v4193
    %v4203 = vmul.f32 %v4201, %v4110
    %4205 = vrot.lane.b32.xlu0 %v4202, 64
    %v4206 = vpop.permute.xlu0 %4205
    %v4208 = vmul.f32 %v4201, %v4206
    %4210 = vrot.lane.b32.xlu0 %v4208, 32
    %v4211 = vpop.permute.xlu0 %4210
    %v4213 = vadd.f32 %v4203, %v4211
    %v4214 = vtanh.pop %v4213
    %4216 = vrot.lane.b32.xlu0 %v4214, 64
    %v4217 = vpop.permute.xlu0 %4216
    %v4219 = vmul.f32 %v4201, %v4217
    %v4220 = vld [vmem:[%s12] sm:$0xff]
    %v4221 = vld [vmem:[%s12 + $0x8] sm:$0xff]
    %v4222 = vld [vmem:[%s12 + $0x10] sm:$0xff]
    %v4223 = vld [vmem:[%s12 + $0x18] sm:$0xff]
    %4225 = vrot.lane.b32.xlu0 %v4219, 32
    %v4226 = vpop.permute.xlu0 %4225
    %v4227 = vsel %vm109, %v4226, 0
    %4229 = vmatprep.subr.mxu0 0.0
    %4230 = vmatpush1.msra.mxu0 0.0
    %4231 = vmatprep.subr.mxu0 0.0
    %4232 = vmatpush1.msra.mxu0 0.0
    %4233 = vmatprep.subr.mxu0 0.0
    %4234 = vmatpush1.msra.mxu0 0.0
    %4235 = vmatprep.subr.mxu0 0.0
    %4236 = vmatpush1.msra.mxu0 0.0
    %4237 = vmatprep.subr.mxu0 0.0
    %4238 = vmatpush1.msra.mxu0 0.0
    %4239 = vmatprep.subr.mxu0 0.0
    %4240 = vmatpush1.msra.mxu0 0.0
    %4241 = vmatprep.subr.mxu0 0.0
    %4242 = vmatpush1.msra.mxu0 0.0
    %4243 = vmatprep.subr.mxu0 0.0
    %4244 = vmatpush1.msra.mxu0 0.0
    %4245 = vmatprep.subr.mxu0 0.0
    %4246 = vmatpush1.msra.mxu0 0.0
    %4247 = vmatprep.subr.mxu0 0.0
    %4248 = vmatpush1.msra.mxu0 0.0
    %4249 = vmatprep.subr.mxu0 0.0
    %4250 = vmatpush1.msra.mxu0 0.0
    %4251 = vmatprep.subr.mxu0 0.0
    %4252 = vmatpush1.msra.mxu0 0.0
    %4253 = vmatprep.subr.mxu0 0.0
    %4254 = vmatpush1.msra.mxu0 %v4223
    %4255 = vmatprep.subr.mxu0 0.0
    %4256 = vmatpush1.msra.mxu0 %v4222
    %4257 = vmatprep.subr.mxu0 0.0
    %4258 = vmatpush1.msra.mxu0 %v4221
    %4259 = vmatprep.subr.mxu0 0.0
    %4260 = vmatpush1.msra.mxu0 %v4220
    %4261 = vmatprep.subr.mxu0 0.0
    %4262 = vmatpush2.msra.mxu0 0.0
    %4263 = vmatprep.subr.mxu0 0.0
    %4264 = vmatpush2.msra.mxu0 0.0
    %4265 = vmatprep.subr.mxu0 0.0
    %4266 = vmatpush2.msra.mxu0 0.0
    %4267 = vmatprep.subr.mxu0 0.0
    %4268 = vmatpush2.msra.mxu0 0.0
    %4269 = vmatprep.subr.mxu0 0.0
    %4270 = vmatpush2.msra.mxu0 0.0
    %4271 = vmatprep.subr.mxu0 0.0
    %4272 = vmatpush2.msra.mxu0 0.0
    %4273 = vmatprep.subr.mxu0 0.0
    %4274 = vmatpush2.msra.mxu0 0.0
    %4275 = vmatprep.subr.mxu0 0.0
    %4276 = vmatpush2.msra.mxu0 0.0
    %4277 = vmatprep.subr.mxu0 0.0
    %4278 = vmatpush2.msra.mxu0 0.0
    %4279 = vmatprep.subr.mxu0 0.0
    %4280 = vmatpush2.msra.mxu0 0.0
    %4281 = vmatprep.subr.mxu0 0.0
    %4282 = vmatpush2.msra.mxu0 0.0
    %4283 = vmatprep.subr.mxu0 0.0
    %4284 = vmatpush2.msra.mxu0 0.0
    %4285 = vmatprep.subr.mxu0 0.0
    %4286 = vmatpush2.msra.mxu0 0.0
    %4287 = vmatprep.subr.mxu0 0.0
    %4288 = vmatpush2.msra.mxu0 0.0
    %4289 = vmatprep.subr.mxu0 0.0
    %4290 = vmatpush2.msra.mxu0 0.0
    %4291 = vmatprep.subr.mxu0 0.0
    %4292 = vmatpush2.msra.mxu0 0.0
    %4293 = vmatprep.mubr.f32.mxu0 0.0
    %4294 = vmatmul.mubr.f32.gmra.mxu0 %v4227
    %v4295 = vpop.f32.mrf.mxu0
    %v4296 = vadd.f32 %v85, %v4295
    %v4297 = vpop.f32.mrf.mxu0
    %4298 = vdwg.mxu0
    %v4299 = vxor.u32 %v4296, 2147483648
    %v4300 = vmul.f32 %v4299, 1.442695
    %v4301 = vpow.pop %v4300
    %v4302 = vadd.f32 %v4301, 1.0
    %v4303 = vrcp.pop %v4302
    %v4304 = vmul.f32 1.0, %v4303
    %v4305 = vtanh.pop %v4296
    %v4306 = vmul.f32 %v4304, %v4213
    %4308 = vrot.lane.b32.xlu0 %v4305, 64
    %v4309 = vpop.permute.xlu0 %4308
    %v4311 = vmul.f32 %v4304, %v4309
    %4313 = vrot.lane.b32.xlu0 %v4311, 32
    %v4314 = vpop.permute.xlu0 %4313
    %v4316 = vadd.f32 %v4306, %v4314
    %v4317 = vtanh.pop %v4316
    %4319 = vrot.lane.b32.xlu0 %v4317, 64
    %v4320 = vpop.permute.xlu0 %4319
    %v4322 = vmul.f32 %v4304, %v4320
    %4324 = vrot.lane.b32.xlu0 %v4322, 32
    %v4325 = vpop.permute.xlu0 %4324
    %v4326 = vsel %vm109, %v4325, 0
    %4328 = vmatprep.subr.mxu0 0.0
    %4329 = vmatpush1.msra.mxu0 0.0
    %4330 = vmatprep.subr.mxu0 0.0
    %4331 = vmatpush1.msra.mxu0 0.0
    %4332 = vmatprep.subr.mxu0 0.0
    %4333 = vmatpush1.msra.mxu0 0.0
    %4334 = vmatprep.subr.mxu0 0.0
    %4335 = vmatpush1.msra.mxu0 0.0
    %4336 = vmatprep.subr.mxu0 0.0
    %4337 = vmatpush1.msra.mxu0 0.0
    %4338 = vmatprep.subr.mxu0 0.0
    %4339 = vmatpush1.msra.mxu0 0.0
    %4340 = vmatprep.subr.mxu0 0.0
    %4341 = vmatpush1.msra.mxu0 0.0
    %4342 = vmatprep.subr.mxu0 0.0
    %4343 = vmatpush1.msra.mxu0 0.0
    %4344 = vmatprep.subr.mxu0 0.0
    %4345 = vmatpush1.msra.mxu0 0.0
    %4346 = vmatprep.subr.mxu0 0.0
    %4347 = vmatpush1.msra.mxu0 0.0
    %4348 = vmatprep.subr.mxu0 0.0
    %4349 = vmatpush1.msra.mxu0 0.0
    %4350 = vmatprep.subr.mxu0 0.0
    %4351 = vmatpush1.msra.mxu0 0.0
    %4352 = vmatprep.subr.mxu0 0.0
    %4353 = vmatpush1.msra.mxu0 %v101
    %4354 = vmatprep.subr.mxu0 0.0
    %4355 = vmatpush1.msra.mxu0 %v100
    %4356 = vmatprep.subr.mxu0 0.0
    %4357 = vmatpush1.msra.mxu0 %v99
    %4358 = vmatprep.subr.mxu0 0.0
    %4359 = vmatpush1.msra.mxu0 %v98
    %4360 = vmatprep.subr.mxu0 0.0
    %4361 = vmatpush2.msra.mxu0 0.0
    %4362 = vmatprep.subr.mxu0 0.0
    %4363 = vmatpush2.msra.mxu0 0.0
    %4364 = vmatprep.subr.mxu0 0.0
    %4365 = vmatpush2.msra.mxu0 0.0
    %4366 = vmatprep.subr.mxu0 0.0
    %4367 = vmatpush2.msra.mxu0 0.0
    %4368 = vmatprep.subr.mxu0 0.0
    %4369 = vmatpush2.msra.mxu0 0.0
    %4370 = vmatprep.subr.mxu0 0.0
    %4371 = vmatpush2.msra.mxu0 0.0
    %4372 = vmatprep.subr.mxu0 0.0
    %4373 = vmatpush2.msra.mxu0 0.0
    %4374 = vmatprep.subr.mxu0 0.0
    %4375 = vmatpush2.msra.mxu0 0.0
    %4376 = vmatprep.subr.mxu0 0.0
    %4377 = vmatpush2.msra.mxu0 0.0
    %4378 = vmatprep.subr.mxu0 0.0
    %4379 = vmatpush2.msra.mxu0 0.0
    %4380 = vmatprep.subr.mxu0 0.0
    %4381 = vmatpush2.msra.mxu0 0.0
    %4382 = vmatprep.subr.mxu0 0.0
    %4383 = vmatpush2.msra.mxu0 0.0
    %4384 = vmatprep.subr.mxu0 0.0
    %4385 = vmatpush2.msra.mxu0 0.0
    %4386 = vmatprep.subr.mxu0 0.0
    %4387 = vmatpush2.msra.mxu0 0.0
    %4388 = vmatprep.subr.mxu0 0.0
    %4389 = vmatpush2.msra.mxu0 0.0
    %4390 = vmatprep.subr.mxu0 0.0
    %4391 = vmatpush2.msra.mxu0 0.0
    %4392 = vmatprep.mubr.f32.mxu0 0.0
    %4393 = vmatmul.mubr.f32.gmra.mxu0 %v4326
    %v4394 = vpop.f32.mrf.mxu0
    %v4395 = vadd.f32 %v92, %v4394
    %v4396 = vpop.f32.mrf.mxu0
    %4397 = vdwg.mxu0
    %v4398 = vmax.f32 %v4395, 0.0
    %v4401 = vunpack.c.l.s4 1966171168
    %v4402 = vunpack.c.0.s8 %v4401
    %v4403 = vlaneseq
    %v4404 = vshrl.u32 %v4403, 7
    %v4405 = vsub.s32 %v4402, %v4404
    %v4406 = vrot.slane %v4398, %v4405
    %v4407 = vcombine.high %v4406, %v4406
    %v4409 = vunpack.c.l.s4 1966171168
    %v4410 = vunpack.c.0.s8 %v4409
    %v4411 = vlaneseq
    %v4412 = vshrl.u32 %v4411, 7
    %v4413 = vsub.s32 %v4410, %v4412
    %v4414 = vrot.slane %v4406, %v4413
    %v4416 = vunpack.c.l.s4 1966171168
    %v4417 = vunpack.c.0.s8 %v4416
    %v4418 = vlaneseq
    %v4419 = vshrl.u32 %v4418, 7
    %v4420 = vsub.s32 %v4417, %v4419
    %v4421 = vrot.slane %v4407, %v4420
    %4424 = vst.msk [vmem:[#allocation2 + $0x5] sm:$0x1] %vm833, %v4414
    %4425 = vst.msk [vmem:[#allocation2 + $0xd] sm:$0x1] %vm833, %v4421
    %v4426 = vld [vmem:[%s4] sm:$0xff]
    %v4427 = vld [vmem:[%s4 + $0x8] sm:$0xff]
    %v4428 = vld [vmem:[%s4 + $0x10] sm:$0xff]
    %v4429 = vld [vmem:[%s4 + $0x18] sm:$0xff]
    %v4430 = vsel %vm109, %v4398, 0
    %4432 = vmatprep.subr.mxu0 0.0
    %4433 = vmatpush1.msra.mxu0 0.0
    %4434 = vmatprep.subr.mxu0 0.0
    %4435 = vmatpush1.msra.mxu0 0.0
    %4436 = vmatprep.subr.mxu0 0.0
    %4437 = vmatpush1.msra.mxu0 0.0
    %4438 = vmatprep.subr.mxu0 0.0
    %4439 = vmatpush1.msra.mxu0 0.0
    %4440 = vmatprep.subr.mxu0 0.0
    %4441 = vmatpush1.msra.mxu0 0.0
    %4442 = vmatprep.subr.mxu0 0.0
    %4443 = vmatpush1.msra.mxu0 0.0
    %4444 = vmatprep.subr.mxu0 0.0
    %4445 = vmatpush1.msra.mxu0 0.0
    %4446 = vmatprep.subr.mxu0 0.0
    %4447 = vmatpush1.msra.mxu0 0.0
    %4448 = vmatprep.subr.mxu0 0.0
    %4449 = vmatpush1.msra.mxu0 0.0
    %4450 = vmatprep.subr.mxu0 0.0
    %4451 = vmatpush1.msra.mxu0 0.0
    %4452 = vmatprep.subr.mxu0 0.0
    %4453 = vmatpush1.msra.mxu0 0.0
    %4454 = vmatprep.subr.mxu0 0.0
    %4455 = vmatpush1.msra.mxu0 0.0
    %4456 = vmatprep.subr.mxu0 0.0
    %4457 = vmatpush1.msra.mxu0 %v4429
    %4458 = vmatprep.subr.mxu0 0.0
    %4459 = vmatpush1.msra.mxu0 %v4428
    %4460 = vmatprep.subr.mxu0 0.0
    %4461 = vmatpush1.msra.mxu0 %v4427
    %4462 = vmatprep.subr.mxu0 0.0
    %4463 = vmatpush1.msra.mxu0 %v4426
    %4464 = vmatprep.subr.mxu0 0.0
    %4465 = vmatpush2.msra.mxu0 0.0
    %4466 = vmatprep.subr.mxu0 0.0
    %4467 = vmatpush2.msra.mxu0 0.0
    %4468 = vmatprep.subr.mxu0 0.0
    %4469 = vmatpush2.msra.mxu0 0.0
    %4470 = vmatprep.subr.mxu0 0.0
    %4471 = vmatpush2.msra.mxu0 0.0
    %4472 = vmatprep.subr.mxu0 0.0
    %4473 = vmatpush2.msra.mxu0 0.0
    %4474 = vmatprep.subr.mxu0 0.0
    %4475 = vmatpush2.msra.mxu0 0.0
    %4476 = vmatprep.subr.mxu0 0.0
    %4477 = vmatpush2.msra.mxu0 0.0
    %4478 = vmatprep.subr.mxu0 0.0
    %4479 = vmatpush2.msra.mxu0 0.0
    %4480 = vmatprep.subr.mxu0 0.0
    %4481 = vmatpush2.msra.mxu0 0.0
    %4482 = vmatprep.subr.mxu0 0.0
    %4483 = vmatpush2.msra.mxu0 0.0
    %4484 = vmatprep.subr.mxu0 0.0
    %4485 = vmatpush2.msra.mxu0 0.0
    %4486 = vmatprep.subr.mxu0 0.0
    %4487 = vmatpush2.msra.mxu0 0.0
    %4488 = vmatprep.subr.mxu0 0.0
    %4489 = vmatpush2.msra.mxu0 0.0
    %4490 = vmatprep.subr.mxu0 0.0
    %4491 = vmatpush2.msra.mxu0 0.0
    %4492 = vmatprep.subr.mxu0 0.0
    %4493 = vmatpush2.msra.mxu0 0.0
    %4494 = vmatprep.subr.mxu0 0.0
    %4495 = vmatpush2.msra.mxu0 0.0
    %4496 = vmatprep.mubr.f32.mxu0 0.0
    %4497 = vmatmul.mubr.f32.gmra.mxu0 %v4430
    %v4498 = vpop.f32.mrf.mxu0
    %v4499 = vadd.f32 %v64, %v4498
    %v4500 = vpop.f32.mrf.mxu0
    %4501 = vdwg.mxu0
    %v4502 = vld [vmem:[%s7] sm:$0xff]
    %v4503 = vld [vmem:[%s7 + $0x8] sm:$0xff]
    %v4504 = vld [vmem:[%s7 + $0x10] sm:$0xff]
    %v4505 = vld [vmem:[%s7 + $0x18] sm:$0xff]
    %v4506 = vld [vmem:[%s7 + $0x20] sm:$0xff]
    %v4507 = vld [vmem:[%s7 + $0x28] sm:$0xff]
    %v4508 = vld [vmem:[%s7 + $0x30] sm:$0xff]
    %v4509 = vld [vmem:[%s7 + $0x38] sm:$0xff]
    %4510 = vmatprep.subr.mxu0 0.0
    %4511 = vmatpush1.msra.mxu0 0.0
    %4512 = vmatprep.subr.mxu0 0.0
    %4513 = vmatpush1.msra.mxu0 0.0
    %4514 = vmatprep.subr.mxu0 0.0
    %4515 = vmatpush1.msra.mxu0 0.0
    %4516 = vmatprep.subr.mxu0 0.0
    %4517 = vmatpush1.msra.mxu0 0.0
    %4518 = vmatprep.subr.mxu0 0.0
    %4519 = vmatpush1.msra.mxu0 0.0
    %4520 = vmatprep.subr.mxu0 0.0
    %4521 = vmatpush1.msra.mxu0 0.0
    %4522 = vmatprep.subr.mxu0 0.0
    %4523 = vmatpush1.msra.mxu0 0.0
    %4524 = vmatprep.subr.mxu0 0.0
    %4525 = vmatpush1.msra.mxu0 0.0
    %4526 = vmatprep.subr.mxu0 0.0
    %4527 = vmatpush1.msra.mxu0 0.0
    %4528 = vmatprep.subr.mxu0 0.0
    %4529 = vmatpush1.msra.mxu0 0.0
    %4530 = vmatprep.subr.mxu0 0.0
    %4531 = vmatpush1.msra.mxu0 0.0
    %4532 = vmatprep.subr.mxu0 0.0
    %4533 = vmatpush1.msra.mxu0 0.0
    %4534 = vmatprep.subr.mxu0 %v4509
    %4535 = vmatpush1.msra.mxu0 %v4508
    %4536 = vmatprep.subr.mxu0 %v4507
    %4537 = vmatpush1.msra.mxu0 %v4506
    %4538 = vmatprep.subr.mxu0 %v4505
    %4539 = vmatpush1.msra.mxu0 %v4504
    %4540 = vmatprep.subr.mxu0 %v4503
    %4541 = vmatpush1.msra.mxu0 %v4502
    %4542 = vmatprep.subr.mxu0 0.0
    %4543 = vmatpush2.msra.mxu0 0.0
    %4544 = vmatprep.subr.mxu0 0.0
    %4545 = vmatpush2.msra.mxu0 0.0
    %4546 = vmatprep.subr.mxu0 0.0
    %4547 = vmatpush2.msra.mxu0 0.0
    %4548 = vmatprep.subr.mxu0 0.0
    %4549 = vmatpush2.msra.mxu0 0.0
    %4550 = vmatprep.subr.mxu0 0.0
    %4551 = vmatpush2.msra.mxu0 0.0
    %4552 = vmatprep.subr.mxu0 0.0
    %4553 = vmatpush2.msra.mxu0 0.0
    %4554 = vmatprep.subr.mxu0 0.0
    %4555 = vmatpush2.msra.mxu0 0.0
    %4556 = vmatprep.subr.mxu0 0.0
    %4557 = vmatpush2.msra.mxu0 0.0
    %4558 = vmatprep.subr.mxu0 0.0
    %4559 = vmatpush2.msra.mxu0 0.0
    %4560 = vmatprep.subr.mxu0 0.0
    %4561 = vmatpush2.msra.mxu0 0.0
    %4562 = vmatprep.subr.mxu0 0.0
    %4563 = vmatpush2.msra.mxu0 0.0
    %4564 = vmatprep.subr.mxu0 0.0
    %4565 = vmatpush2.msra.mxu0 0.0
    %4566 = vmatprep.subr.mxu0 0.0
    %4567 = vmatpush2.msra.mxu0 0.0
    %4568 = vmatprep.subr.mxu0 0.0
    %4569 = vmatpush2.msra.mxu0 0.0
    %4570 = vmatprep.subr.mxu0 0.0
    %4571 = vmatpush2.msra.mxu0 0.0
    %4572 = vmatprep.subr.mxu0 0.0
    %4573 = vmatpush2.msra.mxu0 0.0
    %4574 = vmatprep.mubr.f32.mxu0 0.0
    %4575 = vmatmul.mubr.f32.gmra.mxu0 %v4326
    %v4576 = vpop.f32.mrf.mxu0
    %v4577 = vadd.f32 0.0, %v4576
    %v4578 = vpop.f32.mrf.mxu0
    %v4579 = vadd.f32 0.0, %v4578
    %4580 = vdwg.mxu0
    %v4581 = vadd.f32 %v4499, %v4579
    %v4582 = vsel %vm266, %v4581, -inf
    %4583 = vmax.xlane.f32.xlu0 %v4582
    %v4584 = vpop.xlane.xlu0 %4583
    %v4585 = vsub.f32 %v4581, %v4584
    %v4586 = vmul.f32 %v4585, 1.442695
    %v4587 = vpow.pop %v4586
    %v4588 = vsel %vm266, %v4587, 0.0
    %4589 = vadd.xlane.f32.xlu0 %v4588
    %v4590 = vpop.xlane.xlu0 %4589
    %v4591 = vrcp.pop %v4590
    %v4592 = vmul.f32 %v4587, %v4591
    %v4595 = vunpack.c.l.s4 1966171168
    %v4596 = vunpack.c.0.s8 %v4595
    %v4597 = vlaneseq
    %v4598 = vshrl.u32 %v4597, 7
    %v4599 = vsub.s32 %v4596, %v4598
    %v4600 = vrot.slane %v4592, %v4599
    %v4601 = vcombine.high %v4600, %v4600
    %v4603 = vunpack.c.l.s4 1966171168
    %v4604 = vunpack.c.0.s8 %v4603
    %v4605 = vlaneseq
    %v4606 = vshrl.u32 %v4605, 7
    %v4607 = vsub.s32 %v4604, %v4606
    %v4608 = vrot.slane %v4600, %v4607
    %v4610 = vunpack.c.l.s4 1966171168
    %v4611 = vunpack.c.0.s8 %v4610
    %v4612 = vlaneseq
    %v4613 = vshrl.u32 %v4612, 7
    %v4614 = vsub.s32 %v4611, %v4613
    %v4615 = vrot.slane %v4601, %v4614
    %4618 = vst.msk [vmem:[#allocation4 + $0x6] sm:$0x1] %vm303, %v4608
    %4619 = vst.msk [vmem:[#allocation4 + $0xe] sm:$0x1] %vm303, %v4615
    %v4620 = vlaneseq
    %v4621 = vshrl.u32 %v4620, 7
    %v4622 = vsub.s32 0, %v4621
    %v4623 = vrot.slane %v4592, %v4622
    %4625 = vbcast.lane.b32.xlu0 %v4623, 256
    %v4626 = vpop.permute.xlu0 %4625
    %v4627 = vlaneseq
    %v4628 = vshrl.u32 %v4627, 7
    %v4629 = vsub.s32 1, %v4628
    %v4630 = vrot.slane %v4592, %v4629
    %4632 = vbcast.lane.b32.xlu0 %v4630, 256
    %v4633 = vpop.permute.xlu0 %4632
    %v4634 = vmul.f32 %v4626, %v57
    %v4635 = vmul.f32 %v4633, %v58
    %v4636 = vsel %vm109, %v4634, 0.0
    %v4637 = vrot.slane %v4636, 4
    %v4638 = vadd.f32 %v4636, %v4637
    %v4639 = vrot.slane %v4638, 2
    %v4640 = vadd.f32 %v4638, %v4639
    %v4641 = vrot.slane %v4640, 1
    %v4642 = vadd.f32 %v4640, %v4641
    %v4643 = vsel %vm109, %v4635, 0.0
    %v4644 = vrot.slane %v4643, 4
    %v4645 = vadd.f32 %v4643, %v4644
    %v4646 = vrot.slane %v4645, 2
    %v4647 = vadd.f32 %v4645, %v4646
    %v4648 = vrot.slane %v4647, 1
    %v4649 = vadd.f32 %v4647, %v4648
    %v4652 = vsel %vm338, %v4649, %v4642
    %v4653 = vsel %vm109, %v4652, 0
    %4655 = vmatprep.subr.mxu0 0.0
    %4656 = vmatpush1.msra.mxu0 0.0
    %4657 = vmatprep.subr.mxu0 0.0
    %4658 = vmatpush1.msra.mxu0 0.0
    %4659 = vmatprep.subr.mxu0 0.0
    %4660 = vmatpush1.msra.mxu0 0.0
    %4661 = vmatprep.subr.mxu0 0.0
    %4662 = vmatpush1.msra.mxu0 0.0
    %4663 = vmatprep.subr.mxu0 0.0
    %4664 = vmatpush1.msra.mxu0 0.0
    %4665 = vmatprep.subr.mxu0 0.0
    %4666 = vmatpush1.msra.mxu0 0.0
    %4667 = vmatprep.subr.mxu0 0.0
    %4668 = vmatpush1.msra.mxu0 0.0
    %4669 = vmatprep.subr.mxu0 0.0
    %4670 = vmatpush1.msra.mxu0 0.0
    %4671 = vmatprep.subr.mxu0 0.0
    %4672 = vmatpush1.msra.mxu0 0.0
    %4673 = vmatprep.subr.mxu0 0.0
    %4674 = vmatpush1.msra.mxu0 0.0
    %4675 = vmatprep.subr.mxu0 0.0
    %4676 = vmatpush1.msra.mxu0 0.0
    %4677 = vmatprep.subr.mxu0 0.0
    %4678 = vmatpush1.msra.mxu0 0.0
    %4679 = vmatprep.subr.mxu0 0.0
    %4680 = vmatpush1.msra.mxu0 %v97
    %4681 = vmatprep.subr.mxu0 0.0
    %4682 = vmatpush1.msra.mxu0 %v96
    %4683 = vmatprep.subr.mxu0 0.0
    %4684 = vmatpush1.msra.mxu0 %v95
    %4685 = vmatprep.subr.mxu0 0.0
    %4686 = vmatpush1.msra.mxu0 %v94
    %4687 = vmatprep.subr.mxu0 0.0
    %4688 = vmatpush2.msra.mxu0 0.0
    %4689 = vmatprep.subr.mxu0 0.0
    %4690 = vmatpush2.msra.mxu0 0.0
    %4691 = vmatprep.subr.mxu0 0.0
    %4692 = vmatpush2.msra.mxu0 0.0
    %4693 = vmatprep.subr.mxu0 0.0
    %4694 = vmatpush2.msra.mxu0 0.0
    %4695 = vmatprep.subr.mxu0 0.0
    %4696 = vmatpush2.msra.mxu0 0.0
    %4697 = vmatprep.subr.mxu0 0.0
    %4698 = vmatpush2.msra.mxu0 0.0
    %4699 = vmatprep.subr.mxu0 0.0
    %4700 = vmatpush2.msra.mxu0 0.0
    %4701 = vmatprep.subr.mxu0 0.0
    %4702 = vmatpush2.msra.mxu0 0.0
    %4703 = vmatprep.subr.mxu0 0.0
    %4704 = vmatpush2.msra.mxu0 0.0
    %4705 = vmatprep.subr.mxu0 0.0
    %4706 = vmatpush2.msra.mxu0 0.0
    %4707 = vmatprep.subr.mxu0 0.0
    %4708 = vmatpush2.msra.mxu0 0.0
    %4709 = vmatprep.subr.mxu0 0.0
    %4710 = vmatpush2.msra.mxu0 0.0
    %4711 = vmatprep.subr.mxu0 0.0
    %4712 = vmatpush2.msra.mxu0 0.0
    %4713 = vmatprep.subr.mxu0 0.0
    %4714 = vmatpush2.msra.mxu0 0.0
    %4715 = vmatprep.subr.mxu0 0.0
    %4716 = vmatpush2.msra.mxu0 0.0
    %4717 = vmatprep.subr.mxu0 0.0
    %4718 = vmatpush2.msra.mxu0 0.0
    %4719 = vmatprep.mubr.f32.mxu0 0.0
    %4720 = vmatmul.mubr.f32.gmra.mxu0 %v4653
    %v4721 = vpop.f32.mrf.mxu0
    %v4722 = vadd.f32 0.0, %v4721
    %v4723 = vpop.f32.mrf.mxu0
    %4724 = vdwg.mxu0
    %4726 = vrot.lane.b32.xlu0 %v4722, 8
    %v4727 = vpop.permute.xlu0 %4726
    %v4729 = vadd.f32 %v4499, %v4727
    %v4730 = vmax.f32 %v4729, 0.0
    %v4731 = vld [vmem:[%s8] sm:$0xff]
    %v4732 = vld [vmem:[%s8 + $0x8] sm:$0xff]
    %v4733 = vld [vmem:[%s8 + $0x10] sm:$0xff]
    %v4734 = vld [vmem:[%s8 + $0x18] sm:$0xff]
    %4736 = vrot.lane.b32.xlu0 %v4730, 120
    %v4737 = vpop.permute.xlu0 %4736
    %v4738 = vsel %vm109, %v4737, 0
    %4740 = vmatprep.subr.mxu0 0.0
    %4741 = vmatpush1.msra.mxu0 0.0
    %4742 = vmatprep.subr.mxu0 0.0
    %4743 = vmatpush1.msra.mxu0 0.0
    %4744 = vmatprep.subr.mxu0 0.0
    %4745 = vmatpush1.msra.mxu0 0.0
    %4746 = vmatprep.subr.mxu0 0.0
    %4747 = vmatpush1.msra.mxu0 0.0
    %4748 = vmatprep.subr.mxu0 0.0
    %4749 = vmatpush1.msra.mxu0 0.0
    %4750 = vmatprep.subr.mxu0 0.0
    %4751 = vmatpush1.msra.mxu0 0.0
    %4752 = vmatprep.subr.mxu0 0.0
    %4753 = vmatpush1.msra.mxu0 0.0
    %4754 = vmatprep.subr.mxu0 0.0
    %4755 = vmatpush1.msra.mxu0 0.0
    %4756 = vmatprep.subr.mxu0 0.0
    %4757 = vmatpush1.msra.mxu0 0.0
    %4758 = vmatprep.subr.mxu0 0.0
    %4759 = vmatpush1.msra.mxu0 0.0
    %4760 = vmatprep.subr.mxu0 0.0
    %4761 = vmatpush1.msra.mxu0 0.0
    %4762 = vmatprep.subr.mxu0 0.0
    %4763 = vmatpush1.msra.mxu0 0.0
    %4764 = vmatprep.subr.mxu0 0.0
    %4765 = vmatpush1.msra.mxu0 %v4734
    %4766 = vmatprep.subr.mxu0 0.0
    %4767 = vmatpush1.msra.mxu0 %v4733
    %4768 = vmatprep.subr.mxu0 0.0
    %4769 = vmatpush1.msra.mxu0 %v4732
    %4770 = vmatprep.subr.mxu0 0.0
    %4771 = vmatpush1.msra.mxu0 %v4731
    %4772 = vmatprep.subr.mxu0 0.0
    %4773 = vmatpush2.msra.mxu0 0.0
    %4774 = vmatprep.subr.mxu0 0.0
    %4775 = vmatpush2.msra.mxu0 0.0
    %4776 = vmatprep.subr.mxu0 0.0
    %4777 = vmatpush2.msra.mxu0 0.0
    %4778 = vmatprep.subr.mxu0 0.0
    %4779 = vmatpush2.msra.mxu0 0.0
    %4780 = vmatprep.subr.mxu0 0.0
    %4781 = vmatpush2.msra.mxu0 0.0
    %4782 = vmatprep.subr.mxu0 0.0
    %4783 = vmatpush2.msra.mxu0 0.0
    %4784 = vmatprep.subr.mxu0 0.0
    %4785 = vmatpush2.msra.mxu0 0.0
    %4786 = vmatprep.subr.mxu0 0.0
    %4787 = vmatpush2.msra.mxu0 0.0
    %4788 = vmatprep.subr.mxu0 0.0
    %4789 = vmatpush2.msra.mxu0 0.0
    %4790 = vmatprep.subr.mxu0 0.0
    %4791 = vmatpush2.msra.mxu0 0.0
    %4792 = vmatprep.subr.mxu0 0.0
    %4793 = vmatpush2.msra.mxu0 0.0
    %4794 = vmatprep.subr.mxu0 0.0
    %4795 = vmatpush2.msra.mxu0 0.0
    %4796 = vmatprep.subr.mxu0 0.0
    %4797 = vmatpush2.msra.mxu0 0.0
    %4798 = vmatprep.subr.mxu0 0.0
    %4799 = vmatpush2.msra.mxu0 0.0
    %4800 = vmatprep.subr.mxu0 0.0
    %4801 = vmatpush2.msra.mxu0 0.0
    %4802 = vmatprep.subr.mxu0 0.0
    %4803 = vmatpush2.msra.mxu0 0.0
    %4804 = vmatprep.mubr.f32.mxu0 0.0
    %4805 = vmatmul.mubr.f32.gmra.mxu0 %v4738
    %v4806 = vpop.f32.mrf.mxu0
    %v4807 = vadd.f32 %v4577, %v4806
    %v4808 = vpop.f32.mrf.mxu0
    %4809 = vdwg.mxu0
    %v4810 = vadd.f32 %v4807, %v71
    %v4811 = vxor.u32 %v4810, 2147483648
    %v4812 = vmul.f32 %v4811, 1.442695
    %v4813 = vpow.pop %v4812
    %v4814 = vadd.f32 %v4813, 1.0
    %v4815 = vrcp.pop %v4814
    %v4816 = vmul.f32 1.0, %v4815
    %v4817 = vtanh.pop %v4810
    %v4818 = vmul.f32 %v4816, %v4316
    %4820 = vrot.lane.b32.xlu0 %v4817, 64
    %v4821 = vpop.permute.xlu0 %4820
    %v4823 = vmul.f32 %v4816, %v4821
    %4825 = vrot.lane.b32.xlu0 %v4823, 32
    %v4826 = vpop.permute.xlu0 %4825
    %v4828 = vadd.f32 %v4818, %v4826
    %v4829 = vtanh.pop %v4828
    %4831 = vrot.lane.b32.xlu0 %v4829, 64
    %v4832 = vpop.permute.xlu0 %4831
    %v4834 = vmul.f32 %v4816, %v4832
    %v4835 = vld [vmem:[%s10] sm:$0xff]
    %v4836 = vld [vmem:[%s10 + $0x8] sm:$0xff]
    %v4837 = vld [vmem:[%s10 + $0x10] sm:$0xff]
    %v4838 = vld [vmem:[%s10 + $0x18] sm:$0xff]
    %4840 = vrot.lane.b32.xlu0 %v4834, 32
    %v4841 = vpop.permute.xlu0 %4840
    %v4842 = vsel %vm109, %v4841, 0
    %4844 = vmatprep.subr.mxu0 0.0
    %4845 = vmatpush1.msra.mxu0 0.0
    %4846 = vmatprep.subr.mxu0 0.0
    %4847 = vmatpush1.msra.mxu0 0.0
    %4848 = vmatprep.subr.mxu0 0.0
    %4849 = vmatpush1.msra.mxu0 0.0
    %4850 = vmatprep.subr.mxu0 0.0
    %4851 = vmatpush1.msra.mxu0 0.0
    %4852 = vmatprep.subr.mxu0 0.0
    %4853 = vmatpush1.msra.mxu0 0.0
    %4854 = vmatprep.subr.mxu0 0.0
    %4855 = vmatpush1.msra.mxu0 0.0
    %4856 = vmatprep.subr.mxu0 0.0
    %4857 = vmatpush1.msra.mxu0 0.0
    %4858 = vmatprep.subr.mxu0 0.0
    %4859 = vmatpush1.msra.mxu0 0.0
    %4860 = vmatprep.subr.mxu0 0.0
    %4861 = vmatpush1.msra.mxu0 0.0
    %4862 = vmatprep.subr.mxu0 0.0
    %4863 = vmatpush1.msra.mxu0 0.0
    %4864 = vmatprep.subr.mxu0 0.0
    %4865 = vmatpush1.msra.mxu0 0.0
    %4866 = vmatprep.subr.mxu0 0.0
    %4867 = vmatpush1.msra.mxu0 0.0
    %4868 = vmatprep.subr.mxu0 0.0
    %4869 = vmatpush1.msra.mxu0 %v4838
    %4870 = vmatprep.subr.mxu0 0.0
    %4871 = vmatpush1.msra.mxu0 %v4837
    %4872 = vmatprep.subr.mxu0 0.0
    %4873 = vmatpush1.msra.mxu0 %v4836
    %4874 = vmatprep.subr.mxu0 0.0
    %4875 = vmatpush1.msra.mxu0 %v4835
    %4876 = vmatprep.subr.mxu0 0.0
    %4877 = vmatpush2.msra.mxu0 0.0
    %4878 = vmatprep.subr.mxu0 0.0
    %4879 = vmatpush2.msra.mxu0 0.0
    %4880 = vmatprep.subr.mxu0 0.0
    %4881 = vmatpush2.msra.mxu0 0.0
    %4882 = vmatprep.subr.mxu0 0.0
    %4883 = vmatpush2.msra.mxu0 0.0
    %4884 = vmatprep.subr.mxu0 0.0
    %4885 = vmatpush2.msra.mxu0 0.0
    %4886 = vmatprep.subr.mxu0 0.0
    %4887 = vmatpush2.msra.mxu0 0.0
    %4888 = vmatprep.subr.mxu0 0.0
    %4889 = vmatpush2.msra.mxu0 0.0
    %4890 = vmatprep.subr.mxu0 0.0
    %4891 = vmatpush2.msra.mxu0 0.0
    %4892 = vmatprep.subr.mxu0 0.0
    %4893 = vmatpush2.msra.mxu0 0.0
    %4894 = vmatprep.subr.mxu0 0.0
    %4895 = vmatpush2.msra.mxu0 0.0
    %4896 = vmatprep.subr.mxu0 0.0
    %4897 = vmatpush2.msra.mxu0 0.0
    %4898 = vmatprep.subr.mxu0 0.0
    %4899 = vmatpush2.msra.mxu0 0.0
    %4900 = vmatprep.subr.mxu0 0.0
    %4901 = vmatpush2.msra.mxu0 0.0
    %4902 = vmatprep.subr.mxu0 0.0
    %4903 = vmatpush2.msra.mxu0 0.0
    %4904 = vmatprep.subr.mxu0 0.0
    %4905 = vmatpush2.msra.mxu0 0.0
    %4906 = vmatprep.subr.mxu0 0.0
    %4907 = vmatpush2.msra.mxu0 0.0
    %4908 = vmatprep.mubr.f32.mxu0 0.0
    %4909 = vmatmul.mubr.f32.gmra.mxu0 %v4842
    %v4910 = vpop.f32.mrf.mxu0
    %v4911 = vadd.f32 %v78, %v4910
    %v4912 = vpop.f32.mrf.mxu0
    %4913 = vdwg.mxu0
    %v4914 = vxor.u32 %v4911, 2147483648
    %v4915 = vmul.f32 %v4914, 1.442695
    %v4916 = vpow.pop %v4915
    %v4917 = vadd.f32 %v4916, 1.0
    %v4918 = vrcp.pop %v4917
    %v4919 = vmul.f32 1.0, %v4918
    %v4920 = vtanh.pop %v4911
    %v4921 = vmul.f32 %v4919, %v4828
    %4923 = vrot.lane.b32.xlu0 %v4920, 64
    %v4924 = vpop.permute.xlu0 %4923
    %v4926 = vmul.f32 %v4919, %v4924
    %4928 = vrot.lane.b32.xlu0 %v4926, 32
    %v4929 = vpop.permute.xlu0 %4928
    %v4931 = vadd.f32 %v4921, %v4929
    %v4932 = vtanh.pop %v4931
    %4934 = vrot.lane.b32.xlu0 %v4932, 64
    %v4935 = vpop.permute.xlu0 %4934
    %v4937 = vmul.f32 %v4919, %v4935
    %v4938 = vld [vmem:[%s12] sm:$0xff]
    %v4939 = vld [vmem:[%s12 + $0x8] sm:$0xff]
    %v4940 = vld [vmem:[%s12 + $0x10] sm:$0xff]
    %v4941 = vld [vmem:[%s12 + $0x18] sm:$0xff]
    %4943 = vrot.lane.b32.xlu0 %v4937, 32
    %v4944 = vpop.permute.xlu0 %4943
    %v4945 = vsel %vm109, %v4944, 0
    %4947 = vmatprep.subr.mxu0 0.0
    %4948 = vmatpush1.msra.mxu0 0.0
    %4949 = vmatprep.subr.mxu0 0.0
    %4950 = vmatpush1.msra.mxu0 0.0
    %4951 = vmatprep.subr.mxu0 0.0
    %4952 = vmatpush1.msra.mxu0 0.0
    %4953 = vmatprep.subr.mxu0 0.0
    %4954 = vmatpush1.msra.mxu0 0.0
    %4955 = vmatprep.subr.mxu0 0.0
    %4956 = vmatpush1.msra.mxu0 0.0
    %4957 = vmatprep.subr.mxu0 0.0
    %4958 = vmatpush1.msra.mxu0 0.0
    %4959 = vmatprep.subr.mxu0 0.0
    %4960 = vmatpush1.msra.mxu0 0.0
    %4961 = vmatprep.subr.mxu0 0.0
    %4962 = vmatpush1.msra.mxu0 0.0
    %4963 = vmatprep.subr.mxu0 0.0
    %4964 = vmatpush1.msra.mxu0 0.0
    %4965 = vmatprep.subr.mxu0 0.0
    %4966 = vmatpush1.msra.mxu0 0.0
    %4967 = vmatprep.subr.mxu0 0.0
    %4968 = vmatpush1.msra.mxu0 0.0
    %4969 = vmatprep.subr.mxu0 0.0
    %4970 = vmatpush1.msra.mxu0 0.0
    %4971 = vmatprep.subr.mxu0 0.0
    %4972 = vmatpush1.msra.mxu0 %v4941
    %4973 = vmatprep.subr.mxu0 0.0
    %4974 = vmatpush1.msra.mxu0 %v4940
    %4975 = vmatprep.subr.mxu0 0.0
    %4976 = vmatpush1.msra.mxu0 %v4939
    %4977 = vmatprep.subr.mxu0 0.0
    %4978 = vmatpush1.msra.mxu0 %v4938
    %4979 = vmatprep.subr.mxu0 0.0
    %4980 = vmatpush2.msra.mxu0 0.0
    %4981 = vmatprep.subr.mxu0 0.0
    %4982 = vmatpush2.msra.mxu0 0.0
    %4983 = vmatprep.subr.mxu0 0.0
    %4984 = vmatpush2.msra.mxu0 0.0
    %4985 = vmatprep.subr.mxu0 0.0
    %4986 = vmatpush2.msra.mxu0 0.0
    %4987 = vmatprep.subr.mxu0 0.0
    %4988 = vmatpush2.msra.mxu0 0.0
    %4989 = vmatprep.subr.mxu0 0.0
    %4990 = vmatpush2.msra.mxu0 0.0
    %4991 = vmatprep.subr.mxu0 0.0
    %4992 = vmatpush2.msra.mxu0 0.0
    %4993 = vmatprep.subr.mxu0 0.0
    %4994 = vmatpush2.msra.mxu0 0.0
    %4995 = vmatprep.subr.mxu0 0.0
    %4996 = vmatpush2.msra.mxu0 0.0
    %4997 = vmatprep.subr.mxu0 0.0
    %4998 = vmatpush2.msra.mxu0 0.0
    %4999 = vmatprep.subr.mxu0 0.0
    %5000 = vmatpush2.msra.mxu0 0.0
    %5001 = vmatprep.subr.mxu0 0.0
    %5002 = vmatpush2.msra.mxu0 0.0
    %5003 = vmatprep.subr.mxu0 0.0
    %5004 = vmatpush2.msra.mxu0 0.0
    %5005 = vmatprep.subr.mxu0 0.0
    %5006 = vmatpush2.msra.mxu0 0.0
    %5007 = vmatprep.subr.mxu0 0.0
    %5008 = vmatpush2.msra.mxu0 0.0
    %5009 = vmatprep.subr.mxu0 0.0
    %5010 = vmatpush2.msra.mxu0 0.0
    %5011 = vmatprep.mubr.f32.mxu0 0.0
    %5012 = vmatmul.mubr.f32.gmra.mxu0 %v4945
    %v5013 = vpop.f32.mrf.mxu0
    %v5014 = vadd.f32 %v85, %v5013
    %v5015 = vpop.f32.mrf.mxu0
    %5016 = vdwg.mxu0
    %v5017 = vxor.u32 %v5014, 2147483648
    %v5018 = vmul.f32 %v5017, 1.442695
    %v5019 = vpow.pop %v5018
    %v5020 = vadd.f32 %v5019, 1.0
    %v5021 = vrcp.pop %v5020
    %v5022 = vmul.f32 1.0, %v5021
    %v5023 = vtanh.pop %v5014
    %v5024 = vmul.f32 %v5022, %v4931
    %5026 = vrot.lane.b32.xlu0 %v5023, 64
    %v5027 = vpop.permute.xlu0 %5026
    %v5029 = vmul.f32 %v5022, %v5027
    %5031 = vrot.lane.b32.xlu0 %v5029, 32
    %v5032 = vpop.permute.xlu0 %5031
    %v5034 = vadd.f32 %v5024, %v5032
    %v5035 = vtanh.pop %v5034
    %5037 = vrot.lane.b32.xlu0 %v5035, 64
    %v5038 = vpop.permute.xlu0 %5037
    %v5040 = vmul.f32 %v5022, %v5038
    %5042 = vrot.lane.b32.xlu0 %v5040, 32
    %v5043 = vpop.permute.xlu0 %5042
    %v5044 = vsel %vm109, %v5043, 0
    %5046 = vmatprep.subr.mxu0 0.0
    %5047 = vmatpush1.msra.mxu0 0.0
    %5048 = vmatprep.subr.mxu0 0.0
    %5049 = vmatpush1.msra.mxu0 0.0
    %5050 = vmatprep.subr.mxu0 0.0
    %5051 = vmatpush1.msra.mxu0 0.0
    %5052 = vmatprep.subr.mxu0 0.0
    %5053 = vmatpush1.msra.mxu0 0.0
    %5054 = vmatprep.subr.mxu0 0.0
    %5055 = vmatpush1.msra.mxu0 0.0
    %5056 = vmatprep.subr.mxu0 0.0
    %5057 = vmatpush1.msra.mxu0 0.0
    %5058 = vmatprep.subr.mxu0 0.0
    %5059 = vmatpush1.msra.mxu0 0.0
    %5060 = vmatprep.subr.mxu0 0.0
    %5061 = vmatpush1.msra.mxu0 0.0
    %5062 = vmatprep.subr.mxu0 0.0
    %5063 = vmatpush1.msra.mxu0 0.0
    %5064 = vmatprep.subr.mxu0 0.0
    %5065 = vmatpush1.msra.mxu0 0.0
    %5066 = vmatprep.subr.mxu0 0.0
    %5067 = vmatpush1.msra.mxu0 0.0
    %5068 = vmatprep.subr.mxu0 0.0
    %5069 = vmatpush1.msra.mxu0 0.0
    %5070 = vmatprep.subr.mxu0 0.0
    %5071 = vmatpush1.msra.mxu0 %v101
    %5072 = vmatprep.subr.mxu0 0.0
    %5073 = vmatpush1.msra.mxu0 %v100
    %5074 = vmatprep.subr.mxu0 0.0
    %5075 = vmatpush1.msra.mxu0 %v99
    %5076 = vmatprep.subr.mxu0 0.0
    %5077 = vmatpush1.msra.mxu0 %v98
    %5078 = vmatprep.subr.mxu0 0.0
    %5079 = vmatpush2.msra.mxu0 0.0
    %5080 = vmatprep.subr.mxu0 0.0
    %5081 = vmatpush2.msra.mxu0 0.0
    %5082 = vmatprep.subr.mxu0 0.0
    %5083 = vmatpush2.msra.mxu0 0.0
    %5084 = vmatprep.subr.mxu0 0.0
    %5085 = vmatpush2.msra.mxu0 0.0
    %5086 = vmatprep.subr.mxu0 0.0
    %5087 = vmatpush2.msra.mxu0 0.0
    %5088 = vmatprep.subr.mxu0 0.0
    %5089 = vmatpush2.msra.mxu0 0.0
    %5090 = vmatprep.subr.mxu0 0.0
    %5091 = vmatpush2.msra.mxu0 0.0
    %5092 = vmatprep.subr.mxu0 0.0
    %5093 = vmatpush2.msra.mxu0 0.0
    %5094 = vmatprep.subr.mxu0 0.0
    %5095 = vmatpush2.msra.mxu0 0.0
    %5096 = vmatprep.subr.mxu0 0.0
    %5097 = vmatpush2.msra.mxu0 0.0
    %5098 = vmatprep.subr.mxu0 0.0
    %5099 = vmatpush2.msra.mxu0 0.0
    %5100 = vmatprep.subr.mxu0 0.0
    %5101 = vmatpush2.msra.mxu0 0.0
    %5102 = vmatprep.subr.mxu0 0.0
    %5103 = vmatpush2.msra.mxu0 0.0
    %5104 = vmatprep.subr.mxu0 0.0
    %5105 = vmatpush2.msra.mxu0 0.0
    %5106 = vmatprep.subr.mxu0 0.0
    %5107 = vmatpush2.msra.mxu0 0.0
    %5108 = vmatprep.subr.mxu0 0.0
    %5109 = vmatpush2.msra.mxu0 0.0
    %5110 = vmatprep.mubr.f32.mxu0 0.0
    %5111 = vmatmul.mubr.f32.gmra.mxu0 %v5044
    %v5112 = vpop.f32.mrf.mxu0
    %v5113 = vadd.f32 %v92, %v5112
    %v5114 = vpop.f32.mrf.mxu0
    %5115 = vdwg.mxu0
    %v5116 = vmax.f32 %v5113, 0.0
    %v5119 = vunpack.c.l.s4 1966171168
    %v5120 = vunpack.c.0.s8 %v5119
    %v5121 = vlaneseq
    %v5122 = vshrl.u32 %v5121, 7
    %v5123 = vsub.s32 %v5120, %v5122
    %v5124 = vrot.slane %v5116, %v5123
    %v5125 = vcombine.high %v5124, %v5124
    %v5127 = vunpack.c.l.s4 1966171168
    %v5128 = vunpack.c.0.s8 %v5127
    %v5129 = vlaneseq
    %v5130 = vshrl.u32 %v5129, 7
    %v5131 = vsub.s32 %v5128, %v5130
    %v5132 = vrot.slane %v5124, %v5131
    %v5134 = vunpack.c.l.s4 1966171168
    %v5135 = vunpack.c.0.s8 %v5134
    %v5136 = vlaneseq
    %v5137 = vshrl.u32 %v5136, 7
    %v5138 = vsub.s32 %v5135, %v5137
    %v5139 = vrot.slane %v5125, %v5138
    %5142 = vst.msk [vmem:[#allocation2 + $0x6] sm:$0x1] %vm833, %v5132
    %5143 = vst.msk [vmem:[#allocation2 + $0xe] sm:$0x1] %vm833, %v5139
    %v5144 = vld [vmem:[%s4] sm:$0xff]
    %v5145 = vld [vmem:[%s4 + $0x8] sm:$0xff]
    %v5146 = vld [vmem:[%s4 + $0x10] sm:$0xff]
    %v5147 = vld [vmem:[%s4 + $0x18] sm:$0xff]
    %v5148 = vsel %vm109, %v5116, 0
    %5150 = vmatprep.subr.mxu0 0.0
    %5151 = vmatpush1.msra.mxu0 0.0
    %5152 = vmatprep.subr.mxu0 0.0
    %5153 = vmatpush1.msra.mxu0 0.0
    %5154 = vmatprep.subr.mxu0 0.0
    %5155 = vmatpush1.msra.mxu0 0.0
    %5156 = vmatprep.subr.mxu0 0.0
    %5157 = vmatpush1.msra.mxu0 0.0
    %5158 = vmatprep.subr.mxu0 0.0
    %5159 = vmatpush1.msra.mxu0 0.0
    %5160 = vmatprep.subr.mxu0 0.0
    %5161 = vmatpush1.msra.mxu0 0.0
    %5162 = vmatprep.subr.mxu0 0.0
    %5163 = vmatpush1.msra.mxu0 0.0
    %5164 = vmatprep.subr.mxu0 0.0
    %5165 = vmatpush1.msra.mxu0 0.0
    %5166 = vmatprep.subr.mxu0 0.0
    %5167 = vmatpush1.msra.mxu0 0.0
    %5168 = vmatprep.subr.mxu0 0.0
    %5169 = vmatpush1.msra.mxu0 0.0
    %5170 = vmatprep.subr.mxu0 0.0
    %5171 = vmatpush1.msra.mxu0 0.0
    %5172 = vmatprep.subr.mxu0 0.0
    %5173 = vmatpush1.msra.mxu0 0.0
    %5174 = vmatprep.subr.mxu0 0.0
    %5175 = vmatpush1.msra.mxu0 %v5147
    %5176 = vmatprep.subr.mxu0 0.0
    %5177 = vmatpush1.msra.mxu0 %v5146
    %5178 = vmatprep.subr.mxu0 0.0
    %5179 = vmatpush1.msra.mxu0 %v5145
    %5180 = vmatprep.subr.mxu0 0.0
    %5181 = vmatpush1.msra.mxu0 %v5144
    %5182 = vmatprep.subr.mxu0 0.0
    %5183 = vmatpush2.msra.mxu0 0.0
    %5184 = vmatprep.subr.mxu0 0.0
    %5185 = vmatpush2.msra.mxu0 0.0
    %5186 = vmatprep.subr.mxu0 0.0
    %5187 = vmatpush2.msra.mxu0 0.0
    %5188 = vmatprep.subr.mxu0 0.0
    %5189 = vmatpush2.msra.mxu0 0.0
    %5190 = vmatprep.subr.mxu0 0.0
    %5191 = vmatpush2.msra.mxu0 0.0
    %5192 = vmatprep.subr.mxu0 0.0
    %5193 = vmatpush2.msra.mxu0 0.0
    %5194 = vmatprep.subr.mxu0 0.0
    %5195 = vmatpush2.msra.mxu0 0.0
    %5196 = vmatprep.subr.mxu0 0.0
    %5197 = vmatpush2.msra.mxu0 0.0
    %5198 = vmatprep.subr.mxu0 0.0
    %5199 = vmatpush2.msra.mxu0 0.0
    %5200 = vmatprep.subr.mxu0 0.0
    %5201 = vmatpush2.msra.mxu0 0.0
    %5202 = vmatprep.subr.mxu0 0.0
    %5203 = vmatpush2.msra.mxu0 0.0
    %5204 = vmatprep.subr.mxu0 0.0
    %5205 = vmatpush2.msra.mxu0 0.0
    %5206 = vmatprep.subr.mxu0 0.0
    %5207 = vmatpush2.msra.mxu0 0.0
    %5208 = vmatprep.subr.mxu0 0.0
    %5209 = vmatpush2.msra.mxu0 0.0
    %5210 = vmatprep.subr.mxu0 0.0
    %5211 = vmatpush2.msra.mxu0 0.0
    %5212 = vmatprep.subr.mxu0 0.0
    %5213 = vmatpush2.msra.mxu0 0.0
    %5214 = vmatprep.mubr.f32.mxu0 0.0
    %5215 = vmatmul.mubr.f32.gmra.mxu0 %v5148
    %v5216 = vpop.f32.mrf.mxu0
    %v5217 = vadd.f32 %v64, %v5216
    %v5218 = vpop.f32.mrf.mxu0
    %5219 = vdwg.mxu0
    %v5220 = vld [vmem:[%s7] sm:$0xff]
    %v5221 = vld [vmem:[%s7 + $0x8] sm:$0xff]
    %v5222 = vld [vmem:[%s7 + $0x10] sm:$0xff]
    %v5223 = vld [vmem:[%s7 + $0x18] sm:$0xff]
    %v5224 = vld [vmem:[%s7 + $0x20] sm:$0xff]
    %v5225 = vld [vmem:[%s7 + $0x28] sm:$0xff]
    %v5226 = vld [vmem:[%s7 + $0x30] sm:$0xff]
    %v5227 = vld [vmem:[%s7 + $0x38] sm:$0xff]
    %5228 = vmatprep.subr.mxu0 0.0
    %5229 = vmatpush1.msra.mxu0 0.0
    %5230 = vmatprep.subr.mxu0 0.0
    %5231 = vmatpush1.msra.mxu0 0.0
    %5232 = vmatprep.subr.mxu0 0.0
    %5233 = vmatpush1.msra.mxu0 0.0
    %5234 = vmatprep.subr.mxu0 0.0
    %5235 = vmatpush1.msra.mxu0 0.0
    %5236 = vmatprep.subr.mxu0 0.0
    %5237 = vmatpush1.msra.mxu0 0.0
    %5238 = vmatprep.subr.mxu0 0.0
    %5239 = vmatpush1.msra.mxu0 0.0
    %5240 = vmatprep.subr.mxu0 0.0
    %5241 = vmatpush1.msra.mxu0 0.0
    %5242 = vmatprep.subr.mxu0 0.0
    %5243 = vmatpush1.msra.mxu0 0.0
    %5244 = vmatprep.subr.mxu0 0.0
    %5245 = vmatpush1.msra.mxu0 0.0
    %5246 = vmatprep.subr.mxu0 0.0
    %5247 = vmatpush1.msra.mxu0 0.0
    %5248 = vmatprep.subr.mxu0 0.0
    %5249 = vmatpush1.msra.mxu0 0.0
    %5250 = vmatprep.subr.mxu0 0.0
    %5251 = vmatpush1.msra.mxu0 0.0
    %5252 = vmatprep.subr.mxu0 %v5227
    %5253 = vmatpush1.msra.mxu0 %v5226
    %5254 = vmatprep.subr.mxu0 %v5225
    %5255 = vmatpush1.msra.mxu0 %v5224
    %5256 = vmatprep.subr.mxu0 %v5223
    %5257 = vmatpush1.msra.mxu0 %v5222
    %5258 = vmatprep.subr.mxu0 %v5221
    %5259 = vmatpush1.msra.mxu0 %v5220
    %5260 = vmatprep.subr.mxu0 0.0
    %5261 = vmatpush2.msra.mxu0 0.0
    %5262 = vmatprep.subr.mxu0 0.0
    %5263 = vmatpush2.msra.mxu0 0.0
    %5264 = vmatprep.subr.mxu0 0.0
    %5265 = vmatpush2.msra.mxu0 0.0
    %5266 = vmatprep.subr.mxu0 0.0
    %5267 = vmatpush2.msra.mxu0 0.0
    %5268 = vmatprep.subr.mxu0 0.0
    %5269 = vmatpush2.msra.mxu0 0.0
    %5270 = vmatprep.subr.mxu0 0.0
    %5271 = vmatpush2.msra.mxu0 0.0
    %5272 = vmatprep.subr.mxu0 0.0
    %5273 = vmatpush2.msra.mxu0 0.0
    %5274 = vmatprep.subr.mxu0 0.0
    %5275 = vmatpush2.msra.mxu0 0.0
    %5276 = vmatprep.subr.mxu0 0.0
    %5277 = vmatpush2.msra.mxu0 0.0
    %5278 = vmatprep.subr.mxu0 0.0
    %5279 = vmatpush2.msra.mxu0 0.0
    %5280 = vmatprep.subr.mxu0 0.0
    %5281 = vmatpush2.msra.mxu0 0.0
    %5282 = vmatprep.subr.mxu0 0.0
    %5283 = vmatpush2.msra.mxu0 0.0
    %5284 = vmatprep.subr.mxu0 0.0
    %5285 = vmatpush2.msra.mxu0 0.0
    %5286 = vmatprep.subr.mxu0 0.0
    %5287 = vmatpush2.msra.mxu0 0.0
    %5288 = vmatprep.subr.mxu0 0.0
    %5289 = vmatpush2.msra.mxu0 0.0
    %5290 = vmatprep.subr.mxu0 0.0
    %5291 = vmatpush2.msra.mxu0 0.0
    %5292 = vmatprep.mubr.f32.mxu0 0.0
    %5293 = vmatmul.mubr.f32.gmra.mxu0 %v5044
    %v5294 = vpop.f32.mrf.mxu0
    %v5295 = vadd.f32 0.0, %v5294
    %v5296 = vpop.f32.mrf.mxu0
    %v5297 = vadd.f32 0.0, %v5296
    %5298 = vdwg.mxu0
    %v5299 = vadd.f32 %v5217, %v5297
    %v5300 = vsel %vm266, %v5299, -inf
    %5301 = vmax.xlane.f32.xlu0 %v5300
    %v5302 = vpop.xlane.xlu0 %5301
    %v5303 = vsub.f32 %v5299, %v5302
    %v5304 = vmul.f32 %v5303, 1.442695
    %v5305 = vpow.pop %v5304
    %v5306 = vsel %vm266, %v5305, 0.0
    %5307 = vadd.xlane.f32.xlu0 %v5306
    %v5308 = vpop.xlane.xlu0 %5307
    %v5309 = vrcp.pop %v5308
    %v5310 = vmul.f32 %v5305, %v5309
    %v5313 = vunpack.c.l.s4 1966171168
    %v5314 = vunpack.c.0.s8 %v5313
    %v5315 = vlaneseq
    %v5316 = vshrl.u32 %v5315, 7
    %v5317 = vsub.s32 %v5314, %v5316
    %v5318 = vrot.slane %v5310, %v5317
    %v5319 = vcombine.high %v5318, %v5318
    %v5321 = vunpack.c.l.s4 1966171168
    %v5322 = vunpack.c.0.s8 %v5321
    %v5323 = vlaneseq
    %v5324 = vshrl.u32 %v5323, 7
    %v5325 = vsub.s32 %v5322, %v5324
    %v5326 = vrot.slane %v5318, %v5325
    %v5328 = vunpack.c.l.s4 1966171168
    %v5329 = vunpack.c.0.s8 %v5328
    %v5330 = vlaneseq
    %v5331 = vshrl.u32 %v5330, 7
    %v5332 = vsub.s32 %v5329, %v5331
    %v5333 = vrot.slane %v5319, %v5332
    %5336 = vst.msk [vmem:[#allocation4 + $0x7] sm:$0x1] %vm303, %v5326
    %5337 = vst.msk [vmem:[#allocation4 + $0xf] sm:$0x1] %vm303, %v5333
    %v5338 = vlaneseq
    %v5339 = vshrl.u32 %v5338, 7
    %v5340 = vsub.s32 0, %v5339
    %v5341 = vrot.slane %v5310, %v5340
    %5343 = vbcast.lane.b32.xlu0 %v5341, 256
    %v5344 = vpop.permute.xlu0 %5343
    %v5345 = vlaneseq
    %v5346 = vshrl.u32 %v5345, 7
    %v5347 = vsub.s32 1, %v5346
    %v5348 = vrot.slane %v5310, %v5347
    %5350 = vbcast.lane.b32.xlu0 %v5348, 256
    %v5351 = vpop.permute.xlu0 %5350
    %v5352 = vmul.f32 %v5344, %v57
    %v5353 = vmul.f32 %v5351, %v58
    %v5354 = vsel %vm109, %v5352, 0.0
    %v5355 = vrot.slane %v5354, 4
    %v5356 = vadd.f32 %v5354, %v5355
    %v5357 = vrot.slane %v5356, 2
    %v5358 = vadd.f32 %v5356, %v5357
    %v5359 = vrot.slane %v5358, 1
    %v5360 = vadd.f32 %v5358, %v5359
    %v5361 = vsel %vm109, %v5353, 0.0
    %v5362 = vrot.slane %v5361, 4
    %v5363 = vadd.f32 %v5361, %v5362
    %v5364 = vrot.slane %v5363, 2
    %v5365 = vadd.f32 %v5363, %v5364
    %v5366 = vrot.slane %v5365, 1
    %v5367 = vadd.f32 %v5365, %v5366
    %v5370 = vsel %vm338, %v5367, %v5360
    %v5371 = vsel %vm109, %v5370, 0
    %5373 = vmatprep.subr.mxu0 0.0
    %5374 = vmatpush1.msra.mxu0 0.0
    %5375 = vmatprep.subr.mxu0 0.0
    %5376 = vmatpush1.msra.mxu0 0.0
    %5377 = vmatprep.subr.mxu0 0.0
    %5378 = vmatpush1.msra.mxu0 0.0
    %5379 = vmatprep.subr.mxu0 0.0
    %5380 = vmatpush1.msra.mxu0 0.0
    %5381 = vmatprep.subr.mxu0 0.0
    %5382 = vmatpush1.msra.mxu0 0.0
    %5383 = vmatprep.subr.mxu0 0.0
    %5384 = vmatpush1.msra.mxu0 0.0
    %5385 = vmatprep.subr.mxu0 0.0
    %5386 = vmatpush1.msra.mxu0 0.0
    %5387 = vmatprep.subr.mxu0 0.0
    %5388 = vmatpush1.msra.mxu0 0.0
    %5389 = vmatprep.subr.mxu0 0.0
    %5390 = vmatpush1.msra.mxu0 0.0
    %5391 = vmatprep.subr.mxu0 0.0
    %5392 = vmatpush1.msra.mxu0 0.0
    %5393 = vmatprep.subr.mxu0 0.0
    %5394 = vmatpush1.msra.mxu0 0.0
    %5395 = vmatprep.subr.mxu0 0.0
    %5396 = vmatpush1.msra.mxu0 0.0
    %5397 = vmatprep.subr.mxu0 0.0
    %5398 = vmatpush1.msra.mxu0 %v97
    %5399 = vmatprep.subr.mxu0 0.0
    %5400 = vmatpush1.msra.mxu0 %v96
    %5401 = vmatprep.subr.mxu0 0.0
    %5402 = vmatpush1.msra.mxu0 %v95
    %5403 = vmatprep.subr.mxu0 0.0
    %5404 = vmatpush1.msra.mxu0 %v94
    %5405 = vmatprep.subr.mxu0 0.0
    %5406 = vmatpush2.msra.mxu0 0.0
    %5407 = vmatprep.subr.mxu0 0.0
    %5408 = vmatpush2.msra.mxu0 0.0
    %5409 = vmatprep.subr.mxu0 0.0
    %5410 = vmatpush2.msra.mxu0 0.0
    %5411 = vmatprep.subr.mxu0 0.0
    %5412 = vmatpush2.msra.mxu0 0.0
    %5413 = vmatprep.subr.mxu0 0.0
    %5414 = vmatpush2.msra.mxu0 0.0
    %5415 = vmatprep.subr.mxu0 0.0
    %5416 = vmatpush2.msra.mxu0 0.0
    %5417 = vmatprep.subr.mxu0 0.0
    %5418 = vmatpush2.msra.mxu0 0.0
    %5419 = vmatprep.subr.mxu0 0.0
    %5420 = vmatpush2.msra.mxu0 0.0
    %5421 = vmatprep.subr.mxu0 0.0
    %5422 = vmatpush2.msra.mxu0 0.0
    %5423 = vmatprep.subr.mxu0 0.0
    %5424 = vmatpush2.msra.mxu0 0.0
    %5425 = vmatprep.subr.mxu0 0.0
    %5426 = vmatpush2.msra.mxu0 0.0
    %5427 = vmatprep.subr.mxu0 0.0
    %5428 = vmatpush2.msra.mxu0 0.0
    %5429 = vmatprep.subr.mxu0 0.0
    %5430 = vmatpush2.msra.mxu0 0.0
    %5431 = vmatprep.subr.mxu0 0.0
    %5432 = vmatpush2.msra.mxu0 0.0
    %5433 = vmatprep.subr.mxu0 0.0
    %5434 = vmatpush2.msra.mxu0 0.0
    %5435 = vmatprep.subr.mxu0 0.0
    %5436 = vmatpush2.msra.mxu0 0.0
    %5437 = vmatprep.mubr.f32.mxu0 0.0
    %5438 = vmatmul.mubr.f32.gmra.mxu0 %v5371
    %v5439 = vpop.f32.mrf.mxu0
    %v5440 = vadd.f32 0.0, %v5439
    %v5441 = vpop.f32.mrf.mxu0
    %5442 = vdwg.mxu0
    %5444 = vrot.lane.b32.xlu0 %v5440, 8
    %v5445 = vpop.permute.xlu0 %5444
    %v5447 = vadd.f32 %v5217, %v5445
    %v5448 = vmax.f32 %v5447, 0.0
    %v5449 = vld [vmem:[%s8] sm:$0xff]
    %v5450 = vld [vmem:[%s8 + $0x8] sm:$0xff]
    %v5451 = vld [vmem:[%s8 + $0x10] sm:$0xff]
    %v5452 = vld [vmem:[%s8 + $0x18] sm:$0xff]
    %5454 = vrot.lane.b32.xlu0 %v5448, 120
    %v5455 = vpop.permute.xlu0 %5454
    %v5456 = vsel %vm109, %v5455, 0
    %5458 = vmatprep.subr.mxu0 0.0
    %5459 = vmatpush1.msra.mxu0 0.0
    %5460 = vmatprep.subr.mxu0 0.0
    %5461 = vmatpush1.msra.mxu0 0.0
    %5462 = vmatprep.subr.mxu0 0.0
    %5463 = vmatpush1.msra.mxu0 0.0
    %5464 = vmatprep.subr.mxu0 0.0
    %5465 = vmatpush1.msra.mxu0 0.0
    %5466 = vmatprep.subr.mxu0 0.0
    %5467 = vmatpush1.msra.mxu0 0.0
    %5468 = vmatprep.subr.mxu0 0.0
    %5469 = vmatpush1.msra.mxu0 0.0
    %5470 = vmatprep.subr.mxu0 0.0
    %5471 = vmatpush1.msra.mxu0 0.0
    %5472 = vmatprep.subr.mxu0 0.0
    %5473 = vmatpush1.msra.mxu0 0.0
    %5474 = vmatprep.subr.mxu0 0.0
    %5475 = vmatpush1.msra.mxu0 0.0
    %5476 = vmatprep.subr.mxu0 0.0
    %5477 = vmatpush1.msra.mxu0 0.0
    %5478 = vmatprep.subr.mxu0 0.0
    %5479 = vmatpush1.msra.mxu0 0.0
    %5480 = vmatprep.subr.mxu0 0.0
    %5481 = vmatpush1.msra.mxu0 0.0
    %5482 = vmatprep.subr.mxu0 0.0
    %5483 = vmatpush1.msra.mxu0 %v5452
    %5484 = vmatprep.subr.mxu0 0.0
    %5485 = vmatpush1.msra.mxu0 %v5451
    %5486 = vmatprep.subr.mxu0 0.0
    %5487 = vmatpush1.msra.mxu0 %v5450
    %5488 = vmatprep.subr.mxu0 0.0
    %5489 = vmatpush1.msra.mxu0 %v5449
    %5490 = vmatprep.subr.mxu0 0.0
    %5491 = vmatpush2.msra.mxu0 0.0
    %5492 = vmatprep.subr.mxu0 0.0
    %5493 = vmatpush2.msra.mxu0 0.0
    %5494 = vmatprep.subr.mxu0 0.0
    %5495 = vmatpush2.msra.mxu0 0.0
    %5496 = vmatprep.subr.mxu0 0.0
    %5497 = vmatpush2.msra.mxu0 0.0
    %5498 = vmatprep.subr.mxu0 0.0
    %5499 = vmatpush2.msra.mxu0 0.0
    %5500 = vmatprep.subr.mxu0 0.0
    %5501 = vmatpush2.msra.mxu0 0.0
    %5502 = vmatprep.subr.mxu0 0.0
    %5503 = vmatpush2.msra.mxu0 0.0
    %5504 = vmatprep.subr.mxu0 0.0
    %5505 = vmatpush2.msra.mxu0 0.0
    %5506 = vmatprep.subr.mxu0 0.0
    %5507 = vmatpush2.msra.mxu0 0.0
    %5508 = vmatprep.subr.mxu0 0.0
    %5509 = vmatpush2.msra.mxu0 0.0
    %5510 = vmatprep.subr.mxu0 0.0
    %5511 = vmatpush2.msra.mxu0 0.0
    %5512 = vmatprep.subr.mxu0 0.0
    %5513 = vmatpush2.msra.mxu0 0.0
    %5514 = vmatprep.subr.mxu0 0.0
    %5515 = vmatpush2.msra.mxu0 0.0
    %5516 = vmatprep.subr.mxu0 0.0
    %5517 = vmatpush2.msra.mxu0 0.0
    %5518 = vmatprep.subr.mxu0 0.0
    %5519 = vmatpush2.msra.mxu0 0.0
    %5520 = vmatprep.subr.mxu0 0.0
    %5521 = vmatpush2.msra.mxu0 0.0
    %5522 = vmatprep.mubr.f32.mxu0 0.0
    %5523 = vmatmul.mubr.f32.gmra.mxu0 %v5456
    %v5524 = vpop.f32.mrf.mxu0
    %v5525 = vadd.f32 %v5295, %v5524
    %v5526 = vpop.f32.mrf.mxu0
    %5527 = vdwg.mxu0
    %v5528 = vadd.f32 %v5525, %v71
    %v5529 = vxor.u32 %v5528, 2147483648
    %v5530 = vmul.f32 %v5529, 1.442695
    %v5531 = vpow.pop %v5530
    %v5532 = vadd.f32 %v5531, 1.0
    %v5533 = vrcp.pop %v5532
    %v5534 = vmul.f32 1.0, %v5533
    %v5535 = vtanh.pop %v5528
    %v5536 = vmul.f32 %v5534, %v5034
    %5538 = vrot.lane.b32.xlu0 %v5535, 64
    %v5539 = vpop.permute.xlu0 %5538
    %v5541 = vmul.f32 %v5534, %v5539
    %5543 = vrot.lane.b32.xlu0 %v5541, 32
    %v5544 = vpop.permute.xlu0 %5543
    %v5546 = vadd.f32 %v5536, %v5544
    %v5547 = vtanh.pop %v5546
    %5549 = vrot.lane.b32.xlu0 %v5547, 64
    %v5550 = vpop.permute.xlu0 %5549
    %v5552 = vmul.f32 %v5534, %v5550
    %v5553 = vld [vmem:[%s10] sm:$0xff]
    %v5554 = vld [vmem:[%s10 + $0x8] sm:$0xff]
    %v5555 = vld [vmem:[%s10 + $0x10] sm:$0xff]
    %v5556 = vld [vmem:[%s10 + $0x18] sm:$0xff]
    %5558 = vrot.lane.b32.xlu0 %v5552, 32
    %v5559 = vpop.permute.xlu0 %5558
    %v5560 = vsel %vm109, %v5559, 0
    %5562 = vmatprep.subr.mxu0 0.0
    %5563 = vmatpush1.msra.mxu0 0.0
    %5564 = vmatprep.subr.mxu0 0.0
    %5565 = vmatpush1.msra.mxu0 0.0
    %5566 = vmatprep.subr.mxu0 0.0
    %5567 = vmatpush1.msra.mxu0 0.0
    %5568 = vmatprep.subr.mxu0 0.0
    %5569 = vmatpush1.msra.mxu0 0.0
    %5570 = vmatprep.subr.mxu0 0.0
    %5571 = vmatpush1.msra.mxu0 0.0
    %5572 = vmatprep.subr.mxu0 0.0
    %5573 = vmatpush1.msra.mxu0 0.0
    %5574 = vmatprep.subr.mxu0 0.0
    %5575 = vmatpush1.msra.mxu0 0.0
    %5576 = vmatprep.subr.mxu0 0.0
    %5577 = vmatpush1.msra.mxu0 0.0
    %5578 = vmatprep.subr.mxu0 0.0
    %5579 = vmatpush1.msra.mxu0 0.0
    %5580 = vmatprep.subr.mxu0 0.0
    %5581 = vmatpush1.msra.mxu0 0.0
    %5582 = vmatprep.subr.mxu0 0.0
    %5583 = vmatpush1.msra.mxu0 0.0
    %5584 = vmatprep.subr.mxu0 0.0
    %5585 = vmatpush1.msra.mxu0 0.0
    %5586 = vmatprep.subr.mxu0 0.0
    %5587 = vmatpush1.msra.mxu0 %v5556
    %5588 = vmatprep.subr.mxu0 0.0
    %5589 = vmatpush1.msra.mxu0 %v5555
    %5590 = vmatprep.subr.mxu0 0.0
    %5591 = vmatpush1.msra.mxu0 %v5554
    %5592 = vmatprep.subr.mxu0 0.0
    %5593 = vmatpush1.msra.mxu0 %v5553
    %5594 = vmatprep.subr.mxu0 0.0
    %5595 = vmatpush2.msra.mxu0 0.0
    %5596 = vmatprep.subr.mxu0 0.0
    %5597 = vmatpush2.msra.mxu0 0.0
    %5598 = vmatprep.subr.mxu0 0.0
    %5599 = vmatpush2.msra.mxu0 0.0
    %5600 = vmatprep.subr.mxu0 0.0
    %5601 = vmatpush2.msra.mxu0 0.0
    %5602 = vmatprep.subr.mxu0 0.0
    %5603 = vmatpush2.msra.mxu0 0.0
    %5604 = vmatprep.subr.mxu0 0.0
    %5605 = vmatpush2.msra.mxu0 0.0
    %5606 = vmatprep.subr.mxu0 0.0
    %5607 = vmatpush2.msra.mxu0 0.0
    %5608 = vmatprep.subr.mxu0 0.0
    %5609 = vmatpush2.msra.mxu0 0.0
    %5610 = vmatprep.subr.mxu0 0.0
    %5611 = vmatpush2.msra.mxu0 0.0
    %5612 = vmatprep.subr.mxu0 0.0
    %5613 = vmatpush2.msra.mxu0 0.0
    %5614 = vmatprep.subr.mxu0 0.0
    %5615 = vmatpush2.msra.mxu0 0.0
    %5616 = vmatprep.subr.mxu0 0.0
    %5617 = vmatpush2.msra.mxu0 0.0
    %5618 = vmatprep.subr.mxu0 0.0
    %5619 = vmatpush2.msra.mxu0 0.0
    %5620 = vmatprep.subr.mxu0 0.0
    %5621 = vmatpush2.msra.mxu0 0.0
    %5622 = vmatprep.subr.mxu0 0.0
    %5623 = vmatpush2.msra.mxu0 0.0
    %5624 = vmatprep.subr.mxu0 0.0
    %5625 = vmatpush2.msra.mxu0 0.0
    %5626 = vmatprep.mubr.f32.mxu0 0.0
    %5627 = vmatmul.mubr.f32.gmra.mxu0 %v5560
    %v5628 = vpop.f32.mrf.mxu0
    %v5629 = vadd.f32 %v78, %v5628
    %v5630 = vpop.f32.mrf.mxu0
    %5631 = vdwg.mxu0
    %v5632 = vxor.u32 %v5629, 2147483648
    %v5633 = vmul.f32 %v5632, 1.442695
    %v5634 = vpow.pop %v5633
    %v5635 = vadd.f32 %v5634, 1.0
    %v5636 = vrcp.pop %v5635
    %v5637 = vmul.f32 1.0, %v5636
    %v5638 = vtanh.pop %v5629
    %v5639 = vmul.f32 %v5637, %v5546
    %5641 = vrot.lane.b32.xlu0 %v5638, 64
    %v5642 = vpop.permute.xlu0 %5641
    %v5644 = vmul.f32 %v5637, %v5642
    %5646 = vrot.lane.b32.xlu0 %v5644, 32
    %v5647 = vpop.permute.xlu0 %5646
    %v5649 = vadd.f32 %v5639, %v5647
    %v5650 = vtanh.pop %v5649
    %5652 = vrot.lane.b32.xlu0 %v5650, 64
    %v5653 = vpop.permute.xlu0 %5652
    %v5655 = vmul.f32 %v5637, %v5653
    %v5656 = vld [vmem:[%s12] sm:$0xff]
    %v5657 = vld [vmem:[%s12 + $0x8] sm:$0xff]
    %v5658 = vld [vmem:[%s12 + $0x10] sm:$0xff]
    %v5659 = vld [vmem:[%s12 + $0x18] sm:$0xff]
    %5661 = vrot.lane.b32.xlu0 %v5655, 32
    %v5662 = vpop.permute.xlu0 %5661
    %v5663 = vsel %vm109, %v5662, 0
    %5665 = vmatprep.subr.mxu0 0.0
    %5666 = vmatpush1.msra.mxu0 0.0
    %5667 = vmatprep.subr.mxu0 0.0
    %5668 = vmatpush1.msra.mxu0 0.0
    %5669 = vmatprep.subr.mxu0 0.0
    %5670 = vmatpush1.msra.mxu0 0.0
    %5671 = vmatprep.subr.mxu0 0.0
    %5672 = vmatpush1.msra.mxu0 0.0
    %5673 = vmatprep.subr.mxu0 0.0
    %5674 = vmatpush1.msra.mxu0 0.0
    %5675 = vmatprep.subr.mxu0 0.0
    %5676 = vmatpush1.msra.mxu0 0.0
    %5677 = vmatprep.subr.mxu0 0.0
    %5678 = vmatpush1.msra.mxu0 0.0
    %5679 = vmatprep.subr.mxu0 0.0
    %5680 = vmatpush1.msra.mxu0 0.0
    %5681 = vmatprep.subr.mxu0 0.0
    %5682 = vmatpush1.msra.mxu0 0.0
    %5683 = vmatprep.subr.mxu0 0.0
    %5684 = vmatpush1.msra.mxu0 0.0
    %5685 = vmatprep.subr.mxu0 0.0
    %5686 = vmatpush1.msra.mxu0 0.0
    %5687 = vmatprep.subr.mxu0 0.0
    %5688 = vmatpush1.msra.mxu0 0.0
    %5689 = vmatprep.subr.mxu0 0.0
    %5690 = vmatpush1.msra.mxu0 %v5659
    %5691 = vmatprep.subr.mxu0 0.0
    %5692 = vmatpush1.msra.mxu0 %v5658
    %5693 = vmatprep.subr.mxu0 0.0
    %5694 = vmatpush1.msra.mxu0 %v5657
    %5695 = vmatprep.subr.mxu0 0.0
    %5696 = vmatpush1.msra.mxu0 %v5656
    %5697 = vmatprep.subr.mxu0 0.0
    %5698 = vmatpush2.msra.mxu0 0.0
    %5699 = vmatprep.subr.mxu0 0.0
    %5700 = vmatpush2.msra.mxu0 0.0
    %5701 = vmatprep.subr.mxu0 0.0
    %5702 = vmatpush2.msra.mxu0 0.0
    %5703 = vmatprep.subr.mxu0 0.0
    %5704 = vmatpush2.msra.mxu0 0.0
    %5705 = vmatprep.subr.mxu0 0.0
    %5706 = vmatpush2.msra.mxu0 0.0
    %5707 = vmatprep.subr.mxu0 0.0
    %5708 = vmatpush2.msra.mxu0 0.0
    %5709 = vmatprep.subr.mxu0 0.0
    %5710 = vmatpush2.msra.mxu0 0.0
    %5711 = vmatprep.subr.mxu0 0.0
    %5712 = vmatpush2.msra.mxu0 0.0
    %5713 = vmatprep.subr.mxu0 0.0
    %5714 = vmatpush2.msra.mxu0 0.0
    %5715 = vmatprep.subr.mxu0 0.0
    %5716 = vmatpush2.msra.mxu0 0.0
    %5717 = vmatprep.subr.mxu0 0.0
    %5718 = vmatpush2.msra.mxu0 0.0
    %5719 = vmatprep.subr.mxu0 0.0
    %5720 = vmatpush2.msra.mxu0 0.0
    %5721 = vmatprep.subr.mxu0 0.0
    %5722 = vmatpush2.msra.mxu0 0.0
    %5723 = vmatprep.subr.mxu0 0.0
    %5724 = vmatpush2.msra.mxu0 0.0
    %5725 = vmatprep.subr.mxu0 0.0
    %5726 = vmatpush2.msra.mxu0 0.0
    %5727 = vmatprep.subr.mxu0 0.0
    %5728 = vmatpush2.msra.mxu0 0.0
    %5729 = vmatprep.mubr.f32.mxu0 0.0
    %5730 = vmatmul.mubr.f32.gmra.mxu0 %v5663
    %v5731 = vpop.f32.mrf.mxu0
    %v5732 = vadd.f32 %v85, %v5731
    %v5733 = vpop.f32.mrf.mxu0
    %5734 = vdwg.mxu0
    %v5735 = vxor.u32 %v5732, 2147483648
    %v5736 = vmul.f32 %v5735, 1.442695
    %v5737 = vpow.pop %v5736
    %v5738 = vadd.f32 %v5737, 1.0
    %v5739 = vrcp.pop %v5738
    %v5740 = vmul.f32 1.0, %v5739
    %v5741 = vtanh.pop %v5732
    %v5742 = vmul.f32 %v5740, %v5649
    %5744 = vrot.lane.b32.xlu0 %v5741, 64
    %v5745 = vpop.permute.xlu0 %5744
    %v5747 = vmul.f32 %v5740, %v5745
    %5749 = vrot.lane.b32.xlu0 %v5747, 32
    %v5750 = vpop.permute.xlu0 %5749
    %v5752 = vadd.f32 %v5742, %v5750
    %v5753 = vtanh.pop %v5752
    %5755 = vrot.lane.b32.xlu0 %v5753, 64
    %v5756 = vpop.permute.xlu0 %5755
    %v5758 = vmul.f32 %v5740, %v5756
    %5760 = vrot.lane.b32.xlu0 %v5758, 32
    %v5761 = vpop.permute.xlu0 %5760
    %v5762 = vsel %vm109, %v5761, 0
    %5764 = vmatprep.subr.mxu0 0.0
    %5765 = vmatpush1.msra.mxu0 0.0
    %5766 = vmatprep.subr.mxu0 0.0
    %5767 = vmatpush1.msra.mxu0 0.0
    %5768 = vmatprep.subr.mxu0 0.0
    %5769 = vmatpush1.msra.mxu0 0.0
    %5770 = vmatprep.subr.mxu0 0.0
    %5771 = vmatpush1.msra.mxu0 0.0
    %5772 = vmatprep.subr.mxu0 0.0
    %5773 = vmatpush1.msra.mxu0 0.0
    %5774 = vmatprep.subr.mxu0 0.0
    %5775 = vmatpush1.msra.mxu0 0.0
    %5776 = vmatprep.subr.mxu0 0.0
    %5777 = vmatpush1.msra.mxu0 0.0
    %5778 = vmatprep.subr.mxu0 0.0
    %5779 = vmatpush1.msra.mxu0 0.0
    %5780 = vmatprep.subr.mxu0 0.0
    %5781 = vmatpush1.msra.mxu0 0.0
    %5782 = vmatprep.subr.mxu0 0.0
    %5783 = vmatpush1.msra.mxu0 0.0
    %5784 = vmatprep.subr.mxu0 0.0
    %5785 = vmatpush1.msra.mxu0 0.0
    %5786 = vmatprep.subr.mxu0 0.0
    %5787 = vmatpush1.msra.mxu0 0.0
    %5788 = vmatprep.subr.mxu0 0.0
    %5789 = vmatpush1.msra.mxu0 %v101
    %5790 = vmatprep.subr.mxu0 0.0
    %5791 = vmatpush1.msra.mxu0 %v100
    %5792 = vmatprep.subr.mxu0 0.0
    %5793 = vmatpush1.msra.mxu0 %v99
    %5794 = vmatprep.subr.mxu0 0.0
    %5795 = vmatpush1.msra.mxu0 %v98
    %5796 = vmatprep.subr.mxu0 0.0
    %5797 = vmatpush2.msra.mxu0 0.0
    %5798 = vmatprep.subr.mxu0 0.0
    %5799 = vmatpush2.msra.mxu0 0.0
    %5800 = vmatprep.subr.mxu0 0.0
    %5801 = vmatpush2.msra.mxu0 0.0
    %5802 = vmatprep.subr.mxu0 0.0
    %5803 = vmatpush2.msra.mxu0 0.0
    %5804 = vmatprep.subr.mxu0 0.0
    %5805 = vmatpush2.msra.mxu0 0.0
    %5806 = vmatprep.subr.mxu0 0.0
    %5807 = vmatpush2.msra.mxu0 0.0
    %5808 = vmatprep.subr.mxu0 0.0
    %5809 = vmatpush2.msra.mxu0 0.0
    %5810 = vmatprep.subr.mxu0 0.0
    %5811 = vmatpush2.msra.mxu0 0.0
    %5812 = vmatprep.subr.mxu0 0.0
    %5813 = vmatpush2.msra.mxu0 0.0
    %5814 = vmatprep.subr.mxu0 0.0
    %5815 = vmatpush2.msra.mxu0 0.0
    %5816 = vmatprep.subr.mxu0 0.0
    %5817 = vmatpush2.msra.mxu0 0.0
    %5818 = vmatprep.subr.mxu0 0.0
    %5819 = vmatpush2.msra.mxu0 0.0
    %5820 = vmatprep.subr.mxu0 0.0
    %5821 = vmatpush2.msra.mxu0 0.0
    %5822 = vmatprep.subr.mxu0 0.0
    %5823 = vmatpush2.msra.mxu0 0.0
    %5824 = vmatprep.subr.mxu0 0.0
    %5825 = vmatpush2.msra.mxu0 0.0
    %5826 = vmatprep.subr.mxu0 0.0
    %5827 = vmatpush2.msra.mxu0 0.0
    %5828 = vmatprep.mubr.f32.mxu0 0.0
    %5829 = vmatmul.mubr.f32.gmra.mxu0 %v5762
    %v5830 = vpop.f32.mrf.mxu0
    %v5831 = vadd.f32 %v92, %v5830
    %v5832 = vpop.f32.mrf.mxu0
    %5833 = vdwg.mxu0
    %v5834 = vmax.f32 %v5831, 0.0
    %v5837 = vunpack.c.l.s4 1966171168
    %v5838 = vunpack.c.0.s8 %v5837
    %v5839 = vlaneseq
    %v5840 = vshrl.u32 %v5839, 7
    %v5841 = vsub.s32 %v5838, %v5840
    %v5842 = vrot.slane %v5834, %v5841
    %v5843 = vcombine.high %v5842, %v5842
    %v5845 = vunpack.c.l.s4 1966171168
    %v5846 = vunpack.c.0.s8 %v5845
    %v5847 = vlaneseq
    %v5848 = vshrl.u32 %v5847, 7
    %v5849 = vsub.s32 %v5846, %v5848
    %v5850 = vrot.slane %v5842, %v5849
    %v5852 = vunpack.c.l.s4 1966171168
    %v5853 = vunpack.c.0.s8 %v5852
    %v5854 = vlaneseq
    %v5855 = vshrl.u32 %v5854, 7
    %v5856 = vsub.s32 %v5853, %v5855
    %v5857 = vrot.slane %v5843, %v5856
    %5860 = vst.msk [vmem:[#allocation2 + $0x7] sm:$0x1] %vm833, %v5850
    %5861 = vst.msk [vmem:[#allocation2 + $0xf] sm:$0x1] %vm833, %v5857
    // Predicated region
    $region66: #{attn_decoder2_forward.1} parent=1 // pred_check
      _
    $region67: #{attn_decoder2_forward.1} parent=1 // pred_check_branch
      %5863 = sbr.rel (0) target = $region69
    $region68: #{attn_decoder2_forward.1} parent=1 // pred_region
      %s5865 = ssub.s32 256, 256
      %5866 = vsyncadd [#allocation3], %s5865
      %s5867 = sshll.u32 [#allocation2], 4
      %s5868 = int_to_ptr.vmem [resolvable:$true] %s5867
      %5873 = dma.vmem_to_hbm [thread:$0]  %s5868, 256, %s16, [#allocation3], 128, 128, 8
    $region69: #{attn_decoder2_forward.1} parent=1 // pred_fallthru
      _
    // Predicated region
    $region70: #{attn_decoder2_forward.1} parent=1 // pred_check
      _
    $region71: #{attn_decoder2_forward.1} parent=1 // pred_check_branch
      %5875 = sbr.rel (0) target = $region73
    $region72: #{attn_decoder2_forward.1} parent=1 // pred_region
      %s5877 = ssub.s32 256, 256
      %5878 = vsyncadd [#allocation5], %s5877
      %s5879 = sshll.u32 [#allocation4], 4
      %s5880 = int_to_ptr.vmem [resolvable:$true] %s5879
      %5885 = dma.vmem_to_hbm [thread:$0]  %s5880, 256, %s17, [#allocation5], 128, 128, 8
    $region73: #{attn_decoder2_forward.1} parent=1 // pred_fallthru
      _
    // Predicated region
    $region74: #{attn_decoder2_forward.1} parent=1 // pred_check
      _
    $region75: #{attn_decoder2_forward.1} parent=1 // pred_check_branch
      %5887 = sbr.rel (0) target = $region77
    $region76: #{attn_decoder2_forward.1} parent=1 // pred_region
      %5888 = dma.done [#allocation3], 256
    $region77: #{attn_decoder2_forward.1} parent=1 // pred_fallthru
      _
    // Predicated region
    $region78: #{attn_decoder2_forward.1} parent=1 // pred_check
      _
    $region79: #{attn_decoder2_forward.1} parent=1 // pred_check_branch
      %5890 = sbr.rel (0) target = $region81
    $region80: #{attn_decoder2_forward.1} parent=1 // pred_region
      %5891 = dma.done [#allocation5], 256
    $region81: #{attn_decoder2_forward.1} parent=1 // pred_fallthru
      _
    %5892 = vsyncpa [#allocation3], 1
    %5893 = vsyncpa [#allocation5], 1

</llo_original>
